<compile_context>
chip_gen: v7x
topology: tpu7x:2x2x1
jax: 0.10.0
libtpu: 0.0.40
codegen_flags: <defaults>
</compile_context>

<pallas_src>
import jax
import jax.numpy as jnp
from jax.experimental import pallas as pl
from jax.experimental.pallas import tpu as pltpu

EPS = 1e-5  # torch.nn.LayerNorm default eps


# ---------------------------------------------------------------------------
# In-kernel helpers
# ---------------------------------------------------------------------------
def _ln(x, gamma, beta):
    """LayerNorm over the last axis (biased variance), torch semantics.

    Single-pass moments: mean and mean-of-squares are independent reductions
    (can overlap on the XLU) instead of a serially dependent pair.
    """
    mu = jnp.mean(x, axis=-1, keepdims=True)
    ms = jnp.mean(x * x, axis=-1, keepdims=True)
    var = jnp.maximum(ms - mu * mu, 0.0)
    return (x - mu) * jax.lax.rsqrt(var + EPS) * gamma + beta


def _mmb(a, b):
    """MXU matmul: bf16 operands (single-pass), f32 accumulation."""
    return jnp.dot(a.astype(jnp.bfloat16), b.astype(jnp.bfloat16),
                   preferred_element_type=jnp.float32)


def _embed(x, p):
    """cons/var embedding: LayerNorm -> Linear -> ReLU -> Linear -> ReLU.

    `p` is a dict of VMEM Refs; weights loaded at point of use.
    """
    h = _ln(x, p["g"][...], p["b"][...])
    h = jnp.maximum(_mmb(h, p["w1"][...]) + p["b1"][...], 0.0)
    h = jnp.maximum(_mmb(h, p["w2"][...]) + p["b2"][...], 0.0)
    return h


def _conv(left, right, oh_all, ohT_dst, right_is_cons, p):
    """One BipartiteGraphConvolution (PyG MessagePassing('add')) step.

    oh_all  : (E, Nc+Nv) combined one-hot gather [cons cols | var cols]
    ohT_dst : (N_right, E) one-hot scatter-add of messages onto target nodes
    right_is_cons : static bool, which block of oh_all corresponds to `right`
    `p` is a dict of VMEM Refs.
    """
    # Reassociated gather∘linear -> linear∘gather, then the two gathers fused
    # into one K=(Nc+Nv) matmul against the combined one-hot.
    rw = _mmb(right, p["wl"][...])          # feature_module_left applied to dst
    lw = _mmb(left, p["wr"][...])           # feature_module_right applied to src
    stacked = jnp.concatenate([rw, lw] if right_is_cons else [lw, rw], axis=0)
    # (edge term is a constant row; folded into p["bl"] on the host)
    pre = _mmb(oh_all, stacked) + p["bl"][...]            # (E, D)

    # feature_module_final: LayerNorm -> ReLU -> Linear
    msg = jnp.maximum(_ln(pre, p["gf"][...], p["bf"][...]), 0.0)
    msg = _mmb(msg, p["wf"][...]) + p["bff"][...]

    # 'add' aggregation onto target nodes (scatter-add as an MXU matmul)
    agg = _mmb(ohT_dst, msg)                               # (N_right, D)

    # post_conv_module: LayerNorm
    post = _ln(agg, p["gp"][...], p["bp"][...])

    # output_module(concat([post, right], -1)): one lane-dense K=2D matmul
    hcat = jnp.concatenate([post, right], axis=-1)         # (N_right, 2D)
    h = jnp.maximum(_mmb(hcat, p["wo1"][...]) + p["bo1"][...], 0.0)
    return _mmb(h, p["wo2"][...]) + p["bo2"][...]


# ---------------------------------------------------------------------------
# Fused kernel: embeds + 4 convs + concat, everything resident in VMEM
# ---------------------------------------------------------------------------
def _make_fused_kernel(n_cons, n_vars, n_edges, treedef):
    def kernel(*refs):
        o_ref = refs[-1]
        cx_ref, vx_ref, ci_col_ref, ci_row_ref, vi_col_ref, vi_row_ref = refs[:6]
        # Pytree of Refs (NOT loaded here) -- weights are read at point of use.
        P = jax.tree_util.tree_unflatten(treedef, refs[6:-1])

        bf16 = jnp.bfloat16
        ci_col = ci_col_ref[...]                           # (E, 1) int32
        ci_row = ci_row_ref[...]                           # (1, E) int32
        vi_col = vi_col_ref[...]
        vi_row = vi_row_ref[...]

        # One combined gather one-hot, columns ordered [cons | var]; exact 0/1
        # in bf16. Built once, reused by all four convolutions.
        col = jax.lax.broadcasted_iota(jnp.int32, (n_edges, n_cons + n_vars), 1)
        oh_all = jnp.logical_or(col == ci_col,
                                col == (vi_col + n_cons)).astype(bf16)
        # Transposed one-hots for the scatter-add (built in their own
        # orientation so the aggregation is a plain MXU matmul, no XLU
        # transpose of an (E, N) operand).
        ohT_cons = (jax.lax.broadcasted_iota(jnp.int32, (n_cons, n_edges), 0)
                    == ci_row).astype(bf16)                # (Nc, E)
        ohT_vars = (jax.lax.broadcasted_iota(jnp.int32, (n_vars, n_edges), 0)
                    == vi_row).astype(bf16)                # (Nv, E)

        c = _embed(cx_ref[...], P["cons"])
        v = _embed(vx_ref[...], P["var"])

        # conv_v_to_c : left = vars (src), right = cons (dst)
        c = _conv(v, c, oh_all, ohT_cons, True, P["conv_v_to_c"])
        # conv_c_to_v : left = cons (src), right = vars (dst)
        v = _conv(c, v, oh_all, ohT_vars, False, P["conv_c_to_v"])
        c = _conv(v, c, oh_all, ohT_cons, True, P["conv_v_to_c2"])
        v = _conv(c, v, oh_all, ohT_vars, False, P["conv_c_to_v2"])

        # h = concat([c, v], axis=0), written directly into the output slab.
        o_ref[0:n_cons, :] = c
        o_ref[n_cons:n_cons + n_vars, :] = v

    return kernel


# ---------------------------------------------------------------------------
# PolicyEncoder.forward
# ---------------------------------------------------------------------------
def policy_encoder_forward(params, constraint_features, variable_features,
                           edge_index, edge_attr, perturb=None):
    n_cons = constraint_features.shape[0]
    n_vars = variable_features.shape[0]
    n_edges = edge_index.shape[1]
    d = params["conv_v_to_c"]["wo2"].shape[1]
    # LayerNorm(1) fold below requires exactly one edge feature; edge_attr is
    # then provably ignored by the model.
    assert edge_attr.shape[1] == 1
    # Output row-slice writes assume the var block starts on a sublane tile.
    assert n_cons % 8 == 0, "n_cons must be a multiple of 8 (pad on host)"

    def bf16(w):
        return w.astype(jnp.bfloat16)

    # edge_embedding = LayerNorm(1) is degenerate: its output is exactly `beta`
    # for every edge, so feature_module_edge(edge_LN(e)) == beta @ we, a
    # constant (1, D) row folded into feature_module_left's bias (f32).
    e_beta = params["edge"]["b"]                           # (1, 1)

    def embed_kparams(p):
        return dict(g=p["g"], b=p["b"],
                    w1=bf16(p["w1"]), b1=p["b1"],
                    w2=bf16(p["w2"]), b2=p["b2"])

    def conv_kparams(p):
        return dict(
            wl=bf16(p["wl"]), wr=bf16(p["wr"]),
            bl=p["bl"] + e_beta @ p["we"],
            gf=p["gf"], bf=p["bf"], wf=bf16(p["wf"]), bff=p["bff"],
            gp=p["gp"], bp=p["bp"],
            wo1=bf16(p["wo1"]), bo1=p["bo1"],
            wo2=bf16(p["wo2"]), bo2=p["bo2"])

    kparams = dict(
        cons=embed_kparams(params["cons"]),
        var=embed_kparams(params["var"]),
        conv_v_to_c=conv_kparams(params["conv_v_to_c"]),
        conv_c_to_v=conv_kparams(params["conv_c_to_v"]),
        conv_v_to_c2=conv_kparams(params["conv_v_to_c2"]),
        conv_c_to_v2=conv_kparams(params["conv_c_to_v2"]),
    )
    flat_params, treedef = jax.tree_util.tree_flatten(kparams)

    cons_idx = edge_index[0].astype(jnp.int32)
    var_idx = edge_index[1].astype(jnp.int32)
    ci_col = cons_idx.reshape(n_edges, 1)
    ci_row = cons_idx.reshape(1, n_edges)
    vi_col = var_idx.reshape(n_edges, 1)
    vi_row = var_idx.reshape(1, n_edges)

    inputs = (constraint_features.astype(jnp.float32),
              variable_features.astype(jnp.float32),
              ci_col, ci_row, vi_col, vi_row, *flat_params)

    # Honest VMEM budget: inputs + params + output + bf16 one-hots + a
    # generous allowance for activation temporaries, with 2x headroom.
    def nbytes(a):
        return a.size * a.dtype.itemsize

    out_bytes = (n_cons + n_vars) * d * 4
    onehot_bytes = 2 * n_edges * (n_cons + n_vars) * 2    # gather + transposed, bf16
    act_bytes = 16 * max(n_edges, n_cons + n_vars) * max(2 * d, 128) * 4
    est = sum(nbytes(a) for a in inputs) + out_bytes + onehot_bytes + act_bytes
    vmem_limit = int(min(max(2 * est + (4 << 20), 16 << 20), 60 << 20))

    kernel = _make_fused_kernel(n_cons, n_vars, n_edges, treedef)
    vmem_spec = pl.BlockSpec(memory_space=pltpu.MemorySpace.VMEM)

    h = pl.pallas_call(
        kernel,
        out_shape=jax.ShapeDtypeStruct((n_cons + n_vars, d), jnp.float32),
        in_specs=[vmem_spec] * len(inputs),
        out_specs=vmem_spec,
        compiler_params=pltpu.CompilerParams(vmem_limit_bytes=vmem_limit),
    )(*inputs)

    if perturb is not None:
        h = h + perturb
    return h


# ---------------------------------------------------------------------------
# Deterministic parameter initialization (synthetic; no checkpoint load)
# ---------------------------------------------------------------------------
def _linear(key, fan_in, fan_out, bias=True):
    kw, kb = jax.random.split(key)
    w = jax.random.normal(kw, (fan_in, fan_out), jnp.float32) / jnp.sqrt(
        jnp.float32(fan_in))
    if bias:
        b = 0.01 * jax.random.normal(kb, (1, fan_out), jnp.float32)
        return w, b
    return w, None


def init_embed_params(key, nfeats, d):
    k1, k2 = jax.random.split(key)
    w1, b1 = _linear(k1, nfeats, d)
    w2, b2 = _linear(k2, d, d)
    return dict(g=jnp.ones((1, nfeats), jnp.float32),
                b=jnp.zeros((1, nfeats), jnp.float32),
                w1=w1, b1=b1, w2=w2, b2=b2)


def init_conv_params(key, d):
    ks = jax.random.split(key, 6)
    wl, bl = _linear(ks[0], d, d)                 # feature_module_left
    we, _ = _linear(ks[1], 1, d, bias=False)      # feature_module_edge
    wr, _ = _linear(ks[2], d, d, bias=False)      # feature_module_right
    wf, bff = _linear(ks[3], d, d)                # feature_module_final linear
    wo1, bo1 = _linear(ks[4], 2 * d, d)           # output_module linear 1
    wo2, bo2 = _linear(ks[5], d, d)               # output_module linear 2
    return dict(
        wl=wl, bl=bl, we=we, wr=wr,
        gf=jnp.ones((1, d), jnp.float32), bf=jnp.zeros((1, d), jnp.float32),
        wf=wf, bff=bff,
        gp=jnp.ones((1, d), jnp.float32), bp=jnp.zeros((1, d), jnp.float32),
        wo1=wo1, bo1=bo1,
        wo2=wo2, bo2=bo2,
    )


def init_policy_encoder_params(key, cons_nfeats=4, edge_nfeats=1,
                               var_nfeats=6, d=64):
    ks = jax.random.split(key, 6)
    return dict(
        cons=init_embed_params(ks[0], cons_nfeats, d),
        var=init_embed_params(ks[1], var_nfeats, d),
        edge=dict(g=jnp.ones((1, edge_nfeats), jnp.float32),
                  b=jnp.zeros((1, edge_nfeats), jnp.float32)),
        conv_v_to_c=init_conv_params(ks[2], d),
        conv_c_to_v=init_conv_params(ks[3], d),
        conv_v_to_c2=init_conv_params(ks[4], d),
        conv_c_to_v2=init_conv_params(ks[5], d),
    )


# ---------------------------------------------------------------------------
# Main
# ---------------------------------------------------------------------------
if __name__ == "__main__":
    key = jax.random.PRNGKey(0)
    k_param, k_c, k_v, k_e, k_i0, k_i1 = jax.random.split(key, 6)

    CONS_NF, EDGE_NF, VAR_NF, D = 4, 1, 6, 64          # embedding_size default
    N_CONS, N_VARS, N_EDGES = 64, 96, 256

    params = init_policy_encoder_params(k_param, CONS_NF, EDGE_NF, VAR_NF, D)

    constraint_features = jax.random.normal(k_c, (N_CONS, CONS_NF), jnp.float32)
    variable_features = jax.random.normal(k_v, (N_VARS, VAR_NF), jnp.float32)
    edge_attr = jax.random.normal(k_e, (N_EDGES, EDGE_NF), jnp.float32)
    edge_index = jnp.stack([
        jax.random.randint(k_i0, (N_EDGES,), 0, N_CONS),
        jax.random.randint(k_i1, (N_EDGES,), 0, N_VARS),
    ], axis=0)

    h = policy_encoder_forward(params, constraint_features, variable_features,
                               edge_index, edge_attr)
    h = jax.block_until_ready(h)
    assert h.shape == (N_CONS + N_VARS, D)
    assert bool(jnp.all(jnp.isfinite(h)))
    print("KERNEL_OK")
</pallas_src>

<mosaic_0001>
module attributes {stable_mosaic.version = 11 : i64} {
  func.func @kernel(%arg0: memref<64x4xf32, #tpu.memory_space<vmem>>, %arg1: memref<96x6xf32, #tpu.memory_space<vmem>>, %arg2: memref<256x1xi32, #tpu.memory_space<vmem>>, %arg3: memref<1x256xi32, #tpu.memory_space<vmem>>, %arg4: memref<256x1xi32, #tpu.memory_space<vmem>>, %arg5: memref<1x256xi32, #tpu.memory_space<vmem>>, %arg6: memref<1x4xf32, #tpu.memory_space<vmem>>, %arg7: memref<1x64xf32, #tpu.memory_space<vmem>>, %arg8: memref<1x64xf32, #tpu.memory_space<vmem>>, %arg9: memref<1x4xf32, #tpu.memory_space<vmem>>, %arg10: memref<4x64xbf16, #tpu.memory_space<vmem>>, %arg11: memref<64x64xbf16, #tpu.memory_space<vmem>>, %arg12: memref<1x64xf32, #tpu.memory_space<vmem>>, %arg13: memref<1x64xf32, #tpu.memory_space<vmem>>, %arg14: memref<1x64xf32, #tpu.memory_space<vmem>>, %arg15: memref<1x64xf32, #tpu.memory_space<vmem>>, %arg16: memref<1x64xf32, #tpu.memory_space<vmem>>, %arg17: memref<1x64xf32, #tpu.memory_space<vmem>>, %arg18: memref<1x64xf32, #tpu.memory_space<vmem>>, %arg19: memref<1x64xf32, #tpu.memory_space<vmem>>, %arg20: memref<64x64xbf16, #tpu.memory_space<vmem>>, %arg21: memref<64x64xbf16, #tpu.memory_space<vmem>>, %arg22: memref<128x64xbf16, #tpu.memory_space<vmem>>, %arg23: memref<64x64xbf16, #tpu.memory_space<vmem>>, %arg24: memref<64x64xbf16, #tpu.memory_space<vmem>>, %arg25: memref<1x64xf32, #tpu.memory_space<vmem>>, %arg26: memref<1x64xf32, #tpu.memory_space<vmem>>, %arg27: memref<1x64xf32, #tpu.memory_space<vmem>>, %arg28: memref<1x64xf32, #tpu.memory_space<vmem>>, %arg29: memref<1x64xf32, #tpu.memory_space<vmem>>, %arg30: memref<1x64xf32, #tpu.memory_space<vmem>>, %arg31: memref<1x64xf32, #tpu.memory_space<vmem>>, %arg32: memref<1x64xf32, #tpu.memory_space<vmem>>, %arg33: memref<64x64xbf16, #tpu.memory_space<vmem>>, %arg34: memref<64x64xbf16, #tpu.memory_space<vmem>>, %arg35: memref<128x64xbf16, #tpu.memory_space<vmem>>, %arg36: memref<64x64xbf16, #tpu.memory_space<vmem>>, %arg37: memref<64x64xbf16, #tpu.memory_space<vmem>>, %arg38: memref<1x64xf32, #tpu.memory_space<vmem>>, %arg39: memref<1x64xf32, #tpu.memory_space<vmem>>, %arg40: memref<1x64xf32, #tpu.memory_space<vmem>>, %arg41: memref<1x64xf32, #tpu.memory_space<vmem>>, %arg42: memref<1x64xf32, #tpu.memory_space<vmem>>, %arg43: memref<1x64xf32, #tpu.memory_space<vmem>>, %arg44: memref<1x64xf32, #tpu.memory_space<vmem>>, %arg45: memref<1x64xf32, #tpu.memory_space<vmem>>, %arg46: memref<64x64xbf16, #tpu.memory_space<vmem>>, %arg47: memref<64x64xbf16, #tpu.memory_space<vmem>>, %arg48: memref<128x64xbf16, #tpu.memory_space<vmem>>, %arg49: memref<64x64xbf16, #tpu.memory_space<vmem>>, %arg50: memref<64x64xbf16, #tpu.memory_space<vmem>>, %arg51: memref<1x64xf32, #tpu.memory_space<vmem>>, %arg52: memref<1x64xf32, #tpu.memory_space<vmem>>, %arg53: memref<1x64xf32, #tpu.memory_space<vmem>>, %arg54: memref<1x64xf32, #tpu.memory_space<vmem>>, %arg55: memref<1x64xf32, #tpu.memory_space<vmem>>, %arg56: memref<1x64xf32, #tpu.memory_space<vmem>>, %arg57: memref<1x64xf32, #tpu.memory_space<vmem>>, %arg58: memref<1x64xf32, #tpu.memory_space<vmem>>, %arg59: memref<64x64xbf16, #tpu.memory_space<vmem>>, %arg60: memref<64x64xbf16, #tpu.memory_space<vmem>>, %arg61: memref<128x64xbf16, #tpu.memory_space<vmem>>, %arg62: memref<64x64xbf16, #tpu.memory_space<vmem>>, %arg63: memref<64x64xbf16, #tpu.memory_space<vmem>>, %arg64: memref<1x6xf32, #tpu.memory_space<vmem>>, %arg65: memref<1x64xf32, #tpu.memory_space<vmem>>, %arg66: memref<1x64xf32, #tpu.memory_space<vmem>>, %arg67: memref<1x6xf32, #tpu.memory_space<vmem>>, %arg68: memref<6x64xbf16, #tpu.memory_space<vmem>>, %arg69: memref<64x64xbf16, #tpu.memory_space<vmem>>, %arg70: memref<160x64xf32, #tpu.memory_space<vmem>>) attributes {dimension_semantics = [], scalar_prefetch = 0 : i64, scratch_operands = 0 : i64, tpu.core_type = #tpu.core_type<tc>} {
    %c0 = arith.constant 0 : index
    %c0_0 = arith.constant 0 : index
    %0 = vector.load %arg2[%c0, %c0_0] : memref<256x1xi32, #tpu.memory_space<vmem>>, vector<256x1xi32>
    %c0_1 = arith.constant 0 : index
    %c0_2 = arith.constant 0 : index
    %1 = vector.load %arg3[%c0_1, %c0_2] : memref<1x256xi32, #tpu.memory_space<vmem>>, vector<1x256xi32>
    %c0_3 = arith.constant 0 : index
    %c0_4 = arith.constant 0 : index
    %2 = vector.load %arg4[%c0_3, %c0_4] : memref<256x1xi32, #tpu.memory_space<vmem>>, vector<256x1xi32>
    %c0_5 = arith.constant 0 : index
    %c0_6 = arith.constant 0 : index
    %3 = vector.load %arg5[%c0_5, %c0_6] : memref<1x256xi32, #tpu.memory_space<vmem>>, vector<1x256xi32>
    %4 = tpu.iota {dimensions = array<i32: 1>} : vector<256x160xi32>
    %5 = vector.broadcast %0 : vector<256x1xi32> to vector<256x160xi32>
    %6 = arith.cmpi eq, %4, %5 : vector<256x160xi32>
    %c64_i32 = arith.constant 64 : i32
    %7 = vector.broadcast %c64_i32 : i32 to vector<256x1xi32>
    %8 = arith.addi %2, %7 : vector<256x1xi32>
    %9 = vector.broadcast %8 : vector<256x1xi32> to vector<256x160xi32>
    %10 = arith.cmpi eq, %4, %9 : vector<256x160xi32>
    %11 = arith.ori %6, %10 : vector<256x160xi1>
    %12 = arith.extui %11 : vector<256x160xi1> to vector<256x160xi32>
    %13 = arith.sitofp %12 : vector<256x160xi32> to vector<256x160xf32>
    %14 = arith.truncf %13 : vector<256x160xf32> to vector<256x160xbf16>
    %15 = tpu.iota {dimensions = array<i32: 0>} : vector<64x256xi32>
    %16 = vector.broadcast %1 : vector<1x256xi32> to vector<64x256xi32>
    %17 = arith.cmpi eq, %15, %16 : vector<64x256xi32>
    %18 = arith.extui %17 : vector<64x256xi1> to vector<64x256xi32>
    %19 = arith.sitofp %18 : vector<64x256xi32> to vector<64x256xf32>
    %20 = arith.truncf %19 : vector<64x256xf32> to vector<64x256xbf16>
    %21 = tpu.iota {dimensions = array<i32: 0>} : vector<96x256xi32>
    %22 = vector.broadcast %3 : vector<1x256xi32> to vector<96x256xi32>
    %23 = arith.cmpi eq, %21, %22 : vector<96x256xi32>
    %24 = arith.extui %23 : vector<96x256xi1> to vector<96x256xi32>
    %25 = arith.sitofp %24 : vector<96x256xi32> to vector<96x256xf32>
    %26 = arith.truncf %25 : vector<96x256xf32> to vector<96x256xbf16>
    %c0_7 = arith.constant 0 : index
    %c0_8 = arith.constant 0 : index
    %27 = vector.load %arg0[%c0_7, %c0_8] : memref<64x4xf32, #tpu.memory_space<vmem>>, vector<64x4xf32>
    %c0_9 = arith.constant 0 : index
    %c0_10 = arith.constant 0 : index
    %28 = vector.load %arg9[%c0_9, %c0_10] : memref<1x4xf32, #tpu.memory_space<vmem>>, vector<1x4xf32>
    %c0_11 = arith.constant 0 : index
    %c0_12 = arith.constant 0 : index
    %29 = vector.load %arg6[%c0_11, %c0_12] : memref<1x4xf32, #tpu.memory_space<vmem>>, vector<1x4xf32>
    %cst = arith.constant dense<0.000000e+00> : vector<64xf32>
    %30 = vector.multi_reduction <add>, %27, %cst [1] : vector<64x4xf32> to vector<64xf32>
    %31 = vector.shape_cast %30 : vector<64xf32> to vector<64x1xf32>
    %cst_13 = arith.constant 4.000000e+00 : f32
    %32 = vector.broadcast %cst_13 : f32 to vector<64x1xf32>
    %33 = arith.divf %31, %32 : vector<64x1xf32>
    %34 = arith.mulf %27, %27 : vector<64x4xf32>
    %cst_14 = arith.constant dense<0.000000e+00> : vector<64xf32>
    %35 = vector.multi_reduction <add>, %34, %cst_14 [1] : vector<64x4xf32> to vector<64xf32>
    %36 = vector.shape_cast %35 : vector<64xf32> to vector<64x1xf32>
    %cst_15 = arith.constant 4.000000e+00 : f32
    %37 = vector.broadcast %cst_15 : f32 to vector<64x1xf32>
    %38 = arith.divf %36, %37 : vector<64x1xf32>
    %39 = arith.mulf %33, %33 : vector<64x1xf32>
    %40 = arith.subf %38, %39 : vector<64x1xf32>
    %cst_16 = arith.constant 0.000000e+00 : f32
    %41 = vector.broadcast %cst_16 : f32 to vector<64x1xf32>
    %42 = arith.maximumf %40, %41 : vector<64x1xf32>
    %43 = vector.broadcast %33 : vector<64x1xf32> to vector<64x4xf32>
    %44 = arith.subf %27, %43 : vector<64x4xf32>
    %cst_17 = arith.constant 9.99999974E-6 : f32
    %45 = vector.broadcast %cst_17 : f32 to vector<64x1xf32>
    %46 = arith.addf %42, %45 : vector<64x1xf32>
    %47 = math.rsqrt %46 : vector<64x1xf32>
    %48 = vector.broadcast %47 : vector<64x1xf32> to vector<64x4xf32>
    %49 = arith.mulf %44, %48 : vector<64x4xf32>
    %50 = vector.broadcast %28 : vector<1x4xf32> to vector<64x4xf32>
    %51 = arith.mulf %49, %50 : vector<64x4xf32>
    %52 = vector.broadcast %29 : vector<1x4xf32> to vector<64x4xf32>
    %53 = arith.addf %51, %52 : vector<64x4xf32>
    %c0_18 = arith.constant 0 : index
    %c0_19 = arith.constant 0 : index
    %54 = vector.load %arg10[%c0_18, %c0_19] : memref<4x64xbf16, #tpu.memory_space<vmem>>, vector<4x64xbf16>
    %55 = arith.truncf %53 : vector<64x4xf32> to vector<64x4xbf16>
    %cst_20 = arith.constant dense<0.000000e+00> : vector<64x64xf32>
    %56 = tpu.matmul %55, %54, %cst_20 {dimension_numbers = #tpu.dot_dimension_numbers<[1], [0], [0], [1], [0, 0, 1, 1], [], []>} : vector<64x4xbf16>, vector<4x64xbf16>, vector<64x64xf32> -> vector<64x64xf32>
    %c0_21 = arith.constant 0 : index
    %c0_22 = arith.constant 0 : index
    %57 = vector.load %arg7[%c0_21, %c0_22] : memref<1x64xf32, #tpu.memory_space<vmem>>, vector<1x64xf32>
    %58 = vector.broadcast %57 : vector<1x64xf32> to vector<64x64xf32>
    %59 = arith.addf %56, %58 : vector<64x64xf32>
    %cst_23 = arith.constant 0.000000e+00 : f32
    %60 = vector.broadcast %cst_23 : f32 to vector<64x64xf32>
    %61 = arith.maximumf %59, %60 : vector<64x64xf32>
    %c0_24 = arith.constant 0 : index
    %c0_25 = arith.constant 0 : index
    %62 = vector.load %arg11[%c0_24, %c0_25] : memref<64x64xbf16, #tpu.memory_space<vmem>>, vector<64x64xbf16>
    %63 = arith.truncf %61 : vector<64x64xf32> to vector<64x64xbf16>
    %cst_26 = arith.constant dense<0.000000e+00> : vector<64x64xf32>
    %64 = tpu.matmul %63, %62, %cst_26 {dimension_numbers = #tpu.dot_dimension_numbers<[1], [0], [0], [1], [0, 0, 1, 1], [], []>} : vector<64x64xbf16>, vector<64x64xbf16>, vector<64x64xf32> -> vector<64x64xf32>
    %c0_27 = arith.constant 0 : index
    %c0_28 = arith.constant 0 : index
    %65 = vector.load %arg8[%c0_27, %c0_28] : memref<1x64xf32, #tpu.memory_space<vmem>>, vector<1x64xf32>
    %66 = vector.broadcast %65 : vector<1x64xf32> to vector<64x64xf32>
    %67 = arith.addf %64, %66 : vector<64x64xf32>
    %cst_29 = arith.constant 0.000000e+00 : f32
    %68 = vector.broadcast %cst_29 : f32 to vector<64x64xf32>
    %69 = arith.maximumf %67, %68 : vector<64x64xf32>
    %c0_30 = arith.constant 0 : index
    %c0_31 = arith.constant 0 : index
    %70 = vector.load %arg1[%c0_30, %c0_31] : memref<96x6xf32, #tpu.memory_space<vmem>>, vector<96x6xf32>
    %c0_32 = arith.constant 0 : index
    %c0_33 = arith.constant 0 : index
    %71 = vector.load %arg67[%c0_32, %c0_33] : memref<1x6xf32, #tpu.memory_space<vmem>>, vector<1x6xf32>
    %c0_34 = arith.constant 0 : index
    %c0_35 = arith.constant 0 : index
    %72 = vector.load %arg64[%c0_34, %c0_35] : memref<1x6xf32, #tpu.memory_space<vmem>>, vector<1x6xf32>
    %cst_36 = arith.constant dense<0.000000e+00> : vector<96xf32>
    %73 = vector.multi_reduction <add>, %70, %cst_36 [1] : vector<96x6xf32> to vector<96xf32>
    %74 = vector.shape_cast %73 : vector<96xf32> to vector<96x1xf32>
    %cst_37 = arith.constant 6.000000e+00 : f32
    %75 = vector.broadcast %cst_37 : f32 to vector<96x1xf32>
    %76 = arith.divf %74, %75 : vector<96x1xf32>
    %77 = arith.mulf %70, %70 : vector<96x6xf32>
    %cst_38 = arith.constant dense<0.000000e+00> : vector<96xf32>
    %78 = vector.multi_reduction <add>, %77, %cst_38 [1] : vector<96x6xf32> to vector<96xf32>
    %79 = vector.shape_cast %78 : vector<96xf32> to vector<96x1xf32>
    %cst_39 = arith.constant 6.000000e+00 : f32
    %80 = vector.broadcast %cst_39 : f32 to vector<96x1xf32>
    %81 = arith.divf %79, %80 : vector<96x1xf32>
    %82 = arith.mulf %76, %76 : vector<96x1xf32>
    %83 = arith.subf %81, %82 : vector<96x1xf32>
    %cst_40 = arith.constant 0.000000e+00 : f32
    %84 = vector.broadcast %cst_40 : f32 to vector<96x1xf32>
    %85 = arith.maximumf %83, %84 : vector<96x1xf32>
    %86 = vector.broadcast %76 : vector<96x1xf32> to vector<96x6xf32>
    %87 = arith.subf %70, %86 : vector<96x6xf32>
    %cst_41 = arith.constant 9.99999974E-6 : f32
    %88 = vector.broadcast %cst_41 : f32 to vector<96x1xf32>
    %89 = arith.addf %85, %88 : vector<96x1xf32>
    %90 = math.rsqrt %89 : vector<96x1xf32>
    %91 = vector.broadcast %90 : vector<96x1xf32> to vector<96x6xf32>
    %92 = arith.mulf %87, %91 : vector<96x6xf32>
    %93 = vector.broadcast %71 : vector<1x6xf32> to vector<96x6xf32>
    %94 = arith.mulf %92, %93 : vector<96x6xf32>
    %95 = vector.broadcast %72 : vector<1x6xf32> to vector<96x6xf32>
    %96 = arith.addf %94, %95 : vector<96x6xf32>
    %c0_42 = arith.constant 0 : index
    %c0_43 = arith.constant 0 : index
    %97 = vector.load %arg68[%c0_42, %c0_43] : memref<6x64xbf16, #tpu.memory_space<vmem>>, vector<6x64xbf16>
    %98 = arith.truncf %96 : vector<96x6xf32> to vector<96x6xbf16>
    %cst_44 = arith.constant dense<0.000000e+00> : vector<96x64xf32>
    %99 = tpu.matmul %98, %97, %cst_44 {dimension_numbers = #tpu.dot_dimension_numbers<[1], [0], [0], [1], [0, 0, 1, 1], [], []>} : vector<96x6xbf16>, vector<6x64xbf16>, vector<96x64xf32> -> vector<96x64xf32>
    %c0_45 = arith.constant 0 : index
    %c0_46 = arith.constant 0 : index
    %100 = vector.load %arg65[%c0_45, %c0_46] : memref<1x64xf32, #tpu.memory_space<vmem>>, vector<1x64xf32>
    %101 = vector.broadcast %100 : vector<1x64xf32> to vector<96x64xf32>
    %102 = arith.addf %99, %101 : vector<96x64xf32>
    %cst_47 = arith.constant 0.000000e+00 : f32
    %103 = vector.broadcast %cst_47 : f32 to vector<96x64xf32>
    %104 = arith.maximumf %102, %103 : vector<96x64xf32>
    %c0_48 = arith.constant 0 : index
    %c0_49 = arith.constant 0 : index
    %105 = vector.load %arg69[%c0_48, %c0_49] : memref<64x64xbf16, #tpu.memory_space<vmem>>, vector<64x64xbf16>
    %106 = arith.truncf %104 : vector<96x64xf32> to vector<96x64xbf16>
    %cst_50 = arith.constant dense<0.000000e+00> : vector<96x64xf32>
    %107 = tpu.matmul %106, %105, %cst_50 {dimension_numbers = #tpu.dot_dimension_numbers<[1], [0], [0], [1], [0, 0, 1, 1], [], []>} : vector<96x64xbf16>, vector<64x64xbf16>, vector<96x64xf32> -> vector<96x64xf32>
    %c0_51 = arith.constant 0 : index
    %c0_52 = arith.constant 0 : index
    %108 = vector.load %arg66[%c0_51, %c0_52] : memref<1x64xf32, #tpu.memory_space<vmem>>, vector<1x64xf32>
    %109 = vector.broadcast %108 : vector<1x64xf32> to vector<96x64xf32>
    %110 = arith.addf %107, %109 : vector<96x64xf32>
    %cst_53 = arith.constant 0.000000e+00 : f32
    %111 = vector.broadcast %cst_53 : f32 to vector<96x64xf32>
    %112 = arith.maximumf %110, %111 : vector<96x64xf32>
    %c0_54 = arith.constant 0 : index
    %c0_55 = arith.constant 0 : index
    %113 = vector.load %arg47[%c0_54, %c0_55] : memref<64x64xbf16, #tpu.memory_space<vmem>>, vector<64x64xbf16>
    %114 = arith.truncf %69 : vector<64x64xf32> to vector<64x64xbf16>
    %cst_56 = arith.constant dense<0.000000e+00> : vector<64x64xf32>
    %115 = tpu.matmul %114, %113, %cst_56 {dimension_numbers = #tpu.dot_dimension_numbers<[1], [0], [0], [1], [0, 0, 1, 1], [], []>} : vector<64x64xbf16>, vector<64x64xbf16>, vector<64x64xf32> -> vector<64x64xf32>
    %c0_57 = arith.constant 0 : index
    %c0_58 = arith.constant 0 : index
    %116 = vector.load %arg50[%c0_57, %c0_58] : memref<64x64xbf16, #tpu.memory_space<vmem>>, vector<64x64xbf16>
    %117 = arith.truncf %112 : vector<96x64xf32> to vector<96x64xbf16>
    %cst_59 = arith.constant dense<0.000000e+00> : vector<96x64xf32>
    %118 = tpu.matmul %117, %116, %cst_59 {dimension_numbers = #tpu.dot_dimension_numbers<[1], [0], [0], [1], [0, 0, 1, 1], [], []>} : vector<96x64xbf16>, vector<64x64xbf16>, vector<96x64xf32> -> vector<96x64xf32>
    %119 = tpu.concatenate %115, %118 in 0 : vector<64x64xf32>, vector<96x64xf32> -> vector<160x64xf32>
    %120 = arith.truncf %119 : vector<160x64xf32> to vector<160x64xbf16>
    %cst_60 = arith.constant dense<0.000000e+00> : vector<256x64xf32>
    %121 = tpu.matmul %14, %120, %cst_60 {dimension_numbers = #tpu.dot_dimension_numbers<[1], [0], [0], [1], [0, 0, 1, 1], [], []>} : vector<256x160xbf16>, vector<160x64xbf16>, vector<256x64xf32> -> vector<256x64xf32>
    %c0_61 = arith.constant 0 : index
    %c0_62 = arith.constant 0 : index
    %122 = vector.load %arg40[%c0_61, %c0_62] : memref<1x64xf32, #tpu.memory_space<vmem>>, vector<1x64xf32>
    %123 = vector.broadcast %122 : vector<1x64xf32> to vector<256x64xf32>
    %124 = arith.addf %121, %123 : vector<256x64xf32>
    %c0_63 = arith.constant 0 : index
    %c0_64 = arith.constant 0 : index
    %125 = vector.load %arg44[%c0_63, %c0_64] : memref<1x64xf32, #tpu.memory_space<vmem>>, vector<1x64xf32>
    %c0_65 = arith.constant 0 : index
    %c0_66 = arith.constant 0 : index
    %126 = vector.load %arg38[%c0_65, %c0_66] : memref<1x64xf32, #tpu.memory_space<vmem>>, vector<1x64xf32>
    %cst_67 = arith.constant dense<0.000000e+00> : vector<256xf32>
    %127 = vector.multi_reduction <add>, %124, %cst_67 [1] : vector<256x64xf32> to vector<256xf32>
    %128 = vector.shape_cast %127 : vector<256xf32> to vector<256x1xf32>
    %cst_68 = arith.constant 6.400000e+01 : f32
    %129 = vector.broadcast %cst_68 : f32 to vector<256x1xf32>
    %130 = arith.divf %128, %129 : vector<256x1xf32>
    %131 = arith.mulf %124, %124 : vector<256x64xf32>
    %cst_69 = arith.constant dense<0.000000e+00> : vector<256xf32>
    %132 = vector.multi_reduction <add>, %131, %cst_69 [1] : vector<256x64xf32> to vector<256xf32>
    %133 = vector.shape_cast %132 : vector<256xf32> to vector<256x1xf32>
    %cst_70 = arith.constant 6.400000e+01 : f32
    %134 = vector.broadcast %cst_70 : f32 to vector<256x1xf32>
    %135 = arith.divf %133, %134 : vector<256x1xf32>
    %136 = arith.mulf %130, %130 : vector<256x1xf32>
    %137 = arith.subf %135, %136 : vector<256x1xf32>
    %cst_71 = arith.constant 0.000000e+00 : f32
    %138 = vector.broadcast %cst_71 : f32 to vector<256x1xf32>
    %139 = arith.maximumf %137, %138 : vector<256x1xf32>
    %140 = vector.broadcast %130 : vector<256x1xf32> to vector<256x64xf32>
    %141 = arith.subf %124, %140 : vector<256x64xf32>
    %cst_72 = arith.constant 9.99999974E-6 : f32
    %142 = vector.broadcast %cst_72 : f32 to vector<256x1xf32>
    %143 = arith.addf %139, %142 : vector<256x1xf32>
    %144 = math.rsqrt %143 : vector<256x1xf32>
    %145 = vector.broadcast %144 : vector<256x1xf32> to vector<256x64xf32>
    %146 = arith.mulf %141, %145 : vector<256x64xf32>
    %147 = vector.broadcast %125 : vector<1x64xf32> to vector<256x64xf32>
    %148 = arith.mulf %146, %147 : vector<256x64xf32>
    %149 = vector.broadcast %126 : vector<1x64xf32> to vector<256x64xf32>
    %150 = arith.addf %148, %149 : vector<256x64xf32>
    %cst_73 = arith.constant 0.000000e+00 : f32
    %151 = vector.broadcast %cst_73 : f32 to vector<256x64xf32>
    %152 = arith.maximumf %150, %151 : vector<256x64xf32>
    %c0_74 = arith.constant 0 : index
    %c0_75 = arith.constant 0 : index
    %153 = vector.load %arg46[%c0_74, %c0_75] : memref<64x64xbf16, #tpu.memory_space<vmem>>, vector<64x64xbf16>
    %154 = arith.truncf %152 : vector<256x64xf32> to vector<256x64xbf16>
    %cst_76 = arith.constant dense<0.000000e+00> : vector<256x64xf32>
    %155 = tpu.matmul %154, %153, %cst_76 {dimension_numbers = #tpu.dot_dimension_numbers<[1], [0], [0], [1], [0, 0, 1, 1], [], []>} : vector<256x64xbf16>, vector<64x64xbf16>, vector<256x64xf32> -> vector<256x64xf32>
    %c0_77 = arith.constant 0 : index
    %c0_78 = arith.constant 0 : index
    %156 = vector.load %arg39[%c0_77, %c0_78] : memref<1x64xf32, #tpu.memory_space<vmem>>, vector<1x64xf32>
    %157 = vector.broadcast %156 : vector<1x64xf32> to vector<256x64xf32>
    %158 = arith.addf %155, %157 : vector<256x64xf32>
    %159 = arith.truncf %158 : vector<256x64xf32> to vector<256x64xbf16>
    %cst_79 = arith.constant dense<0.000000e+00> : vector<64x64xf32>
    %160 = tpu.matmul %20, %159, %cst_79 {dimension_numbers = #tpu.dot_dimension_numbers<[1], [0], [0], [1], [0, 0, 1, 1], [], []>} : vector<64x256xbf16>, vector<256x64xbf16>, vector<64x64xf32> -> vector<64x64xf32>
    %c0_80 = arith.constant 0 : index
    %c0_81 = arith.constant 0 : index
    %161 = vector.load %arg45[%c0_80, %c0_81] : memref<1x64xf32, #tpu.memory_space<vmem>>, vector<1x64xf32>
    %c0_82 = arith.constant 0 : index
    %c0_83 = arith.constant 0 : index
    %162 = vector.load %arg43[%c0_82, %c0_83] : memref<1x64xf32, #tpu.memory_space<vmem>>, vector<1x64xf32>
    %cst_84 = arith.constant dense<0.000000e+00> : vector<64xf32>
    %163 = vector.multi_reduction <add>, %160, %cst_84 [1] : vector<64x64xf32> to vector<64xf32>
    %164 = vector.shape_cast %163 : vector<64xf32> to vector<64x1xf32>
    %cst_85 = arith.constant 6.400000e+01 : f32
    %165 = vector.broadcast %cst_85 : f32 to vector<64x1xf32>
    %166 = arith.divf %164, %165 : vector<64x1xf32>
    %167 = arith.mulf %160, %160 : vector<64x64xf32>
    %cst_86 = arith.constant dense<0.000000e+00> : vector<64xf32>
    %168 = vector.multi_reduction <add>, %167, %cst_86 [1] : vector<64x64xf32> to vector<64xf32>
    %169 = vector.shape_cast %168 : vector<64xf32> to vector<64x1xf32>
    %cst_87 = arith.constant 6.400000e+01 : f32
    %170 = vector.broadcast %cst_87 : f32 to vector<64x1xf32>
    %171 = arith.divf %169, %170 : vector<64x1xf32>
    %172 = arith.mulf %166, %166 : vector<64x1xf32>
    %173 = arith.subf %171, %172 : vector<64x1xf32>
    %cst_88 = arith.constant 0.000000e+00 : f32
    %174 = vector.broadcast %cst_88 : f32 to vector<64x1xf32>
    %175 = arith.maximumf %173, %174 : vector<64x1xf32>
    %176 = vector.broadcast %166 : vector<64x1xf32> to vector<64x64xf32>
    %177 = arith.subf %160, %176 : vector<64x64xf32>
    %cst_89 = arith.constant 9.99999974E-6 : f32
    %178 = vector.broadcast %cst_89 : f32 to vector<64x1xf32>
    %179 = arith.addf %175, %178 : vector<64x1xf32>
    %180 = math.rsqrt %179 : vector<64x1xf32>
    %181 = vector.broadcast %180 : vector<64x1xf32> to vector<64x64xf32>
    %182 = arith.mulf %177, %181 : vector<64x64xf32>
    %183 = vector.broadcast %161 : vector<1x64xf32> to vector<64x64xf32>
    %184 = arith.mulf %182, %183 : vector<64x64xf32>
    %185 = vector.broadcast %162 : vector<1x64xf32> to vector<64x64xf32>
    %186 = arith.addf %184, %185 : vector<64x64xf32>
    %187 = tpu.concatenate %186, %69 in 1 : vector<64x64xf32>, vector<64x64xf32> -> vector<64x128xf32>
    %c0_90 = arith.constant 0 : index
    %c0_91 = arith.constant 0 : index
    %188 = vector.load %arg48[%c0_90, %c0_91] : memref<128x64xbf16, #tpu.memory_space<vmem>>, vector<128x64xbf16>
    %189 = arith.truncf %187 : vector<64x128xf32> to vector<64x128xbf16>
    %cst_92 = arith.constant dense<0.000000e+00> : vector<64x64xf32>
    %190 = tpu.matmul %189, %188, %cst_92 {dimension_numbers = #tpu.dot_dimension_numbers<[1], [0], [0], [1], [0, 0, 1, 1], [], []>} : vector<64x128xbf16>, vector<128x64xbf16>, vector<64x64xf32> -> vector<64x64xf32>
    %c0_93 = arith.constant 0 : index
    %c0_94 = arith.constant 0 : index
    %191 = vector.load %arg41[%c0_93, %c0_94] : memref<1x64xf32, #tpu.memory_space<vmem>>, vector<1x64xf32>
    %192 = vector.broadcast %191 : vector<1x64xf32> to vector<64x64xf32>
    %193 = arith.addf %190, %192 : vector<64x64xf32>
    %cst_95 = arith.constant 0.000000e+00 : f32
    %194 = vector.broadcast %cst_95 : f32 to vector<64x64xf32>
    %195 = arith.maximumf %193, %194 : vector<64x64xf32>
    %c0_96 = arith.constant 0 : index
    %c0_97 = arith.constant 0 : index
    %196 = vector.load %arg49[%c0_96, %c0_97] : memref<64x64xbf16, #tpu.memory_space<vmem>>, vector<64x64xbf16>
    %197 = arith.truncf %195 : vector<64x64xf32> to vector<64x64xbf16>
    %cst_98 = arith.constant dense<0.000000e+00> : vector<64x64xf32>
    %198 = tpu.matmul %197, %196, %cst_98 {dimension_numbers = #tpu.dot_dimension_numbers<[1], [0], [0], [1], [0, 0, 1, 1], [], []>} : vector<64x64xbf16>, vector<64x64xbf16>, vector<64x64xf32> -> vector<64x64xf32>
    %c0_99 = arith.constant 0 : index
    %c0_100 = arith.constant 0 : index
    %199 = vector.load %arg42[%c0_99, %c0_100] : memref<1x64xf32, #tpu.memory_space<vmem>>, vector<1x64xf32>
    %200 = vector.broadcast %199 : vector<1x64xf32> to vector<64x64xf32>
    %201 = arith.addf %198, %200 : vector<64x64xf32>
    %c0_101 = arith.constant 0 : index
    %c0_102 = arith.constant 0 : index
    %202 = vector.load %arg21[%c0_101, %c0_102] : memref<64x64xbf16, #tpu.memory_space<vmem>>, vector<64x64xbf16>
    %203 = arith.truncf %112 : vector<96x64xf32> to vector<96x64xbf16>
    %cst_103 = arith.constant dense<0.000000e+00> : vector<96x64xf32>
    %204 = tpu.matmul %203, %202, %cst_103 {dimension_numbers = #tpu.dot_dimension_numbers<[1], [0], [0], [1], [0, 0, 1, 1], [], []>} : vector<96x64xbf16>, vector<64x64xbf16>, vector<96x64xf32> -> vector<96x64xf32>
    %c0_104 = arith.constant 0 : index
    %c0_105 = arith.constant 0 : index
    %205 = vector.load %arg24[%c0_104, %c0_105] : memref<64x64xbf16, #tpu.memory_space<vmem>>, vector<64x64xbf16>
    %206 = arith.truncf %201 : vector<64x64xf32> to vector<64x64xbf16>
    %cst_106 = arith.constant dense<0.000000e+00> : vector<64x64xf32>
    %207 = tpu.matmul %206, %205, %cst_106 {dimension_numbers = #tpu.dot_dimension_numbers<[1], [0], [0], [1], [0, 0, 1, 1], [], []>} : vector<64x64xbf16>, vector<64x64xbf16>, vector<64x64xf32> -> vector<64x64xf32>
    %208 = tpu.concatenate %207, %204 in 0 : vector<64x64xf32>, vector<96x64xf32> -> vector<160x64xf32>
    %209 = arith.truncf %208 : vector<160x64xf32> to vector<160x64xbf16>
    %cst_107 = arith.constant dense<0.000000e+00> : vector<256x64xf32>
    %210 = tpu.matmul %14, %209, %cst_107 {dimension_numbers = #tpu.dot_dimension_numbers<[1], [0], [0], [1], [0, 0, 1, 1], [], []>} : vector<256x160xbf16>, vector<160x64xbf16>, vector<256x64xf32> -> vector<256x64xf32>
    %c0_108 = arith.constant 0 : index
    %c0_109 = arith.constant 0 : index
    %211 = vector.load %arg14[%c0_108, %c0_109] : memref<1x64xf32, #tpu.memory_space<vmem>>, vector<1x64xf32>
    %212 = vector.broadcast %211 : vector<1x64xf32> to vector<256x64xf32>
    %213 = arith.addf %210, %212 : vector<256x64xf32>
    %c0_110 = arith.constant 0 : index
    %c0_111 = arith.constant 0 : index
    %214 = vector.load %arg18[%c0_110, %c0_111] : memref<1x64xf32, #tpu.memory_space<vmem>>, vector<1x64xf32>
    %c0_112 = arith.constant 0 : index
    %c0_113 = arith.constant 0 : index
    %215 = vector.load %arg12[%c0_112, %c0_113] : memref<1x64xf32, #tpu.memory_space<vmem>>, vector<1x64xf32>
    %cst_114 = arith.constant dense<0.000000e+00> : vector<256xf32>
    %216 = vector.multi_reduction <add>, %213, %cst_114 [1] : vector<256x64xf32> to vector<256xf32>
    %217 = vector.shape_cast %216 : vector<256xf32> to vector<256x1xf32>
    %cst_115 = arith.constant 6.400000e+01 : f32
    %218 = vector.broadcast %cst_115 : f32 to vector<256x1xf32>
    %219 = arith.divf %217, %218 : vector<256x1xf32>
    %220 = arith.mulf %213, %213 : vector<256x64xf32>
    %cst_116 = arith.constant dense<0.000000e+00> : vector<256xf32>
    %221 = vector.multi_reduction <add>, %220, %cst_116 [1] : vector<256x64xf32> to vector<256xf32>
    %222 = vector.shape_cast %221 : vector<256xf32> to vector<256x1xf32>
    %cst_117 = arith.constant 6.400000e+01 : f32
    %223 = vector.broadcast %cst_117 : f32 to vector<256x1xf32>
    %224 = arith.divf %222, %223 : vector<256x1xf32>
    %225 = arith.mulf %219, %219 : vector<256x1xf32>
    %226 = arith.subf %224, %225 : vector<256x1xf32>
    %cst_118 = arith.constant 0.000000e+00 : f32
    %227 = vector.broadcast %cst_118 : f32 to vector<256x1xf32>
    %228 = arith.maximumf %226, %227 : vector<256x1xf32>
    %229 = vector.broadcast %219 : vector<256x1xf32> to vector<256x64xf32>
    %230 = arith.subf %213, %229 : vector<256x64xf32>
    %cst_119 = arith.constant 9.99999974E-6 : f32
    %231 = vector.broadcast %cst_119 : f32 to vector<256x1xf32>
    %232 = arith.addf %228, %231 : vector<256x1xf32>
    %233 = math.rsqrt %232 : vector<256x1xf32>
    %234 = vector.broadcast %233 : vector<256x1xf32> to vector<256x64xf32>
    %235 = arith.mulf %230, %234 : vector<256x64xf32>
    %236 = vector.broadcast %214 : vector<1x64xf32> to vector<256x64xf32>
    %237 = arith.mulf %235, %236 : vector<256x64xf32>
    %238 = vector.broadcast %215 : vector<1x64xf32> to vector<256x64xf32>
    %239 = arith.addf %237, %238 : vector<256x64xf32>
    %cst_120 = arith.constant 0.000000e+00 : f32
    %240 = vector.broadcast %cst_120 : f32 to vector<256x64xf32>
    %241 = arith.maximumf %239, %240 : vector<256x64xf32>
    %c0_121 = arith.constant 0 : index
    %c0_122 = arith.constant 0 : index
    %242 = vector.load %arg20[%c0_121, %c0_122] : memref<64x64xbf16, #tpu.memory_space<vmem>>, vector<64x64xbf16>
    %243 = arith.truncf %241 : vector<256x64xf32> to vector<256x64xbf16>
    %cst_123 = arith.constant dense<0.000000e+00> : vector<256x64xf32>
    %244 = tpu.matmul %243, %242, %cst_123 {dimension_numbers = #tpu.dot_dimension_numbers<[1], [0], [0], [1], [0, 0, 1, 1], [], []>} : vector<256x64xbf16>, vector<64x64xbf16>, vector<256x64xf32> -> vector<256x64xf32>
    %c0_124 = arith.constant 0 : index
    %c0_125 = arith.constant 0 : index
    %245 = vector.load %arg13[%c0_124, %c0_125] : memref<1x64xf32, #tpu.memory_space<vmem>>, vector<1x64xf32>
    %246 = vector.broadcast %245 : vector<1x64xf32> to vector<256x64xf32>
    %247 = arith.addf %244, %246 : vector<256x64xf32>
    %248 = arith.truncf %247 : vector<256x64xf32> to vector<256x64xbf16>
    %cst_126 = arith.constant dense<0.000000e+00> : vector<96x64xf32>
    %249 = tpu.matmul %26, %248, %cst_126 {dimension_numbers = #tpu.dot_dimension_numbers<[1], [0], [0], [1], [0, 0, 1, 1], [], []>} : vector<96x256xbf16>, vector<256x64xbf16>, vector<96x64xf32> -> vector<96x64xf32>
    %c0_127 = arith.constant 0 : index
    %c0_128 = arith.constant 0 : index
    %250 = vector.load %arg19[%c0_127, %c0_128] : memref<1x64xf32, #tpu.memory_space<vmem>>, vector<1x64xf32>
    %c0_129 = arith.constant 0 : index
    %c0_130 = arith.constant 0 : index
    %251 = vector.load %arg17[%c0_129, %c0_130] : memref<1x64xf32, #tpu.memory_space<vmem>>, vector<1x64xf32>
    %cst_131 = arith.constant dense<0.000000e+00> : vector<96xf32>
    %252 = vector.multi_reduction <add>, %249, %cst_131 [1] : vector<96x64xf32> to vector<96xf32>
    %253 = vector.shape_cast %252 : vector<96xf32> to vector<96x1xf32>
    %cst_132 = arith.constant 6.400000e+01 : f32
    %254 = vector.broadcast %cst_132 : f32 to vector<96x1xf32>
    %255 = arith.divf %253, %254 : vector<96x1xf32>
    %256 = arith.mulf %249, %249 : vector<96x64xf32>
    %cst_133 = arith.constant dense<0.000000e+00> : vector<96xf32>
    %257 = vector.multi_reduction <add>, %256, %cst_133 [1] : vector<96x64xf32> to vector<96xf32>
    %258 = vector.shape_cast %257 : vector<96xf32> to vector<96x1xf32>
    %cst_134 = arith.constant 6.400000e+01 : f32
    %259 = vector.broadcast %cst_134 : f32 to vector<96x1xf32>
    %260 = arith.divf %258, %259 : vector<96x1xf32>
    %261 = arith.mulf %255, %255 : vector<96x1xf32>
    %262 = arith.subf %260, %261 : vector<96x1xf32>
    %cst_135 = arith.constant 0.000000e+00 : f32
    %263 = vector.broadcast %cst_135 : f32 to vector<96x1xf32>
    %264 = arith.maximumf %262, %263 : vector<96x1xf32>
    %265 = vector.broadcast %255 : vector<96x1xf32> to vector<96x64xf32>
    %266 = arith.subf %249, %265 : vector<96x64xf32>
    %cst_136 = arith.constant 9.99999974E-6 : f32
    %267 = vector.broadcast %cst_136 : f32 to vector<96x1xf32>
    %268 = arith.addf %264, %267 : vector<96x1xf32>
    %269 = math.rsqrt %268 : vector<96x1xf32>
    %270 = vector.broadcast %269 : vector<96x1xf32> to vector<96x64xf32>
    %271 = arith.mulf %266, %270 : vector<96x64xf32>
    %272 = vector.broadcast %250 : vector<1x64xf32> to vector<96x64xf32>
    %273 = arith.mulf %271, %272 : vector<96x64xf32>
    %274 = vector.broadcast %251 : vector<1x64xf32> to vector<96x64xf32>
    %275 = arith.addf %273, %274 : vector<96x64xf32>
    %276 = tpu.concatenate %275, %112 in 1 : vector<96x64xf32>, vector<96x64xf32> -> vector<96x128xf32>
    %c0_137 = arith.constant 0 : index
    %c0_138 = arith.constant 0 : index
    %277 = vector.load %arg22[%c0_137, %c0_138] : memref<128x64xbf16, #tpu.memory_space<vmem>>, vector<128x64xbf16>
    %278 = arith.truncf %276 : vector<96x128xf32> to vector<96x128xbf16>
    %cst_139 = arith.constant dense<0.000000e+00> : vector<96x64xf32>
    %279 = tpu.matmul %278, %277, %cst_139 {dimension_numbers = #tpu.dot_dimension_numbers<[1], [0], [0], [1], [0, 0, 1, 1], [], []>} : vector<96x128xbf16>, vector<128x64xbf16>, vector<96x64xf32> -> vector<96x64xf32>
    %c0_140 = arith.constant 0 : index
    %c0_141 = arith.constant 0 : index
    %280 = vector.load %arg15[%c0_140, %c0_141] : memref<1x64xf32, #tpu.memory_space<vmem>>, vector<1x64xf32>
    %281 = vector.broadcast %280 : vector<1x64xf32> to vector<96x64xf32>
    %282 = arith.addf %279, %281 : vector<96x64xf32>
    %cst_142 = arith.constant 0.000000e+00 : f32
    %283 = vector.broadcast %cst_142 : f32 to vector<96x64xf32>
    %284 = arith.maximumf %282, %283 : vector<96x64xf32>
    %c0_143 = arith.constant 0 : index
    %c0_144 = arith.constant 0 : index
    %285 = vector.load %arg23[%c0_143, %c0_144] : memref<64x64xbf16, #tpu.memory_space<vmem>>, vector<64x64xbf16>
    %286 = arith.truncf %284 : vector<96x64xf32> to vector<96x64xbf16>
    %cst_145 = arith.constant dense<0.000000e+00> : vector<96x64xf32>
    %287 = tpu.matmul %286, %285, %cst_145 {dimension_numbers = #tpu.dot_dimension_numbers<[1], [0], [0], [1], [0, 0, 1, 1], [], []>} : vector<96x64xbf16>, vector<64x64xbf16>, vector<96x64xf32> -> vector<96x64xf32>
    %c0_146 = arith.constant 0 : index
    %c0_147 = arith.constant 0 : index
    %288 = vector.load %arg16[%c0_146, %c0_147] : memref<1x64xf32, #tpu.memory_space<vmem>>, vector<1x64xf32>
    %289 = vector.broadcast %288 : vector<1x64xf32> to vector<96x64xf32>
    %290 = arith.addf %287, %289 : vector<96x64xf32>
    %c0_148 = arith.constant 0 : index
    %c0_149 = arith.constant 0 : index
    %291 = vector.load %arg60[%c0_148, %c0_149] : memref<64x64xbf16, #tpu.memory_space<vmem>>, vector<64x64xbf16>
    %292 = arith.truncf %201 : vector<64x64xf32> to vector<64x64xbf16>
    %cst_150 = arith.constant dense<0.000000e+00> : vector<64x64xf32>
    %293 = tpu.matmul %292, %291, %cst_150 {dimension_numbers = #tpu.dot_dimension_numbers<[1], [0], [0], [1], [0, 0, 1, 1], [], []>} : vector<64x64xbf16>, vector<64x64xbf16>, vector<64x64xf32> -> vector<64x64xf32>
    %c0_151 = arith.constant 0 : index
    %c0_152 = arith.constant 0 : index
    %294 = vector.load %arg63[%c0_151, %c0_152] : memref<64x64xbf16, #tpu.memory_space<vmem>>, vector<64x64xbf16>
    %295 = arith.truncf %290 : vector<96x64xf32> to vector<96x64xbf16>
    %cst_153 = arith.constant dense<0.000000e+00> : vector<96x64xf32>
    %296 = tpu.matmul %295, %294, %cst_153 {dimension_numbers = #tpu.dot_dimension_numbers<[1], [0], [0], [1], [0, 0, 1, 1], [], []>} : vector<96x64xbf16>, vector<64x64xbf16>, vector<96x64xf32> -> vector<96x64xf32>
    %297 = tpu.concatenate %293, %296 in 0 : vector<64x64xf32>, vector<96x64xf32> -> vector<160x64xf32>
    %298 = arith.truncf %297 : vector<160x64xf32> to vector<160x64xbf16>
    %cst_154 = arith.constant dense<0.000000e+00> : vector<256x64xf32>
    %299 = tpu.matmul %14, %298, %cst_154 {dimension_numbers = #tpu.dot_dimension_numbers<[1], [0], [0], [1], [0, 0, 1, 1], [], []>} : vector<256x160xbf16>, vector<160x64xbf16>, vector<256x64xf32> -> vector<256x64xf32>
    %c0_155 = arith.constant 0 : index
    %c0_156 = arith.constant 0 : index
    %300 = vector.load %arg53[%c0_155, %c0_156] : memref<1x64xf32, #tpu.memory_space<vmem>>, vector<1x64xf32>
    %301 = vector.broadcast %300 : vector<1x64xf32> to vector<256x64xf32>
    %302 = arith.addf %299, %301 : vector<256x64xf32>
    %c0_157 = arith.constant 0 : index
    %c0_158 = arith.constant 0 : index
    %303 = vector.load %arg57[%c0_157, %c0_158] : memref<1x64xf32, #tpu.memory_space<vmem>>, vector<1x64xf32>
    %c0_159 = arith.constant 0 : index
    %c0_160 = arith.constant 0 : index
    %304 = vector.load %arg51[%c0_159, %c0_160] : memref<1x64xf32, #tpu.memory_space<vmem>>, vector<1x64xf32>
    %cst_161 = arith.constant dense<0.000000e+00> : vector<256xf32>
    %305 = vector.multi_reduction <add>, %302, %cst_161 [1] : vector<256x64xf32> to vector<256xf32>
    %306 = vector.shape_cast %305 : vector<256xf32> to vector<256x1xf32>
    %cst_162 = arith.constant 6.400000e+01 : f32
    %307 = vector.broadcast %cst_162 : f32 to vector<256x1xf32>
    %308 = arith.divf %306, %307 : vector<256x1xf32>
    %309 = arith.mulf %302, %302 : vector<256x64xf32>
    %cst_163 = arith.constant dense<0.000000e+00> : vector<256xf32>
    %310 = vector.multi_reduction <add>, %309, %cst_163 [1] : vector<256x64xf32> to vector<256xf32>
    %311 = vector.shape_cast %310 : vector<256xf32> to vector<256x1xf32>
    %cst_164 = arith.constant 6.400000e+01 : f32
    %312 = vector.broadcast %cst_164 : f32 to vector<256x1xf32>
    %313 = arith.divf %311, %312 : vector<256x1xf32>
    %314 = arith.mulf %308, %308 : vector<256x1xf32>
    %315 = arith.subf %313, %314 : vector<256x1xf32>
    %cst_165 = arith.constant 0.000000e+00 : f32
    %316 = vector.broadcast %cst_165 : f32 to vector<256x1xf32>
    %317 = arith.maximumf %315, %316 : vector<256x1xf32>
    %318 = vector.broadcast %308 : vector<256x1xf32> to vector<256x64xf32>
    %319 = arith.subf %302, %318 : vector<256x64xf32>
    %cst_166 = arith.constant 9.99999974E-6 : f32
    %320 = vector.broadcast %cst_166 : f32 to vector<256x1xf32>
    %321 = arith.addf %317, %320 : vector<256x1xf32>
    %322 = math.rsqrt %321 : vector<256x1xf32>
    %323 = vector.broadcast %322 : vector<256x1xf32> to vector<256x64xf32>
    %324 = arith.mulf %319, %323 : vector<256x64xf32>
    %325 = vector.broadcast %303 : vector<1x64xf32> to vector<256x64xf32>
    %326 = arith.mulf %324, %325 : vector<256x64xf32>
    %327 = vector.broadcast %304 : vector<1x64xf32> to vector<256x64xf32>
    %328 = arith.addf %326, %327 : vector<256x64xf32>
    %cst_167 = arith.constant 0.000000e+00 : f32
    %329 = vector.broadcast %cst_167 : f32 to vector<256x64xf32>
    %330 = arith.maximumf %328, %329 : vector<256x64xf32>
    %c0_168 = arith.constant 0 : index
    %c0_169 = arith.constant 0 : index
    %331 = vector.load %arg59[%c0_168, %c0_169] : memref<64x64xbf16, #tpu.memory_space<vmem>>, vector<64x64xbf16>
    %332 = arith.truncf %330 : vector<256x64xf32> to vector<256x64xbf16>
    %cst_170 = arith.constant dense<0.000000e+00> : vector<256x64xf32>
    %333 = tpu.matmul %332, %331, %cst_170 {dimension_numbers = #tpu.dot_dimension_numbers<[1], [0], [0], [1], [0, 0, 1, 1], [], []>} : vector<256x64xbf16>, vector<64x64xbf16>, vector<256x64xf32> -> vector<256x64xf32>
    %c0_171 = arith.constant 0 : index
    %c0_172 = arith.constant 0 : index
    %334 = vector.load %arg52[%c0_171, %c0_172] : memref<1x64xf32, #tpu.memory_space<vmem>>, vector<1x64xf32>
    %335 = vector.broadcast %334 : vector<1x64xf32> to vector<256x64xf32>
    %336 = arith.addf %333, %335 : vector<256x64xf32>
    %337 = arith.truncf %336 : vector<256x64xf32> to vector<256x64xbf16>
    %cst_173 = arith.constant dense<0.000000e+00> : vector<64x64xf32>
    %338 = tpu.matmul %20, %337, %cst_173 {dimension_numbers = #tpu.dot_dimension_numbers<[1], [0], [0], [1], [0, 0, 1, 1], [], []>} : vector<64x256xbf16>, vector<256x64xbf16>, vector<64x64xf32> -> vector<64x64xf32>
    %c0_174 = arith.constant 0 : index
    %c0_175 = arith.constant 0 : index
    %339 = vector.load %arg58[%c0_174, %c0_175] : memref<1x64xf32, #tpu.memory_space<vmem>>, vector<1x64xf32>
    %c0_176 = arith.constant 0 : index
    %c0_177 = arith.constant 0 : index
    %340 = vector.load %arg56[%c0_176, %c0_177] : memref<1x64xf32, #tpu.memory_space<vmem>>, vector<1x64xf32>
    %cst_178 = arith.constant dense<0.000000e+00> : vector<64xf32>
    %341 = vector.multi_reduction <add>, %338, %cst_178 [1] : vector<64x64xf32> to vector<64xf32>
    %342 = vector.shape_cast %341 : vector<64xf32> to vector<64x1xf32>
    %cst_179 = arith.constant 6.400000e+01 : f32
    %343 = vector.broadcast %cst_179 : f32 to vector<64x1xf32>
    %344 = arith.divf %342, %343 : vector<64x1xf32>
    %345 = arith.mulf %338, %338 : vector<64x64xf32>
    %cst_180 = arith.constant dense<0.000000e+00> : vector<64xf32>
    %346 = vector.multi_reduction <add>, %345, %cst_180 [1] : vector<64x64xf32> to vector<64xf32>
    %347 = vector.shape_cast %346 : vector<64xf32> to vector<64x1xf32>
    %cst_181 = arith.constant 6.400000e+01 : f32
    %348 = vector.broadcast %cst_181 : f32 to vector<64x1xf32>
    %349 = arith.divf %347, %348 : vector<64x1xf32>
    %350 = arith.mulf %344, %344 : vector<64x1xf32>
    %351 = arith.subf %349, %350 : vector<64x1xf32>
    %cst_182 = arith.constant 0.000000e+00 : f32
    %352 = vector.broadcast %cst_182 : f32 to vector<64x1xf32>
    %353 = arith.maximumf %351, %352 : vector<64x1xf32>
    %354 = vector.broadcast %344 : vector<64x1xf32> to vector<64x64xf32>
    %355 = arith.subf %338, %354 : vector<64x64xf32>
    %cst_183 = arith.constant 9.99999974E-6 : f32
    %356 = vector.broadcast %cst_183 : f32 to vector<64x1xf32>
    %357 = arith.addf %353, %356 : vector<64x1xf32>
    %358 = math.rsqrt %357 : vector<64x1xf32>
    %359 = vector.broadcast %358 : vector<64x1xf32> to vector<64x64xf32>
    %360 = arith.mulf %355, %359 : vector<64x64xf32>
    %361 = vector.broadcast %339 : vector<1x64xf32> to vector<64x64xf32>
    %362 = arith.mulf %360, %361 : vector<64x64xf32>
    %363 = vector.broadcast %340 : vector<1x64xf32> to vector<64x64xf32>
    %364 = arith.addf %362, %363 : vector<64x64xf32>
    %365 = tpu.concatenate %364, %201 in 1 : vector<64x64xf32>, vector<64x64xf32> -> vector<64x128xf32>
    %c0_184 = arith.constant 0 : index
    %c0_185 = arith.constant 0 : index
    %366 = vector.load %arg61[%c0_184, %c0_185] : memref<128x64xbf16, #tpu.memory_space<vmem>>, vector<128x64xbf16>
    %367 = arith.truncf %365 : vector<64x128xf32> to vector<64x128xbf16>
    %cst_186 = arith.constant dense<0.000000e+00> : vector<64x64xf32>
    %368 = tpu.matmul %367, %366, %cst_186 {dimension_numbers = #tpu.dot_dimension_numbers<[1], [0], [0], [1], [0, 0, 1, 1], [], []>} : vector<64x128xbf16>, vector<128x64xbf16>, vector<64x64xf32> -> vector<64x64xf32>
    %c0_187 = arith.constant 0 : index
    %c0_188 = arith.constant 0 : index
    %369 = vector.load %arg54[%c0_187, %c0_188] : memref<1x64xf32, #tpu.memory_space<vmem>>, vector<1x64xf32>
    %370 = vector.broadcast %369 : vector<1x64xf32> to vector<64x64xf32>
    %371 = arith.addf %368, %370 : vector<64x64xf32>
    %cst_189 = arith.constant 0.000000e+00 : f32
    %372 = vector.broadcast %cst_189 : f32 to vector<64x64xf32>
    %373 = arith.maximumf %371, %372 : vector<64x64xf32>
    %c0_190 = arith.constant 0 : index
    %c0_191 = arith.constant 0 : index
    %374 = vector.load %arg62[%c0_190, %c0_191] : memref<64x64xbf16, #tpu.memory_space<vmem>>, vector<64x64xbf16>
    %375 = arith.truncf %373 : vector<64x64xf32> to vector<64x64xbf16>
    %cst_192 = arith.constant dense<0.000000e+00> : vector<64x64xf32>
    %376 = tpu.matmul %375, %374, %cst_192 {dimension_numbers = #tpu.dot_dimension_numbers<[1], [0], [0], [1], [0, 0, 1, 1], [], []>} : vector<64x64xbf16>, vector<64x64xbf16>, vector<64x64xf32> -> vector<64x64xf32>
    %c0_193 = arith.constant 0 : index
    %c0_194 = arith.constant 0 : index
    %377 = vector.load %arg55[%c0_193, %c0_194] : memref<1x64xf32, #tpu.memory_space<vmem>>, vector<1x64xf32>
    %378 = vector.broadcast %377 : vector<1x64xf32> to vector<64x64xf32>
    %379 = arith.addf %376, %378 : vector<64x64xf32>
    %c0_195 = arith.constant 0 : index
    %c0_196 = arith.constant 0 : index
    %380 = vector.load %arg34[%c0_195, %c0_196] : memref<64x64xbf16, #tpu.memory_space<vmem>>, vector<64x64xbf16>
    %381 = arith.truncf %290 : vector<96x64xf32> to vector<96x64xbf16>
    %cst_197 = arith.constant dense<0.000000e+00> : vector<96x64xf32>
    %382 = tpu.matmul %381, %380, %cst_197 {dimension_numbers = #tpu.dot_dimension_numbers<[1], [0], [0], [1], [0, 0, 1, 1], [], []>} : vector<96x64xbf16>, vector<64x64xbf16>, vector<96x64xf32> -> vector<96x64xf32>
    %c0_198 = arith.constant 0 : index
    %c0_199 = arith.constant 0 : index
    %383 = vector.load %arg37[%c0_198, %c0_199] : memref<64x64xbf16, #tpu.memory_space<vmem>>, vector<64x64xbf16>
    %384 = arith.truncf %379 : vector<64x64xf32> to vector<64x64xbf16>
    %cst_200 = arith.constant dense<0.000000e+00> : vector<64x64xf32>
    %385 = tpu.matmul %384, %383, %cst_200 {dimension_numbers = #tpu.dot_dimension_numbers<[1], [0], [0], [1], [0, 0, 1, 1], [], []>} : vector<64x64xbf16>, vector<64x64xbf16>, vector<64x64xf32> -> vector<64x64xf32>
    %386 = tpu.concatenate %385, %382 in 0 : vector<64x64xf32>, vector<96x64xf32> -> vector<160x64xf32>
    %387 = arith.truncf %386 : vector<160x64xf32> to vector<160x64xbf16>
    %cst_201 = arith.constant dense<0.000000e+00> : vector<256x64xf32>
    %388 = tpu.matmul %14, %387, %cst_201 {dimension_numbers = #tpu.dot_dimension_numbers<[1], [0], [0], [1], [0, 0, 1, 1], [], []>} : vector<256x160xbf16>, vector<160x64xbf16>, vector<256x64xf32> -> vector<256x64xf32>
    %c0_202 = arith.constant 0 : index
    %c0_203 = arith.constant 0 : index
    %389 = vector.load %arg27[%c0_202, %c0_203] : memref<1x64xf32, #tpu.memory_space<vmem>>, vector<1x64xf32>
    %390 = vector.broadcast %389 : vector<1x64xf32> to vector<256x64xf32>
    %391 = arith.addf %388, %390 : vector<256x64xf32>
    %c0_204 = arith.constant 0 : index
    %c0_205 = arith.constant 0 : index
    %392 = vector.load %arg31[%c0_204, %c0_205] : memref<1x64xf32, #tpu.memory_space<vmem>>, vector<1x64xf32>
    %c0_206 = arith.constant 0 : index
    %c0_207 = arith.constant 0 : index
    %393 = vector.load %arg25[%c0_206, %c0_207] : memref<1x64xf32, #tpu.memory_space<vmem>>, vector<1x64xf32>
    %cst_208 = arith.constant dense<0.000000e+00> : vector<256xf32>
    %394 = vector.multi_reduction <add>, %391, %cst_208 [1] : vector<256x64xf32> to vector<256xf32>
    %395 = vector.shape_cast %394 : vector<256xf32> to vector<256x1xf32>
    %cst_209 = arith.constant 6.400000e+01 : f32
    %396 = vector.broadcast %cst_209 : f32 to vector<256x1xf32>
    %397 = arith.divf %395, %396 : vector<256x1xf32>
    %398 = arith.mulf %391, %391 : vector<256x64xf32>
    %cst_210 = arith.constant dense<0.000000e+00> : vector<256xf32>
    %399 = vector.multi_reduction <add>, %398, %cst_210 [1] : vector<256x64xf32> to vector<256xf32>
    %400 = vector.shape_cast %399 : vector<256xf32> to vector<256x1xf32>
    %cst_211 = arith.constant 6.400000e+01 : f32
    %401 = vector.broadcast %cst_211 : f32 to vector<256x1xf32>
    %402 = arith.divf %400, %401 : vector<256x1xf32>
    %403 = arith.mulf %397, %397 : vector<256x1xf32>
    %404 = arith.subf %402, %403 : vector<256x1xf32>
    %cst_212 = arith.constant 0.000000e+00 : f32
    %405 = vector.broadcast %cst_212 : f32 to vector<256x1xf32>
    %406 = arith.maximumf %404, %405 : vector<256x1xf32>
    %407 = vector.broadcast %397 : vector<256x1xf32> to vector<256x64xf32>
    %408 = arith.subf %391, %407 : vector<256x64xf32>
    %cst_213 = arith.constant 9.99999974E-6 : f32
    %409 = vector.broadcast %cst_213 : f32 to vector<256x1xf32>
    %410 = arith.addf %406, %409 : vector<256x1xf32>
    %411 = math.rsqrt %410 : vector<256x1xf32>
    %412 = vector.broadcast %411 : vector<256x1xf32> to vector<256x64xf32>
    %413 = arith.mulf %408, %412 : vector<256x64xf32>
    %414 = vector.broadcast %392 : vector<1x64xf32> to vector<256x64xf32>
    %415 = arith.mulf %413, %414 : vector<256x64xf32>
    %416 = vector.broadcast %393 : vector<1x64xf32> to vector<256x64xf32>
    %417 = arith.addf %415, %416 : vector<256x64xf32>
    %cst_214 = arith.constant 0.000000e+00 : f32
    %418 = vector.broadcast %cst_214 : f32 to vector<256x64xf32>
    %419 = arith.maximumf %417, %418 : vector<256x64xf32>
    %c0_215 = arith.constant 0 : index
    %c0_216 = arith.constant 0 : index
    %420 = vector.load %arg33[%c0_215, %c0_216] : memref<64x64xbf16, #tpu.memory_space<vmem>>, vector<64x64xbf16>
    %421 = arith.truncf %419 : vector<256x64xf32> to vector<256x64xbf16>
    %cst_217 = arith.constant dense<0.000000e+00> : vector<256x64xf32>
    %422 = tpu.matmul %421, %420, %cst_217 {dimension_numbers = #tpu.dot_dimension_numbers<[1], [0], [0], [1], [0, 0, 1, 1], [], []>} : vector<256x64xbf16>, vector<64x64xbf16>, vector<256x64xf32> -> vector<256x64xf32>
    %c0_218 = arith.constant 0 : index
    %c0_219 = arith.constant 0 : index
    %423 = vector.load %arg26[%c0_218, %c0_219] : memref<1x64xf32, #tpu.memory_space<vmem>>, vector<1x64xf32>
    %424 = vector.broadcast %423 : vector<1x64xf32> to vector<256x64xf32>
    %425 = arith.addf %422, %424 : vector<256x64xf32>
    %426 = arith.truncf %425 : vector<256x64xf32> to vector<256x64xbf16>
    %cst_220 = arith.constant dense<0.000000e+00> : vector<96x64xf32>
    %427 = tpu.matmul %26, %426, %cst_220 {dimension_numbers = #tpu.dot_dimension_numbers<[1], [0], [0], [1], [0, 0, 1, 1], [], []>} : vector<96x256xbf16>, vector<256x64xbf16>, vector<96x64xf32> -> vector<96x64xf32>
    %c0_221 = arith.constant 0 : index
    %c0_222 = arith.constant 0 : index
    %428 = vector.load %arg32[%c0_221, %c0_222] : memref<1x64xf32, #tpu.memory_space<vmem>>, vector<1x64xf32>
    %c0_223 = arith.constant 0 : index
    %c0_224 = arith.constant 0 : index
    %429 = vector.load %arg30[%c0_223, %c0_224] : memref<1x64xf32, #tpu.memory_space<vmem>>, vector<1x64xf32>
    %cst_225 = arith.constant dense<0.000000e+00> : vector<96xf32>
    %430 = vector.multi_reduction <add>, %427, %cst_225 [1] : vector<96x64xf32> to vector<96xf32>
    %431 = vector.shape_cast %430 : vector<96xf32> to vector<96x1xf32>
    %cst_226 = arith.constant 6.400000e+01 : f32
    %432 = vector.broadcast %cst_226 : f32 to vector<96x1xf32>
    %433 = arith.divf %431, %432 : vector<96x1xf32>
    %434 = arith.mulf %427, %427 : vector<96x64xf32>
    %cst_227 = arith.constant dense<0.000000e+00> : vector<96xf32>
    %435 = vector.multi_reduction <add>, %434, %cst_227 [1] : vector<96x64xf32> to vector<96xf32>
    %436 = vector.shape_cast %435 : vector<96xf32> to vector<96x1xf32>
    %cst_228 = arith.constant 6.400000e+01 : f32
    %437 = vector.broadcast %cst_228 : f32 to vector<96x1xf32>
    %438 = arith.divf %436, %437 : vector<96x1xf32>
    %439 = arith.mulf %433, %433 : vector<96x1xf32>
    %440 = arith.subf %438, %439 : vector<96x1xf32>
    %cst_229 = arith.constant 0.000000e+00 : f32
    %441 = vector.broadcast %cst_229 : f32 to vector<96x1xf32>
    %442 = arith.maximumf %440, %441 : vector<96x1xf32>
    %443 = vector.broadcast %433 : vector<96x1xf32> to vector<96x64xf32>
    %444 = arith.subf %427, %443 : vector<96x64xf32>
    %cst_230 = arith.constant 9.99999974E-6 : f32
    %445 = vector.broadcast %cst_230 : f32 to vector<96x1xf32>
    %446 = arith.addf %442, %445 : vector<96x1xf32>
    %447 = math.rsqrt %446 : vector<96x1xf32>
    %448 = vector.broadcast %447 : vector<96x1xf32> to vector<96x64xf32>
    %449 = arith.mulf %444, %448 : vector<96x64xf32>
    %450 = vector.broadcast %428 : vector<1x64xf32> to vector<96x64xf32>
    %451 = arith.mulf %449, %450 : vector<96x64xf32>
    %452 = vector.broadcast %429 : vector<1x64xf32> to vector<96x64xf32>
    %453 = arith.addf %451, %452 : vector<96x64xf32>
    %454 = tpu.concatenate %453, %290 in 1 : vector<96x64xf32>, vector<96x64xf32> -> vector<96x128xf32>
    %c0_231 = arith.constant 0 : index
    %c0_232 = arith.constant 0 : index
    %455 = vector.load %arg35[%c0_231, %c0_232] : memref<128x64xbf16, #tpu.memory_space<vmem>>, vector<128x64xbf16>
    %456 = arith.truncf %454 : vector<96x128xf32> to vector<96x128xbf16>
    %cst_233 = arith.constant dense<0.000000e+00> : vector<96x64xf32>
    %457 = tpu.matmul %456, %455, %cst_233 {dimension_numbers = #tpu.dot_dimension_numbers<[1], [0], [0], [1], [0, 0, 1, 1], [], []>} : vector<96x128xbf16>, vector<128x64xbf16>, vector<96x64xf32> -> vector<96x64xf32>
    %c0_234 = arith.constant 0 : index
    %c0_235 = arith.constant 0 : index
    %458 = vector.load %arg28[%c0_234, %c0_235] : memref<1x64xf32, #tpu.memory_space<vmem>>, vector<1x64xf32>
    %459 = vector.broadcast %458 : vector<1x64xf32> to vector<96x64xf32>
    %460 = arith.addf %457, %459 : vector<96x64xf32>
    %cst_236 = arith.constant 0.000000e+00 : f32
    %461 = vector.broadcast %cst_236 : f32 to vector<96x64xf32>
    %462 = arith.maximumf %460, %461 : vector<96x64xf32>
    %c0_237 = arith.constant 0 : index
    %c0_238 = arith.constant 0 : index
    %463 = vector.load %arg36[%c0_237, %c0_238] : memref<64x64xbf16, #tpu.memory_space<vmem>>, vector<64x64xbf16>
    %464 = arith.truncf %462 : vector<96x64xf32> to vector<96x64xbf16>
    %cst_239 = arith.constant dense<0.000000e+00> : vector<96x64xf32>
    %465 = tpu.matmul %464, %463, %cst_239 {dimension_numbers = #tpu.dot_dimension_numbers<[1], [0], [0], [1], [0, 0, 1, 1], [], []>} : vector<96x64xbf16>, vector<64x64xbf16>, vector<96x64xf32> -> vector<96x64xf32>
    %c0_240 = arith.constant 0 : index
    %c0_241 = arith.constant 0 : index
    %466 = vector.load %arg29[%c0_240, %c0_241] : memref<1x64xf32, #tpu.memory_space<vmem>>, vector<1x64xf32>
    %467 = vector.broadcast %466 : vector<1x64xf32> to vector<96x64xf32>
    %468 = arith.addf %465, %467 : vector<96x64xf32>
    %c0_242 = arith.constant 0 : index
    %c0_243 = arith.constant 0 : index
    %469 = vector.load %arg70[%c0_242, %c0_243] : memref<160x64xf32, #tpu.memory_space<vmem>>, vector<64x64xf32>
    tpu.vector_store %arg70[%c0_242, %c0_243], %379 {strides = array<i32>} : memref<160x64xf32, #tpu.memory_space<vmem>>, vector<64x64xf32>,
    %c64 = arith.constant 64 : index
    %c0_244 = arith.constant 0 : index
    %470 = vector.load %arg70[%c64, %c0_244] : memref<160x64xf32, #tpu.memory_space<vmem>>, vector<96x64xf32>
    tpu.vector_store %arg70[%c64, %c0_244], %468 {strides = array<i32>} : memref<160x64xf32, #tpu.memory_space<vmem>>, vector<96x64xf32>,
    return
  }
}

</mosaic_0001>

<llo_original>
// kernel: tpu_custom_call.1
$region0: #{tpu_custom_call.1}
  #allocation0 [shape = 'u32[]', space=smem, size = 0x4, offset = 0x4, fixed_abs, tag = 'smem constant byte address 0x4 - core index']
  #allocation1 [shape = 'u32[144,128]{1,0:T(1,128)}', space=vmem, size = 0x12000, scoped, tag = 'internal scratch']
  %s0 = inlined_call_operand.smem [shape: u32[71], index: -1, kind: input, shape index: {}]
  %s1 = sld [smem:[%s0]]
  %s2 = scalar_lea.smem %s0, 1
  %s3 = sld [smem:[%s2]]
  %s4 = scalar_lea.smem %s0, 2
  %s5 = sld [smem:[%s4]]
  %s6 = scalar_lea.smem %s0, 3
  %s7 = sld [smem:[%s6]]
  %s8 = scalar_lea.smem %s0, 4
  %s9 = sld [smem:[%s8]]
  %s10 = scalar_lea.smem %s0, 5
  %s11 = sld [smem:[%s10]]
  %s12 = scalar_lea.smem %s0, 6
  %s13 = sld [smem:[%s12]]
  %s14 = scalar_lea.smem %s0, 7
  %s15 = sld [smem:[%s14]]
  %s16 = scalar_lea.smem %s0, 8
  %s17 = sld [smem:[%s16]]
  %s18 = scalar_lea.smem %s0, 9
  %s19 = sld [smem:[%s18]]
  %s20 = scalar_lea.smem %s0, 10
  %s21 = sld [smem:[%s20]]
  %s22 = scalar_lea.smem %s0, 11
  %s23 = sld [smem:[%s22]]
  %s24 = scalar_lea.smem %s0, 12
  %s25 = sld [smem:[%s24]]
  %s26 = scalar_lea.smem %s0, 13
  %s27 = sld [smem:[%s26]]
  %s28 = scalar_lea.smem %s0, 14
  %s29 = sld [smem:[%s28]]
  %s30 = scalar_lea.smem %s0, 15
  %s31 = sld [smem:[%s30]]
  %s32 = scalar_lea.smem %s0, 16
  %s33 = sld [smem:[%s32]]
  %s34 = scalar_lea.smem %s0, 17
  %s35 = sld [smem:[%s34]]
  %s36 = scalar_lea.smem %s0, 18
  %s37 = sld [smem:[%s36]]
  %s38 = scalar_lea.smem %s0, 19
  %s39 = sld [smem:[%s38]]
  %s40 = scalar_lea.smem %s0, 20
  %s41 = sld [smem:[%s40]]
  %s42 = scalar_lea.smem %s0, 21
  %s43 = sld [smem:[%s42]]
  %s44 = scalar_lea.smem %s0, 22
  %s45 = sld [smem:[%s44]]
  %s46 = scalar_lea.smem %s0, 23
  %s47 = sld [smem:[%s46]]
  %s48 = scalar_lea.smem %s0, 24
  %s49 = sld [smem:[%s48]]
  %s50 = scalar_lea.smem %s0, 25
  %s51 = sld [smem:[%s50]]
  %s52 = scalar_lea.smem %s0, 26
  %s53 = sld [smem:[%s52]]
  %s54 = scalar_lea.smem %s0, 27
  %s55 = sld [smem:[%s54]]
  %s56 = scalar_lea.smem %s0, 28
  %s57 = sld [smem:[%s56]]
  %s58 = scalar_lea.smem %s0, 29
  %s59 = sld [smem:[%s58]]
  %s60 = scalar_lea.smem %s0, 30
  %s61 = sld [smem:[%s60]]
  %s62 = scalar_lea.smem %s0, 31
  %s63 = sld [smem:[%s62]]
  %s64 = scalar_lea.smem %s0, 32
  %s65 = sld [smem:[%s64]]
  %s66 = scalar_lea.smem %s0, 33
  %s67 = sld [smem:[%s66]]
  %s68 = scalar_lea.smem %s0, 34
  %s69 = sld [smem:[%s68]]
  %s70 = scalar_lea.smem %s0, 35
  %s71 = sld [smem:[%s70]]
  %s72 = scalar_lea.smem %s0, 36
  %s73 = sld [smem:[%s72]]
  %s74 = scalar_lea.smem %s0, 37
  %s75 = sld [smem:[%s74]]
  %s76 = scalar_lea.smem %s0, 38
  %s77 = sld [smem:[%s76]]
  %s78 = scalar_lea.smem %s0, 39
  %s79 = sld [smem:[%s78]]
  %s80 = scalar_lea.smem %s0, 40
  %s81 = sld [smem:[%s80]]
  %s82 = scalar_lea.smem %s0, 41
  %s83 = sld [smem:[%s82]]
  %s84 = scalar_lea.smem %s0, 42
  %s85 = sld [smem:[%s84]]
  %s86 = scalar_lea.smem %s0, 43
  %s87 = sld [smem:[%s86]]
  %s88 = scalar_lea.smem %s0, 44
  %s89 = sld [smem:[%s88]]
  %s90 = scalar_lea.smem %s0, 45
  %s91 = sld [smem:[%s90]]
  %s92 = scalar_lea.smem %s0, 46
  %s93 = sld [smem:[%s92]]
  %s94 = scalar_lea.smem %s0, 47
  %s95 = sld [smem:[%s94]]
  %s96 = scalar_lea.smem %s0, 48
  %s97 = sld [smem:[%s96]]
  %s98 = scalar_lea.smem %s0, 49
  %s99 = sld [smem:[%s98]]
  %s100 = scalar_lea.smem %s0, 50
  %s101 = sld [smem:[%s100]]
  %s102 = scalar_lea.smem %s0, 51
  %s103 = sld [smem:[%s102]]
  %s104 = scalar_lea.smem %s0, 52
  %s105 = sld [smem:[%s104]]
  %s106 = scalar_lea.smem %s0, 53
  %s107 = sld [smem:[%s106]]
  %s108 = scalar_lea.smem %s0, 54
  %s109 = sld [smem:[%s108]]
  %s110 = scalar_lea.smem %s0, 55
  %s111 = sld [smem:[%s110]]
  %s112 = scalar_lea.smem %s0, 56
  %s113 = sld [smem:[%s112]]
  %s114 = scalar_lea.smem %s0, 57
  %s115 = sld [smem:[%s114]]
  %s116 = scalar_lea.smem %s0, 58
  %s117 = sld [smem:[%s116]]
  %s118 = scalar_lea.smem %s0, 59
  %s119 = sld [smem:[%s118]]
  %s120 = scalar_lea.smem %s0, 60
  %s121 = sld [smem:[%s120]]
  %s122 = scalar_lea.smem %s0, 61
  %s123 = sld [smem:[%s122]]
  %s124 = scalar_lea.smem %s0, 62
  %s125 = sld [smem:[%s124]]
  %s126 = scalar_lea.smem %s0, 63
  %s127 = sld [smem:[%s126]]
  %s128 = scalar_lea.smem %s0, 64
  %s129 = sld [smem:[%s128]]
  %s130 = scalar_lea.smem %s0, 65
  %s131 = sld [smem:[%s130]]
  %s132 = scalar_lea.smem %s0, 66
  %s133 = sld [smem:[%s132]]
  %s134 = scalar_lea.smem %s0, 67
  %s135 = sld [smem:[%s134]]
  %s136 = scalar_lea.smem %s0, 68
  %s137 = sld [smem:[%s136]]
  %s138 = scalar_lea.smem %s0, 69
  %s139 = sld [smem:[%s138]]
  %s140 = scalar_lea.smem %s0, 70
  %s141 = sld [smem:[%s140]]
  %s142 = sld [smem:[#allocation0]]
  $region394: #{tpu_custom_call.1} parent=0
    _
  %s144 = ssub.s32 1, %s142
  %s145 = scalar_select 0, %s144, %s142
  $region1: #{tpu_custom_call.1} parent=0
    #allocation2 [shape = 'u8[512]{0}', space=vmem, size = 0x400, scoped, tag = 'input window, operand 27, single buffered']
    #allocation3 [shape = 's32[1]{0}', space=sflag, size = 0x4, scoped, tag = 'scoped memory for tpu_custom_call.1']
    #allocation4 [shape = 'u8[512]{0}', space=vmem, size = 0x400, scoped, tag = 'input window, operand 28, single buffered']
    #allocation5 [shape = 's32[1]{0}', space=sflag, size = 0x4, scoped, tag = 'scoped memory for tpu_custom_call.1']
    #allocation6 [shape = 'u8[512]{0}', space=vmem, size = 0x400, scoped, tag = 'input window, operand 29, single buffered']
    #allocation7 [shape = 'u8[512]{0}', space=vmem, size = 0x400, scoped, tag = 'input window, operand 30, single buffered']
    #allocation8 [shape = 's32[1]{0}', space=sflag, size = 0x4, scoped, tag = 'scoped memory for tpu_custom_call.1']
    #allocation9 [shape = 'u8[512]{0}', space=vmem, size = 0x400, scoped, tag = 'input window, operand 31, single buffered']
    #allocation10 [shape = 'u8[512]{0}', space=vmem, size = 0x400, scoped, tag = 'input window, operand 32, single buffered']
    #allocation11 [shape = 's32[1]{0}', space=sflag, size = 0x4, scoped, tag = 'scoped memory for tpu_custom_call.1']
    #allocation12 [shape = 'u8[512]{0}', space=vmem, size = 0x400, scoped, tag = 'input window, operand 38, single buffered']
    #allocation13 [shape = 'u8[512]{0}', space=vmem, size = 0x400, scoped, tag = 'input window, operand 39, single buffered']
    #allocation14 [shape = 's32[1]{0}', space=sflag, size = 0x4, scoped, tag = 'scoped memory for tpu_custom_call.1']
    #allocation15 [shape = 'u8[512]{0}', space=vmem, size = 0x400, scoped, tag = 'input window, operand 40, single buffered']
    #allocation16 [shape = 'u8[512]{0}', space=vmem, size = 0x400, scoped, tag = 'input window, operand 41, single buffered']
    #allocation17 [shape = 's32[1]{0}', space=sflag, size = 0x4, scoped, tag = 'scoped memory for tpu_custom_call.1']
    #allocation18 [shape = 'u8[512]{0}', space=vmem, size = 0x400, scoped, tag = 'input window, operand 42, single buffered']
    #allocation19 [shape = 'u8[512]{0}', space=vmem, size = 0x400, scoped, tag = 'input window, operand 43, single buffered']
    #allocation20 [shape = 's32[1]{0}', space=sflag, size = 0x4, scoped, tag = 'scoped memory for tpu_custom_call.1']
    #allocation21 [shape = 'u8[512]{0}', space=vmem, size = 0x400, scoped, tag = 'input window, operand 44, single buffered']
    #allocation22 [shape = 'u8[512]{0}', space=vmem, size = 0x400, scoped, tag = 'input window, operand 45, single buffered']
    #allocation23 [shape = 's32[1]{0}', space=sflag, size = 0x4, scoped, tag = 'scoped memory for tpu_custom_call.1']
    #allocation24 [shape = 'u8[512]{0}', space=vmem, size = 0x400, scoped, tag = 'input window, operand 51, single buffered']
    #allocation25 [shape = 'u8[512]{0}', space=vmem, size = 0x400, scoped, tag = 'input window, operand 52, single buffered']
    #allocation26 [shape = 's32[1]{0}', space=sflag, size = 0x4, scoped, tag = 'scoped memory for tpu_custom_call.1']
    #allocation27 [shape = 'u8[512]{0}', space=vmem, size = 0x400, scoped, tag = 'input window, operand 53, single buffered']
    #allocation28 [shape = 'u8[512]{0}', space=vmem, size = 0x400, scoped, tag = 'input window, operand 54, single buffered']
    #allocation29 [shape = 's32[1]{0}', space=sflag, size = 0x4, scoped, tag = 'scoped memory for tpu_custom_call.1']
    #allocation30 [shape = 'u8[512]{0}', space=vmem, size = 0x400, scoped, tag = 'input window, operand 55, single buffered']
    #allocation31 [shape = 'u8[512]{0}', space=vmem, size = 0x400, scoped, tag = 'input window, operand 56, single buffered']
    #allocation32 [shape = 's32[1]{0}', space=sflag, size = 0x4, scoped, tag = 'scoped memory for tpu_custom_call.1']
    #allocation33 [shape = 'u8[512]{0}', space=vmem, size = 0x400, scoped, tag = 'input window, operand 57, single buffered']
    #allocation34 [shape = 'u8[512]{0}', space=vmem, size = 0x400, scoped, tag = 'input window, operand 58, single buffered']
    #allocation35 [shape = 's32[1]{0}', space=sflag, size = 0x4, scoped, tag = 'scoped memory for tpu_custom_call.1']
    #allocation36 [shape = 'u8[512]{0}', space=vmem, size = 0x400, scoped, tag = 'input window, operand 64, single buffered']
    #allocation37 [shape = 'u8[512]{0}', space=vmem, size = 0x400, scoped, tag = 'input window, operand 65, single buffered']
    #allocation38 [shape = 's32[1]{0}', space=sflag, size = 0x4, scoped, tag = 'scoped memory for tpu_custom_call.1']
    #allocation39 [shape = 'u8[512]{0}', space=vmem, size = 0x400, scoped, tag = 'input window, operand 66, single buffered']
    #allocation40 [shape = 'u8[512]{0}', space=vmem, size = 0x400, scoped, tag = 'input window, operand 67, single buffered']
    #allocation41 [shape = 's32[1]{0}', space=sflag, size = 0x4, scoped, tag = 'scoped memory for tpu_custom_call.1']
    %146 = vsyncpa [#allocation3], 0
    %147 = vsyncpa [#allocation5], 0
    %148 = vsyncpa [#allocation8], 0
    %149 = vsyncpa [#allocation11], 0
    %150 = vsyncpa [#allocation14], 0
    %151 = vsyncpa [#allocation17], 0
    %152 = vsyncpa [#allocation20], 0
    %153 = vsyncpa [#allocation23], 0
    %154 = vsyncpa [#allocation26], 0
    %155 = vsyncpa [#allocation29], 0
    %156 = vsyncpa [#allocation32], 0
    %157 = vsyncpa [#allocation35], 0
    %158 = vsyncpa [#allocation38], 0
    %159 = vsyncpa [#allocation41], 0
    // Predicated region
    $region2: #{tpu_custom_call.1} parent=1 // pred_check
      _
    $region3: #{tpu_custom_call.1} parent=1 // pred_check_branch
      %161 = sbr.rel (0) target = $region5
    $region4: #{tpu_custom_call.1} parent=1 // pred_region
      _
    $region5: #{tpu_custom_call.1} parent=1 // pred_fallthru
      _
    // Predicated region
    $region6: #{tpu_custom_call.1} parent=1 // pred_check
      _
    $region7: #{tpu_custom_call.1} parent=1 // pred_check_branch
      %163 = sbr.rel (0) target = $region9
    $region8: #{tpu_custom_call.1} parent=1 // pred_region
      _
    $region9: #{tpu_custom_call.1} parent=1 // pred_fallthru
      _
    // Predicated region
    $region10: #{tpu_custom_call.1} parent=1 // pred_check
      _
    $region11: #{tpu_custom_call.1} parent=1 // pred_check_branch
      %165 = sbr.rel (0) target = $region13
    $region12: #{tpu_custom_call.1} parent=1 // pred_region
      _
    $region13: #{tpu_custom_call.1} parent=1 // pred_fallthru
      _
    // Predicated region
    $region14: #{tpu_custom_call.1} parent=1 // pred_check
      _
    $region15: #{tpu_custom_call.1} parent=1 // pred_check_branch
      %167 = sbr.rel (0) target = $region17
    $region16: #{tpu_custom_call.1} parent=1 // pred_region
      _
    $region17: #{tpu_custom_call.1} parent=1 // pred_fallthru
      _
    // Predicated region
    $region18: #{tpu_custom_call.1} parent=1 // pred_check
      _
    $region19: #{tpu_custom_call.1} parent=1 // pred_check_branch
      %169 = sbr.rel (0) target = $region21
    $region20: #{tpu_custom_call.1} parent=1 // pred_region
      _
    $region21: #{tpu_custom_call.1} parent=1 // pred_fallthru
      _
    // Predicated region
    $region22: #{tpu_custom_call.1} parent=1 // pred_check
      _
    $region23: #{tpu_custom_call.1} parent=1 // pred_check_branch
      %171 = sbr.rel (0) target = $region25
    $region24: #{tpu_custom_call.1} parent=1 // pred_region
      _
    $region25: #{tpu_custom_call.1} parent=1 // pred_fallthru
      _
    // Predicated region
    $region26: #{tpu_custom_call.1} parent=1 // pred_check
      _
    $region27: #{tpu_custom_call.1} parent=1 // pred_check_branch
      %173 = sbr.rel (0) target = $region29
    $region28: #{tpu_custom_call.1} parent=1 // pred_region
      _
    $region29: #{tpu_custom_call.1} parent=1 // pred_fallthru
      _
    // Predicated region
    $region30: #{tpu_custom_call.1} parent=1 // pred_check
      _
    $region31: #{tpu_custom_call.1} parent=1 // pred_check_branch
      %175 = sbr.rel (0) target = $region33
    $region32: #{tpu_custom_call.1} parent=1 // pred_region
      _
    $region33: #{tpu_custom_call.1} parent=1 // pred_fallthru
      _
    // Predicated region
    $region34: #{tpu_custom_call.1} parent=1 // pred_check
      _
    $region35: #{tpu_custom_call.1} parent=1 // pred_check_branch
      %177 = sbr.rel (0) target = $region37
    $region36: #{tpu_custom_call.1} parent=1 // pred_region
      _
    $region37: #{tpu_custom_call.1} parent=1 // pred_fallthru
      _
    // Predicated region
    $region38: #{tpu_custom_call.1} parent=1 // pred_check
      _
    $region39: #{tpu_custom_call.1} parent=1 // pred_check_branch
      %179 = sbr.rel (0) target = $region41
    $region40: #{tpu_custom_call.1} parent=1 // pred_region
      _
    $region41: #{tpu_custom_call.1} parent=1 // pred_fallthru
      _
    // Predicated region
    $region42: #{tpu_custom_call.1} parent=1 // pred_check
      _
    $region43: #{tpu_custom_call.1} parent=1 // pred_check_branch
      %181 = sbr.rel (0) target = $region45
    $region44: #{tpu_custom_call.1} parent=1 // pred_region
      _
    $region45: #{tpu_custom_call.1} parent=1 // pred_fallthru
      _
    // Predicated region
    $region46: #{tpu_custom_call.1} parent=1 // pred_check
      _
    $region47: #{tpu_custom_call.1} parent=1 // pred_check_branch
      %183 = sbr.rel (0) target = $region49
    $region48: #{tpu_custom_call.1} parent=1 // pred_region
      _
    $region49: #{tpu_custom_call.1} parent=1 // pred_fallthru
      _
    // Predicated region
    $region50: #{tpu_custom_call.1} parent=1 // pred_check
      _
    $region51: #{tpu_custom_call.1} parent=1 // pred_check_branch
      %185 = sbr.rel (0) target = $region53
    $region52: #{tpu_custom_call.1} parent=1 // pred_region
      _
    $region53: #{tpu_custom_call.1} parent=1 // pred_fallthru
      _
    // Predicated region
    $region54: #{tpu_custom_call.1} parent=1 // pred_check
      _
    $region55: #{tpu_custom_call.1} parent=1 // pred_check_branch
      %187 = sbr.rel (0) target = $region57
    $region56: #{tpu_custom_call.1} parent=1 // pred_region
      _
    $region57: #{tpu_custom_call.1} parent=1 // pred_fallthru
      _
    // Predicated region
    $region58: #{tpu_custom_call.1} parent=1 // pred_check
      _
    $region59: #{tpu_custom_call.1} parent=1 // pred_check_branch
      %189 = sbr.rel (0) target = $region61
    $region60: #{tpu_custom_call.1} parent=1 // pred_region
      _
    $region61: #{tpu_custom_call.1} parent=1 // pred_fallthru
      _
    // Predicated region
    $region62: #{tpu_custom_call.1} parent=1 // pred_check
      _
    $region63: #{tpu_custom_call.1} parent=1 // pred_check_branch
      %191 = sbr.rel (0) target = $region65
    $region64: #{tpu_custom_call.1} parent=1 // pred_region
      _
    $region65: #{tpu_custom_call.1} parent=1 // pred_fallthru
      _
    // Predicated region
    $region66: #{tpu_custom_call.1} parent=1 // pred_check
      _
    $region67: #{tpu_custom_call.1} parent=1 // pred_check_branch
      %193 = sbr.rel (0) target = $region69
    $region68: #{tpu_custom_call.1} parent=1 // pred_region
      _
    $region69: #{tpu_custom_call.1} parent=1 // pred_fallthru
      _
    // Predicated region
    $region70: #{tpu_custom_call.1} parent=1 // pred_check
      _
    $region71: #{tpu_custom_call.1} parent=1 // pred_check_branch
      %195 = sbr.rel (0) target = $region73
    $region72: #{tpu_custom_call.1} parent=1 // pred_region
      _
    $region73: #{tpu_custom_call.1} parent=1 // pred_fallthru
      _
    // Predicated region
    $region74: #{tpu_custom_call.1} parent=1 // pred_check
      _
    $region75: #{tpu_custom_call.1} parent=1 // pred_check_branch
      %197 = sbr.rel (0) target = $region77
    $region76: #{tpu_custom_call.1} parent=1 // pred_region
      _
    $region77: #{tpu_custom_call.1} parent=1 // pred_fallthru
      _
    // Predicated region
    $region78: #{tpu_custom_call.1} parent=1 // pred_check
      _
    $region79: #{tpu_custom_call.1} parent=1 // pred_check_branch
      %199 = sbr.rel (0) target = $region81
    $region80: #{tpu_custom_call.1} parent=1 // pred_region
      _
    $region81: #{tpu_custom_call.1} parent=1 // pred_fallthru
      _
    // Predicated region
    $region82: #{tpu_custom_call.1} parent=1 // pred_check
      _
    $region83: #{tpu_custom_call.1} parent=1 // pred_check_branch
      %201 = sbr.rel (0) target = $region85
    $region84: #{tpu_custom_call.1} parent=1 // pred_region
      _
    $region85: #{tpu_custom_call.1} parent=1 // pred_fallthru
      _
    // Predicated region
    $region86: #{tpu_custom_call.1} parent=1 // pred_check
      _
    $region87: #{tpu_custom_call.1} parent=1 // pred_check_branch
      %203 = sbr.rel (0) target = $region89
    $region88: #{tpu_custom_call.1} parent=1 // pred_region
      _
    $region89: #{tpu_custom_call.1} parent=1 // pred_fallthru
      _
    // Predicated region
    $region90: #{tpu_custom_call.1} parent=1 // pred_check
      _
    $region91: #{tpu_custom_call.1} parent=1 // pred_check_branch
      %205 = sbr.rel (0) target = $region93
    $region92: #{tpu_custom_call.1} parent=1 // pred_region
      _
    $region93: #{tpu_custom_call.1} parent=1 // pred_fallthru
      _
    // Predicated region
    $region94: #{tpu_custom_call.1} parent=1 // pred_check
      _
    $region95: #{tpu_custom_call.1} parent=1 // pred_check_branch
      %207 = sbr.rel (0) target = $region97
    $region96: #{tpu_custom_call.1} parent=1 // pred_region
      _
    $region97: #{tpu_custom_call.1} parent=1 // pred_fallthru
      _
    // Predicated region
    $region98: #{tpu_custom_call.1} parent=1 // pred_check
      _
    $region99: #{tpu_custom_call.1} parent=1 // pred_check_branch
      %209 = sbr.rel (0) target = $region101
    $region100: #{tpu_custom_call.1} parent=1 // pred_region
      _
    $region101: #{tpu_custom_call.1} parent=1 // pred_fallthru
      _
    // Predicated region
    $region102: #{tpu_custom_call.1} parent=1 // pred_check
      _
    $region103: #{tpu_custom_call.1} parent=1 // pred_check_branch
      %211 = sbr.rel (0) target = $region105
    $region104: #{tpu_custom_call.1} parent=1 // pred_region
      _
    $region105: #{tpu_custom_call.1} parent=1 // pred_fallthru
      _
    // Predicated region
    $region106: #{tpu_custom_call.1} parent=1 // pred_check
      _
    $region107: #{tpu_custom_call.1} parent=1 // pred_check_branch
      %213 = sbr.rel (0) target = $region109
    $region108: #{tpu_custom_call.1} parent=1 // pred_region
      _
    $region109: #{tpu_custom_call.1} parent=1 // pred_fallthru
      _
    // Predicated region
    $region110: #{tpu_custom_call.1} parent=1 // pred_check
      _
    $region111: #{tpu_custom_call.1} parent=1 // pred_check_branch
      %215 = sbr.rel (0) target = $region113
    $region112: #{tpu_custom_call.1} parent=1 // pred_region
      %s217 = ssub.s32 16, 16
      %218 = vsyncadd [#allocation3], %s217
      %s220 = sshll.u32 [#allocation2], 4
      %s221 = int_to_ptr.vmem [resolvable:$true] %s220
      %223 = dma.hbm_to_vmem [thread:$0]  %s55, 16, %s221, [#allocation3]
    $region113: #{tpu_custom_call.1} parent=1 // pred_fallthru
      _
    // Predicated region
    $region114: #{tpu_custom_call.1} parent=1 // pred_check
      _
    $region115: #{tpu_custom_call.1} parent=1 // pred_check_branch
      %225 = sbr.rel (0) target = $region117
    $region116: #{tpu_custom_call.1} parent=1 // pred_region
      %s227 = ssub.s32 16, 16
      %228 = vsyncadd [#allocation5], %s227
      %s230 = sshll.u32 [#allocation4], 4
      %s231 = int_to_ptr.vmem [resolvable:$true] %s230
      %233 = dma.hbm_to_vmem [thread:$0]  %s57, 16, %s231, [#allocation5]
    $region117: #{tpu_custom_call.1} parent=1 // pred_fallthru
      _
    // Predicated region
    $region118: #{tpu_custom_call.1} parent=1 // pred_check
      _
    $region119: #{tpu_custom_call.1} parent=1 // pred_check_branch
      %235 = sbr.rel (0) target = $region121
    $region120: #{tpu_custom_call.1} parent=1 // pred_region
      %s237 = ssub.s32 16, 16
      %238 = vsyncadd [#allocation5], %s237
      %s240 = sshll.u32 [#allocation6], 4
      %s241 = int_to_ptr.vmem [resolvable:$true] %s240
      %243 = dma.hbm_to_vmem [thread:$0]  %s59, 16, %s241, [#allocation5]
    $region121: #{tpu_custom_call.1} parent=1 // pred_fallthru
      _
    // Predicated region
    $region122: #{tpu_custom_call.1} parent=1 // pred_check
      _
    $region123: #{tpu_custom_call.1} parent=1 // pred_check_branch
      %245 = sbr.rel (0) target = $region125
    $region124: #{tpu_custom_call.1} parent=1 // pred_region
      %s247 = ssub.s32 16, 16
      %248 = vsyncadd [#allocation8], %s247
      %s250 = sshll.u32 [#allocation7], 4
      %s251 = int_to_ptr.vmem [resolvable:$true] %s250
      %253 = dma.hbm_to_vmem [thread:$0]  %s61, 16, %s251, [#allocation8]
    $region125: #{tpu_custom_call.1} parent=1 // pred_fallthru
      _
    // Predicated region
    $region126: #{tpu_custom_call.1} parent=1 // pred_check
      _
    $region127: #{tpu_custom_call.1} parent=1 // pred_check_branch
      %255 = sbr.rel (0) target = $region129
    $region128: #{tpu_custom_call.1} parent=1 // pred_region
      %s257 = ssub.s32 16, 16
      %258 = vsyncadd [#allocation8], %s257
      %s260 = sshll.u32 [#allocation9], 4
      %s261 = int_to_ptr.vmem [resolvable:$true] %s260
      %263 = dma.hbm_to_vmem [thread:$0]  %s63, 16, %s261, [#allocation8]
    $region129: #{tpu_custom_call.1} parent=1 // pred_fallthru
      _
    // Predicated region
    $region130: #{tpu_custom_call.1} parent=1 // pred_check
      _
    $region131: #{tpu_custom_call.1} parent=1 // pred_check_branch
      %265 = sbr.rel (0) target = $region133
    $region132: #{tpu_custom_call.1} parent=1 // pred_region
      %s267 = ssub.s32 16, 16
      %268 = vsyncadd [#allocation11], %s267
      %s270 = sshll.u32 [#allocation10], 4
      %s271 = int_to_ptr.vmem [resolvable:$true] %s270
      %273 = dma.hbm_to_vmem [thread:$0]  %s65, 16, %s271, [#allocation11]
    $region133: #{tpu_custom_call.1} parent=1 // pred_fallthru
      _
    // Predicated region
    $region134: #{tpu_custom_call.1} parent=1 // pred_check
      _
    $region135: #{tpu_custom_call.1} parent=1 // pred_check_branch
      %275 = sbr.rel (0) target = $region137
    $region136: #{tpu_custom_call.1} parent=1 // pred_region
      _
    $region137: #{tpu_custom_call.1} parent=1 // pred_fallthru
      _
    // Predicated region
    $region138: #{tpu_custom_call.1} parent=1 // pred_check
      _
    $region139: #{tpu_custom_call.1} parent=1 // pred_check_branch
      %277 = sbr.rel (0) target = $region141
    $region140: #{tpu_custom_call.1} parent=1 // pred_region
      _
    $region141: #{tpu_custom_call.1} parent=1 // pred_fallthru
      _
    // Predicated region
    $region142: #{tpu_custom_call.1} parent=1 // pred_check
      _
    $region143: #{tpu_custom_call.1} parent=1 // pred_check_branch
      %279 = sbr.rel (0) target = $region145
    $region144: #{tpu_custom_call.1} parent=1 // pred_region
      _
    $region145: #{tpu_custom_call.1} parent=1 // pred_fallthru
      _
    // Predicated region
    $region146: #{tpu_custom_call.1} parent=1 // pred_check
      _
    $region147: #{tpu_custom_call.1} parent=1 // pred_check_branch
      %281 = sbr.rel (0) target = $region149
    $region148: #{tpu_custom_call.1} parent=1 // pred_region
      _
    $region149: #{tpu_custom_call.1} parent=1 // pred_fallthru
      _
    // Predicated region
    $region150: #{tpu_custom_call.1} parent=1 // pred_check
      _
    $region151: #{tpu_custom_call.1} parent=1 // pred_check_branch
      %283 = sbr.rel (0) target = $region153
    $region152: #{tpu_custom_call.1} parent=1 // pred_region
      _
    $region153: #{tpu_custom_call.1} parent=1 // pred_fallthru
      _
    // Predicated region
    $region154: #{tpu_custom_call.1} parent=1 // pred_check
      _
    $region155: #{tpu_custom_call.1} parent=1 // pred_check_branch
      %285 = sbr.rel (0) target = $region157
    $region156: #{tpu_custom_call.1} parent=1 // pred_region
      %s287 = ssub.s32 16, 16
      %288 = vsyncadd [#allocation11], %s287
      %s290 = sshll.u32 [#allocation12], 4
      %s291 = int_to_ptr.vmem [resolvable:$true] %s290
      %293 = dma.hbm_to_vmem [thread:$0]  %s77, 16, %s291, [#allocation11]
    $region157: #{tpu_custom_call.1} parent=1 // pred_fallthru
      _
    // Predicated region
    $region158: #{tpu_custom_call.1} parent=1 // pred_check
      _
    $region159: #{tpu_custom_call.1} parent=1 // pred_check_branch
      %295 = sbr.rel (0) target = $region161
    $region160: #{tpu_custom_call.1} parent=1 // pred_region
      %s297 = ssub.s32 16, 16
      %298 = vsyncadd [#allocation14], %s297
      %s300 = sshll.u32 [#allocation13], 4
      %s301 = int_to_ptr.vmem [resolvable:$true] %s300
      %303 = dma.hbm_to_vmem [thread:$0]  %s79, 16, %s301, [#allocation14]
    $region161: #{tpu_custom_call.1} parent=1 // pred_fallthru
      _
    // Predicated region
    $region162: #{tpu_custom_call.1} parent=1 // pred_check
      _
    $region163: #{tpu_custom_call.1} parent=1 // pred_check_branch
      %305 = sbr.rel (0) target = $region165
    $region164: #{tpu_custom_call.1} parent=1 // pred_region
      %s307 = ssub.s32 16, 16
      %308 = vsyncadd [#allocation14], %s307
      %s310 = sshll.u32 [#allocation15], 4
      %s311 = int_to_ptr.vmem [resolvable:$true] %s310
      %313 = dma.hbm_to_vmem [thread:$0]  %s81, 16, %s311, [#allocation14]
    $region165: #{tpu_custom_call.1} parent=1 // pred_fallthru
      _
    // Predicated region
    $region166: #{tpu_custom_call.1} parent=1 // pred_check
      _
    $region167: #{tpu_custom_call.1} parent=1 // pred_check_branch
      %315 = sbr.rel (0) target = $region169
    $region168: #{tpu_custom_call.1} parent=1 // pred_region
      %s317 = ssub.s32 16, 16
      %318 = vsyncadd [#allocation17], %s317
      %s320 = sshll.u32 [#allocation16], 4
      %s321 = int_to_ptr.vmem [resolvable:$true] %s320
      %323 = dma.hbm_to_vmem [thread:$0]  %s83, 16, %s321, [#allocation17]
    $region169: #{tpu_custom_call.1} parent=1 // pred_fallthru
      _
    // Predicated region
    $region170: #{tpu_custom_call.1} parent=1 // pred_check
      _
    $region171: #{tpu_custom_call.1} parent=1 // pred_check_branch
      %325 = sbr.rel (0) target = $region173
    $region172: #{tpu_custom_call.1} parent=1 // pred_region
      %s327 = ssub.s32 16, 16
      %328 = vsyncadd [#allocation17], %s327
      %s330 = sshll.u32 [#allocation18], 4
      %s331 = int_to_ptr.vmem [resolvable:$true] %s330
      %333 = dma.hbm_to_vmem [thread:$0]  %s85, 16, %s331, [#allocation17]
    $region173: #{tpu_custom_call.1} parent=1 // pred_fallthru
      _
    // Predicated region
    $region174: #{tpu_custom_call.1} parent=1 // pred_check
      _
    $region175: #{tpu_custom_call.1} parent=1 // pred_check_branch
      %335 = sbr.rel (0) target = $region177
    $region176: #{tpu_custom_call.1} parent=1 // pred_region
      %s337 = ssub.s32 16, 16
      %338 = vsyncadd [#allocation20], %s337
      %s340 = sshll.u32 [#allocation19], 4
      %s341 = int_to_ptr.vmem [resolvable:$true] %s340
      %343 = dma.hbm_to_vmem [thread:$0]  %s87, 16, %s341, [#allocation20]
    $region177: #{tpu_custom_call.1} parent=1 // pred_fallthru
      _
    // Predicated region
    $region178: #{tpu_custom_call.1} parent=1 // pred_check
      _
    $region179: #{tpu_custom_call.1} parent=1 // pred_check_branch
      %345 = sbr.rel (0) target = $region181
    $region180: #{tpu_custom_call.1} parent=1 // pred_region
      %s347 = ssub.s32 16, 16
      %348 = vsyncadd [#allocation20], %s347
      %s350 = sshll.u32 [#allocation21], 4
      %s351 = int_to_ptr.vmem [resolvable:$true] %s350
      %353 = dma.hbm_to_vmem [thread:$0]  %s89, 16, %s351, [#allocation20]
    $region181: #{tpu_custom_call.1} parent=1 // pred_fallthru
      _
    // Predicated region
    $region182: #{tpu_custom_call.1} parent=1 // pred_check
      _
    $region183: #{tpu_custom_call.1} parent=1 // pred_check_branch
      %355 = sbr.rel (0) target = $region185
    $region184: #{tpu_custom_call.1} parent=1 // pred_region
      %s357 = ssub.s32 16, 16
      %358 = vsyncadd [#allocation23], %s357
      %s360 = sshll.u32 [#allocation22], 4
      %s361 = int_to_ptr.vmem [resolvable:$true] %s360
      %363 = dma.hbm_to_vmem [thread:$0]  %s91, 16, %s361, [#allocation23]
    $region185: #{tpu_custom_call.1} parent=1 // pred_fallthru
      _
    // Predicated region
    $region186: #{tpu_custom_call.1} parent=1 // pred_check
      _
    $region187: #{tpu_custom_call.1} parent=1 // pred_check_branch
      %365 = sbr.rel (0) target = $region189
    $region188: #{tpu_custom_call.1} parent=1 // pred_region
      _
    $region189: #{tpu_custom_call.1} parent=1 // pred_fallthru
      _
    // Predicated region
    $region190: #{tpu_custom_call.1} parent=1 // pred_check
      _
    $region191: #{tpu_custom_call.1} parent=1 // pred_check_branch
      %367 = sbr.rel (0) target = $region193
    $region192: #{tpu_custom_call.1} parent=1 // pred_region
      _
    $region193: #{tpu_custom_call.1} parent=1 // pred_fallthru
      _
    // Predicated region
    $region194: #{tpu_custom_call.1} parent=1 // pred_check
      _
    $region195: #{tpu_custom_call.1} parent=1 // pred_check_branch
      %369 = sbr.rel (0) target = $region197
    $region196: #{tpu_custom_call.1} parent=1 // pred_region
      _
    $region197: #{tpu_custom_call.1} parent=1 // pred_fallthru
      _
    // Predicated region
    $region198: #{tpu_custom_call.1} parent=1 // pred_check
      _
    $region199: #{tpu_custom_call.1} parent=1 // pred_check_branch
      %371 = sbr.rel (0) target = $region201
    $region200: #{tpu_custom_call.1} parent=1 // pred_region
      _
    $region201: #{tpu_custom_call.1} parent=1 // pred_fallthru
      _
    // Predicated region
    $region202: #{tpu_custom_call.1} parent=1 // pred_check
      _
    $region203: #{tpu_custom_call.1} parent=1 // pred_check_branch
      %373 = sbr.rel (0) target = $region205
    $region204: #{tpu_custom_call.1} parent=1 // pred_region
      _
    $region205: #{tpu_custom_call.1} parent=1 // pred_fallthru
      _
    // Predicated region
    $region206: #{tpu_custom_call.1} parent=1 // pred_check
      _
    $region207: #{tpu_custom_call.1} parent=1 // pred_check_branch
      %375 = sbr.rel (0) target = $region209
    $region208: #{tpu_custom_call.1} parent=1 // pred_region
      %s377 = ssub.s32 16, 16
      %378 = vsyncadd [#allocation23], %s377
      %s380 = sshll.u32 [#allocation24], 4
      %s381 = int_to_ptr.vmem [resolvable:$true] %s380
      %383 = dma.hbm_to_vmem [thread:$0]  %s103, 16, %s381, [#allocation23]
    $region209: #{tpu_custom_call.1} parent=1 // pred_fallthru
      _
    // Predicated region
    $region210: #{tpu_custom_call.1} parent=1 // pred_check
      _
    $region211: #{tpu_custom_call.1} parent=1 // pred_check_branch
      %385 = sbr.rel (0) target = $region213
    $region212: #{tpu_custom_call.1} parent=1 // pred_region
      %s387 = ssub.s32 16, 16
      %388 = vsyncadd [#allocation26], %s387
      %s390 = sshll.u32 [#allocation25], 4
      %s391 = int_to_ptr.vmem [resolvable:$true] %s390
      %393 = dma.hbm_to_vmem [thread:$0]  %s105, 16, %s391, [#allocation26]
    $region213: #{tpu_custom_call.1} parent=1 // pred_fallthru
      _
    // Predicated region
    $region214: #{tpu_custom_call.1} parent=1 // pred_check
      _
    $region215: #{tpu_custom_call.1} parent=1 // pred_check_branch
      %395 = sbr.rel (0) target = $region217
    $region216: #{tpu_custom_call.1} parent=1 // pred_region
      %s397 = ssub.s32 16, 16
      %398 = vsyncadd [#allocation26], %s397
      %s400 = sshll.u32 [#allocation27], 4
      %s401 = int_to_ptr.vmem [resolvable:$true] %s400
      %403 = dma.hbm_to_vmem [thread:$0]  %s107, 16, %s401, [#allocation26]
    $region217: #{tpu_custom_call.1} parent=1 // pred_fallthru
      _
    // Predicated region
    $region218: #{tpu_custom_call.1} parent=1 // pred_check
      _
    $region219: #{tpu_custom_call.1} parent=1 // pred_check_branch
      %405 = sbr.rel (0) target = $region221
    $region220: #{tpu_custom_call.1} parent=1 // pred_region
      %s407 = ssub.s32 16, 16
      %408 = vsyncadd [#allocation29], %s407
      %s410 = sshll.u32 [#allocation28], 4
      %s411 = int_to_ptr.vmem [resolvable:$true] %s410
      %413 = dma.hbm_to_vmem [thread:$0]  %s109, 16, %s411, [#allocation29]
    $region221: #{tpu_custom_call.1} parent=1 // pred_fallthru
      _
    // Predicated region
    $region222: #{tpu_custom_call.1} parent=1 // pred_check
      _
    $region223: #{tpu_custom_call.1} parent=1 // pred_check_branch
      %415 = sbr.rel (0) target = $region225
    $region224: #{tpu_custom_call.1} parent=1 // pred_region
      %s417 = ssub.s32 16, 16
      %418 = vsyncadd [#allocation29], %s417
      %s420 = sshll.u32 [#allocation30], 4
      %s421 = int_to_ptr.vmem [resolvable:$true] %s420
      %423 = dma.hbm_to_vmem [thread:$0]  %s111, 16, %s421, [#allocation29]
    $region225: #{tpu_custom_call.1} parent=1 // pred_fallthru
      _
    // Predicated region
    $region226: #{tpu_custom_call.1} parent=1 // pred_check
      _
    $region227: #{tpu_custom_call.1} parent=1 // pred_check_branch
      %425 = sbr.rel (0) target = $region229
    $region228: #{tpu_custom_call.1} parent=1 // pred_region
      %s427 = ssub.s32 16, 16
      %428 = vsyncadd [#allocation32], %s427
      %s430 = sshll.u32 [#allocation31], 4
      %s431 = int_to_ptr.vmem [resolvable:$true] %s430
      %433 = dma.hbm_to_vmem [thread:$0]  %s113, 16, %s431, [#allocation32]
    $region229: #{tpu_custom_call.1} parent=1 // pred_fallthru
      _
    // Predicated region
    $region230: #{tpu_custom_call.1} parent=1 // pred_check
      _
    $region231: #{tpu_custom_call.1} parent=1 // pred_check_branch
      %435 = sbr.rel (0) target = $region233
    $region232: #{tpu_custom_call.1} parent=1 // pred_region
      %s437 = ssub.s32 16, 16
      %438 = vsyncadd [#allocation32], %s437
      %s440 = sshll.u32 [#allocation33], 4
      %s441 = int_to_ptr.vmem [resolvable:$true] %s440
      %443 = dma.hbm_to_vmem [thread:$0]  %s115, 16, %s441, [#allocation32]
    $region233: #{tpu_custom_call.1} parent=1 // pred_fallthru
      _
    // Predicated region
    $region234: #{tpu_custom_call.1} parent=1 // pred_check
      _
    $region235: #{tpu_custom_call.1} parent=1 // pred_check_branch
      %445 = sbr.rel (0) target = $region237
    $region236: #{tpu_custom_call.1} parent=1 // pred_region
      %s447 = ssub.s32 16, 16
      %448 = vsyncadd [#allocation35], %s447
      %s450 = sshll.u32 [#allocation34], 4
      %s451 = int_to_ptr.vmem [resolvable:$true] %s450
      %453 = dma.hbm_to_vmem [thread:$0]  %s117, 16, %s451, [#allocation35]
    $region237: #{tpu_custom_call.1} parent=1 // pred_fallthru
      _
    // Predicated region
    $region238: #{tpu_custom_call.1} parent=1 // pred_check
      _
    $region239: #{tpu_custom_call.1} parent=1 // pred_check_branch
      %455 = sbr.rel (0) target = $region241
    $region240: #{tpu_custom_call.1} parent=1 // pred_region
      _
    $region241: #{tpu_custom_call.1} parent=1 // pred_fallthru
      _
    // Predicated region
    $region242: #{tpu_custom_call.1} parent=1 // pred_check
      _
    $region243: #{tpu_custom_call.1} parent=1 // pred_check_branch
      %457 = sbr.rel (0) target = $region245
    $region244: #{tpu_custom_call.1} parent=1 // pred_region
      _
    $region245: #{tpu_custom_call.1} parent=1 // pred_fallthru
      _
    // Predicated region
    $region246: #{tpu_custom_call.1} parent=1 // pred_check
      _
    $region247: #{tpu_custom_call.1} parent=1 // pred_check_branch
      %459 = sbr.rel (0) target = $region249
    $region248: #{tpu_custom_call.1} parent=1 // pred_region
      _
    $region249: #{tpu_custom_call.1} parent=1 // pred_fallthru
      _
    // Predicated region
    $region250: #{tpu_custom_call.1} parent=1 // pred_check
      _
    $region251: #{tpu_custom_call.1} parent=1 // pred_check_branch
      %461 = sbr.rel (0) target = $region253
    $region252: #{tpu_custom_call.1} parent=1 // pred_region
      _
    $region253: #{tpu_custom_call.1} parent=1 // pred_fallthru
      _
    // Predicated region
    $region254: #{tpu_custom_call.1} parent=1 // pred_check
      _
    $region255: #{tpu_custom_call.1} parent=1 // pred_check_branch
      %463 = sbr.rel (0) target = $region257
    $region256: #{tpu_custom_call.1} parent=1 // pred_region
      _
    $region257: #{tpu_custom_call.1} parent=1 // pred_fallthru
      _
    // Predicated region
    $region258: #{tpu_custom_call.1} parent=1 // pred_check
      _
    $region259: #{tpu_custom_call.1} parent=1 // pred_check_branch
      %465 = sbr.rel (0) target = $region261
    $region260: #{tpu_custom_call.1} parent=1 // pred_region
      %s467 = ssub.s32 16, 16
      %468 = vsyncadd [#allocation35], %s467
      %s470 = sshll.u32 [#allocation36], 4
      %s471 = int_to_ptr.vmem [resolvable:$true] %s470
      %473 = dma.hbm_to_vmem [thread:$0]  %s129, 16, %s471, [#allocation35]
    $region261: #{tpu_custom_call.1} parent=1 // pred_fallthru
      _
    // Predicated region
    $region262: #{tpu_custom_call.1} parent=1 // pred_check
      _
    $region263: #{tpu_custom_call.1} parent=1 // pred_check_branch
      %475 = sbr.rel (0) target = $region265
    $region264: #{tpu_custom_call.1} parent=1 // pred_region
      %s477 = ssub.s32 16, 16
      %478 = vsyncadd [#allocation38], %s477
      %s480 = sshll.u32 [#allocation37], 4
      %s481 = int_to_ptr.vmem [resolvable:$true] %s480
      %483 = dma.hbm_to_vmem [thread:$0]  %s131, 16, %s481, [#allocation38]
    $region265: #{tpu_custom_call.1} parent=1 // pred_fallthru
      _
    // Predicated region
    $region266: #{tpu_custom_call.1} parent=1 // pred_check
      _
    $region267: #{tpu_custom_call.1} parent=1 // pred_check_branch
      %485 = sbr.rel (0) target = $region269
    $region268: #{tpu_custom_call.1} parent=1 // pred_region
      %s487 = ssub.s32 16, 16
      %488 = vsyncadd [#allocation38], %s487
      %s490 = sshll.u32 [#allocation39], 4
      %s491 = int_to_ptr.vmem [resolvable:$true] %s490
      %493 = dma.hbm_to_vmem [thread:$0]  %s133, 16, %s491, [#allocation38]
    $region269: #{tpu_custom_call.1} parent=1 // pred_fallthru
      _
    // Predicated region
    $region270: #{tpu_custom_call.1} parent=1 // pred_check
      _
    $region271: #{tpu_custom_call.1} parent=1 // pred_check_branch
      %495 = sbr.rel (0) target = $region273
    $region272: #{tpu_custom_call.1} parent=1 // pred_region
      %s497 = ssub.s32 16, 16
      %498 = vsyncadd [#allocation41], %s497
      %s500 = sshll.u32 [#allocation40], 4
      %s501 = int_to_ptr.vmem [resolvable:$true] %s500
      %503 = dma.hbm_to_vmem [thread:$0]  %s135, 16, %s501, [#allocation41]
    $region273: #{tpu_custom_call.1} parent=1 // pred_fallthru
      _
    // Predicated region
    $region274: #{tpu_custom_call.1} parent=1 // pred_check
      _
    $region275: #{tpu_custom_call.1} parent=1 // pred_check_branch
      %505 = sbr.rel (0) target = $region277
    $region276: #{tpu_custom_call.1} parent=1 // pred_region
      _
    $region277: #{tpu_custom_call.1} parent=1 // pred_fallthru
      _
    // Predicated region
    $region278: #{tpu_custom_call.1} parent=1 // pred_check
      _
    $region279: #{tpu_custom_call.1} parent=1 // pred_check_branch
      %507 = sbr.rel (0) target = $region281
    $region280: #{tpu_custom_call.1} parent=1 // pred_region
      _
    $region281: #{tpu_custom_call.1} parent=1 // pred_fallthru
      _
    // Predicated region
    $region282: #{tpu_custom_call.1} parent=1 // pred_check
      _
    $region283: #{tpu_custom_call.1} parent=1 // pred_check_branch
      %509 = sbr.rel (0) target = $region285
    $region284: #{tpu_custom_call.1} parent=1 // pred_region
      %510 = dma.done [#allocation3], 16
    $region285: #{tpu_custom_call.1} parent=1 // pred_fallthru
      _
    // Predicated region
    $region286: #{tpu_custom_call.1} parent=1 // pred_check
      _
    $region287: #{tpu_custom_call.1} parent=1 // pred_check_branch
      %512 = sbr.rel (0) target = $region289
    $region288: #{tpu_custom_call.1} parent=1 // pred_region
      %513 = dma.done [#allocation5], 16
    $region289: #{tpu_custom_call.1} parent=1 // pred_fallthru
      _
    // Predicated region
    $region290: #{tpu_custom_call.1} parent=1 // pred_check
      _
    $region291: #{tpu_custom_call.1} parent=1 // pred_check_branch
      %515 = sbr.rel (0) target = $region293
    $region292: #{tpu_custom_call.1} parent=1 // pred_region
      %516 = dma.done [#allocation5], 16
    $region293: #{tpu_custom_call.1} parent=1 // pred_fallthru
      _
    // Predicated region
    $region294: #{tpu_custom_call.1} parent=1 // pred_check
      _
    $region295: #{tpu_custom_call.1} parent=1 // pred_check_branch
      %518 = sbr.rel (0) target = $region297
    $region296: #{tpu_custom_call.1} parent=1 // pred_region
      %519 = dma.done [#allocation8], 16
    $region297: #{tpu_custom_call.1} parent=1 // pred_fallthru
      _
    // Predicated region
    $region298: #{tpu_custom_call.1} parent=1 // pred_check
      _
    $region299: #{tpu_custom_call.1} parent=1 // pred_check_branch
      %521 = sbr.rel (0) target = $region301
    $region300: #{tpu_custom_call.1} parent=1 // pred_region
      %522 = dma.done [#allocation8], 16
    $region301: #{tpu_custom_call.1} parent=1 // pred_fallthru
      _
    // Predicated region
    $region302: #{tpu_custom_call.1} parent=1 // pred_check
      _
    $region303: #{tpu_custom_call.1} parent=1 // pred_check_branch
      %524 = sbr.rel (0) target = $region305
    $region304: #{tpu_custom_call.1} parent=1 // pred_region
      %525 = dma.done [#allocation11], 16
    $region305: #{tpu_custom_call.1} parent=1 // pred_fallthru
      _
    // Predicated region
    $region306: #{tpu_custom_call.1} parent=1 // pred_check
      _
    $region307: #{tpu_custom_call.1} parent=1 // pred_check_branch
      %527 = sbr.rel (0) target = $region309
    $region308: #{tpu_custom_call.1} parent=1 // pred_region
      %528 = dma.done [#allocation11], 16
    $region309: #{tpu_custom_call.1} parent=1 // pred_fallthru
      _
    // Predicated region
    $region310: #{tpu_custom_call.1} parent=1 // pred_check
      _
    $region311: #{tpu_custom_call.1} parent=1 // pred_check_branch
      %530 = sbr.rel (0) target = $region313
    $region312: #{tpu_custom_call.1} parent=1 // pred_region
      %531 = dma.done [#allocation14], 16
    $region313: #{tpu_custom_call.1} parent=1 // pred_fallthru
      _
    // Predicated region
    $region314: #{tpu_custom_call.1} parent=1 // pred_check
      _
    $region315: #{tpu_custom_call.1} parent=1 // pred_check_branch
      %533 = sbr.rel (0) target = $region317
    $region316: #{tpu_custom_call.1} parent=1 // pred_region
      %534 = dma.done [#allocation14], 16
    $region317: #{tpu_custom_call.1} parent=1 // pred_fallthru
      _
    // Predicated region
    $region318: #{tpu_custom_call.1} parent=1 // pred_check
      _
    $region319: #{tpu_custom_call.1} parent=1 // pred_check_branch
      %536 = sbr.rel (0) target = $region321
    $region320: #{tpu_custom_call.1} parent=1 // pred_region
      %537 = dma.done [#allocation17], 16
    $region321: #{tpu_custom_call.1} parent=1 // pred_fallthru
      _
    // Predicated region
    $region322: #{tpu_custom_call.1} parent=1 // pred_check
      _
    $region323: #{tpu_custom_call.1} parent=1 // pred_check_branch
      %539 = sbr.rel (0) target = $region325
    $region324: #{tpu_custom_call.1} parent=1 // pred_region
      %540 = dma.done [#allocation17], 16
    $region325: #{tpu_custom_call.1} parent=1 // pred_fallthru
      _
    // Predicated region
    $region326: #{tpu_custom_call.1} parent=1 // pred_check
      _
    $region327: #{tpu_custom_call.1} parent=1 // pred_check_branch
      %542 = sbr.rel (0) target = $region329
    $region328: #{tpu_custom_call.1} parent=1 // pred_region
      %543 = dma.done [#allocation20], 16
    $region329: #{tpu_custom_call.1} parent=1 // pred_fallthru
      _
    // Predicated region
    $region330: #{tpu_custom_call.1} parent=1 // pred_check
      _
    $region331: #{tpu_custom_call.1} parent=1 // pred_check_branch
      %545 = sbr.rel (0) target = $region333
    $region332: #{tpu_custom_call.1} parent=1 // pred_region
      %546 = dma.done [#allocation20], 16
    $region333: #{tpu_custom_call.1} parent=1 // pred_fallthru
      _
    // Predicated region
    $region334: #{tpu_custom_call.1} parent=1 // pred_check
      _
    $region335: #{tpu_custom_call.1} parent=1 // pred_check_branch
      %548 = sbr.rel (0) target = $region337
    $region336: #{tpu_custom_call.1} parent=1 // pred_region
      %549 = dma.done [#allocation23], 16
    $region337: #{tpu_custom_call.1} parent=1 // pred_fallthru
      _
    // Predicated region
    $region338: #{tpu_custom_call.1} parent=1 // pred_check
      _
    $region339: #{tpu_custom_call.1} parent=1 // pred_check_branch
      %551 = sbr.rel (0) target = $region341
    $region340: #{tpu_custom_call.1} parent=1 // pred_region
      %552 = dma.done [#allocation23], 16
    $region341: #{tpu_custom_call.1} parent=1 // pred_fallthru
      _
    // Predicated region
    $region342: #{tpu_custom_call.1} parent=1 // pred_check
      _
    $region343: #{tpu_custom_call.1} parent=1 // pred_check_branch
      %554 = sbr.rel (0) target = $region345
    $region344: #{tpu_custom_call.1} parent=1 // pred_region
      %555 = dma.done [#allocation26], 16
    $region345: #{tpu_custom_call.1} parent=1 // pred_fallthru
      _
    // Predicated region
    $region346: #{tpu_custom_call.1} parent=1 // pred_check
      _
    $region347: #{tpu_custom_call.1} parent=1 // pred_check_branch
      %557 = sbr.rel (0) target = $region349
    $region348: #{tpu_custom_call.1} parent=1 // pred_region
      %558 = dma.done [#allocation26], 16
    $region349: #{tpu_custom_call.1} parent=1 // pred_fallthru
      _
    // Predicated region
    $region350: #{tpu_custom_call.1} parent=1 // pred_check
      _
    $region351: #{tpu_custom_call.1} parent=1 // pred_check_branch
      %560 = sbr.rel (0) target = $region353
    $region352: #{tpu_custom_call.1} parent=1 // pred_region
      %561 = dma.done [#allocation29], 16
    $region353: #{tpu_custom_call.1} parent=1 // pred_fallthru
      _
    // Predicated region
    $region354: #{tpu_custom_call.1} parent=1 // pred_check
      _
    $region355: #{tpu_custom_call.1} parent=1 // pred_check_branch
      %563 = sbr.rel (0) target = $region357
    $region356: #{tpu_custom_call.1} parent=1 // pred_region
      %564 = dma.done [#allocation29], 16
    $region357: #{tpu_custom_call.1} parent=1 // pred_fallthru
      _
    // Predicated region
    $region358: #{tpu_custom_call.1} parent=1 // pred_check
      _
    $region359: #{tpu_custom_call.1} parent=1 // pred_check_branch
      %566 = sbr.rel (0) target = $region361
    $region360: #{tpu_custom_call.1} parent=1 // pred_region
      %567 = dma.done [#allocation32], 16
    $region361: #{tpu_custom_call.1} parent=1 // pred_fallthru
      _
    // Predicated region
    $region362: #{tpu_custom_call.1} parent=1 // pred_check
      _
    $region363: #{tpu_custom_call.1} parent=1 // pred_check_branch
      %569 = sbr.rel (0) target = $region365
    $region364: #{tpu_custom_call.1} parent=1 // pred_region
      %570 = dma.done [#allocation32], 16
    $region365: #{tpu_custom_call.1} parent=1 // pred_fallthru
      _
    // Predicated region
    $region366: #{tpu_custom_call.1} parent=1 // pred_check
      _
    $region367: #{tpu_custom_call.1} parent=1 // pred_check_branch
      %572 = sbr.rel (0) target = $region369
    $region368: #{tpu_custom_call.1} parent=1 // pred_region
      %573 = dma.done [#allocation35], 16
    $region369: #{tpu_custom_call.1} parent=1 // pred_fallthru
      _
    // Predicated region
    $region370: #{tpu_custom_call.1} parent=1 // pred_check
      _
    $region371: #{tpu_custom_call.1} parent=1 // pred_check_branch
      %575 = sbr.rel (0) target = $region373
    $region372: #{tpu_custom_call.1} parent=1 // pred_region
      %576 = dma.done [#allocation35], 16
    $region373: #{tpu_custom_call.1} parent=1 // pred_fallthru
      _
    // Predicated region
    $region374: #{tpu_custom_call.1} parent=1 // pred_check
      _
    $region375: #{tpu_custom_call.1} parent=1 // pred_check_branch
      %578 = sbr.rel (0) target = $region377
    $region376: #{tpu_custom_call.1} parent=1 // pred_region
      %579 = dma.done [#allocation38], 16
    $region377: #{tpu_custom_call.1} parent=1 // pred_fallthru
      _
    // Predicated region
    $region378: #{tpu_custom_call.1} parent=1 // pred_check
      _
    $region379: #{tpu_custom_call.1} parent=1 // pred_check_branch
      %581 = sbr.rel (0) target = $region381
    $region380: #{tpu_custom_call.1} parent=1 // pred_region
      %582 = dma.done [#allocation38], 16
    $region381: #{tpu_custom_call.1} parent=1 // pred_fallthru
      _
    // Predicated region
    $region382: #{tpu_custom_call.1} parent=1 // pred_check
      _
    $region383: #{tpu_custom_call.1} parent=1 // pred_check_branch
      %584 = sbr.rel (0) target = $region385
    $region384: #{tpu_custom_call.1} parent=1 // pred_region
      %585 = dma.done [#allocation41], 16
    $region385: #{tpu_custom_call.1} parent=1 // pred_fallthru
      _
    %v587 = vld [vmem:[%s5] sm:$0xff]
    %v588 = vld [vmem:[%s5 + $0x8] sm:$0xff]
    %v589 = vld [vmem:[%s5 + $0x10] sm:$0xff]
    %v590 = vld [vmem:[%s5 + $0x18] sm:$0xff]
    %v591 = vld [vmem:[%s5 + $0x20] sm:$0xff]
    %v592 = vld [vmem:[%s5 + $0x28] sm:$0xff]
    %v593 = vld [vmem:[%s5 + $0x30] sm:$0xff]
    %v594 = vld [vmem:[%s5 + $0x38] sm:$0xff]
    %v595 = vld [vmem:[%s5 + $0x40] sm:$0xff]
    %v596 = vld [vmem:[%s5 + $0x48] sm:$0xff]
    %v597 = vld [vmem:[%s5 + $0x50] sm:$0xff]
    %v598 = vld [vmem:[%s5 + $0x58] sm:$0xff]
    %v599 = vld [vmem:[%s5 + $0x60] sm:$0xff]
    %v600 = vld [vmem:[%s5 + $0x68] sm:$0xff]
    %v601 = vld [vmem:[%s5 + $0x70] sm:$0xff]
    %v602 = vld [vmem:[%s5 + $0x78] sm:$0xff]
    %v603 = vld [vmem:[%s5 + $0x80] sm:$0xff]
    %v604 = vld [vmem:[%s5 + $0x88] sm:$0xff]
    %v605 = vld [vmem:[%s5 + $0x90] sm:$0xff]
    %v606 = vld [vmem:[%s5 + $0x98] sm:$0xff]
    %v607 = vld [vmem:[%s5 + $0xa0] sm:$0xff]
    %v608 = vld [vmem:[%s5 + $0xa8] sm:$0xff]
    %v609 = vld [vmem:[%s5 + $0xb0] sm:$0xff]
    %v610 = vld [vmem:[%s5 + $0xb8] sm:$0xff]
    %v611 = vld [vmem:[%s5 + $0xc0] sm:$0xff]
    %v612 = vld [vmem:[%s5 + $0xc8] sm:$0xff]
    %v613 = vld [vmem:[%s5 + $0xd0] sm:$0xff]
    %v614 = vld [vmem:[%s5 + $0xd8] sm:$0xff]
    %v615 = vld [vmem:[%s5 + $0xe0] sm:$0xff]
    %v616 = vld [vmem:[%s5 + $0xe8] sm:$0xff]
    %v617 = vld [vmem:[%s5 + $0xf0] sm:$0xff]
    %v618 = vld [vmem:[%s5 + $0xf8] sm:$0xff]
    %v619 = vld [vmem:[%s7] sm:$0x3]
    %v620 = vld [vmem:[%s9] sm:$0xff]
    %v621 = vld [vmem:[%s9 + $0x8] sm:$0xff]
    %v622 = vld [vmem:[%s9 + $0x10] sm:$0xff]
    %v623 = vld [vmem:[%s9 + $0x18] sm:$0xff]
    %v624 = vld [vmem:[%s9 + $0x20] sm:$0xff]
    %v625 = vld [vmem:[%s9 + $0x28] sm:$0xff]
    %v626 = vld [vmem:[%s9 + $0x30] sm:$0xff]
    %v627 = vld [vmem:[%s9 + $0x38] sm:$0xff]
    %v628 = vld [vmem:[%s9 + $0x40] sm:$0xff]
    %v629 = vld [vmem:[%s9 + $0x48] sm:$0xff]
    %v630 = vld [vmem:[%s9 + $0x50] sm:$0xff]
    %v631 = vld [vmem:[%s9 + $0x58] sm:$0xff]
    %v632 = vld [vmem:[%s9 + $0x60] sm:$0xff]
    %v633 = vld [vmem:[%s9 + $0x68] sm:$0xff]
    %v634 = vld [vmem:[%s9 + $0x70] sm:$0xff]
    %v635 = vld [vmem:[%s9 + $0x78] sm:$0xff]
    %v636 = vld [vmem:[%s9 + $0x80] sm:$0xff]
    %v637 = vld [vmem:[%s9 + $0x88] sm:$0xff]
    %v638 = vld [vmem:[%s9 + $0x90] sm:$0xff]
    %v639 = vld [vmem:[%s9 + $0x98] sm:$0xff]
    %v640 = vld [vmem:[%s9 + $0xa0] sm:$0xff]
    %v641 = vld [vmem:[%s9 + $0xa8] sm:$0xff]
    %v642 = vld [vmem:[%s9 + $0xb0] sm:$0xff]
    %v643 = vld [vmem:[%s9 + $0xb8] sm:$0xff]
    %v644 = vld [vmem:[%s9 + $0xc0] sm:$0xff]
    %v645 = vld [vmem:[%s9 + $0xc8] sm:$0xff]
    %v646 = vld [vmem:[%s9 + $0xd0] sm:$0xff]
    %v647 = vld [vmem:[%s9 + $0xd8] sm:$0xff]
    %v648 = vld [vmem:[%s9 + $0xe0] sm:$0xff]
    %v649 = vld [vmem:[%s9 + $0xe8] sm:$0xff]
    %v650 = vld [vmem:[%s9 + $0xf0] sm:$0xff]
    %v651 = vld [vmem:[%s9 + $0xf8] sm:$0xff]
    %v652 = vld [vmem:[%s11] sm:$0x3]
    %v653 = vlaneseq
    %v654 = vand.u32 %v653, 127
    %v655 = vadd.s32 %v654, 128
    %656 = vset.pattern.permute.xlu0 0
    %657 = vperm.xlu0 %656, %v587
    %v658 = vpop.permute.xlu0 %657
    %659 = vset.pattern.permute.xlu0 0
    %660 = vperm.xlu0 %659, %v588
    %v661 = vpop.permute.xlu0 %660
    %662 = vset.pattern.permute.xlu0 0
    %663 = vperm.xlu0 %662, %v589
    %v664 = vpop.permute.xlu0 %663
    %665 = vset.pattern.permute.xlu0 0
    %666 = vperm.xlu0 %665, %v590
    %v667 = vpop.permute.xlu0 %666
    %668 = vset.pattern.permute.xlu0 0
    %669 = vperm.xlu0 %668, %v591
    %v670 = vpop.permute.xlu0 %669
    %671 = vset.pattern.permute.xlu0 0
    %672 = vperm.xlu0 %671, %v592
    %v673 = vpop.permute.xlu0 %672
    %674 = vset.pattern.permute.xlu0 0
    %675 = vperm.xlu0 %674, %v593
    %v676 = vpop.permute.xlu0 %675
    %677 = vset.pattern.permute.xlu0 0
    %678 = vperm.xlu0 %677, %v594
    %v679 = vpop.permute.xlu0 %678
    %680 = vset.pattern.permute.xlu0 0
    %681 = vperm.xlu0 %680, %v595
    %v682 = vpop.permute.xlu0 %681
    %683 = vset.pattern.permute.xlu0 0
    %684 = vperm.xlu0 %683, %v596
    %v685 = vpop.permute.xlu0 %684
    %686 = vset.pattern.permute.xlu0 0
    %687 = vperm.xlu0 %686, %v597
    %v688 = vpop.permute.xlu0 %687
    %689 = vset.pattern.permute.xlu0 0
    %690 = vperm.xlu0 %689, %v598
    %v691 = vpop.permute.xlu0 %690
    %692 = vset.pattern.permute.xlu0 0
    %693 = vperm.xlu0 %692, %v599
    %v694 = vpop.permute.xlu0 %693
    %695 = vset.pattern.permute.xlu0 0
    %696 = vperm.xlu0 %695, %v600
    %v697 = vpop.permute.xlu0 %696
    %698 = vset.pattern.permute.xlu0 0
    %699 = vperm.xlu0 %698, %v601
    %v700 = vpop.permute.xlu0 %699
    %701 = vset.pattern.permute.xlu0 0
    %702 = vperm.xlu0 %701, %v602
    %v703 = vpop.permute.xlu0 %702
    %704 = vset.pattern.permute.xlu0 0
    %705 = vperm.xlu0 %704, %v603
    %v706 = vpop.permute.xlu0 %705
    %707 = vset.pattern.permute.xlu0 0
    %708 = vperm.xlu0 %707, %v604
    %v709 = vpop.permute.xlu0 %708
    %710 = vset.pattern.permute.xlu0 0
    %711 = vperm.xlu0 %710, %v605
    %v712 = vpop.permute.xlu0 %711
    %713 = vset.pattern.permute.xlu0 0
    %714 = vperm.xlu0 %713, %v606
    %v715 = vpop.permute.xlu0 %714
    %716 = vset.pattern.permute.xlu0 0
    %717 = vperm.xlu0 %716, %v607
    %v718 = vpop.permute.xlu0 %717
    %719 = vset.pattern.permute.xlu0 0
    %720 = vperm.xlu0 %719, %v608
    %v721 = vpop.permute.xlu0 %720
    %722 = vset.pattern.permute.xlu0 0
    %723 = vperm.xlu0 %722, %v609
    %v724 = vpop.permute.xlu0 %723
    %725 = vset.pattern.permute.xlu0 0
    %726 = vperm.xlu0 %725, %v610
    %v727 = vpop.permute.xlu0 %726
    %728 = vset.pattern.permute.xlu0 0
    %729 = vperm.xlu0 %728, %v611
    %v730 = vpop.permute.xlu0 %729
    %731 = vset.pattern.permute.xlu0 0
    %732 = vperm.xlu0 %731, %v612
    %v733 = vpop.permute.xlu0 %732
    %734 = vset.pattern.permute.xlu0 0
    %735 = vperm.xlu0 %734, %v613
    %v736 = vpop.permute.xlu0 %735
    %737 = vset.pattern.permute.xlu0 0
    %738 = vperm.xlu0 %737, %v614
    %v739 = vpop.permute.xlu0 %738
    %740 = vset.pattern.permute.xlu0 0
    %741 = vperm.xlu0 %740, %v615
    %v742 = vpop.permute.xlu0 %741
    %743 = vset.pattern.permute.xlu0 0
    %744 = vperm.xlu0 %743, %v616
    %v745 = vpop.permute.xlu0 %744
    %746 = vset.pattern.permute.xlu0 0
    %747 = vperm.xlu0 %746, %v617
    %v748 = vpop.permute.xlu0 %747
    %749 = vset.pattern.permute.xlu0 0
    %750 = vperm.xlu0 %749, %v618
    %v751 = vpop.permute.xlu0 %750
    %vm752 = vcmp.eq.s32.totalorder %v654, %v658
    %vm753 = vcmp.eq.s32.totalorder %v655, %v658
    %vm754 = vcmp.eq.s32.totalorder %v654, %v661
    %vm755 = vcmp.eq.s32.totalorder %v655, %v661
    %vm756 = vcmp.eq.s32.totalorder %v654, %v664
    %vm757 = vcmp.eq.s32.totalorder %v655, %v664
    %vm758 = vcmp.eq.s32.totalorder %v654, %v667
    %vm759 = vcmp.eq.s32.totalorder %v655, %v667
    %vm760 = vcmp.eq.s32.totalorder %v654, %v670
    %vm761 = vcmp.eq.s32.totalorder %v655, %v670
    %vm762 = vcmp.eq.s32.totalorder %v654, %v673
    %vm763 = vcmp.eq.s32.totalorder %v655, %v673
    %vm764 = vcmp.eq.s32.totalorder %v654, %v676
    %vm765 = vcmp.eq.s32.totalorder %v655, %v676
    %vm766 = vcmp.eq.s32.totalorder %v654, %v679
    %vm767 = vcmp.eq.s32.totalorder %v655, %v679
    %vm768 = vcmp.eq.s32.totalorder %v654, %v682
    %vm769 = vcmp.eq.s32.totalorder %v655, %v682
    %vm770 = vcmp.eq.s32.totalorder %v654, %v685
    %vm771 = vcmp.eq.s32.totalorder %v655, %v685
    %vm772 = vcmp.eq.s32.totalorder %v654, %v688
    %vm773 = vcmp.eq.s32.totalorder %v655, %v688
    %vm774 = vcmp.eq.s32.totalorder %v654, %v691
    %vm775 = vcmp.eq.s32.totalorder %v655, %v691
    %vm776 = vcmp.eq.s32.totalorder %v654, %v694
    %vm777 = vcmp.eq.s32.totalorder %v655, %v694
    %vm778 = vcmp.eq.s32.totalorder %v654, %v697
    %vm779 = vcmp.eq.s32.totalorder %v655, %v697
    %vm780 = vcmp.eq.s32.totalorder %v654, %v700
    %vm781 = vcmp.eq.s32.totalorder %v655, %v700
    %vm782 = vcmp.eq.s32.totalorder %v654, %v703
    %vm783 = vcmp.eq.s32.totalorder %v655, %v703
    %vm784 = vcmp.eq.s32.totalorder %v654, %v706
    %vm785 = vcmp.eq.s32.totalorder %v655, %v706
    %vm786 = vcmp.eq.s32.totalorder %v654, %v709
    %vm787 = vcmp.eq.s32.totalorder %v655, %v709
    %vm788 = vcmp.eq.s32.totalorder %v654, %v712
    %vm789 = vcmp.eq.s32.totalorder %v655, %v712
    %vm790 = vcmp.eq.s32.totalorder %v654, %v715
    %vm791 = vcmp.eq.s32.totalorder %v655, %v715
    %vm792 = vcmp.eq.s32.totalorder %v654, %v718
    %vm793 = vcmp.eq.s32.totalorder %v655, %v718
    %vm794 = vcmp.eq.s32.totalorder %v654, %v721
    %vm795 = vcmp.eq.s32.totalorder %v655, %v721
    %vm796 = vcmp.eq.s32.totalorder %v654, %v724
    %vm797 = vcmp.eq.s32.totalorder %v655, %v724
    %vm798 = vcmp.eq.s32.totalorder %v654, %v727
    %vm799 = vcmp.eq.s32.totalorder %v655, %v727
    %vm800 = vcmp.eq.s32.totalorder %v654, %v730
    %vm801 = vcmp.eq.s32.totalorder %v655, %v730
    %vm802 = vcmp.eq.s32.totalorder %v654, %v733
    %vm803 = vcmp.eq.s32.totalorder %v655, %v733
    %vm804 = vcmp.eq.s32.totalorder %v654, %v736
    %vm805 = vcmp.eq.s32.totalorder %v655, %v736
    %vm806 = vcmp.eq.s32.totalorder %v654, %v739
    %vm807 = vcmp.eq.s32.totalorder %v655, %v739
    %vm808 = vcmp.eq.s32.totalorder %v654, %v742
    %vm809 = vcmp.eq.s32.totalorder %v655, %v742
    %vm810 = vcmp.eq.s32.totalorder %v654, %v745
    %vm811 = vcmp.eq.s32.totalorder %v655, %v745
    %vm812 = vcmp.eq.s32.totalorder %v654, %v748
    %vm813 = vcmp.eq.s32.totalorder %v655, %v748
    %vm814 = vcmp.eq.s32.totalorder %v654, %v751
    %vm815 = vcmp.eq.s32.totalorder %v655, %v751
    %v816 = vadd.s32 %v620, 64
    %v817 = vadd.s32 %v621, 64
    %v818 = vadd.s32 %v622, 64
    %v819 = vadd.s32 %v623, 64
    %v820 = vadd.s32 %v624, 64
    %v821 = vadd.s32 %v625, 64
    %v822 = vadd.s32 %v626, 64
    %v823 = vadd.s32 %v627, 64
    %v824 = vadd.s32 %v628, 64
    %v825 = vadd.s32 %v629, 64
    %v826 = vadd.s32 %v630, 64
    %v827 = vadd.s32 %v631, 64
    %v828 = vadd.s32 %v632, 64
    %v829 = vadd.s32 %v633, 64
    %v830 = vadd.s32 %v634, 64
    %v831 = vadd.s32 %v635, 64
    %v832 = vadd.s32 %v636, 64
    %v833 = vadd.s32 %v637, 64
    %v834 = vadd.s32 %v638, 64
    %v835 = vadd.s32 %v639, 64
    %v836 = vadd.s32 %v640, 64
    %v837 = vadd.s32 %v641, 64
    %v838 = vadd.s32 %v642, 64
    %v839 = vadd.s32 %v643, 64
    %v840 = vadd.s32 %v644, 64
    %v841 = vadd.s32 %v645, 64
    %v842 = vadd.s32 %v646, 64
    %v843 = vadd.s32 %v647, 64
    %v844 = vadd.s32 %v648, 64
    %v845 = vadd.s32 %v649, 64
    %v846 = vadd.s32 %v650, 64
    %v847 = vadd.s32 %v651, 64
    %848 = vset.pattern.permute.xlu0 0
    %849 = vperm.xlu0 %848, %v816
    %v850 = vpop.permute.xlu0 %849
    %851 = vset.pattern.permute.xlu0 0
    %852 = vperm.xlu0 %851, %v817
    %v853 = vpop.permute.xlu0 %852
    %854 = vset.pattern.permute.xlu0 0
    %855 = vperm.xlu0 %854, %v818
    %v856 = vpop.permute.xlu0 %855
    %857 = vset.pattern.permute.xlu0 0
    %858 = vperm.xlu0 %857, %v819
    %v859 = vpop.permute.xlu0 %858
    %860 = vset.pattern.permute.xlu0 0
    %861 = vperm.xlu0 %860, %v820
    %v862 = vpop.permute.xlu0 %861
    %863 = vset.pattern.permute.xlu0 0
    %864 = vperm.xlu0 %863, %v821
    %v865 = vpop.permute.xlu0 %864
    %866 = vset.pattern.permute.xlu0 0
    %867 = vperm.xlu0 %866, %v822
    %v868 = vpop.permute.xlu0 %867
    %869 = vset.pattern.permute.xlu0 0
    %870 = vperm.xlu0 %869, %v823
    %v871 = vpop.permute.xlu0 %870
    %872 = vset.pattern.permute.xlu0 0
    %873 = vperm.xlu0 %872, %v824
    %v874 = vpop.permute.xlu0 %873
    %875 = vset.pattern.permute.xlu0 0
    %876 = vperm.xlu0 %875, %v825
    %v877 = vpop.permute.xlu0 %876
    %878 = vset.pattern.permute.xlu0 0
    %879 = vperm.xlu0 %878, %v826
    %v880 = vpop.permute.xlu0 %879
    %881 = vset.pattern.permute.xlu0 0
    %882 = vperm.xlu0 %881, %v827
    %v883 = vpop.permute.xlu0 %882
    %884 = vset.pattern.permute.xlu0 0
    %885 = vperm.xlu0 %884, %v828
    %v886 = vpop.permute.xlu0 %885
    %887 = vset.pattern.permute.xlu0 0
    %888 = vperm.xlu0 %887, %v829
    %v889 = vpop.permute.xlu0 %888
    %890 = vset.pattern.permute.xlu0 0
    %891 = vperm.xlu0 %890, %v830
    %v892 = vpop.permute.xlu0 %891
    %893 = vset.pattern.permute.xlu0 0
    %894 = vperm.xlu0 %893, %v831
    %v895 = vpop.permute.xlu0 %894
    %896 = vset.pattern.permute.xlu0 0
    %897 = vperm.xlu0 %896, %v832
    %v898 = vpop.permute.xlu0 %897
    %899 = vset.pattern.permute.xlu0 0
    %900 = vperm.xlu0 %899, %v833
    %v901 = vpop.permute.xlu0 %900
    %902 = vset.pattern.permute.xlu0 0
    %903 = vperm.xlu0 %902, %v834
    %v904 = vpop.permute.xlu0 %903
    %905 = vset.pattern.permute.xlu0 0
    %906 = vperm.xlu0 %905, %v835
    %v907 = vpop.permute.xlu0 %906
    %908 = vset.pattern.permute.xlu0 0
    %909 = vperm.xlu0 %908, %v836
    %v910 = vpop.permute.xlu0 %909
    %911 = vset.pattern.permute.xlu0 0
    %912 = vperm.xlu0 %911, %v837
    %v913 = vpop.permute.xlu0 %912
    %914 = vset.pattern.permute.xlu0 0
    %915 = vperm.xlu0 %914, %v838
    %v916 = vpop.permute.xlu0 %915
    %917 = vset.pattern.permute.xlu0 0
    %918 = vperm.xlu0 %917, %v839
    %v919 = vpop.permute.xlu0 %918
    %920 = vset.pattern.permute.xlu0 0
    %921 = vperm.xlu0 %920, %v840
    %v922 = vpop.permute.xlu0 %921
    %923 = vset.pattern.permute.xlu0 0
    %924 = vperm.xlu0 %923, %v841
    %v925 = vpop.permute.xlu0 %924
    %926 = vset.pattern.permute.xlu0 0
    %927 = vperm.xlu0 %926, %v842
    %v928 = vpop.permute.xlu0 %927
    %929 = vset.pattern.permute.xlu0 0
    %930 = vperm.xlu0 %929, %v843
    %v931 = vpop.permute.xlu0 %930
    %932 = vset.pattern.permute.xlu0 0
    %933 = vperm.xlu0 %932, %v844
    %v934 = vpop.permute.xlu0 %933
    %935 = vset.pattern.permute.xlu0 0
    %936 = vperm.xlu0 %935, %v845
    %v937 = vpop.permute.xlu0 %936
    %938 = vset.pattern.permute.xlu0 0
    %939 = vperm.xlu0 %938, %v846
    %v940 = vpop.permute.xlu0 %939
    %941 = vset.pattern.permute.xlu0 0
    %942 = vperm.xlu0 %941, %v847
    %v943 = vpop.permute.xlu0 %942
    %vm944 = vcmp.eq.s32.totalorder %v654, %v850
    %vm945 = vcmp.eq.s32.totalorder %v655, %v850
    %vm946 = vcmp.eq.s32.totalorder %v654, %v853
    %vm947 = vcmp.eq.s32.totalorder %v655, %v853
    %vm948 = vcmp.eq.s32.totalorder %v654, %v856
    %vm949 = vcmp.eq.s32.totalorder %v655, %v856
    %vm950 = vcmp.eq.s32.totalorder %v654, %v859
    %vm951 = vcmp.eq.s32.totalorder %v655, %v859
    %vm952 = vcmp.eq.s32.totalorder %v654, %v862
    %vm953 = vcmp.eq.s32.totalorder %v655, %v862
    %vm954 = vcmp.eq.s32.totalorder %v654, %v865
    %vm955 = vcmp.eq.s32.totalorder %v655, %v865
    %vm956 = vcmp.eq.s32.totalorder %v654, %v868
    %vm957 = vcmp.eq.s32.totalorder %v655, %v868
    %vm958 = vcmp.eq.s32.totalorder %v654, %v871
    %vm959 = vcmp.eq.s32.totalorder %v655, %v871
    %vm960 = vcmp.eq.s32.totalorder %v654, %v874
    %vm961 = vcmp.eq.s32.totalorder %v655, %v874
    %vm962 = vcmp.eq.s32.totalorder %v654, %v877
    %vm963 = vcmp.eq.s32.totalorder %v655, %v877
    %vm964 = vcmp.eq.s32.totalorder %v654, %v880
    %vm965 = vcmp.eq.s32.totalorder %v655, %v880
    %vm966 = vcmp.eq.s32.totalorder %v654, %v883
    %vm967 = vcmp.eq.s32.totalorder %v655, %v883
    %vm968 = vcmp.eq.s32.totalorder %v654, %v886
    %vm969 = vcmp.eq.s32.totalorder %v655, %v886
    %vm970 = vcmp.eq.s32.totalorder %v654, %v889
    %vm971 = vcmp.eq.s32.totalorder %v655, %v889
    %vm972 = vcmp.eq.s32.totalorder %v654, %v892
    %vm973 = vcmp.eq.s32.totalorder %v655, %v892
    %vm974 = vcmp.eq.s32.totalorder %v654, %v895
    %vm975 = vcmp.eq.s32.totalorder %v655, %v895
    %vm976 = vcmp.eq.s32.totalorder %v654, %v898
    %vm977 = vcmp.eq.s32.totalorder %v655, %v898
    %vm978 = vcmp.eq.s32.totalorder %v654, %v901
    %vm979 = vcmp.eq.s32.totalorder %v655, %v901
    %vm980 = vcmp.eq.s32.totalorder %v654, %v904
    %vm981 = vcmp.eq.s32.totalorder %v655, %v904
    %vm982 = vcmp.eq.s32.totalorder %v654, %v907
    %vm983 = vcmp.eq.s32.totalorder %v655, %v907
    %vm984 = vcmp.eq.s32.totalorder %v654, %v910
    %vm985 = vcmp.eq.s32.totalorder %v655, %v910
    %vm986 = vcmp.eq.s32.totalorder %v654, %v913
    %vm987 = vcmp.eq.s32.totalorder %v655, %v913
    %vm988 = vcmp.eq.s32.totalorder %v654, %v916
    %vm989 = vcmp.eq.s32.totalorder %v655, %v916
    %vm990 = vcmp.eq.s32.totalorder %v654, %v919
    %vm991 = vcmp.eq.s32.totalorder %v655, %v919
    %vm992 = vcmp.eq.s32.totalorder %v654, %v922
    %vm993 = vcmp.eq.s32.totalorder %v655, %v922
    %vm994 = vcmp.eq.s32.totalorder %v654, %v925
    %vm995 = vcmp.eq.s32.totalorder %v655, %v925
    %vm996 = vcmp.eq.s32.totalorder %v654, %v928
    %vm997 = vcmp.eq.s32.totalorder %v655, %v928
    %vm998 = vcmp.eq.s32.totalorder %v654, %v931
    %vm999 = vcmp.eq.s32.totalorder %v655, %v931
    %vm1000 = vcmp.eq.s32.totalorder %v654, %v934
    %vm1001 = vcmp.eq.s32.totalorder %v655, %v934
    %vm1002 = vcmp.eq.s32.totalorder %v654, %v937
    %vm1003 = vcmp.eq.s32.totalorder %v655, %v937
    %vm1004 = vcmp.eq.s32.totalorder %v654, %v940
    %vm1005 = vcmp.eq.s32.totalorder %v655, %v940
    %vm1006 = vcmp.eq.s32.totalorder %v654, %v943
    %vm1007 = vcmp.eq.s32.totalorder %v655, %v943
    %vm1008 = vmor %vm752, %vm944
    %vm1009 = vmor %vm753, %vm945
    %vm1010 = vmor %vm754, %vm946
    %vm1011 = vmor %vm755, %vm947
    %vm1012 = vmor %vm756, %vm948
    %vm1013 = vmor %vm757, %vm949
    %vm1014 = vmor %vm758, %vm950
    %vm1015 = vmor %vm759, %vm951
    %vm1016 = vmor %vm760, %vm952
    %vm1017 = vmor %vm761, %vm953
    %vm1018 = vmor %vm762, %vm954
    %vm1019 = vmor %vm763, %vm955
    %vm1020 = vmor %vm764, %vm956
    %vm1021 = vmor %vm765, %vm957
    %vm1022 = vmor %vm766, %vm958
    %vm1023 = vmor %vm767, %vm959
    %vm1024 = vmor %vm768, %vm960
    %vm1025 = vmor %vm769, %vm961
    %vm1026 = vmor %vm770, %vm962
    %vm1027 = vmor %vm771, %vm963
    %vm1028 = vmor %vm772, %vm964
    %vm1029 = vmor %vm773, %vm965
    %vm1030 = vmor %vm774, %vm966
    %vm1031 = vmor %vm775, %vm967
    %vm1032 = vmor %vm776, %vm968
    %vm1033 = vmor %vm777, %vm969
    %vm1034 = vmor %vm778, %vm970
    %vm1035 = vmor %vm779, %vm971
    %vm1036 = vmor %vm780, %vm972
    %vm1037 = vmor %vm781, %vm973
    %vm1038 = vmor %vm782, %vm974
    %vm1039 = vmor %vm783, %vm975
    %vm1040 = vmor %vm784, %vm976
    %vm1041 = vmor %vm785, %vm977
    %vm1042 = vmor %vm786, %vm978
    %vm1043 = vmor %vm787, %vm979
    %vm1044 = vmor %vm788, %vm980
    %vm1045 = vmor %vm789, %vm981
    %vm1046 = vmor %vm790, %vm982
    %vm1047 = vmor %vm791, %vm983
    %vm1048 = vmor %vm792, %vm984
    %vm1049 = vmor %vm793, %vm985
    %vm1050 = vmor %vm794, %vm986
    %vm1051 = vmor %vm795, %vm987
    %vm1052 = vmor %vm796, %vm988
    %vm1053 = vmor %vm797, %vm989
    %vm1054 = vmor %vm798, %vm990
    %vm1055 = vmor %vm799, %vm991
    %vm1056 = vmor %vm800, %vm992
    %vm1057 = vmor %vm801, %vm993
    %vm1058 = vmor %vm802, %vm994
    %vm1059 = vmor %vm803, %vm995
    %vm1060 = vmor %vm804, %vm996
    %vm1061 = vmor %vm805, %vm997
    %vm1062 = vmor %vm806, %vm998
    %vm1063 = vmor %vm807, %vm999
    %vm1064 = vmor %vm808, %vm1000
    %vm1065 = vmor %vm809, %vm1001
    %vm1066 = vmor %vm810, %vm1002
    %vm1067 = vmor %vm811, %vm1003
    %vm1068 = vmor %vm812, %vm1004
    %vm1069 = vmor %vm813, %vm1005
    %vm1070 = vmor %vm814, %vm1006
    %vm1071 = vmor %vm815, %vm1007
    %v1072 = vsel %vm1008, 1, 0
    %v1073 = vsel %vm1009, 1, 0
    %v1074 = vsel %vm1010, 1, 0
    %v1075 = vsel %vm1011, 1, 0
    %v1076 = vsel %vm1012, 1, 0
    %v1077 = vsel %vm1013, 1, 0
    %v1078 = vsel %vm1014, 1, 0
    %v1079 = vsel %vm1015, 1, 0
    %v1080 = vsel %vm1016, 1, 0
    %v1081 = vsel %vm1017, 1, 0
    %v1082 = vsel %vm1018, 1, 0
    %v1083 = vsel %vm1019, 1, 0
    %v1084 = vsel %vm1020, 1, 0
    %v1085 = vsel %vm1021, 1, 0
    %v1086 = vsel %vm1022, 1, 0
    %v1087 = vsel %vm1023, 1, 0
    %v1088 = vsel %vm1024, 1, 0
    %v1089 = vsel %vm1025, 1, 0
    %v1090 = vsel %vm1026, 1, 0
    %v1091 = vsel %vm1027, 1, 0
    %v1092 = vsel %vm1028, 1, 0
    %v1093 = vsel %vm1029, 1, 0
    %v1094 = vsel %vm1030, 1, 0
    %v1095 = vsel %vm1031, 1, 0
    %v1096 = vsel %vm1032, 1, 0
    %v1097 = vsel %vm1033, 1, 0
    %v1098 = vsel %vm1034, 1, 0
    %v1099 = vsel %vm1035, 1, 0
    %v1100 = vsel %vm1036, 1, 0
    %v1101 = vsel %vm1037, 1, 0
    %v1102 = vsel %vm1038, 1, 0
    %v1103 = vsel %vm1039, 1, 0
    %v1104 = vsel %vm1040, 1, 0
    %v1105 = vsel %vm1041, 1, 0
    %v1106 = vsel %vm1042, 1, 0
    %v1107 = vsel %vm1043, 1, 0
    %v1108 = vsel %vm1044, 1, 0
    %v1109 = vsel %vm1045, 1, 0
    %v1110 = vsel %vm1046, 1, 0
    %v1111 = vsel %vm1047, 1, 0
    %v1112 = vsel %vm1048, 1, 0
    %v1113 = vsel %vm1049, 1, 0
    %v1114 = vsel %vm1050, 1, 0
    %v1115 = vsel %vm1051, 1, 0
    %v1116 = vsel %vm1052, 1, 0
    %v1117 = vsel %vm1053, 1, 0
    %v1118 = vsel %vm1054, 1, 0
    %v1119 = vsel %vm1055, 1, 0
    %v1120 = vsel %vm1056, 1, 0
    %v1121 = vsel %vm1057, 1, 0
    %v1122 = vsel %vm1058, 1, 0
    %v1123 = vsel %vm1059, 1, 0
    %v1124 = vsel %vm1060, 1, 0
    %v1125 = vsel %vm1061, 1, 0
    %v1126 = vsel %vm1062, 1, 0
    %v1127 = vsel %vm1063, 1, 0
    %v1128 = vsel %vm1064, 1, 0
    %v1129 = vsel %vm1065, 1, 0
    %v1130 = vsel %vm1066, 1, 0
    %v1131 = vsel %vm1067, 1, 0
    %v1132 = vsel %vm1068, 1, 0
    %v1133 = vsel %vm1069, 1, 0
    %v1134 = vsel %vm1070, 1, 0
    %v1135 = vsel %vm1071, 1, 0
    %v1136 = vcvt.s32.f32 %v1072
    %v1137 = vcvt.s32.f32 %v1073
    %v1138 = vcvt.s32.f32 %v1074
    %v1139 = vcvt.s32.f32 %v1075
    %v1140 = vcvt.s32.f32 %v1076
    %v1141 = vcvt.s32.f32 %v1077
    %v1142 = vcvt.s32.f32 %v1078
    %v1143 = vcvt.s32.f32 %v1079
    %v1144 = vcvt.s32.f32 %v1080
    %v1145 = vcvt.s32.f32 %v1081
    %v1146 = vcvt.s32.f32 %v1082
    %v1147 = vcvt.s32.f32 %v1083
    %v1148 = vcvt.s32.f32 %v1084
    %v1149 = vcvt.s32.f32 %v1085
    %v1150 = vcvt.s32.f32 %v1086
    %v1151 = vcvt.s32.f32 %v1087
    %v1152 = vcvt.s32.f32 %v1088
    %v1153 = vcvt.s32.f32 %v1089
    %v1154 = vcvt.s32.f32 %v1090
    %v1155 = vcvt.s32.f32 %v1091
    %v1156 = vcvt.s32.f32 %v1092
    %v1157 = vcvt.s32.f32 %v1093
    %v1158 = vcvt.s32.f32 %v1094
    %v1159 = vcvt.s32.f32 %v1095
    %v1160 = vcvt.s32.f32 %v1096
    %v1161 = vcvt.s32.f32 %v1097
    %v1162 = vcvt.s32.f32 %v1098
    %v1163 = vcvt.s32.f32 %v1099
    %v1164 = vcvt.s32.f32 %v1100
    %v1165 = vcvt.s32.f32 %v1101
    %v1166 = vcvt.s32.f32 %v1102
    %v1167 = vcvt.s32.f32 %v1103
    %v1168 = vcvt.s32.f32 %v1104
    %v1169 = vcvt.s32.f32 %v1105
    %v1170 = vcvt.s32.f32 %v1106
    %v1171 = vcvt.s32.f32 %v1107
    %v1172 = vcvt.s32.f32 %v1108
    %v1173 = vcvt.s32.f32 %v1109
    %v1174 = vcvt.s32.f32 %v1110
    %v1175 = vcvt.s32.f32 %v1111
    %v1176 = vcvt.s32.f32 %v1112
    %v1177 = vcvt.s32.f32 %v1113
    %v1178 = vcvt.s32.f32 %v1114
    %v1179 = vcvt.s32.f32 %v1115
    %v1180 = vcvt.s32.f32 %v1116
    %v1181 = vcvt.s32.f32 %v1117
    %v1182 = vcvt.s32.f32 %v1118
    %v1183 = vcvt.s32.f32 %v1119
    %v1184 = vcvt.s32.f32 %v1120
    %v1185 = vcvt.s32.f32 %v1121
    %v1186 = vcvt.s32.f32 %v1122
    %v1187 = vcvt.s32.f32 %v1123
    %v1188 = vcvt.s32.f32 %v1124
    %v1189 = vcvt.s32.f32 %v1125
    %v1190 = vcvt.s32.f32 %v1126
    %v1191 = vcvt.s32.f32 %v1127
    %v1192 = vcvt.s32.f32 %v1128
    %v1193 = vcvt.s32.f32 %v1129
    %v1194 = vcvt.s32.f32 %v1130
    %v1195 = vcvt.s32.f32 %v1131
    %v1196 = vcvt.s32.f32 %v1132
    %v1197 = vcvt.s32.f32 %v1133
    %v1198 = vcvt.s32.f32 %v1134
    %v1199 = vcvt.s32.f32 %v1135
    %v1200 = vpack.c.bf16 %v1138, %v1136
    %v1201 = vpack.c.bf16 %v1139, %v1137
    %v1202 = vpack.c.bf16 %v1142, %v1140
    %v1203 = vpack.c.bf16 %v1143, %v1141
    %v1204 = vpack.c.bf16 %v1146, %v1144
    %v1205 = vpack.c.bf16 %v1147, %v1145
    %v1206 = vpack.c.bf16 %v1150, %v1148
    %v1207 = vpack.c.bf16 %v1151, %v1149
    %v1208 = vpack.c.bf16 %v1154, %v1152
    %v1209 = vpack.c.bf16 %v1155, %v1153
    %v1210 = vpack.c.bf16 %v1158, %v1156
    %v1211 = vpack.c.bf16 %v1159, %v1157
    %v1212 = vpack.c.bf16 %v1162, %v1160
    %v1213 = vpack.c.bf16 %v1163, %v1161
    %v1214 = vpack.c.bf16 %v1166, %v1164
    %v1215 = vpack.c.bf16 %v1167, %v1165
    %v1216 = vpack.c.bf16 %v1170, %v1168
    %v1217 = vpack.c.bf16 %v1171, %v1169
    %v1218 = vpack.c.bf16 %v1174, %v1172
    %v1219 = vpack.c.bf16 %v1175, %v1173
    %v1220 = vpack.c.bf16 %v1178, %v1176
    %v1221 = vpack.c.bf16 %v1179, %v1177
    %v1222 = vpack.c.bf16 %v1182, %v1180
    %v1223 = vpack.c.bf16 %v1183, %v1181
    %v1224 = vpack.c.bf16 %v1186, %v1184
    %v1225 = vpack.c.bf16 %v1187, %v1185
    %v1226 = vpack.c.bf16 %v1190, %v1188
    %v1227 = vpack.c.bf16 %v1191, %v1189
    %v1228 = vpack.c.bf16 %v1194, %v1192
    %v1229 = vpack.c.bf16 %v1195, %v1193
    %v1230 = vpack.c.bf16 %v1198, %v1196
    %v1231 = vpack.c.bf16 %v1199, %v1197
    %v1232 = vlaneseq
    %v1233 = vshrl.u32 %v1232, 7
    %v1234 = vadd.s32 %v1233, 8
    %v1235 = vadd.s32 %v1233, 16
    %v1236 = vadd.s32 %v1233, 24
    %v1237 = vadd.s32 %v1233, 32
    %v1238 = vadd.s32 %v1233, 40
    %v1239 = vadd.s32 %v1233, 48
    %v1240 = vadd.s32 %v1233, 56
    %v1241 = vlaneseq
    %v1242 = vshrl.u32 %v1241, 7
    %v1243 = vsub.s32 0, %v1242
    %v1244 = vrot.slane %v619, %v1243
    %v1245 = vlaneseq
    %v1246 = vshrl.u32 %v1245, 7
    %v1247 = vsub.s32 1, %v1246
    %v1248 = vrot.slane %v619, %v1247
    %vm1249 = vcmp.eq.s32.totalorder %v1233, %v1244
    %vm1250 = vcmp.eq.s32.totalorder %v1233, %v1248
    %vm1251 = vcmp.eq.s32.totalorder %v1234, %v1244
    %vm1252 = vcmp.eq.s32.totalorder %v1234, %v1248
    %vm1253 = vcmp.eq.s32.totalorder %v1235, %v1244
    %vm1254 = vcmp.eq.s32.totalorder %v1235, %v1248
    %vm1255 = vcmp.eq.s32.totalorder %v1236, %v1244
    %vm1256 = vcmp.eq.s32.totalorder %v1236, %v1248
    %vm1257 = vcmp.eq.s32.totalorder %v1237, %v1244
    %vm1258 = vcmp.eq.s32.totalorder %v1237, %v1248
    %vm1259 = vcmp.eq.s32.totalorder %v1238, %v1244
    %vm1260 = vcmp.eq.s32.totalorder %v1238, %v1248
    %vm1261 = vcmp.eq.s32.totalorder %v1239, %v1244
    %vm1262 = vcmp.eq.s32.totalorder %v1239, %v1248
    %vm1263 = vcmp.eq.s32.totalorder %v1240, %v1244
    %vm1264 = vcmp.eq.s32.totalorder %v1240, %v1248
    %v1265 = vsel %vm1249, 1, 0
    %v1266 = vsel %vm1250, 1, 0
    %v1267 = vsel %vm1251, 1, 0
    %v1268 = vsel %vm1252, 1, 0
    %v1269 = vsel %vm1253, 1, 0
    %v1270 = vsel %vm1254, 1, 0
    %v1271 = vsel %vm1255, 1, 0
    %v1272 = vsel %vm1256, 1, 0
    %v1273 = vsel %vm1257, 1, 0
    %v1274 = vsel %vm1258, 1, 0
    %v1275 = vsel %vm1259, 1, 0
    %v1276 = vsel %vm1260, 1, 0
    %v1277 = vsel %vm1261, 1, 0
    %v1278 = vsel %vm1262, 1, 0
    %v1279 = vsel %vm1263, 1, 0
    %v1280 = vsel %vm1264, 1, 0
    %v1281 = vcvt.s32.f32 %v1265
    %v1282 = vcvt.s32.f32 %v1266
    %v1283 = vcvt.s32.f32 %v1267
    %v1284 = vcvt.s32.f32 %v1268
    %v1285 = vcvt.s32.f32 %v1269
    %v1286 = vcvt.s32.f32 %v1270
    %v1287 = vcvt.s32.f32 %v1271
    %v1288 = vcvt.s32.f32 %v1272
    %v1289 = vcvt.s32.f32 %v1273
    %v1290 = vcvt.s32.f32 %v1274
    %v1291 = vcvt.s32.f32 %v1275
    %v1292 = vcvt.s32.f32 %v1276
    %v1293 = vcvt.s32.f32 %v1277
    %v1294 = vcvt.s32.f32 %v1278
    %v1295 = vcvt.s32.f32 %v1279
    %v1296 = vcvt.s32.f32 %v1280
    %v1297 = vpack.c.bf16 %v1283, %v1281
    %v1298 = vpack.c.bf16 %v1284, %v1282
    %v1299 = vpack.c.bf16 %v1287, %v1285
    %v1300 = vpack.c.bf16 %v1288, %v1286
    %v1301 = vpack.c.bf16 %v1291, %v1289
    %v1302 = vpack.c.bf16 %v1292, %v1290
    %v1303 = vpack.c.bf16 %v1295, %v1293
    %v1304 = vpack.c.bf16 %v1296, %v1294
    %v1305 = vadd.s32 %v1233, 64
    %v1306 = vadd.s32 %v1233, 72
    %v1307 = vadd.s32 %v1233, 80
    %v1308 = vadd.s32 %v1233, 88
    %v1309 = vlaneseq
    %v1310 = vshrl.u32 %v1309, 7
    %v1311 = vsub.s32 0, %v1310
    %v1312 = vrot.slane %v652, %v1311
    %v1313 = vlaneseq
    %v1314 = vshrl.u32 %v1313, 7
    %v1315 = vsub.s32 1, %v1314
    %v1316 = vrot.slane %v652, %v1315
    %vm1317 = vcmp.eq.s32.totalorder %v1233, %v1312
    %vm1318 = vcmp.eq.s32.totalorder %v1233, %v1316
    %vm1319 = vcmp.eq.s32.totalorder %v1234, %v1312
    %vm1320 = vcmp.eq.s32.totalorder %v1234, %v1316
    %vm1321 = vcmp.eq.s32.totalorder %v1235, %v1312
    %vm1322 = vcmp.eq.s32.totalorder %v1235, %v1316
    %vm1323 = vcmp.eq.s32.totalorder %v1236, %v1312
    %vm1324 = vcmp.eq.s32.totalorder %v1236, %v1316
    %vm1325 = vcmp.eq.s32.totalorder %v1237, %v1312
    %vm1326 = vcmp.eq.s32.totalorder %v1237, %v1316
    %vm1327 = vcmp.eq.s32.totalorder %v1238, %v1312
    %vm1328 = vcmp.eq.s32.totalorder %v1238, %v1316
    %vm1329 = vcmp.eq.s32.totalorder %v1239, %v1312
    %vm1330 = vcmp.eq.s32.totalorder %v1239, %v1316
    %vm1331 = vcmp.eq.s32.totalorder %v1240, %v1312
    %vm1332 = vcmp.eq.s32.totalorder %v1240, %v1316
    %vm1333 = vcmp.eq.s32.totalorder %v1305, %v1312
    %vm1334 = vcmp.eq.s32.totalorder %v1305, %v1316
    %vm1335 = vcmp.eq.s32.totalorder %v1306, %v1312
    %vm1336 = vcmp.eq.s32.totalorder %v1306, %v1316
    %vm1337 = vcmp.eq.s32.totalorder %v1307, %v1312
    %vm1338 = vcmp.eq.s32.totalorder %v1307, %v1316
    %vm1339 = vcmp.eq.s32.totalorder %v1308, %v1312
    %vm1340 = vcmp.eq.s32.totalorder %v1308, %v1316
    %v1341 = vsel %vm1317, 1, 0
    %v1342 = vsel %vm1318, 1, 0
    %v1343 = vsel %vm1319, 1, 0
    %v1344 = vsel %vm1320, 1, 0
    %v1345 = vsel %vm1321, 1, 0
    %v1346 = vsel %vm1322, 1, 0
    %v1347 = vsel %vm1323, 1, 0
    %v1348 = vsel %vm1324, 1, 0
    %v1349 = vsel %vm1325, 1, 0
    %v1350 = vsel %vm1326, 1, 0
    %v1351 = vsel %vm1327, 1, 0
    %v1352 = vsel %vm1328, 1, 0
    %v1353 = vsel %vm1329, 1, 0
    %v1354 = vsel %vm1330, 1, 0
    %v1355 = vsel %vm1331, 1, 0
    %v1356 = vsel %vm1332, 1, 0
    %v1357 = vsel %vm1333, 1, 0
    %v1358 = vsel %vm1334, 1, 0
    %v1359 = vsel %vm1335, 1, 0
    %v1360 = vsel %vm1336, 1, 0
    %v1361 = vsel %vm1337, 1, 0
    %v1362 = vsel %vm1338, 1, 0
    %v1363 = vsel %vm1339, 1, 0
    %v1364 = vsel %vm1340, 1, 0
    %v1365 = vcvt.s32.f32 %v1341
    %v1366 = vcvt.s32.f32 %v1342
    %v1367 = vcvt.s32.f32 %v1343
    %v1368 = vcvt.s32.f32 %v1344
    %v1369 = vcvt.s32.f32 %v1345
    %v1370 = vcvt.s32.f32 %v1346
    %v1371 = vcvt.s32.f32 %v1347
    %v1372 = vcvt.s32.f32 %v1348
    %v1373 = vcvt.s32.f32 %v1349
    %v1374 = vcvt.s32.f32 %v1350
    %v1375 = vcvt.s32.f32 %v1351
    %v1376 = vcvt.s32.f32 %v1352
    %v1377 = vcvt.s32.f32 %v1353
    %v1378 = vcvt.s32.f32 %v1354
    %v1379 = vcvt.s32.f32 %v1355
    %v1380 = vcvt.s32.f32 %v1356
    %v1381 = vcvt.s32.f32 %v1357
    %v1382 = vcvt.s32.f32 %v1358
    %v1383 = vcvt.s32.f32 %v1359
    %v1384 = vcvt.s32.f32 %v1360
    %v1385 = vcvt.s32.f32 %v1361
    %v1386 = vcvt.s32.f32 %v1362
    %v1387 = vcvt.s32.f32 %v1363
    %v1388 = vcvt.s32.f32 %v1364
    %v1389 = vpack.c.bf16 %v1367, %v1365
    %v1390 = vpack.c.bf16 %v1368, %v1366
    %v1391 = vpack.c.bf16 %v1371, %v1369
    %v1392 = vpack.c.bf16 %v1372, %v1370
    %v1393 = vpack.c.bf16 %v1375, %v1373
    %v1394 = vpack.c.bf16 %v1376, %v1374
    %v1395 = vpack.c.bf16 %v1379, %v1377
    %v1396 = vpack.c.bf16 %v1380, %v1378
    %v1397 = vpack.c.bf16 %v1383, %v1381
    %v1398 = vpack.c.bf16 %v1384, %v1382
    %v1399 = vpack.c.bf16 %v1387, %v1385
    %v1400 = vpack.c.bf16 %v1388, %v1386
    %v1401 = vld [vmem:[%s1] sm:$0xff]
    %v1402 = vld [vmem:[%s1 + $0x8] sm:$0xff]
    %v1403 = vld [vmem:[%s1 + $0x10] sm:$0xff]
    %v1404 = vld [vmem:[%s1 + $0x18] sm:$0xff]
    %v1405 = vld [vmem:[%s1 + $0x20] sm:$0xff]
    %v1406 = vld [vmem:[%s1 + $0x28] sm:$0xff]
    %v1407 = vld [vmem:[%s1 + $0x30] sm:$0xff]
    %v1408 = vld [vmem:[%s1 + $0x38] sm:$0xff]
    %v1409 = vld [vmem:[%s19] sm:$0x1]
    %v1410 = vld [vmem:[%s13] sm:$0x1]
    %vm1411 = vcmask 31744
    %v1412 = vsel %vm1411, %v1401, 0.0
    %1413 = vadd.xlane.f32.xlu0 %v1412
    %v1414 = vpop.xlane.xlu0 %1413
    %v1415 = vsel %vm1411, %v1402, 0.0
    %1416 = vadd.xlane.f32.xlu0 %v1415
    %v1417 = vpop.xlane.xlu0 %1416
    %v1418 = vsel %vm1411, %v1403, 0.0
    %1419 = vadd.xlane.f32.xlu0 %v1418
    %v1420 = vpop.xlane.xlu0 %1419
    %v1421 = vsel %vm1411, %v1404, 0.0
    %1422 = vadd.xlane.f32.xlu0 %v1421
    %v1423 = vpop.xlane.xlu0 %1422
    %v1424 = vsel %vm1411, %v1405, 0.0
    %1425 = vadd.xlane.f32.xlu0 %v1424
    %v1426 = vpop.xlane.xlu0 %1425
    %v1427 = vsel %vm1411, %v1406, 0.0
    %1428 = vadd.xlane.f32.xlu0 %v1427
    %v1429 = vpop.xlane.xlu0 %1428
    %v1430 = vsel %vm1411, %v1407, 0.0
    %1431 = vadd.xlane.f32.xlu0 %v1430
    %v1432 = vpop.xlane.xlu0 %1431
    %v1433 = vsel %vm1411, %v1408, 0.0
    %1434 = vadd.xlane.f32.xlu0 %v1433
    %v1435 = vpop.xlane.xlu0 %1434
    %v1436 = vrcp.pop 4.0
    %v1437 = vmul.f32 %v1414, %v1436
    %v1438 = vmul.f32 %v1417, %v1436
    %v1439 = vmul.f32 %v1420, %v1436
    %v1440 = vmul.f32 %v1423, %v1436
    %v1441 = vmul.f32 %v1426, %v1436
    %v1442 = vmul.f32 %v1429, %v1436
    %v1443 = vmul.f32 %v1432, %v1436
    %v1444 = vmul.f32 %v1435, %v1436
    %v1445 = vmul.f32 %v1401, %v1401
    %v1446 = vmul.f32 %v1402, %v1402
    %v1447 = vmul.f32 %v1403, %v1403
    %v1448 = vmul.f32 %v1404, %v1404
    %v1449 = vmul.f32 %v1405, %v1405
    %v1450 = vmul.f32 %v1406, %v1406
    %v1451 = vmul.f32 %v1407, %v1407
    %v1452 = vmul.f32 %v1408, %v1408
    %v1453 = vsel %vm1411, %v1445, 0.0
    %1454 = vadd.xlane.f32.xlu0 %v1453
    %v1455 = vpop.xlane.xlu0 %1454
    %v1456 = vsel %vm1411, %v1446, 0.0
    %1457 = vadd.xlane.f32.xlu0 %v1456
    %v1458 = vpop.xlane.xlu0 %1457
    %v1459 = vsel %vm1411, %v1447, 0.0
    %1460 = vadd.xlane.f32.xlu0 %v1459
    %v1461 = vpop.xlane.xlu0 %1460
    %v1462 = vsel %vm1411, %v1448, 0.0
    %1463 = vadd.xlane.f32.xlu0 %v1462
    %v1464 = vpop.xlane.xlu0 %1463
    %v1465 = vsel %vm1411, %v1449, 0.0
    %1466 = vadd.xlane.f32.xlu0 %v1465
    %v1467 = vpop.xlane.xlu0 %1466
    %v1468 = vsel %vm1411, %v1450, 0.0
    %1469 = vadd.xlane.f32.xlu0 %v1468
    %v1470 = vpop.xlane.xlu0 %1469
    %v1471 = vsel %vm1411, %v1451, 0.0
    %1472 = vadd.xlane.f32.xlu0 %v1471
    %v1473 = vpop.xlane.xlu0 %1472
    %v1474 = vsel %vm1411, %v1452, 0.0
    %1475 = vadd.xlane.f32.xlu0 %v1474
    %v1476 = vpop.xlane.xlu0 %1475
    %v1477 = vmul.f32 %v1455, %v1436
    %v1478 = vmul.f32 %v1458, %v1436
    %v1479 = vmul.f32 %v1461, %v1436
    %v1480 = vmul.f32 %v1464, %v1436
    %v1481 = vmul.f32 %v1467, %v1436
    %v1482 = vmul.f32 %v1470, %v1436
    %v1483 = vmul.f32 %v1473, %v1436
    %v1484 = vmul.f32 %v1476, %v1436
    %v1485 = vmul.f32 %v1437, %v1437
    %v1486 = vmul.f32 %v1438, %v1438
    %v1487 = vmul.f32 %v1439, %v1439
    %v1488 = vmul.f32 %v1440, %v1440
    %v1489 = vmul.f32 %v1441, %v1441
    %v1490 = vmul.f32 %v1442, %v1442
    %v1491 = vmul.f32 %v1443, %v1443
    %v1492 = vmul.f32 %v1444, %v1444
    %v1493 = vsub.f32 %v1477, %v1485
    %v1494 = vsub.f32 %v1478, %v1486
    %v1495 = vsub.f32 %v1479, %v1487
    %v1496 = vsub.f32 %v1480, %v1488
    %v1497 = vsub.f32 %v1481, %v1489
    %v1498 = vsub.f32 %v1482, %v1490
    %v1499 = vsub.f32 %v1483, %v1491
    %v1500 = vsub.f32 %v1484, %v1492
    %v1501 = vmax.f32 %v1493, 0.0
    %v1502 = vmax.f32 %v1494, 0.0
    %v1503 = vmax.f32 %v1495, 0.0
    %v1504 = vmax.f32 %v1496, 0.0
    %v1505 = vmax.f32 %v1497, 0.0
    %v1506 = vmax.f32 %v1498, 0.0
    %v1507 = vmax.f32 %v1499, 0.0
    %v1508 = vmax.f32 %v1500, 0.0
    %v1509 = vsub.f32 %v1401, %v1437
    %v1510 = vsub.f32 %v1402, %v1438
    %v1511 = vsub.f32 %v1403, %v1439
    %v1512 = vsub.f32 %v1404, %v1440
    %v1513 = vsub.f32 %v1405, %v1441
    %v1514 = vsub.f32 %v1406, %v1442
    %v1515 = vsub.f32 %v1407, %v1443
    %v1516 = vsub.f32 %v1408, %v1444
    %v1517 = vadd.f32 %v1501, 1e-05
    %v1518 = vadd.f32 %v1502, 1e-05
    %v1519 = vadd.f32 %v1503, 1e-05
    %v1520 = vadd.f32 %v1504, 1e-05
    %v1521 = vadd.f32 %v1505, 1e-05
    %v1522 = vadd.f32 %v1506, 1e-05
    %v1523 = vadd.f32 %v1507, 1e-05
    %v1524 = vadd.f32 %v1508, 1e-05
    %v1525 = vrsqrt.pop %v1517
    %v1526 = vrsqrt.pop %v1518
    %v1527 = vrsqrt.pop %v1519
    %v1528 = vrsqrt.pop %v1520
    %v1529 = vrsqrt.pop %v1521
    %v1530 = vrsqrt.pop %v1522
    %v1531 = vrsqrt.pop %v1523
    %v1532 = vrsqrt.pop %v1524
    %v1533 = vmul.f32 %v1509, %v1525
    %v1534 = vmul.f32 %v1510, %v1526
    %v1535 = vmul.f32 %v1511, %v1527
    %v1536 = vmul.f32 %v1512, %v1528
    %v1537 = vmul.f32 %v1513, %v1529
    %v1538 = vmul.f32 %v1514, %v1530
    %v1539 = vmul.f32 %v1515, %v1531
    %v1540 = vmul.f32 %v1516, %v1532
    %v1542 = vlaneseq
    %v1543 = vshrl.u32 %v1542, 7
    %v1544 = vsub.s32 0, %v1543
    %v1545 = vrot.slane %v1409, %v1544
    %v1547 = vmul.f32 %v1533, %v1545
    %v1548 = vmul.f32 %v1534, %v1545
    %v1549 = vmul.f32 %v1535, %v1545
    %v1550 = vmul.f32 %v1536, %v1545
    %v1551 = vmul.f32 %v1537, %v1545
    %v1552 = vmul.f32 %v1538, %v1545
    %v1553 = vmul.f32 %v1539, %v1545
    %v1554 = vmul.f32 %v1540, %v1545
    %v1556 = vlaneseq
    %v1557 = vshrl.u32 %v1556, 7
    %v1558 = vsub.s32 0, %v1557
    %v1559 = vrot.slane %v1410, %v1558
    %v1561 = vadd.f32 %v1547, %v1559
    %v1562 = vadd.f32 %v1548, %v1559
    %v1563 = vadd.f32 %v1549, %v1559
    %v1564 = vadd.f32 %v1550, %v1559
    %v1565 = vadd.f32 %v1551, %v1559
    %v1566 = vadd.f32 %v1552, %v1559
    %v1567 = vadd.f32 %v1553, %v1559
    %v1568 = vadd.f32 %v1554, %v1559
    %v1569 = vld [vmem:[%s21] sm:$0x3]
    %v1570 = vpack.c.bf16 %v1562, %v1561
    %v1571 = vpack.c.bf16 %v1564, %v1563
    %v1572 = vpack.c.bf16 %v1566, %v1565
    %v1573 = vpack.c.bf16 %v1568, %v1567
    %v1574 = vld [vmem:[%s15] sm:$0x1]
    %v1576 = vlaneseq
    %v1577 = vshrl.u32 %v1576, 7
    %v1578 = vsub.s32 0, %v1577
    %v1579 = vrot.slane %v1574, %v1578
    %v1582 = vsel %vm1411, %v1570, 0
    %v1585 = vsel %vm1411, %v1571, 0
    %v1588 = vsel %vm1411, %v1572, 0
    %v1591 = vsel %vm1411, %v1573, 0
    %vm1593 = vcmask 1041408
    %v1595 = vsel %vm1593, %v1569, 0
    %1597 = vmatprep.subr.bf16.mxu0 0
    %1598 = vmatpush1.bf16.msra.mxu0 %v1595
    %1599 = vmatprep.subr.bf16.mxu0 0
    %1600 = vmatpush1.bf16.msra.mxu0 0
    %1601 = vmatprep.subr.bf16.mxu0 0
    %1602 = vmatpush1.bf16.msra.mxu0 0
    %1603 = vmatprep.subr.bf16.mxu0 0
    %1604 = vmatpush1.bf16.msra.mxu0 0
    %1605 = vmatprep.subr.bf16.mxu0 0
    %1606 = vmatpush1.bf16.msra.mxu0 0
    %1607 = vmatprep.subr.bf16.mxu0 0
    %1608 = vmatpush1.bf16.msra.mxu0 0
    %1609 = vmatprep.subr.bf16.mxu0 0
    %1610 = vmatpush1.bf16.msra.mxu0 0
    %1611 = vmatprep.subr.bf16.mxu0 0
    %1612 = vmatpush1.bf16.msra.mxu0 0
    %1613 = vmatprep.subr.bf16.mxu0 0
    %1614 = vmatpush1.bf16.msra.mxu0 0
    %1615 = vmatprep.subr.bf16.mxu0 0
    %1616 = vmatpush1.bf16.msra.mxu0 0
    %1617 = vmatprep.subr.bf16.mxu0 0
    %1618 = vmatpush1.bf16.msra.mxu0 0
    %1619 = vmatprep.subr.bf16.mxu0 0
    %1620 = vmatpush1.bf16.msra.mxu0 0
    %1621 = vmatprep.subr.bf16.mxu0 0
    %1622 = vmatpush1.bf16.msra.mxu0 0
    %1623 = vmatprep.subr.bf16.mxu0 0
    %1624 = vmatpush1.bf16.msra.mxu0 0
    %1625 = vmatprep.subr.bf16.mxu0 0
    %1626 = vmatpush1.bf16.msra.mxu0 0
    %1627 = vmatprep.subr.bf16.mxu0 0
    %1628 = vmatpush1.bf16.msra.mxu0 0
    %1629 = vmatprep.mubr.bf16.mxu0 0
    %1630 = vmatmul.mubr.bf16.gmra.mrb[0].mxu0 %v1582
    %v1631 = vpop.f32.mrb[0].mxu0
    %v1632 = vadd.f32 %v1579, %v1631
    %v1633 = vpop.f32.mrb[0].mxu0
    %v1634 = vpop.f32.mrb[0].mxu0
    %v1635 = vadd.f32 %v1579, %v1634
    %v1636 = vpop.f32.mrb[0].mxu0
    %1637 = vmatprep.mubr.bf16.mxu0 0
    %1638 = vmatmul.mubr.bf16.gmra.mrb[0].mxu0 %v1585
    %v1639 = vpop.f32.mrb[0].mxu0
    %v1640 = vadd.f32 %v1579, %v1639
    %v1641 = vpop.f32.mrb[0].mxu0
    %v1642 = vpop.f32.mrb[0].mxu0
    %v1643 = vadd.f32 %v1579, %v1642
    %v1644 = vpop.f32.mrb[0].mxu0
    %1645 = vmatprep.mubr.bf16.mxu0 0
    %1646 = vmatmul.mubr.bf16.gmra.mrb[0].mxu0 %v1588
    %v1647 = vpop.f32.mrb[0].mxu0
    %v1648 = vadd.f32 %v1579, %v1647
    %v1649 = vpop.f32.mrb[0].mxu0
    %v1650 = vpop.f32.mrb[0].mxu0
    %v1651 = vadd.f32 %v1579, %v1650
    %v1652 = vpop.f32.mrb[0].mxu0
    %1653 = vmatprep.mubr.bf16.mxu0 0
    %1654 = vmatmul.mubr.bf16.gmra.mrb[0].mxu0 %v1591
    %v1655 = vpop.f32.mrb[0].mxu0
    %v1656 = vadd.f32 %v1579, %v1655
    %v1657 = vpop.f32.mrb[0].mxu0
    %v1658 = vpop.f32.mrb[0].mxu0
    %v1659 = vadd.f32 %v1579, %v1658
    %v1660 = vpop.f32.mrb[0].mxu0
    %1661 = vdwg.mxu0
    %v1662 = vmax.f32 %v1632, 0.0
    %v1663 = vmax.f32 %v1635, 0.0
    %v1664 = vmax.f32 %v1640, 0.0
    %v1665 = vmax.f32 %v1643, 0.0
    %v1666 = vmax.f32 %v1648, 0.0
    %v1667 = vmax.f32 %v1651, 0.0
    %v1668 = vmax.f32 %v1656, 0.0
    %v1669 = vmax.f32 %v1659, 0.0
    %v1670 = vld [vmem:[%s23] sm:$0xf]
    %v1671 = vld [vmem:[%s23 + $0x4] sm:$0xf]
    %v1672 = vld [vmem:[%s23 + $0x8] sm:$0xf]
    %v1673 = vld [vmem:[%s23 + $0xc] sm:$0xf]
    %v1674 = vld [vmem:[%s23 + $0x10] sm:$0xf]
    %v1675 = vld [vmem:[%s23 + $0x14] sm:$0xf]
    %v1676 = vld [vmem:[%s23 + $0x18] sm:$0xf]
    %v1677 = vld [vmem:[%s23 + $0x1c] sm:$0xf]
    %v1678 = vpack.c.bf16 %v1663, %v1662
    %v1679 = vpack.c.bf16 %v1665, %v1664
    %v1680 = vpack.c.bf16 %v1667, %v1666
    %v1681 = vpack.c.bf16 %v1669, %v1668
    %v1682 = vld [vmem:[%s17] sm:$0x1]
    %v1684 = vlaneseq
    %v1685 = vshrl.u32 %v1684, 7
    %v1686 = vsub.s32 0, %v1685
    %v1687 = vrot.slane %v1682, %v1686
    %v1697 = vunpack.c.l.b16 %v1670
    %v1698 = vunpack.c.l.b16 %v1671
    %v1699 = vunpack.c.l.b16 %v1672
    %v1700 = vunpack.c.l.b16 %v1673
    %v1701 = vunpack.c.l.b16 %v1674
    %v1702 = vunpack.c.l.b16 %v1675
    %v1703 = vunpack.c.l.b16 %v1676
    %v1704 = vunpack.c.l.b16 %v1677
    %v1705 = vpack.c.b16 %v1698, %v1697
    %v1706 = vpack.c.b16 %v1700, %v1699
    %v1707 = vpack.c.b16 %v1702, %v1701
    %v1708 = vpack.c.b16 %v1704, %v1703
    %vm1713 = vcmask 523264
    %v1715 = vsel %vm1713, %v1678, 0
    %v1718 = vsel %vm1713, %v1679, 0
    %v1721 = vsel %vm1713, %v1680, 0
    %v1724 = vsel %vm1713, %v1681, 0
    %1726 = vmatprep.subr.bf16.mxu0 0
    %1727 = vmatpush1.bf16.msra.mxu0 %v1705
    %1728 = vmatprep.subr.bf16.mxu0 0
    %1729 = vmatpush1.bf16.msra.mxu0 %v1706
    %1730 = vmatprep.subr.bf16.mxu0 0
    %1731 = vmatpush1.bf16.msra.mxu0 %v1707
    %1732 = vmatprep.subr.bf16.mxu0 0
    %1733 = vmatpush1.bf16.msra.mxu0 %v1708
    %1734 = vmatprep.subr.bf16.mxu0 0
    %1735 = vmatpush1.bf16.msra.mxu0 0
    %1736 = vmatprep.subr.bf16.mxu0 0
    %1737 = vmatpush1.bf16.msra.mxu0 0
    %1738 = vmatprep.subr.bf16.mxu0 0
    %1739 = vmatpush1.bf16.msra.mxu0 0
    %1740 = vmatprep.subr.bf16.mxu0 0
    %1741 = vmatpush1.bf16.msra.mxu0 0
    %1742 = vmatprep.subr.bf16.mxu0 0
    %1743 = vmatpush1.bf16.msra.mxu0 0
    %1744 = vmatprep.subr.bf16.mxu0 0
    %1745 = vmatpush1.bf16.msra.mxu0 0
    %1746 = vmatprep.subr.bf16.mxu0 0
    %1747 = vmatpush1.bf16.msra.mxu0 0
    %1748 = vmatprep.subr.bf16.mxu0 0
    %1749 = vmatpush1.bf16.msra.mxu0 0
    %1750 = vmatprep.subr.bf16.mxu0 0
    %1751 = vmatpush1.bf16.msra.mxu0 0
    %1752 = vmatprep.subr.bf16.mxu0 0
    %1753 = vmatpush1.bf16.msra.mxu0 0
    %1754 = vmatprep.subr.bf16.mxu0 0
    %1755 = vmatpush1.bf16.msra.mxu0 0
    %1756 = vmatprep.subr.bf16.mxu0 0
    %1757 = vmatpush1.bf16.msra.mxu0 0
    %1758 = vmatprep.mubr.bf16.mxu0 0
    %1759 = vmatmul.mubr.bf16.gmra.mrb[0].mxu0 %v1715
    %v1760 = vpop.f32.mrb[0].mxu0
    %v1761 = vadd.f32 %v1687, %v1760
    %v1762 = vpop.f32.mrb[0].mxu0
    %v1763 = vpop.f32.mrb[0].mxu0
    %v1764 = vadd.f32 %v1687, %v1763
    %v1765 = vpop.f32.mrb[0].mxu0
    %1766 = vmatprep.mubr.bf16.mxu0 0
    %1767 = vmatmul.mubr.bf16.gmra.mrb[0].mxu0 %v1718
    %v1768 = vpop.f32.mrb[0].mxu0
    %v1769 = vadd.f32 %v1687, %v1768
    %v1770 = vpop.f32.mrb[0].mxu0
    %v1771 = vpop.f32.mrb[0].mxu0
    %v1772 = vadd.f32 %v1687, %v1771
    %v1773 = vpop.f32.mrb[0].mxu0
    %1774 = vmatprep.mubr.bf16.mxu0 0
    %1775 = vmatmul.mubr.bf16.gmra.mrb[0].mxu0 %v1721
    %v1776 = vpop.f32.mrb[0].mxu0
    %v1777 = vadd.f32 %v1687, %v1776
    %v1778 = vpop.f32.mrb[0].mxu0
    %v1779 = vpop.f32.mrb[0].mxu0
    %v1780 = vadd.f32 %v1687, %v1779
    %v1781 = vpop.f32.mrb[0].mxu0
    %1782 = vmatprep.mubr.bf16.mxu0 0
    %1783 = vmatmul.mubr.bf16.gmra.mrb[0].mxu0 %v1724
    %v1784 = vpop.f32.mrb[0].mxu0
    %v1785 = vadd.f32 %v1687, %v1784
    %v1786 = vpop.f32.mrb[0].mxu0
    %v1787 = vpop.f32.mrb[0].mxu0
    %v1788 = vadd.f32 %v1687, %v1787
    %v1789 = vpop.f32.mrb[0].mxu0
    %1790 = vdwg.mxu0
    %v1791 = vmax.f32 %v1761, 0.0
    %v1792 = vmax.f32 %v1764, 0.0
    %v1793 = vmax.f32 %v1769, 0.0
    %v1794 = vmax.f32 %v1772, 0.0
    %v1795 = vmax.f32 %v1777, 0.0
    %v1796 = vmax.f32 %v1780, 0.0
    %v1797 = vmax.f32 %v1785, 0.0
    %v1798 = vmax.f32 %v1788, 0.0
    %v1799 = vld [vmem:[%s3] sm:$0xff]
    %v1800 = vld [vmem:[%s3 + $0x8] sm:$0xff]
    %v1801 = vld [vmem:[%s3 + $0x10] sm:$0xff]
    %v1802 = vld [vmem:[%s3 + $0x18] sm:$0xff]
    %v1803 = vld [vmem:[%s3 + $0x20] sm:$0xff]
    %v1804 = vld [vmem:[%s3 + $0x28] sm:$0xff]
    %v1805 = vld [vmem:[%s3 + $0x30] sm:$0xff]
    %v1806 = vld [vmem:[%s3 + $0x38] sm:$0xff]
    %v1807 = vld [vmem:[%s3 + $0x40] sm:$0xff]
    %v1808 = vld [vmem:[%s3 + $0x48] sm:$0xff]
    %v1809 = vld [vmem:[%s3 + $0x50] sm:$0xff]
    %v1810 = vld [vmem:[%s3 + $0x58] sm:$0xff]
    %v1811 = vld [vmem:[#allocation40] sm:$0x1]
    %v1812 = vld [vmem:[#allocation36] sm:$0x1]
    %vm1813 = vcmask 48128
    %v1814 = vsel %vm1813, %v1799, 0.0
    %1815 = vadd.xlane.f32.xlu0 %v1814
    %v1816 = vpop.xlane.xlu0 %1815
    %v1817 = vsel %vm1813, %v1800, 0.0
    %1818 = vadd.xlane.f32.xlu0 %v1817
    %v1819 = vpop.xlane.xlu0 %1818
    %v1820 = vsel %vm1813, %v1801, 0.0
    %1821 = vadd.xlane.f32.xlu0 %v1820
    %v1822 = vpop.xlane.xlu0 %1821
    %v1823 = vsel %vm1813, %v1802, 0.0
    %1824 = vadd.xlane.f32.xlu0 %v1823
    %v1825 = vpop.xlane.xlu0 %1824
    %v1826 = vsel %vm1813, %v1803, 0.0
    %1827 = vadd.xlane.f32.xlu0 %v1826
    %v1828 = vpop.xlane.xlu0 %1827
    %v1829 = vsel %vm1813, %v1804, 0.0
    %1830 = vadd.xlane.f32.xlu0 %v1829
    %v1831 = vpop.xlane.xlu0 %1830
    %v1832 = vsel %vm1813, %v1805, 0.0
    %1833 = vadd.xlane.f32.xlu0 %v1832
    %v1834 = vpop.xlane.xlu0 %1833
    %v1835 = vsel %vm1813, %v1806, 0.0
    %1836 = vadd.xlane.f32.xlu0 %v1835
    %v1837 = vpop.xlane.xlu0 %1836
    %v1838 = vsel %vm1813, %v1807, 0.0
    %1839 = vadd.xlane.f32.xlu0 %v1838
    %v1840 = vpop.xlane.xlu0 %1839
    %v1841 = vsel %vm1813, %v1808, 0.0
    %1842 = vadd.xlane.f32.xlu0 %v1841
    %v1843 = vpop.xlane.xlu0 %1842
    %v1844 = vsel %vm1813, %v1809, 0.0
    %1845 = vadd.xlane.f32.xlu0 %v1844
    %v1846 = vpop.xlane.xlu0 %1845
    %v1847 = vsel %vm1813, %v1810, 0.0
    %1848 = vadd.xlane.f32.xlu0 %v1847
    %v1849 = vpop.xlane.xlu0 %1848
    %v1850 = vrcp.pop 6.0
    %v1851 = vmul.f32 %v1816, %v1850
    %v1852 = vmul.f32 %v1819, %v1850
    %v1853 = vmul.f32 %v1822, %v1850
    %v1854 = vmul.f32 %v1825, %v1850
    %v1855 = vmul.f32 %v1828, %v1850
    %v1856 = vmul.f32 %v1831, %v1850
    %v1857 = vmul.f32 %v1834, %v1850
    %v1858 = vmul.f32 %v1837, %v1850
    %v1859 = vmul.f32 %v1840, %v1850
    %v1860 = vmul.f32 %v1843, %v1850
    %v1861 = vmul.f32 %v1846, %v1850
    %v1862 = vmul.f32 %v1849, %v1850
    %v1863 = vmul.f32 %v1799, %v1799
    %v1864 = vmul.f32 %v1800, %v1800
    %v1865 = vmul.f32 %v1801, %v1801
    %v1866 = vmul.f32 %v1802, %v1802
    %v1867 = vmul.f32 %v1803, %v1803
    %v1868 = vmul.f32 %v1804, %v1804
    %v1869 = vmul.f32 %v1805, %v1805
    %v1870 = vmul.f32 %v1806, %v1806
    %v1871 = vmul.f32 %v1807, %v1807
    %v1872 = vmul.f32 %v1808, %v1808
    %v1873 = vmul.f32 %v1809, %v1809
    %v1874 = vmul.f32 %v1810, %v1810
    %v1875 = vsel %vm1813, %v1863, 0.0
    %1876 = vadd.xlane.f32.xlu0 %v1875
    %v1877 = vpop.xlane.xlu0 %1876
    %v1878 = vsel %vm1813, %v1864, 0.0
    %1879 = vadd.xlane.f32.xlu0 %v1878
    %v1880 = vpop.xlane.xlu0 %1879
    %v1881 = vsel %vm1813, %v1865, 0.0
    %1882 = vadd.xlane.f32.xlu0 %v1881
    %v1883 = vpop.xlane.xlu0 %1882
    %v1884 = vsel %vm1813, %v1866, 0.0
    %1885 = vadd.xlane.f32.xlu0 %v1884
    %v1886 = vpop.xlane.xlu0 %1885
    %v1887 = vsel %vm1813, %v1867, 0.0
    %1888 = vadd.xlane.f32.xlu0 %v1887
    %v1889 = vpop.xlane.xlu0 %1888
    %v1890 = vsel %vm1813, %v1868, 0.0
    %1891 = vadd.xlane.f32.xlu0 %v1890
    %v1892 = vpop.xlane.xlu0 %1891
    %v1893 = vsel %vm1813, %v1869, 0.0
    %1894 = vadd.xlane.f32.xlu0 %v1893
    %v1895 = vpop.xlane.xlu0 %1894
    %v1896 = vsel %vm1813, %v1870, 0.0
    %1897 = vadd.xlane.f32.xlu0 %v1896
    %v1898 = vpop.xlane.xlu0 %1897
    %v1899 = vsel %vm1813, %v1871, 0.0
    %1900 = vadd.xlane.f32.xlu0 %v1899
    %v1901 = vpop.xlane.xlu0 %1900
    %v1902 = vsel %vm1813, %v1872, 0.0
    %1903 = vadd.xlane.f32.xlu0 %v1902
    %v1904 = vpop.xlane.xlu0 %1903
    %v1905 = vsel %vm1813, %v1873, 0.0
    %1906 = vadd.xlane.f32.xlu0 %v1905
    %v1907 = vpop.xlane.xlu0 %1906
    %v1908 = vsel %vm1813, %v1874, 0.0
    %1909 = vadd.xlane.f32.xlu0 %v1908
    %v1910 = vpop.xlane.xlu0 %1909
    %v1911 = vmul.f32 %v1877, %v1850
    %v1912 = vmul.f32 %v1880, %v1850
    %v1913 = vmul.f32 %v1883, %v1850
    %v1914 = vmul.f32 %v1886, %v1850
    %v1915 = vmul.f32 %v1889, %v1850
    %v1916 = vmul.f32 %v1892, %v1850
    %v1917 = vmul.f32 %v1895, %v1850
    %v1918 = vmul.f32 %v1898, %v1850
    %v1919 = vmul.f32 %v1901, %v1850
    %v1920 = vmul.f32 %v1904, %v1850
    %v1921 = vmul.f32 %v1907, %v1850
    %v1922 = vmul.f32 %v1910, %v1850
    %v1923 = vmul.f32 %v1851, %v1851
    %v1924 = vmul.f32 %v1852, %v1852
    %v1925 = vmul.f32 %v1853, %v1853
    %v1926 = vmul.f32 %v1854, %v1854
    %v1927 = vmul.f32 %v1855, %v1855
    %v1928 = vmul.f32 %v1856, %v1856
    %v1929 = vmul.f32 %v1857, %v1857
    %v1930 = vmul.f32 %v1858, %v1858
    %v1931 = vmul.f32 %v1859, %v1859
    %v1932 = vmul.f32 %v1860, %v1860
    %v1933 = vmul.f32 %v1861, %v1861
    %v1934 = vmul.f32 %v1862, %v1862
    %v1935 = vsub.f32 %v1911, %v1923
    %v1936 = vsub.f32 %v1912, %v1924
    %v1937 = vsub.f32 %v1913, %v1925
    %v1938 = vsub.f32 %v1914, %v1926
    %v1939 = vsub.f32 %v1915, %v1927
    %v1940 = vsub.f32 %v1916, %v1928
    %v1941 = vsub.f32 %v1917, %v1929
    %v1942 = vsub.f32 %v1918, %v1930
    %v1943 = vsub.f32 %v1919, %v1931
    %v1944 = vsub.f32 %v1920, %v1932
    %v1945 = vsub.f32 %v1921, %v1933
    %v1946 = vsub.f32 %v1922, %v1934
    %v1947 = vmax.f32 %v1935, 0.0
    %v1948 = vmax.f32 %v1936, 0.0
    %v1949 = vmax.f32 %v1937, 0.0
    %v1950 = vmax.f32 %v1938, 0.0
    %v1951 = vmax.f32 %v1939, 0.0
    %v1952 = vmax.f32 %v1940, 0.0
    %v1953 = vmax.f32 %v1941, 0.0
    %v1954 = vmax.f32 %v1942, 0.0
    %v1955 = vmax.f32 %v1943, 0.0
    %v1956 = vmax.f32 %v1944, 0.0
    %v1957 = vmax.f32 %v1945, 0.0
    %v1958 = vmax.f32 %v1946, 0.0
    %v1959 = vsub.f32 %v1799, %v1851
    %v1960 = vsub.f32 %v1800, %v1852
    %v1961 = vsub.f32 %v1801, %v1853
    %v1962 = vsub.f32 %v1802, %v1854
    %v1963 = vsub.f32 %v1803, %v1855
    %v1964 = vsub.f32 %v1804, %v1856
    %v1965 = vsub.f32 %v1805, %v1857
    %v1966 = vsub.f32 %v1806, %v1858
    %v1967 = vsub.f32 %v1807, %v1859
    %v1968 = vsub.f32 %v1808, %v1860
    %v1969 = vsub.f32 %v1809, %v1861
    %v1970 = vsub.f32 %v1810, %v1862
    %v1971 = vadd.f32 %v1947, 1e-05
    %v1972 = vadd.f32 %v1948, 1e-05
    %v1973 = vadd.f32 %v1949, 1e-05
    %v1974 = vadd.f32 %v1950, 1e-05
    %v1975 = vadd.f32 %v1951, 1e-05
    %v1976 = vadd.f32 %v1952, 1e-05
    %v1977 = vadd.f32 %v1953, 1e-05
    %v1978 = vadd.f32 %v1954, 1e-05
    %v1979 = vadd.f32 %v1955, 1e-05
    %v1980 = vadd.f32 %v1956, 1e-05
    %v1981 = vadd.f32 %v1957, 1e-05
    %v1982 = vadd.f32 %v1958, 1e-05
    %v1983 = vrsqrt.pop %v1971
    %v1984 = vrsqrt.pop %v1972
    %v1985 = vrsqrt.pop %v1973
    %v1986 = vrsqrt.pop %v1974
    %v1987 = vrsqrt.pop %v1975
    %v1988 = vrsqrt.pop %v1976
    %v1989 = vrsqrt.pop %v1977
    %v1990 = vrsqrt.pop %v1978
    %v1991 = vrsqrt.pop %v1979
    %v1992 = vrsqrt.pop %v1980
    %v1993 = vrsqrt.pop %v1981
    %v1994 = vrsqrt.pop %v1982
    %v1995 = vmul.f32 %v1959, %v1983
    %v1996 = vmul.f32 %v1960, %v1984
    %v1997 = vmul.f32 %v1961, %v1985
    %v1998 = vmul.f32 %v1962, %v1986
    %v1999 = vmul.f32 %v1963, %v1987
    %v2000 = vmul.f32 %v1964, %v1988
    %v2001 = vmul.f32 %v1965, %v1989
    %v2002 = vmul.f32 %v1966, %v1990
    %v2003 = vmul.f32 %v1967, %v1991
    %v2004 = vmul.f32 %v1968, %v1992
    %v2005 = vmul.f32 %v1969, %v1993
    %v2006 = vmul.f32 %v1970, %v1994
    %v2008 = vlaneseq
    %v2009 = vshrl.u32 %v2008, 7
    %v2010 = vsub.s32 0, %v2009
    %v2011 = vrot.slane %v1811, %v2010
    %v2013 = vmul.f32 %v1995, %v2011
    %v2014 = vmul.f32 %v1996, %v2011
    %v2015 = vmul.f32 %v1997, %v2011
    %v2016 = vmul.f32 %v1998, %v2011
    %v2017 = vmul.f32 %v1999, %v2011
    %v2018 = vmul.f32 %v2000, %v2011
    %v2019 = vmul.f32 %v2001, %v2011
    %v2020 = vmul.f32 %v2002, %v2011
    %v2021 = vmul.f32 %v2003, %v2011
    %v2022 = vmul.f32 %v2004, %v2011
    %v2023 = vmul.f32 %v2005, %v2011
    %v2024 = vmul.f32 %v2006, %v2011
    %v2026 = vlaneseq
    %v2027 = vshrl.u32 %v2026, 7
    %v2028 = vsub.s32 0, %v2027
    %v2029 = vrot.slane %v1812, %v2028
    %v2031 = vadd.f32 %v2013, %v2029
    %v2032 = vadd.f32 %v2014, %v2029
    %v2033 = vadd.f32 %v2015, %v2029
    %v2034 = vadd.f32 %v2016, %v2029
    %v2035 = vadd.f32 %v2017, %v2029
    %v2036 = vadd.f32 %v2018, %v2029
    %v2037 = vadd.f32 %v2019, %v2029
    %v2038 = vadd.f32 %v2020, %v2029
    %v2039 = vadd.f32 %v2021, %v2029
    %v2040 = vadd.f32 %v2022, %v2029
    %v2041 = vadd.f32 %v2023, %v2029
    %v2042 = vadd.f32 %v2024, %v2029
    %v2043 = vld [vmem:[%s137] sm:$0x7]
    %v2044 = vpack.c.bf16 %v2032, %v2031
    %v2045 = vpack.c.bf16 %v2034, %v2033
    %v2046 = vpack.c.bf16 %v2036, %v2035
    %v2047 = vpack.c.bf16 %v2038, %v2037
    %v2048 = vpack.c.bf16 %v2040, %v2039
    %v2049 = vpack.c.bf16 %v2042, %v2041
    %v2050 = vld [vmem:[#allocation37] sm:$0x1]
    %v2052 = vlaneseq
    %v2053 = vshrl.u32 %v2052, 7
    %v2054 = vsub.s32 0, %v2053
    %v2055 = vrot.slane %v2050, %v2054
    %v2058 = vsel %vm1813, %v2044, 0
    %v2061 = vsel %vm1813, %v2045, 0
    %v2064 = vsel %vm1813, %v2046, 0
    %v2067 = vsel %vm1813, %v2047, 0
    %v2070 = vsel %vm1813, %v2048, 0
    %v2073 = vsel %vm1813, %v2049, 0
    %vm2075 = vcmask 1042432
    %v2077 = vsel %vm2075, %v2043, 0
    %2079 = vmatprep.subr.bf16.mxu0 0
    %2080 = vmatpush1.bf16.msra.mxu0 %v2077
    %2081 = vmatprep.subr.bf16.mxu0 0
    %2082 = vmatpush1.bf16.msra.mxu0 0
    %2083 = vmatprep.subr.bf16.mxu0 0
    %2084 = vmatpush1.bf16.msra.mxu0 0
    %2085 = vmatprep.subr.bf16.mxu0 0
    %2086 = vmatpush1.bf16.msra.mxu0 0
    %2087 = vmatprep.subr.bf16.mxu0 0
    %2088 = vmatpush1.bf16.msra.mxu0 0
    %2089 = vmatprep.subr.bf16.mxu0 0
    %2090 = vmatpush1.bf16.msra.mxu0 0
    %2091 = vmatprep.subr.bf16.mxu0 0
    %2092 = vmatpush1.bf16.msra.mxu0 0
    %2093 = vmatprep.subr.bf16.mxu0 0
    %2094 = vmatpush1.bf16.msra.mxu0 0
    %2095 = vmatprep.subr.bf16.mxu0 0
    %2096 = vmatpush1.bf16.msra.mxu0 0
    %2097 = vmatprep.subr.bf16.mxu0 0
    %2098 = vmatpush1.bf16.msra.mxu0 0
    %2099 = vmatprep.subr.bf16.mxu0 0
    %2100 = vmatpush1.bf16.msra.mxu0 0
    %2101 = vmatprep.subr.bf16.mxu0 0
    %2102 = vmatpush1.bf16.msra.mxu0 0
    %2103 = vmatprep.subr.bf16.mxu0 0
    %2104 = vmatpush1.bf16.msra.mxu0 0
    %2105 = vmatprep.subr.bf16.mxu0 0
    %2106 = vmatpush1.bf16.msra.mxu0 0
    %2107 = vmatprep.subr.bf16.mxu0 0
    %2108 = vmatpush1.bf16.msra.mxu0 0
    %2109 = vmatprep.subr.bf16.mxu0 0
    %2110 = vmatpush1.bf16.msra.mxu0 0
    %2111 = vmatprep.mubr.bf16.mxu0 0
    %2112 = vmatmul.mubr.bf16.gmra.mrb[0].mxu0 %v2058
    %v2113 = vpop.f32.mrb[0].mxu0
    %v2114 = vadd.f32 %v2055, %v2113
    %v2115 = vpop.f32.mrb[0].mxu0
    %v2116 = vpop.f32.mrb[0].mxu0
    %v2117 = vadd.f32 %v2055, %v2116
    %v2118 = vpop.f32.mrb[0].mxu0
    %2119 = vmatprep.mubr.bf16.mxu0 0
    %2120 = vmatmul.mubr.bf16.gmra.mrb[0].mxu0 %v2061
    %v2121 = vpop.f32.mrb[0].mxu0
    %v2122 = vadd.f32 %v2055, %v2121
    %v2123 = vpop.f32.mrb[0].mxu0
    %v2124 = vpop.f32.mrb[0].mxu0
    %v2125 = vadd.f32 %v2055, %v2124
    %v2126 = vpop.f32.mrb[0].mxu0
    %2127 = vmatprep.mubr.bf16.mxu0 0
    %2128 = vmatmul.mubr.bf16.gmra.mrb[0].mxu0 %v2064
    %v2129 = vpop.f32.mrb[0].mxu0
    %v2130 = vadd.f32 %v2055, %v2129
    %v2131 = vpop.f32.mrb[0].mxu0
    %v2132 = vpop.f32.mrb[0].mxu0
    %v2133 = vadd.f32 %v2055, %v2132
    %v2134 = vpop.f32.mrb[0].mxu0
    %2135 = vmatprep.mubr.bf16.mxu0 0
    %2136 = vmatmul.mubr.bf16.gmra.mrb[0].mxu0 %v2067
    %v2137 = vpop.f32.mrb[0].mxu0
    %v2138 = vadd.f32 %v2055, %v2137
    %v2139 = vpop.f32.mrb[0].mxu0
    %v2140 = vpop.f32.mrb[0].mxu0
    %v2141 = vadd.f32 %v2055, %v2140
    %v2142 = vpop.f32.mrb[0].mxu0
    %2143 = vmatprep.mubr.bf16.mxu0 0
    %2144 = vmatmul.mubr.bf16.gmra.mrb[0].mxu0 %v2070
    %v2145 = vpop.f32.mrb[0].mxu0
    %v2146 = vadd.f32 %v2055, %v2145
    %v2147 = vpop.f32.mrb[0].mxu0
    %v2148 = vpop.f32.mrb[0].mxu0
    %v2149 = vadd.f32 %v2055, %v2148
    %v2150 = vpop.f32.mrb[0].mxu0
    %2151 = vmatprep.mubr.bf16.mxu0 0
    %2152 = vmatmul.mubr.bf16.gmra.mrb[0].mxu0 %v2073
    %v2153 = vpop.f32.mrb[0].mxu0
    %v2154 = vadd.f32 %v2055, %v2153
    %v2155 = vpop.f32.mrb[0].mxu0
    %v2156 = vpop.f32.mrb[0].mxu0
    %v2157 = vadd.f32 %v2055, %v2156
    %v2158 = vpop.f32.mrb[0].mxu0
    %2159 = vdwg.mxu0
    %v2160 = vmax.f32 %v2114, 0.0
    %v2161 = vmax.f32 %v2117, 0.0
    %v2162 = vmax.f32 %v2122, 0.0
    %v2163 = vmax.f32 %v2125, 0.0
    %v2164 = vmax.f32 %v2130, 0.0
    %v2165 = vmax.f32 %v2133, 0.0
    %v2166 = vmax.f32 %v2138, 0.0
    %v2167 = vmax.f32 %v2141, 0.0
    %v2168 = vmax.f32 %v2146, 0.0
    %v2169 = vmax.f32 %v2149, 0.0
    %v2170 = vmax.f32 %v2154, 0.0
    %v2171 = vmax.f32 %v2157, 0.0
    %v2172 = vld [vmem:[%s139] sm:$0xf]
    %v2173 = vld [vmem:[%s139 + $0x4] sm:$0xf]
    %v2174 = vld [vmem:[%s139 + $0x8] sm:$0xf]
    %v2175 = vld [vmem:[%s139 + $0xc] sm:$0xf]
    %v2176 = vld [vmem:[%s139 + $0x10] sm:$0xf]
    %v2177 = vld [vmem:[%s139 + $0x14] sm:$0xf]
    %v2178 = vld [vmem:[%s139 + $0x18] sm:$0xf]
    %v2179 = vld [vmem:[%s139 + $0x1c] sm:$0xf]
    %v2180 = vpack.c.bf16 %v2161, %v2160
    %v2181 = vpack.c.bf16 %v2163, %v2162
    %v2182 = vpack.c.bf16 %v2165, %v2164
    %v2183 = vpack.c.bf16 %v2167, %v2166
    %v2184 = vpack.c.bf16 %v2169, %v2168
    %v2185 = vpack.c.bf16 %v2171, %v2170
    %v2186 = vld [vmem:[#allocation39] sm:$0x1]
    %v2188 = vlaneseq
    %v2189 = vshrl.u32 %v2188, 7
    %v2190 = vsub.s32 0, %v2189
    %v2191 = vrot.slane %v2186, %v2190
    %v2201 = vunpack.c.l.b16 %v2172
    %v2202 = vunpack.c.l.b16 %v2173
    %v2203 = vunpack.c.l.b16 %v2174
    %v2204 = vunpack.c.l.b16 %v2175
    %v2205 = vunpack.c.l.b16 %v2176
    %v2206 = vunpack.c.l.b16 %v2177
    %v2207 = vunpack.c.l.b16 %v2178
    %v2208 = vunpack.c.l.b16 %v2179
    %v2209 = vpack.c.b16 %v2202, %v2201
    %v2210 = vpack.c.b16 %v2204, %v2203
    %v2211 = vpack.c.b16 %v2206, %v2205
    %v2212 = vpack.c.b16 %v2208, %v2207
    %v2218 = vsel %vm1713, %v2180, 0
    %v2221 = vsel %vm1713, %v2181, 0
    %v2224 = vsel %vm1713, %v2182, 0
    %v2227 = vsel %vm1713, %v2183, 0
    %v2230 = vsel %vm1713, %v2184, 0
    %v2233 = vsel %vm1713, %v2185, 0
    %2235 = vmatprep.subr.bf16.mxu0 0
    %2236 = vmatpush1.bf16.msra.mxu0 %v2209
    %2237 = vmatprep.subr.bf16.mxu0 0
    %2238 = vmatpush1.bf16.msra.mxu0 %v2210
    %2239 = vmatprep.subr.bf16.mxu0 0
    %2240 = vmatpush1.bf16.msra.mxu0 %v2211
    %2241 = vmatprep.subr.bf16.mxu0 0
    %2242 = vmatpush1.bf16.msra.mxu0 %v2212
    %2243 = vmatprep.subr.bf16.mxu0 0
    %2244 = vmatpush1.bf16.msra.mxu0 0
    %2245 = vmatprep.subr.bf16.mxu0 0
    %2246 = vmatpush1.bf16.msra.mxu0 0
    %2247 = vmatprep.subr.bf16.mxu0 0
    %2248 = vmatpush1.bf16.msra.mxu0 0
    %2249 = vmatprep.subr.bf16.mxu0 0
    %2250 = vmatpush1.bf16.msra.mxu0 0
    %2251 = vmatprep.subr.bf16.mxu0 0
    %2252 = vmatpush1.bf16.msra.mxu0 0
    %2253 = vmatprep.subr.bf16.mxu0 0
    %2254 = vmatpush1.bf16.msra.mxu0 0
    %2255 = vmatprep.subr.bf16.mxu0 0
    %2256 = vmatpush1.bf16.msra.mxu0 0
    %2257 = vmatprep.subr.bf16.mxu0 0
    %2258 = vmatpush1.bf16.msra.mxu0 0
    %2259 = vmatprep.subr.bf16.mxu0 0
    %2260 = vmatpush1.bf16.msra.mxu0 0
    %2261 = vmatprep.subr.bf16.mxu0 0
    %2262 = vmatpush1.bf16.msra.mxu0 0
    %2263 = vmatprep.subr.bf16.mxu0 0
    %2264 = vmatpush1.bf16.msra.mxu0 0
    %2265 = vmatprep.subr.bf16.mxu0 0
    %2266 = vmatpush1.bf16.msra.mxu0 0
    %2267 = vmatprep.mubr.bf16.mxu0 0
    %2268 = vmatmul.mubr.bf16.gmra.mrb[0].mxu0 %v2218
    %v2269 = vpop.f32.mrb[0].mxu0
    %v2270 = vadd.f32 %v2191, %v2269
    %v2271 = vpop.f32.mrb[0].mxu0
    %v2272 = vpop.f32.mrb[0].mxu0
    %v2273 = vadd.f32 %v2191, %v2272
    %v2274 = vpop.f32.mrb[0].mxu0
    %2275 = vmatprep.mubr.bf16.mxu0 0
    %2276 = vmatmul.mubr.bf16.gmra.mrb[0].mxu0 %v2221
    %v2277 = vpop.f32.mrb[0].mxu0
    %v2278 = vadd.f32 %v2191, %v2277
    %v2279 = vpop.f32.mrb[0].mxu0
    %v2280 = vpop.f32.mrb[0].mxu0
    %v2281 = vadd.f32 %v2191, %v2280
    %v2282 = vpop.f32.mrb[0].mxu0
    %2283 = vmatprep.mubr.bf16.mxu0 0
    %2284 = vmatmul.mubr.bf16.gmra.mrb[0].mxu0 %v2224
    %v2285 = vpop.f32.mrb[0].mxu0
    %v2286 = vadd.f32 %v2191, %v2285
    %v2287 = vpop.f32.mrb[0].mxu0
    %v2288 = vpop.f32.mrb[0].mxu0
    %v2289 = vadd.f32 %v2191, %v2288
    %v2290 = vpop.f32.mrb[0].mxu0
    %2291 = vmatprep.mubr.bf16.mxu0 0
    %2292 = vmatmul.mubr.bf16.gmra.mrb[0].mxu0 %v2227
    %v2293 = vpop.f32.mrb[0].mxu0
    %v2294 = vadd.f32 %v2191, %v2293
    %v2295 = vpop.f32.mrb[0].mxu0
    %v2296 = vpop.f32.mrb[0].mxu0
    %v2297 = vadd.f32 %v2191, %v2296
    %v2298 = vpop.f32.mrb[0].mxu0
    %2299 = vmatprep.mubr.bf16.mxu0 0
    %2300 = vmatmul.mubr.bf16.gmra.mrb[0].mxu0 %v2230
    %v2301 = vpop.f32.mrb[0].mxu0
    %v2302 = vadd.f32 %v2191, %v2301
    %v2303 = vpop.f32.mrb[0].mxu0
    %v2304 = vpop.f32.mrb[0].mxu0
    %v2305 = vadd.f32 %v2191, %v2304
    %v2306 = vpop.f32.mrb[0].mxu0
    %2307 = vmatprep.mubr.bf16.mxu0 0
    %2308 = vmatmul.mubr.bf16.gmra.mrb[0].mxu0 %v2233
    %v2309 = vpop.f32.mrb[0].mxu0
    %v2310 = vadd.f32 %v2191, %v2309
    %v2311 = vpop.f32.mrb[0].mxu0
    %v2312 = vpop.f32.mrb[0].mxu0
    %v2313 = vadd.f32 %v2191, %v2312
    %v2314 = vpop.f32.mrb[0].mxu0
    %2315 = vdwg.mxu0
    %v2316 = vmax.f32 %v2270, 0.0
    %v2317 = vmax.f32 %v2273, 0.0
    %v2318 = vmax.f32 %v2278, 0.0
    %v2319 = vmax.f32 %v2281, 0.0
    %v2320 = vmax.f32 %v2286, 0.0
    %v2321 = vmax.f32 %v2289, 0.0
    %v2322 = vmax.f32 %v2294, 0.0
    %v2323 = vmax.f32 %v2297, 0.0
    %v2324 = vmax.f32 %v2302, 0.0
    %v2325 = vmax.f32 %v2305, 0.0
    %v2326 = vmax.f32 %v2310, 0.0
    %v2327 = vmax.f32 %v2313, 0.0
    %v2328 = vld [vmem:[%s95] sm:$0xf]
    %v2329 = vld [vmem:[%s95 + $0x4] sm:$0xf]
    %v2330 = vld [vmem:[%s95 + $0x8] sm:$0xf]
    %v2331 = vld [vmem:[%s95 + $0xc] sm:$0xf]
    %v2332 = vld [vmem:[%s95 + $0x10] sm:$0xf]
    %v2333 = vld [vmem:[%s95 + $0x14] sm:$0xf]
    %v2334 = vld [vmem:[%s95 + $0x18] sm:$0xf]
    %v2335 = vld [vmem:[%s95 + $0x1c] sm:$0xf]
    %v2336 = vpack.c.bf16 %v1792, %v1791
    %v2337 = vpack.c.bf16 %v1794, %v1793
    %v2338 = vpack.c.bf16 %v1796, %v1795
    %v2339 = vpack.c.bf16 %v1798, %v1797
    %v2348 = vunpack.c.l.b16 %v2328
    %v2349 = vunpack.c.l.b16 %v2329
    %v2350 = vunpack.c.l.b16 %v2330
    %v2351 = vunpack.c.l.b16 %v2331
    %v2352 = vunpack.c.l.b16 %v2332
    %v2353 = vunpack.c.l.b16 %v2333
    %v2354 = vunpack.c.l.b16 %v2334
    %v2355 = vunpack.c.l.b16 %v2335
    %v2356 = vpack.c.b16 %v2349, %v2348
    %v2357 = vpack.c.b16 %v2351, %v2350
    %v2358 = vpack.c.b16 %v2353, %v2352
    %v2359 = vpack.c.b16 %v2355, %v2354
    %v2365 = vsel %vm1713, %v2336, 0
    %v2368 = vsel %vm1713, %v2337, 0
    %v2371 = vsel %vm1713, %v2338, 0
    %v2374 = vsel %vm1713, %v2339, 0
    %2376 = vmatprep.subr.bf16.mxu0 0
    %2377 = vmatpush1.bf16.msra.mxu0 %v2356
    %2378 = vmatprep.subr.bf16.mxu0 0
    %2379 = vmatpush1.bf16.msra.mxu0 %v2357
    %2380 = vmatprep.subr.bf16.mxu0 0
    %2381 = vmatpush1.bf16.msra.mxu0 %v2358
    %2382 = vmatprep.subr.bf16.mxu0 0
    %2383 = vmatpush1.bf16.msra.mxu0 %v2359
    %2384 = vmatprep.subr.bf16.mxu0 0
    %2385 = vmatpush1.bf16.msra.mxu0 0
    %2386 = vmatprep.subr.bf16.mxu0 0
    %2387 = vmatpush1.bf16.msra.mxu0 0
    %2388 = vmatprep.subr.bf16.mxu0 0
    %2389 = vmatpush1.bf16.msra.mxu0 0
    %2390 = vmatprep.subr.bf16.mxu0 0
    %2391 = vmatpush1.bf16.msra.mxu0 0
    %2392 = vmatprep.subr.bf16.mxu0 0
    %2393 = vmatpush1.bf16.msra.mxu0 0
    %2394 = vmatprep.subr.bf16.mxu0 0
    %2395 = vmatpush1.bf16.msra.mxu0 0
    %2396 = vmatprep.subr.bf16.mxu0 0
    %2397 = vmatpush1.bf16.msra.mxu0 0
    %2398 = vmatprep.subr.bf16.mxu0 0
    %2399 = vmatpush1.bf16.msra.mxu0 0
    %2400 = vmatprep.subr.bf16.mxu0 0
    %2401 = vmatpush1.bf16.msra.mxu0 0
    %2402 = vmatprep.subr.bf16.mxu0 0
    %2403 = vmatpush1.bf16.msra.mxu0 0
    %2404 = vmatprep.subr.bf16.mxu0 0
    %2405 = vmatpush1.bf16.msra.mxu0 0
    %2406 = vmatprep.subr.bf16.mxu0 0
    %2407 = vmatpush1.bf16.msra.mxu0 0
    %2408 = vmatprep.mubr.bf16.mxu0 0
    %2409 = vmatmul.mubr.bf16.gmra.mrb[0].mxu0 %v2365
    %v2410 = vpop.f32.mrb[0].mxu0
    %v2411 = vadd.f32 0.0, %v2410
    %v2412 = vpop.f32.mrb[0].mxu0
    %v2413 = vpop.f32.mrb[0].mxu0
    %v2414 = vadd.f32 0.0, %v2413
    %v2415 = vpop.f32.mrb[0].mxu0
    %2416 = vmatprep.mubr.bf16.mxu0 0
    %2417 = vmatmul.mubr.bf16.gmra.mrb[0].mxu0 %v2368
    %v2418 = vpop.f32.mrb[0].mxu0
    %v2419 = vadd.f32 0.0, %v2418
    %v2420 = vpop.f32.mrb[0].mxu0
    %v2421 = vpop.f32.mrb[0].mxu0
    %v2422 = vadd.f32 0.0, %v2421
    %v2423 = vpop.f32.mrb[0].mxu0
    %2424 = vmatprep.mubr.bf16.mxu0 0
    %2425 = vmatmul.mubr.bf16.gmra.mrb[0].mxu0 %v2371
    %v2426 = vpop.f32.mrb[0].mxu0
    %v2427 = vadd.f32 0.0, %v2426
    %v2428 = vpop.f32.mrb[0].mxu0
    %v2429 = vpop.f32.mrb[0].mxu0
    %v2430 = vadd.f32 0.0, %v2429
    %v2431 = vpop.f32.mrb[0].mxu0
    %2432 = vmatprep.mubr.bf16.mxu0 0
    %2433 = vmatmul.mubr.bf16.gmra.mrb[0].mxu0 %v2374
    %v2434 = vpop.f32.mrb[0].mxu0
    %v2435 = vadd.f32 0.0, %v2434
    %v2436 = vpop.f32.mrb[0].mxu0
    %v2437 = vpop.f32.mrb[0].mxu0
    %v2438 = vadd.f32 0.0, %v2437
    %v2439 = vpop.f32.mrb[0].mxu0
    %2440 = vdwg.mxu0
    %v2441 = vld [vmem:[%s101] sm:$0xf]
    %v2442 = vld [vmem:[%s101 + $0x4] sm:$0xf]
    %v2443 = vld [vmem:[%s101 + $0x8] sm:$0xf]
    %v2444 = vld [vmem:[%s101 + $0xc] sm:$0xf]
    %v2445 = vld [vmem:[%s101 + $0x10] sm:$0xf]
    %v2446 = vld [vmem:[%s101 + $0x14] sm:$0xf]
    %v2447 = vld [vmem:[%s101 + $0x18] sm:$0xf]
    %v2448 = vld [vmem:[%s101 + $0x1c] sm:$0xf]
    %v2449 = vpack.c.bf16 %v2317, %v2316
    %v2450 = vpack.c.bf16 %v2319, %v2318
    %v2451 = vpack.c.bf16 %v2321, %v2320
    %v2452 = vpack.c.bf16 %v2323, %v2322
    %v2453 = vpack.c.bf16 %v2325, %v2324
    %v2454 = vpack.c.bf16 %v2327, %v2326
    %v2463 = vunpack.c.l.b16 %v2441
    %v2464 = vunpack.c.l.b16 %v2442
    %v2465 = vunpack.c.l.b16 %v2443
    %v2466 = vunpack.c.l.b16 %v2444
    %v2467 = vunpack.c.l.b16 %v2445
    %v2468 = vunpack.c.l.b16 %v2446
    %v2469 = vunpack.c.l.b16 %v2447
    %v2470 = vunpack.c.l.b16 %v2448
    %v2471 = vpack.c.b16 %v2464, %v2463
    %v2472 = vpack.c.b16 %v2466, %v2465
    %v2473 = vpack.c.b16 %v2468, %v2467
    %v2474 = vpack.c.b16 %v2470, %v2469
    %v2480 = vsel %vm1713, %v2449, 0
    %v2483 = vsel %vm1713, %v2450, 0
    %v2486 = vsel %vm1713, %v2451, 0
    %v2489 = vsel %vm1713, %v2452, 0
    %v2492 = vsel %vm1713, %v2453, 0
    %v2495 = vsel %vm1713, %v2454, 0
    %2497 = vmatprep.subr.bf16.mxu0 0
    %2498 = vmatpush1.bf16.msra.mxu0 %v2471
    %2499 = vmatprep.subr.bf16.mxu0 0
    %2500 = vmatpush1.bf16.msra.mxu0 %v2472
    %2501 = vmatprep.subr.bf16.mxu0 0
    %2502 = vmatpush1.bf16.msra.mxu0 %v2473
    %2503 = vmatprep.subr.bf16.mxu0 0
    %2504 = vmatpush1.bf16.msra.mxu0 %v2474
    %2505 = vmatprep.subr.bf16.mxu0 0
    %2506 = vmatpush1.bf16.msra.mxu0 0
    %2507 = vmatprep.subr.bf16.mxu0 0
    %2508 = vmatpush1.bf16.msra.mxu0 0
    %2509 = vmatprep.subr.bf16.mxu0 0
    %2510 = vmatpush1.bf16.msra.mxu0 0
    %2511 = vmatprep.subr.bf16.mxu0 0
    %2512 = vmatpush1.bf16.msra.mxu0 0
    %2513 = vmatprep.subr.bf16.mxu0 0
    %2514 = vmatpush1.bf16.msra.mxu0 0
    %2515 = vmatprep.subr.bf16.mxu0 0
    %2516 = vmatpush1.bf16.msra.mxu0 0
    %2517 = vmatprep.subr.bf16.mxu0 0
    %2518 = vmatpush1.bf16.msra.mxu0 0
    %2519 = vmatprep.subr.bf16.mxu0 0
    %2520 = vmatpush1.bf16.msra.mxu0 0
    %2521 = vmatprep.subr.bf16.mxu0 0
    %2522 = vmatpush1.bf16.msra.mxu0 0
    %2523 = vmatprep.subr.bf16.mxu0 0
    %2524 = vmatpush1.bf16.msra.mxu0 0
    %2525 = vmatprep.subr.bf16.mxu0 0
    %2526 = vmatpush1.bf16.msra.mxu0 0
    %2527 = vmatprep.subr.bf16.mxu0 0
    %2528 = vmatpush1.bf16.msra.mxu0 0
    %2529 = vmatprep.mubr.bf16.mxu0 0
    %2530 = vmatmul.mubr.bf16.gmra.mrb[0].mxu0 %v2480
    %v2531 = vpop.f32.mrb[0].mxu0
    %v2532 = vadd.f32 0.0, %v2531
    %v2533 = vpop.f32.mrb[0].mxu0
    %v2534 = vpop.f32.mrb[0].mxu0
    %v2535 = vadd.f32 0.0, %v2534
    %v2536 = vpop.f32.mrb[0].mxu0
    %2537 = vmatprep.mubr.bf16.mxu0 0
    %2538 = vmatmul.mubr.bf16.gmra.mrb[0].mxu0 %v2483
    %v2539 = vpop.f32.mrb[0].mxu0
    %v2540 = vadd.f32 0.0, %v2539
    %v2541 = vpop.f32.mrb[0].mxu0
    %v2542 = vpop.f32.mrb[0].mxu0
    %v2543 = vadd.f32 0.0, %v2542
    %v2544 = vpop.f32.mrb[0].mxu0
    %2545 = vmatprep.mubr.bf16.mxu0 0
    %2546 = vmatmul.mubr.bf16.gmra.mrb[0].mxu0 %v2486
    %v2547 = vpop.f32.mrb[0].mxu0
    %v2548 = vadd.f32 0.0, %v2547
    %v2549 = vpop.f32.mrb[0].mxu0
    %v2550 = vpop.f32.mrb[0].mxu0
    %v2551 = vadd.f32 0.0, %v2550
    %v2552 = vpop.f32.mrb[0].mxu0
    %2553 = vmatprep.mubr.bf16.mxu0 0
    %2554 = vmatmul.mubr.bf16.gmra.mrb[0].mxu0 %v2489
    %v2555 = vpop.f32.mrb[0].mxu0
    %v2556 = vadd.f32 0.0, %v2555
    %v2557 = vpop.f32.mrb[0].mxu0
    %v2558 = vpop.f32.mrb[0].mxu0
    %v2559 = vadd.f32 0.0, %v2558
    %v2560 = vpop.f32.mrb[0].mxu0
    %2561 = vmatprep.mubr.bf16.mxu0 0
    %2562 = vmatmul.mubr.bf16.gmra.mrb[0].mxu0 %v2492
    %v2563 = vpop.f32.mrb[0].mxu0
    %v2564 = vadd.f32 0.0, %v2563
    %v2565 = vpop.f32.mrb[0].mxu0
    %v2566 = vpop.f32.mrb[0].mxu0
    %v2567 = vadd.f32 0.0, %v2566
    %v2568 = vpop.f32.mrb[0].mxu0
    %2569 = vmatprep.mubr.bf16.mxu0 0
    %2570 = vmatmul.mubr.bf16.gmra.mrb[0].mxu0 %v2495
    %v2571 = vpop.f32.mrb[0].mxu0
    %v2572 = vadd.f32 0.0, %v2571
    %v2573 = vpop.f32.mrb[0].mxu0
    %v2574 = vpop.f32.mrb[0].mxu0
    %v2575 = vadd.f32 0.0, %v2574
    %v2576 = vpop.f32.mrb[0].mxu0
    %2577 = vdwg.mxu0
    %v2578 = vpack.c.bf16 %v2414, %v2411
    %v2579 = vpack.c.bf16 %v2422, %v2419
    %v2580 = vpack.c.bf16 %v2430, %v2427
    %v2581 = vpack.c.bf16 %v2438, %v2435
    %v2582 = vpack.c.bf16 %v2535, %v2532
    %v2583 = vpack.c.bf16 %v2543, %v2540
    %v2584 = vpack.c.bf16 %v2551, %v2548
    %v2585 = vpack.c.bf16 %v2559, %v2556
    %v2586 = vpack.c.bf16 %v2567, %v2564
    %v2587 = vpack.c.bf16 %v2575, %v2572
    %v2588 = vld [vmem:[#allocation15] sm:$0x1]
    %v2590 = vlaneseq
    %v2591 = vshrl.u32 %v2590, 7
    %v2592 = vsub.s32 0, %v2591
    %v2593 = vrot.slane %v2588, %v2592
    %vm2595 = vcmask 261120
    %v2597 = vsel %vm2595, %v1201, 0
    %v2600 = vsel %vm2595, %v1203, 0
    %v2603 = vsel %vm2595, %v1205, 0
    %v2606 = vsel %vm2595, %v1207, 0
    %v2609 = vsel %vm2595, %v1209, 0
    %v2612 = vsel %vm2595, %v1211, 0
    %v2615 = vsel %vm2595, %v1213, 0
    %v2618 = vsel %vm2595, %v1215, 0
    %v2621 = vsel %vm2595, %v1217, 0
    %v2624 = vsel %vm2595, %v1219, 0
    %v2627 = vsel %vm2595, %v1221, 0
    %v2630 = vsel %vm2595, %v1223, 0
    %v2633 = vsel %vm2595, %v1225, 0
    %v2636 = vsel %vm2595, %v1227, 0
    %v2639 = vsel %vm2595, %v1229, 0
    %v2642 = vsel %vm2595, %v1231, 0
    %2644 = vmatprep.subr.bf16.mxu0 0
    %2645 = vmatpush1.bf16.msra.mxu0 %v2578
    %2646 = vmatprep.subr.bf16.mxu0 0
    %2647 = vmatpush1.bf16.msra.mxu0 %v2579
    %2648 = vmatprep.subr.bf16.mxu0 0
    %2649 = vmatpush1.bf16.msra.mxu0 %v2580
    %2650 = vmatprep.subr.bf16.mxu0 0
    %2651 = vmatpush1.bf16.msra.mxu0 %v2581
    %2652 = vmatprep.subr.bf16.mxu0 0
    %2653 = vmatpush1.bf16.msra.mxu0 %v2582
    %2654 = vmatprep.subr.bf16.mxu0 0
    %2655 = vmatpush1.bf16.msra.mxu0 %v2583
    %2656 = vmatprep.subr.bf16.mxu0 0
    %2657 = vmatpush1.bf16.msra.mxu0 %v2584
    %2658 = vmatprep.subr.bf16.mxu0 0
    %2659 = vmatpush1.bf16.msra.mxu0 %v2585
    %2660 = vmatprep.subr.bf16.mxu0 0
    %2661 = vmatpush1.bf16.msra.mxu0 %v2586
    %2662 = vmatprep.subr.bf16.mxu0 0
    %2663 = vmatpush1.bf16.msra.mxu0 %v2587
    %2664 = vmatprep.subr.bf16.mxu0 0
    %2665 = vmatpush1.bf16.msra.mxu0 0
    %2666 = vmatprep.subr.bf16.mxu0 0
    %2667 = vmatpush1.bf16.msra.mxu0 0
    %2668 = vmatprep.subr.bf16.mxu0 0
    %2669 = vmatpush1.bf16.msra.mxu0 0
    %2670 = vmatprep.subr.bf16.mxu0 0
    %2671 = vmatpush1.bf16.msra.mxu0 0
    %2672 = vmatprep.subr.bf16.mxu0 0
    %2673 = vmatpush1.bf16.msra.mxu0 0
    %2674 = vmatprep.subr.bf16.mxu0 0
    %2675 = vmatpush1.bf16.msra.mxu0 0
    %2676 = vmatprep.mubr.bf16.mxu0 %v2597
    %2677 = vmatmul.mubr.bf16.gmra.mrb[0].mxu0 %v1200
    %v2678 = vpop.f32.mrb[0].mxu0
    %v2679 = vadd.f32 %v2593, %v2678
    %v2680 = vpop.f32.mrb[0].mxu0
    %v2681 = vpop.f32.mrb[0].mxu0
    %v2682 = vadd.f32 %v2593, %v2681
    %v2683 = vpop.f32.mrb[0].mxu0
    %2684 = vmatprep.mubr.bf16.mxu0 %v2600
    %2685 = vmatmul.mubr.bf16.gmra.mrb[0].mxu0 %v1202
    %v2686 = vpop.f32.mrb[0].mxu0
    %v2687 = vadd.f32 %v2593, %v2686
    %v2688 = vpop.f32.mrb[0].mxu0
    %v2689 = vpop.f32.mrb[0].mxu0
    %v2690 = vadd.f32 %v2593, %v2689
    %v2691 = vpop.f32.mrb[0].mxu0
    %2692 = vmatprep.mubr.bf16.mxu0 %v2603
    %2693 = vmatmul.mubr.bf16.gmra.mrb[0].mxu0 %v1204
    %v2694 = vpop.f32.mrb[0].mxu0
    %v2695 = vadd.f32 %v2593, %v2694
    %v2696 = vpop.f32.mrb[0].mxu0
    %v2697 = vpop.f32.mrb[0].mxu0
    %v2698 = vadd.f32 %v2593, %v2697
    %v2699 = vpop.f32.mrb[0].mxu0
    %2700 = vmatprep.mubr.bf16.mxu0 %v2606
    %2701 = vmatmul.mubr.bf16.gmra.mrb[0].mxu0 %v1206
    %v2702 = vpop.f32.mrb[0].mxu0
    %v2703 = vadd.f32 %v2593, %v2702
    %v2704 = vpop.f32.mrb[0].mxu0
    %v2705 = vpop.f32.mrb[0].mxu0
    %v2706 = vadd.f32 %v2593, %v2705
    %v2707 = vpop.f32.mrb[0].mxu0
    %2708 = vmatprep.mubr.bf16.mxu0 %v2609
    %2709 = vmatmul.mubr.bf16.gmra.mrb[0].mxu0 %v1208
    %v2710 = vpop.f32.mrb[0].mxu0
    %v2711 = vadd.f32 %v2593, %v2710
    %v2712 = vpop.f32.mrb[0].mxu0
    %v2713 = vpop.f32.mrb[0].mxu0
    %v2714 = vadd.f32 %v2593, %v2713
    %v2715 = vpop.f32.mrb[0].mxu0
    %2716 = vmatprep.mubr.bf16.mxu0 %v2612
    %2717 = vmatmul.mubr.bf16.gmra.mrb[0].mxu0 %v1210
    %v2718 = vpop.f32.mrb[0].mxu0
    %v2719 = vadd.f32 %v2593, %v2718
    %v2720 = vpop.f32.mrb[0].mxu0
    %v2721 = vpop.f32.mrb[0].mxu0
    %v2722 = vadd.f32 %v2593, %v2721
    %v2723 = vpop.f32.mrb[0].mxu0
    %2724 = vmatprep.mubr.bf16.mxu0 %v2615
    %2725 = vmatmul.mubr.bf16.gmra.mrb[0].mxu0 %v1212
    %v2726 = vpop.f32.mrb[0].mxu0
    %v2727 = vadd.f32 %v2593, %v2726
    %v2728 = vpop.f32.mrb[0].mxu0
    %v2729 = vpop.f32.mrb[0].mxu0
    %v2730 = vadd.f32 %v2593, %v2729
    %v2731 = vpop.f32.mrb[0].mxu0
    %2732 = vmatprep.mubr.bf16.mxu0 %v2618
    %2733 = vmatmul.mubr.bf16.gmra.mrb[0].mxu0 %v1214
    %v2734 = vpop.f32.mrb[0].mxu0
    %v2735 = vadd.f32 %v2593, %v2734
    %v2736 = vpop.f32.mrb[0].mxu0
    %v2737 = vpop.f32.mrb[0].mxu0
    %v2738 = vadd.f32 %v2593, %v2737
    %v2739 = vpop.f32.mrb[0].mxu0
    %2740 = vmatprep.mubr.bf16.mxu0 %v2621
    %2741 = vmatmul.mubr.bf16.gmra.mrb[0].mxu0 %v1216
    %v2742 = vpop.f32.mrb[0].mxu0
    %v2743 = vadd.f32 %v2593, %v2742
    %v2744 = vpop.f32.mrb[0].mxu0
    %v2745 = vpop.f32.mrb[0].mxu0
    %v2746 = vadd.f32 %v2593, %v2745
    %v2747 = vpop.f32.mrb[0].mxu0
    %2748 = vmatprep.mubr.bf16.mxu0 %v2624
    %2749 = vmatmul.mubr.bf16.gmra.mrb[0].mxu0 %v1218
    %v2750 = vpop.f32.mrb[0].mxu0
    %v2751 = vadd.f32 %v2593, %v2750
    %v2752 = vpop.f32.mrb[0].mxu0
    %v2753 = vpop.f32.mrb[0].mxu0
    %v2754 = vadd.f32 %v2593, %v2753
    %v2755 = vpop.f32.mrb[0].mxu0
    %2756 = vmatprep.mubr.bf16.mxu0 %v2627
    %2757 = vmatmul.mubr.bf16.gmra.mrb[0].mxu0 %v1220
    %v2758 = vpop.f32.mrb[0].mxu0
    %v2759 = vadd.f32 %v2593, %v2758
    %v2760 = vpop.f32.mrb[0].mxu0
    %v2761 = vpop.f32.mrb[0].mxu0
    %v2762 = vadd.f32 %v2593, %v2761
    %v2763 = vpop.f32.mrb[0].mxu0
    %2764 = vmatprep.mubr.bf16.mxu0 %v2630
    %2765 = vmatmul.mubr.bf16.gmra.mrb[0].mxu0 %v1222
    %v2766 = vpop.f32.mrb[0].mxu0
    %v2767 = vadd.f32 %v2593, %v2766
    %v2768 = vpop.f32.mrb[0].mxu0
    %v2769 = vpop.f32.mrb[0].mxu0
    %v2770 = vadd.f32 %v2593, %v2769
    %v2771 = vpop.f32.mrb[0].mxu0
    %2772 = vmatprep.mubr.bf16.mxu0 %v2633
    %2773 = vmatmul.mubr.bf16.gmra.mrb[0].mxu0 %v1224
    %v2774 = vpop.f32.mrb[0].mxu0
    %v2775 = vadd.f32 %v2593, %v2774
    %v2776 = vpop.f32.mrb[0].mxu0
    %v2777 = vpop.f32.mrb[0].mxu0
    %v2778 = vadd.f32 %v2593, %v2777
    %v2779 = vpop.f32.mrb[0].mxu0
    %2780 = vmatprep.mubr.bf16.mxu0 %v2636
    %2781 = vmatmul.mubr.bf16.gmra.mrb[0].mxu0 %v1226
    %v2782 = vpop.f32.mrb[0].mxu0
    %v2783 = vadd.f32 %v2593, %v2782
    %v2784 = vpop.f32.mrb[0].mxu0
    %v2785 = vpop.f32.mrb[0].mxu0
    %v2786 = vadd.f32 %v2593, %v2785
    %v2787 = vpop.f32.mrb[0].mxu0
    %2788 = vmatprep.mubr.bf16.mxu0 %v2639
    %2789 = vmatmul.mubr.bf16.gmra.mrb[0].mxu0 %v1228
    %v2790 = vpop.f32.mrb[0].mxu0
    %v2791 = vadd.f32 %v2593, %v2790
    %v2792 = vpop.f32.mrb[0].mxu0
    %v2793 = vpop.f32.mrb[0].mxu0
    %v2794 = vadd.f32 %v2593, %v2793
    %v2795 = vpop.f32.mrb[0].mxu0
    %2796 = vmatprep.mubr.bf16.mxu0 %v2642
    %2797 = vmatmul.mubr.bf16.gmra.mrb[0].mxu0 %v1230
    %v2798 = vpop.f32.mrb[0].mxu0
    %v2799 = vadd.f32 %v2593, %v2798
    %v2800 = vpop.f32.mrb[0].mxu0
    %v2801 = vpop.f32.mrb[0].mxu0
    %v2802 = vadd.f32 %v2593, %v2801
    %v2803 = vpop.f32.mrb[0].mxu0
    %2804 = vdwg.mxu0
    %v2805 = vld [vmem:[#allocation21] sm:$0x1]
    %v2806 = vld [vmem:[#allocation12] sm:$0x1]
    %v2807 = vsel %vm1713, %v2679, 0.0
    %2808 = vadd.xlane.f32.xlu0 %v2807
    %v2809 = vpop.xlane.xlu0 %2808
    %v2810 = vsel %vm1713, %v2682, 0.0
    %2811 = vadd.xlane.f32.xlu0 %v2810
    %v2812 = vpop.xlane.xlu0 %2811
    %v2813 = vsel %vm1713, %v2687, 0.0
    %2814 = vadd.xlane.f32.xlu0 %v2813
    %v2815 = vpop.xlane.xlu0 %2814
    %v2816 = vsel %vm1713, %v2690, 0.0
    %2817 = vadd.xlane.f32.xlu0 %v2816
    %v2818 = vpop.xlane.xlu0 %2817
    %v2819 = vsel %vm1713, %v2695, 0.0
    %2820 = vadd.xlane.f32.xlu0 %v2819
    %v2821 = vpop.xlane.xlu0 %2820
    %v2822 = vsel %vm1713, %v2698, 0.0
    %2823 = vadd.xlane.f32.xlu0 %v2822
    %v2824 = vpop.xlane.xlu0 %2823
    %v2825 = vsel %vm1713, %v2703, 0.0
    %2826 = vadd.xlane.f32.xlu0 %v2825
    %v2827 = vpop.xlane.xlu0 %2826
    %v2828 = vsel %vm1713, %v2706, 0.0
    %2829 = vadd.xlane.f32.xlu0 %v2828
    %v2830 = vpop.xlane.xlu0 %2829
    %v2831 = vsel %vm1713, %v2711, 0.0
    %2832 = vadd.xlane.f32.xlu0 %v2831
    %v2833 = vpop.xlane.xlu0 %2832
    %v2834 = vsel %vm1713, %v2714, 0.0
    %2835 = vadd.xlane.f32.xlu0 %v2834
    %v2836 = vpop.xlane.xlu0 %2835
    %v2837 = vsel %vm1713, %v2719, 0.0
    %2838 = vadd.xlane.f32.xlu0 %v2837
    %v2839 = vpop.xlane.xlu0 %2838
    %v2840 = vsel %vm1713, %v2722, 0.0
    %2841 = vadd.xlane.f32.xlu0 %v2840
    %v2842 = vpop.xlane.xlu0 %2841
    %v2843 = vsel %vm1713, %v2727, 0.0
    %2844 = vadd.xlane.f32.xlu0 %v2843
    %v2845 = vpop.xlane.xlu0 %2844
    %v2846 = vsel %vm1713, %v2730, 0.0
    %2847 = vadd.xlane.f32.xlu0 %v2846
    %v2848 = vpop.xlane.xlu0 %2847
    %v2849 = vsel %vm1713, %v2735, 0.0
    %2850 = vadd.xlane.f32.xlu0 %v2849
    %v2851 = vpop.xlane.xlu0 %2850
    %v2852 = vsel %vm1713, %v2738, 0.0
    %2853 = vadd.xlane.f32.xlu0 %v2852
    %v2854 = vpop.xlane.xlu0 %2853
    %v2855 = vsel %vm1713, %v2743, 0.0
    %2856 = vadd.xlane.f32.xlu0 %v2855
    %v2857 = vpop.xlane.xlu0 %2856
    %v2858 = vsel %vm1713, %v2746, 0.0
    %2859 = vadd.xlane.f32.xlu0 %v2858
    %v2860 = vpop.xlane.xlu0 %2859
    %v2861 = vsel %vm1713, %v2751, 0.0
    %2862 = vadd.xlane.f32.xlu0 %v2861
    %v2863 = vpop.xlane.xlu0 %2862
    %v2864 = vsel %vm1713, %v2754, 0.0
    %2865 = vadd.xlane.f32.xlu0 %v2864
    %v2866 = vpop.xlane.xlu0 %2865
    %v2867 = vsel %vm1713, %v2759, 0.0
    %2868 = vadd.xlane.f32.xlu0 %v2867
    %v2869 = vpop.xlane.xlu0 %2868
    %v2870 = vsel %vm1713, %v2762, 0.0
    %2871 = vadd.xlane.f32.xlu0 %v2870
    %v2872 = vpop.xlane.xlu0 %2871
    %v2873 = vsel %vm1713, %v2767, 0.0
    %2874 = vadd.xlane.f32.xlu0 %v2873
    %v2875 = vpop.xlane.xlu0 %2874
    %v2876 = vsel %vm1713, %v2770, 0.0
    %2877 = vadd.xlane.f32.xlu0 %v2876
    %v2878 = vpop.xlane.xlu0 %2877
    %v2879 = vsel %vm1713, %v2775, 0.0
    %2880 = vadd.xlane.f32.xlu0 %v2879
    %v2881 = vpop.xlane.xlu0 %2880
    %v2882 = vsel %vm1713, %v2778, 0.0
    %2883 = vadd.xlane.f32.xlu0 %v2882
    %v2884 = vpop.xlane.xlu0 %2883
    %v2885 = vsel %vm1713, %v2783, 0.0
    %2886 = vadd.xlane.f32.xlu0 %v2885
    %v2887 = vpop.xlane.xlu0 %2886
    %v2888 = vsel %vm1713, %v2786, 0.0
    %2889 = vadd.xlane.f32.xlu0 %v2888
    %v2890 = vpop.xlane.xlu0 %2889
    %v2891 = vsel %vm1713, %v2791, 0.0
    %2892 = vadd.xlane.f32.xlu0 %v2891
    %v2893 = vpop.xlane.xlu0 %2892
    %v2894 = vsel %vm1713, %v2794, 0.0
    %2895 = vadd.xlane.f32.xlu0 %v2894
    %v2896 = vpop.xlane.xlu0 %2895
    %v2897 = vsel %vm1713, %v2799, 0.0
    %2898 = vadd.xlane.f32.xlu0 %v2897
    %v2899 = vpop.xlane.xlu0 %2898
    %v2900 = vsel %vm1713, %v2802, 0.0
    %2901 = vadd.xlane.f32.xlu0 %v2900
    %v2902 = vpop.xlane.xlu0 %2901
    %v2903 = vrcp.pop 64.0
    %v2904 = vmul.f32 %v2809, %v2903
    %v2905 = vmul.f32 %v2812, %v2903
    %v2906 = vmul.f32 %v2815, %v2903
    %v2907 = vmul.f32 %v2818, %v2903
    %v2908 = vmul.f32 %v2821, %v2903
    %v2909 = vmul.f32 %v2824, %v2903
    %v2910 = vmul.f32 %v2827, %v2903
    %v2911 = vmul.f32 %v2830, %v2903
    %v2912 = vmul.f32 %v2833, %v2903
    %v2913 = vmul.f32 %v2836, %v2903
    %v2914 = vmul.f32 %v2839, %v2903
    %v2915 = vmul.f32 %v2842, %v2903
    %v2916 = vmul.f32 %v2845, %v2903
    %v2917 = vmul.f32 %v2848, %v2903
    %v2918 = vmul.f32 %v2851, %v2903
    %v2919 = vmul.f32 %v2854, %v2903
    %v2920 = vmul.f32 %v2857, %v2903
    %v2921 = vmul.f32 %v2860, %v2903
    %v2922 = vmul.f32 %v2863, %v2903
    %v2923 = vmul.f32 %v2866, %v2903
    %v2924 = vmul.f32 %v2869, %v2903
    %v2925 = vmul.f32 %v2872, %v2903
    %v2926 = vmul.f32 %v2875, %v2903
    %v2927 = vmul.f32 %v2878, %v2903
    %v2928 = vmul.f32 %v2881, %v2903
    %v2929 = vmul.f32 %v2884, %v2903
    %v2930 = vmul.f32 %v2887, %v2903
    %v2931 = vmul.f32 %v2890, %v2903
    %v2932 = vmul.f32 %v2893, %v2903
    %v2933 = vmul.f32 %v2896, %v2903
    %v2934 = vmul.f32 %v2899, %v2903
    %v2935 = vmul.f32 %v2902, %v2903
    %v2936 = vmul.f32 %v2679, %v2679
    %v2937 = vmul.f32 %v2682, %v2682
    %v2938 = vmul.f32 %v2687, %v2687
    %v2939 = vmul.f32 %v2690, %v2690
    %v2940 = vmul.f32 %v2695, %v2695
    %v2941 = vmul.f32 %v2698, %v2698
    %v2942 = vmul.f32 %v2703, %v2703
    %v2943 = vmul.f32 %v2706, %v2706
    %v2944 = vmul.f32 %v2711, %v2711
    %v2945 = vmul.f32 %v2714, %v2714
    %v2946 = vmul.f32 %v2719, %v2719
    %v2947 = vmul.f32 %v2722, %v2722
    %v2948 = vmul.f32 %v2727, %v2727
    %v2949 = vmul.f32 %v2730, %v2730
    %v2950 = vmul.f32 %v2735, %v2735
    %v2951 = vmul.f32 %v2738, %v2738
    %v2952 = vmul.f32 %v2743, %v2743
    %v2953 = vmul.f32 %v2746, %v2746
    %v2954 = vmul.f32 %v2751, %v2751
    %v2955 = vmul.f32 %v2754, %v2754
    %v2956 = vmul.f32 %v2759, %v2759
    %v2957 = vmul.f32 %v2762, %v2762
    %v2958 = vmul.f32 %v2767, %v2767
    %v2959 = vmul.f32 %v2770, %v2770
    %v2960 = vmul.f32 %v2775, %v2775
    %v2961 = vmul.f32 %v2778, %v2778
    %v2962 = vmul.f32 %v2783, %v2783
    %v2963 = vmul.f32 %v2786, %v2786
    %v2964 = vmul.f32 %v2791, %v2791
    %v2965 = vmul.f32 %v2794, %v2794
    %v2966 = vmul.f32 %v2799, %v2799
    %v2967 = vmul.f32 %v2802, %v2802
    %v2968 = vsel %vm1713, %v2936, 0.0
    %2969 = vadd.xlane.f32.xlu0 %v2968
    %v2970 = vpop.xlane.xlu0 %2969
    %v2971 = vsel %vm1713, %v2937, 0.0
    %2972 = vadd.xlane.f32.xlu0 %v2971
    %v2973 = vpop.xlane.xlu0 %2972
    %v2974 = vsel %vm1713, %v2938, 0.0
    %2975 = vadd.xlane.f32.xlu0 %v2974
    %v2976 = vpop.xlane.xlu0 %2975
    %v2977 = vsel %vm1713, %v2939, 0.0
    %2978 = vadd.xlane.f32.xlu0 %v2977
    %v2979 = vpop.xlane.xlu0 %2978
    %v2980 = vsel %vm1713, %v2940, 0.0
    %2981 = vadd.xlane.f32.xlu0 %v2980
    %v2982 = vpop.xlane.xlu0 %2981
    %v2983 = vsel %vm1713, %v2941, 0.0
    %2984 = vadd.xlane.f32.xlu0 %v2983
    %v2985 = vpop.xlane.xlu0 %2984
    %v2986 = vsel %vm1713, %v2942, 0.0
    %2987 = vadd.xlane.f32.xlu0 %v2986
    %v2988 = vpop.xlane.xlu0 %2987
    %v2989 = vsel %vm1713, %v2943, 0.0
    %2990 = vadd.xlane.f32.xlu0 %v2989
    %v2991 = vpop.xlane.xlu0 %2990
    %v2992 = vsel %vm1713, %v2944, 0.0
    %2993 = vadd.xlane.f32.xlu0 %v2992
    %v2994 = vpop.xlane.xlu0 %2993
    %v2995 = vsel %vm1713, %v2945, 0.0
    %2996 = vadd.xlane.f32.xlu0 %v2995
    %v2997 = vpop.xlane.xlu0 %2996
    %v2998 = vsel %vm1713, %v2946, 0.0
    %2999 = vadd.xlane.f32.xlu0 %v2998
    %v3000 = vpop.xlane.xlu0 %2999
    %v3001 = vsel %vm1713, %v2947, 0.0
    %3002 = vadd.xlane.f32.xlu0 %v3001
    %v3003 = vpop.xlane.xlu0 %3002
    %v3004 = vsel %vm1713, %v2948, 0.0
    %3005 = vadd.xlane.f32.xlu0 %v3004
    %v3006 = vpop.xlane.xlu0 %3005
    %v3007 = vsel %vm1713, %v2949, 0.0
    %3008 = vadd.xlane.f32.xlu0 %v3007
    %v3009 = vpop.xlane.xlu0 %3008
    %v3010 = vsel %vm1713, %v2950, 0.0
    %3011 = vadd.xlane.f32.xlu0 %v3010
    %v3012 = vpop.xlane.xlu0 %3011
    %v3013 = vsel %vm1713, %v2951, 0.0
    %3014 = vadd.xlane.f32.xlu0 %v3013
    %v3015 = vpop.xlane.xlu0 %3014
    %v3016 = vsel %vm1713, %v2952, 0.0
    %3017 = vadd.xlane.f32.xlu0 %v3016
    %v3018 = vpop.xlane.xlu0 %3017
    %v3019 = vsel %vm1713, %v2953, 0.0
    %3020 = vadd.xlane.f32.xlu0 %v3019
    %v3021 = vpop.xlane.xlu0 %3020
    %v3022 = vsel %vm1713, %v2954, 0.0
    %3023 = vadd.xlane.f32.xlu0 %v3022
    %v3024 = vpop.xlane.xlu0 %3023
    %v3025 = vsel %vm1713, %v2955, 0.0
    %3026 = vadd.xlane.f32.xlu0 %v3025
    %v3027 = vpop.xlane.xlu0 %3026
    %v3028 = vsel %vm1713, %v2956, 0.0
    %3029 = vadd.xlane.f32.xlu0 %v3028
    %v3030 = vpop.xlane.xlu0 %3029
    %v3031 = vsel %vm1713, %v2957, 0.0
    %3032 = vadd.xlane.f32.xlu0 %v3031
    %v3033 = vpop.xlane.xlu0 %3032
    %v3034 = vsel %vm1713, %v2958, 0.0
    %3035 = vadd.xlane.f32.xlu0 %v3034
    %v3036 = vpop.xlane.xlu0 %3035
    %v3037 = vsel %vm1713, %v2959, 0.0
    %3038 = vadd.xlane.f32.xlu0 %v3037
    %v3039 = vpop.xlane.xlu0 %3038
    %v3040 = vsel %vm1713, %v2960, 0.0
    %3041 = vadd.xlane.f32.xlu0 %v3040
    %v3042 = vpop.xlane.xlu0 %3041
    %v3043 = vsel %vm1713, %v2961, 0.0
    %3044 = vadd.xlane.f32.xlu0 %v3043
    %v3045 = vpop.xlane.xlu0 %3044
    %v3046 = vsel %vm1713, %v2962, 0.0
    %3047 = vadd.xlane.f32.xlu0 %v3046
    %v3048 = vpop.xlane.xlu0 %3047
    %v3049 = vsel %vm1713, %v2963, 0.0
    %3050 = vadd.xlane.f32.xlu0 %v3049
    %v3051 = vpop.xlane.xlu0 %3050
    %v3052 = vsel %vm1713, %v2964, 0.0
    %3053 = vadd.xlane.f32.xlu0 %v3052
    %v3054 = vpop.xlane.xlu0 %3053
    %v3055 = vsel %vm1713, %v2965, 0.0
    %3056 = vadd.xlane.f32.xlu0 %v3055
    %v3057 = vpop.xlane.xlu0 %3056
    %v3058 = vsel %vm1713, %v2966, 0.0
    %3059 = vadd.xlane.f32.xlu0 %v3058
    %v3060 = vpop.xlane.xlu0 %3059
    %v3061 = vsel %vm1713, %v2967, 0.0
    %3062 = vadd.xlane.f32.xlu0 %v3061
    %v3063 = vpop.xlane.xlu0 %3062
    %v3064 = vmul.f32 %v2970, %v2903
    %v3065 = vmul.f32 %v2973, %v2903
    %v3066 = vmul.f32 %v2976, %v2903
    %v3067 = vmul.f32 %v2979, %v2903
    %v3068 = vmul.f32 %v2982, %v2903
    %v3069 = vmul.f32 %v2985, %v2903
    %v3070 = vmul.f32 %v2988, %v2903
    %v3071 = vmul.f32 %v2991, %v2903
    %v3072 = vmul.f32 %v2994, %v2903
    %v3073 = vmul.f32 %v2997, %v2903
    %v3074 = vmul.f32 %v3000, %v2903
    %v3075 = vmul.f32 %v3003, %v2903
    %v3076 = vmul.f32 %v3006, %v2903
    %v3077 = vmul.f32 %v3009, %v2903
    %v3078 = vmul.f32 %v3012, %v2903
    %v3079 = vmul.f32 %v3015, %v2903
    %v3080 = vmul.f32 %v3018, %v2903
    %v3081 = vmul.f32 %v3021, %v2903
    %v3082 = vmul.f32 %v3024, %v2903
    %v3083 = vmul.f32 %v3027, %v2903
    %v3084 = vmul.f32 %v3030, %v2903
    %v3085 = vmul.f32 %v3033, %v2903
    %v3086 = vmul.f32 %v3036, %v2903
    %v3087 = vmul.f32 %v3039, %v2903
    %v3088 = vmul.f32 %v3042, %v2903
    %v3089 = vmul.f32 %v3045, %v2903
    %v3090 = vmul.f32 %v3048, %v2903
    %v3091 = vmul.f32 %v3051, %v2903
    %v3092 = vmul.f32 %v3054, %v2903
    %v3093 = vmul.f32 %v3057, %v2903
    %v3094 = vmul.f32 %v3060, %v2903
    %v3095 = vmul.f32 %v3063, %v2903
    %v3096 = vmul.f32 %v2904, %v2904
    %v3097 = vmul.f32 %v2905, %v2905
    %v3098 = vmul.f32 %v2906, %v2906
    %v3099 = vmul.f32 %v2907, %v2907
    %v3100 = vmul.f32 %v2908, %v2908
    %v3101 = vmul.f32 %v2909, %v2909
    %v3102 = vmul.f32 %v2910, %v2910
    %v3103 = vmul.f32 %v2911, %v2911
    %v3104 = vmul.f32 %v2912, %v2912
    %v3105 = vmul.f32 %v2913, %v2913
    %v3106 = vmul.f32 %v2914, %v2914
    %v3107 = vmul.f32 %v2915, %v2915
    %v3108 = vmul.f32 %v2916, %v2916
    %v3109 = vmul.f32 %v2917, %v2917
    %v3110 = vmul.f32 %v2918, %v2918
    %v3111 = vmul.f32 %v2919, %v2919
    %v3112 = vmul.f32 %v2920, %v2920
    %v3113 = vmul.f32 %v2921, %v2921
    %v3114 = vmul.f32 %v2922, %v2922
    %v3115 = vmul.f32 %v2923, %v2923
    %v3116 = vmul.f32 %v2924, %v2924
    %v3117 = vmul.f32 %v2925, %v2925
    %v3118 = vmul.f32 %v2926, %v2926
    %v3119 = vmul.f32 %v2927, %v2927
    %v3120 = vmul.f32 %v2928, %v2928
    %v3121 = vmul.f32 %v2929, %v2929
    %v3122 = vmul.f32 %v2930, %v2930
    %v3123 = vmul.f32 %v2931, %v2931
    %v3124 = vmul.f32 %v2932, %v2932
    %v3125 = vmul.f32 %v2933, %v2933
    %v3126 = vmul.f32 %v2934, %v2934
    %v3127 = vmul.f32 %v2935, %v2935
    %v3128 = vsub.f32 %v3064, %v3096
    %v3129 = vsub.f32 %v3065, %v3097
    %v3130 = vsub.f32 %v3066, %v3098
    %v3131 = vsub.f32 %v3067, %v3099
    %v3132 = vsub.f32 %v3068, %v3100
    %v3133 = vsub.f32 %v3069, %v3101
    %v3134 = vsub.f32 %v3070, %v3102
    %v3135 = vsub.f32 %v3071, %v3103
    %v3136 = vsub.f32 %v3072, %v3104
    %v3137 = vsub.f32 %v3073, %v3105
    %v3138 = vsub.f32 %v3074, %v3106
    %v3139 = vsub.f32 %v3075, %v3107
    %v3140 = vsub.f32 %v3076, %v3108
    %v3141 = vsub.f32 %v3077, %v3109
    %v3142 = vsub.f32 %v3078, %v3110
    %v3143 = vsub.f32 %v3079, %v3111
    %v3144 = vsub.f32 %v3080, %v3112
    %v3145 = vsub.f32 %v3081, %v3113
    %v3146 = vsub.f32 %v3082, %v3114
    %v3147 = vsub.f32 %v3083, %v3115
    %v3148 = vsub.f32 %v3084, %v3116
    %v3149 = vsub.f32 %v3085, %v3117
    %v3150 = vsub.f32 %v3086, %v3118
    %v3151 = vsub.f32 %v3087, %v3119
    %v3152 = vsub.f32 %v3088, %v3120
    %v3153 = vsub.f32 %v3089, %v3121
    %v3154 = vsub.f32 %v3090, %v3122
    %v3155 = vsub.f32 %v3091, %v3123
    %v3156 = vsub.f32 %v3092, %v3124
    %v3157 = vsub.f32 %v3093, %v3125
    %v3158 = vsub.f32 %v3094, %v3126
    %v3159 = vsub.f32 %v3095, %v3127
    %v3160 = vmax.f32 %v3128, 0.0
    %v3161 = vmax.f32 %v3129, 0.0
    %v3162 = vmax.f32 %v3130, 0.0
    %v3163 = vmax.f32 %v3131, 0.0
    %v3164 = vmax.f32 %v3132, 0.0
    %v3165 = vmax.f32 %v3133, 0.0
    %v3166 = vmax.f32 %v3134, 0.0
    %v3167 = vmax.f32 %v3135, 0.0
    %v3168 = vmax.f32 %v3136, 0.0
    %v3169 = vmax.f32 %v3137, 0.0
    %v3170 = vmax.f32 %v3138, 0.0
    %v3171 = vmax.f32 %v3139, 0.0
    %v3172 = vmax.f32 %v3140, 0.0
    %v3173 = vmax.f32 %v3141, 0.0
    %v3174 = vmax.f32 %v3142, 0.0
    %v3175 = vmax.f32 %v3143, 0.0
    %v3176 = vmax.f32 %v3144, 0.0
    %v3177 = vmax.f32 %v3145, 0.0
    %v3178 = vmax.f32 %v3146, 0.0
    %v3179 = vmax.f32 %v3147, 0.0
    %v3180 = vmax.f32 %v3148, 0.0
    %v3181 = vmax.f32 %v3149, 0.0
    %v3182 = vmax.f32 %v3150, 0.0
    %v3183 = vmax.f32 %v3151, 0.0
    %v3184 = vmax.f32 %v3152, 0.0
    %v3185 = vmax.f32 %v3153, 0.0
    %v3186 = vmax.f32 %v3154, 0.0
    %v3187 = vmax.f32 %v3155, 0.0
    %v3188 = vmax.f32 %v3156, 0.0
    %v3189 = vmax.f32 %v3157, 0.0
    %v3190 = vmax.f32 %v3158, 0.0
    %v3191 = vmax.f32 %v3159, 0.0
    %v3192 = vsub.f32 %v2679, %v2904
    %v3193 = vsub.f32 %v2682, %v2905
    %v3194 = vsub.f32 %v2687, %v2906
    %v3195 = vsub.f32 %v2690, %v2907
    %v3196 = vsub.f32 %v2695, %v2908
    %v3197 = vsub.f32 %v2698, %v2909
    %v3198 = vsub.f32 %v2703, %v2910
    %v3199 = vsub.f32 %v2706, %v2911
    %v3200 = vsub.f32 %v2711, %v2912
    %v3201 = vsub.f32 %v2714, %v2913
    %v3202 = vsub.f32 %v2719, %v2914
    %v3203 = vsub.f32 %v2722, %v2915
    %v3204 = vsub.f32 %v2727, %v2916
    %v3205 = vsub.f32 %v2730, %v2917
    %v3206 = vsub.f32 %v2735, %v2918
    %v3207 = vsub.f32 %v2738, %v2919
    %v3208 = vsub.f32 %v2743, %v2920
    %v3209 = vsub.f32 %v2746, %v2921
    %v3210 = vsub.f32 %v2751, %v2922
    %v3211 = vsub.f32 %v2754, %v2923
    %v3212 = vsub.f32 %v2759, %v2924
    %v3213 = vsub.f32 %v2762, %v2925
    %v3214 = vsub.f32 %v2767, %v2926
    %v3215 = vsub.f32 %v2770, %v2927
    %v3216 = vsub.f32 %v2775, %v2928
    %v3217 = vsub.f32 %v2778, %v2929
    %v3218 = vsub.f32 %v2783, %v2930
    %v3219 = vsub.f32 %v2786, %v2931
    %v3220 = vsub.f32 %v2791, %v2932
    %v3221 = vsub.f32 %v2794, %v2933
    %v3222 = vsub.f32 %v2799, %v2934
    %v3223 = vsub.f32 %v2802, %v2935
    %v3224 = vadd.f32 %v3160, 1e-05
    %v3225 = vadd.f32 %v3161, 1e-05
    %v3226 = vadd.f32 %v3162, 1e-05
    %v3227 = vadd.f32 %v3163, 1e-05
    %v3228 = vadd.f32 %v3164, 1e-05
    %v3229 = vadd.f32 %v3165, 1e-05
    %v3230 = vadd.f32 %v3166, 1e-05
    %v3231 = vadd.f32 %v3167, 1e-05
    %v3232 = vadd.f32 %v3168, 1e-05
    %v3233 = vadd.f32 %v3169, 1e-05
    %v3234 = vadd.f32 %v3170, 1e-05
    %v3235 = vadd.f32 %v3171, 1e-05
    %v3236 = vadd.f32 %v3172, 1e-05
    %v3237 = vadd.f32 %v3173, 1e-05
    %v3238 = vadd.f32 %v3174, 1e-05
    %v3239 = vadd.f32 %v3175, 1e-05
    %v3240 = vadd.f32 %v3176, 1e-05
    %v3241 = vadd.f32 %v3177, 1e-05
    %v3242 = vadd.f32 %v3178, 1e-05
    %v3243 = vadd.f32 %v3179, 1e-05
    %v3244 = vadd.f32 %v3180, 1e-05
    %v3245 = vadd.f32 %v3181, 1e-05
    %v3246 = vadd.f32 %v3182, 1e-05
    %v3247 = vadd.f32 %v3183, 1e-05
    %v3248 = vadd.f32 %v3184, 1e-05
    %v3249 = vadd.f32 %v3185, 1e-05
    %v3250 = vadd.f32 %v3186, 1e-05
    %v3251 = vadd.f32 %v3187, 1e-05
    %v3252 = vadd.f32 %v3188, 1e-05
    %v3253 = vadd.f32 %v3189, 1e-05
    %v3254 = vadd.f32 %v3190, 1e-05
    %v3255 = vadd.f32 %v3191, 1e-05
    %v3256 = vrsqrt.pop %v3224
    %v3257 = vrsqrt.pop %v3225
    %v3258 = vrsqrt.pop %v3226
    %v3259 = vrsqrt.pop %v3227
    %v3260 = vrsqrt.pop %v3228
    %v3261 = vrsqrt.pop %v3229
    %v3262 = vrsqrt.pop %v3230
    %v3263 = vrsqrt.pop %v3231
    %v3264 = vrsqrt.pop %v3232
    %v3265 = vrsqrt.pop %v3233
    %v3266 = vrsqrt.pop %v3234
    %v3267 = vrsqrt.pop %v3235
    %v3268 = vrsqrt.pop %v3236
    %v3269 = vrsqrt.pop %v3237
    %v3270 = vrsqrt.pop %v3238
    %v3271 = vrsqrt.pop %v3239
    %v3272 = vrsqrt.pop %v3240
    %v3273 = vrsqrt.pop %v3241
    %v3274 = vrsqrt.pop %v3242
    %v3275 = vrsqrt.pop %v3243
    %v3276 = vrsqrt.pop %v3244
    %v3277 = vrsqrt.pop %v3245
    %v3278 = vrsqrt.pop %v3246
    %v3279 = vrsqrt.pop %v3247
    %v3280 = vrsqrt.pop %v3248
    %v3281 = vrsqrt.pop %v3249
    %v3282 = vrsqrt.pop %v3250
    %v3283 = vrsqrt.pop %v3251
    %v3284 = vrsqrt.pop %v3252
    %v3285 = vrsqrt.pop %v3253
    %v3286 = vrsqrt.pop %v3254
    %v3287 = vrsqrt.pop %v3255
    %v3288 = vmul.f32 %v3192, %v3256
    %v3289 = vmul.f32 %v3193, %v3257
    %v3290 = vmul.f32 %v3194, %v3258
    %v3291 = vmul.f32 %v3195, %v3259
    %v3292 = vmul.f32 %v3196, %v3260
    %v3293 = vmul.f32 %v3197, %v3261
    %v3294 = vmul.f32 %v3198, %v3262
    %v3295 = vmul.f32 %v3199, %v3263
    %v3296 = vmul.f32 %v3200, %v3264
    %v3297 = vmul.f32 %v3201, %v3265
    %v3298 = vmul.f32 %v3202, %v3266
    %v3299 = vmul.f32 %v3203, %v3267
    %v3300 = vmul.f32 %v3204, %v3268
    %v3301 = vmul.f32 %v3205, %v3269
    %v3302 = vmul.f32 %v3206, %v3270
    %v3303 = vmul.f32 %v3207, %v3271
    %v3304 = vmul.f32 %v3208, %v3272
    %v3305 = vmul.f32 %v3209, %v3273
    %v3306 = vmul.f32 %v3210, %v3274
    %v3307 = vmul.f32 %v3211, %v3275
    %v3308 = vmul.f32 %v3212, %v3276
    %v3309 = vmul.f32 %v3213, %v3277
    %v3310 = vmul.f32 %v3214, %v3278
    %v3311 = vmul.f32 %v3215, %v3279
    %v3312 = vmul.f32 %v3216, %v3280
    %v3313 = vmul.f32 %v3217, %v3281
    %v3314 = vmul.f32 %v3218, %v3282
    %v3315 = vmul.f32 %v3219, %v3283
    %v3316 = vmul.f32 %v3220, %v3284
    %v3317 = vmul.f32 %v3221, %v3285
    %v3318 = vmul.f32 %v3222, %v3286
    %v3319 = vmul.f32 %v3223, %v3287
    %v3321 = vlaneseq
    %v3322 = vshrl.u32 %v3321, 7
    %v3323 = vsub.s32 0, %v3322
    %v3324 = vrot.slane %v2805, %v3323
    %v3326 = vmul.f32 %v3288, %v3324
    %v3327 = vmul.f32 %v3289, %v3324
    %v3328 = vmul.f32 %v3290, %v3324
    %v3329 = vmul.f32 %v3291, %v3324
    %v3330 = vmul.f32 %v3292, %v3324
    %v3331 = vmul.f32 %v3293, %v3324
    %v3332 = vmul.f32 %v3294, %v3324
    %v3333 = vmul.f32 %v3295, %v3324
    %v3334 = vmul.f32 %v3296, %v3324
    %v3335 = vmul.f32 %v3297, %v3324
    %v3336 = vmul.f32 %v3298, %v3324
    %v3337 = vmul.f32 %v3299, %v3324
    %v3338 = vmul.f32 %v3300, %v3324
    %v3339 = vmul.f32 %v3301, %v3324
    %v3340 = vmul.f32 %v3302, %v3324
    %v3341 = vmul.f32 %v3303, %v3324
    %v3342 = vmul.f32 %v3304, %v3324
    %v3343 = vmul.f32 %v3305, %v3324
    %v3344 = vmul.f32 %v3306, %v3324
    %v3345 = vmul.f32 %v3307, %v3324
    %v3346 = vmul.f32 %v3308, %v3324
    %v3347 = vmul.f32 %v3309, %v3324
    %v3348 = vmul.f32 %v3310, %v3324
    %v3349 = vmul.f32 %v3311, %v3324
    %v3350 = vmul.f32 %v3312, %v3324
    %v3351 = vmul.f32 %v3313, %v3324
    %v3352 = vmul.f32 %v3314, %v3324
    %v3353 = vmul.f32 %v3315, %v3324
    %v3354 = vmul.f32 %v3316, %v3324
    %v3355 = vmul.f32 %v3317, %v3324
    %v3356 = vmul.f32 %v3318, %v3324
    %v3357 = vmul.f32 %v3319, %v3324
    %v3359 = vlaneseq
    %v3360 = vshrl.u32 %v3359, 7
    %v3361 = vsub.s32 0, %v3360
    %v3362 = vrot.slane %v2806, %v3361
    %v3364 = vadd.f32 %v3326, %v3362
    %v3365 = vadd.f32 %v3327, %v3362
    %v3366 = vadd.f32 %v3328, %v3362
    %v3367 = vadd.f32 %v3329, %v3362
    %v3368 = vadd.f32 %v3330, %v3362
    %v3369 = vadd.f32 %v3331, %v3362
    %v3370 = vadd.f32 %v3332, %v3362
    %v3371 = vadd.f32 %v3333, %v3362
    %v3372 = vadd.f32 %v3334, %v3362
    %v3373 = vadd.f32 %v3335, %v3362
    %v3374 = vadd.f32 %v3336, %v3362
    %v3375 = vadd.f32 %v3337, %v3362
    %v3376 = vadd.f32 %v3338, %v3362
    %v3377 = vadd.f32 %v3339, %v3362
    %v3378 = vadd.f32 %v3340, %v3362
    %v3379 = vadd.f32 %v3341, %v3362
    %v3380 = vadd.f32 %v3342, %v3362
    %v3381 = vadd.f32 %v3343, %v3362
    %v3382 = vadd.f32 %v3344, %v3362
    %v3383 = vadd.f32 %v3345, %v3362
    %v3384 = vadd.f32 %v3346, %v3362
    %v3385 = vadd.f32 %v3347, %v3362
    %v3386 = vadd.f32 %v3348, %v3362
    %v3387 = vadd.f32 %v3349, %v3362
    %v3388 = vadd.f32 %v3350, %v3362
    %v3389 = vadd.f32 %v3351, %v3362
    %v3390 = vadd.f32 %v3352, %v3362
    %v3391 = vadd.f32 %v3353, %v3362
    %v3392 = vadd.f32 %v3354, %v3362
    %v3393 = vadd.f32 %v3355, %v3362
    %v3394 = vadd.f32 %v3356, %v3362
    %v3395 = vadd.f32 %v3357, %v3362
    %v3396 = vmax.f32 %v3364, 0.0
    %v3397 = vmax.f32 %v3365, 0.0
    %v3398 = vmax.f32 %v3366, 0.0
    %v3399 = vmax.f32 %v3367, 0.0
    %v3400 = vmax.f32 %v3368, 0.0
    %v3401 = vmax.f32 %v3369, 0.0
    %v3402 = vmax.f32 %v3370, 0.0
    %v3403 = vmax.f32 %v3371, 0.0
    %v3404 = vmax.f32 %v3372, 0.0
    %v3405 = vmax.f32 %v3373, 0.0
    %v3406 = vmax.f32 %v3374, 0.0
    %v3407 = vmax.f32 %v3375, 0.0
    %v3408 = vmax.f32 %v3376, 0.0
    %v3409 = vmax.f32 %v3377, 0.0
    %v3410 = vmax.f32 %v3378, 0.0
    %v3411 = vmax.f32 %v3379, 0.0
    %v3412 = vmax.f32 %v3380, 0.0
    %v3413 = vmax.f32 %v3381, 0.0
    %v3414 = vmax.f32 %v3382, 0.0
    %v3415 = vmax.f32 %v3383, 0.0
    %v3416 = vmax.f32 %v3384, 0.0
    %v3417 = vmax.f32 %v3385, 0.0
    %v3418 = vmax.f32 %v3386, 0.0
    %v3419 = vmax.f32 %v3387, 0.0
    %v3420 = vmax.f32 %v3388, 0.0
    %v3421 = vmax.f32 %v3389, 0.0
    %v3422 = vmax.f32 %v3390, 0.0
    %v3423 = vmax.f32 %v3391, 0.0
    %v3424 = vmax.f32 %v3392, 0.0
    %v3425 = vmax.f32 %v3393, 0.0
    %v3426 = vmax.f32 %v3394, 0.0
    %v3427 = vmax.f32 %v3395, 0.0
    %v3428 = vld [vmem:[%s93] sm:$0xf]
    %v3429 = vld [vmem:[%s93 + $0x4] sm:$0xf]
    %v3430 = vld [vmem:[%s93 + $0x8] sm:$0xf]
    %v3431 = vld [vmem:[%s93 + $0xc] sm:$0xf]
    %v3432 = vld [vmem:[%s93 + $0x10] sm:$0xf]
    %v3433 = vld [vmem:[%s93 + $0x14] sm:$0xf]
    %v3434 = vld [vmem:[%s93 + $0x18] sm:$0xf]
    %v3435 = vld [vmem:[%s93 + $0x1c] sm:$0xf]
    %v3436 = vpack.c.bf16 %v3397, %v3396
    %v3437 = vpack.c.bf16 %v3399, %v3398
    %v3438 = vpack.c.bf16 %v3401, %v3400
    %v3439 = vpack.c.bf16 %v3403, %v3402
    %v3440 = vpack.c.bf16 %v3405, %v3404
    %v3441 = vpack.c.bf16 %v3407, %v3406
    %v3442 = vpack.c.bf16 %v3409, %v3408
    %v3443 = vpack.c.bf16 %v3411, %v3410
    %v3444 = vpack.c.bf16 %v3413, %v3412
    %v3445 = vpack.c.bf16 %v3415, %v3414
    %v3446 = vpack.c.bf16 %v3417, %v3416
    %v3447 = vpack.c.bf16 %v3419, %v3418
    %v3448 = vpack.c.bf16 %v3421, %v3420
    %v3449 = vpack.c.bf16 %v3423, %v3422
    %v3450 = vpack.c.bf16 %v3425, %v3424
    %v3451 = vpack.c.bf16 %v3427, %v3426
    %v3452 = vld [vmem:[#allocation13] sm:$0x1]
    %v3454 = vlaneseq
    %v3455 = vshrl.u32 %v3454, 7
    %v3456 = vsub.s32 0, %v3455
    %v3457 = vrot.slane %v3452, %v3456
    %v3467 = vunpack.c.l.b16 %v3428
    %v3468 = vunpack.c.l.b16 %v3429
    %v3469 = vunpack.c.l.b16 %v3430
    %v3470 = vunpack.c.l.b16 %v3431
    %v3471 = vunpack.c.l.b16 %v3432
    %v3472 = vunpack.c.l.b16 %v3433
    %v3473 = vunpack.c.l.b16 %v3434
    %v3474 = vunpack.c.l.b16 %v3435
    %v3475 = vpack.c.b16 %v3468, %v3467
    %v3476 = vpack.c.b16 %v3470, %v3469
    %v3477 = vpack.c.b16 %v3472, %v3471
    %v3478 = vpack.c.b16 %v3474, %v3473
    %v3484 = vsel %vm1713, %v3436, 0
    %v3487 = vsel %vm1713, %v3437, 0
    %v3490 = vsel %vm1713, %v3438, 0
    %v3493 = vsel %vm1713, %v3439, 0
    %v3496 = vsel %vm1713, %v3440, 0
    %v3499 = vsel %vm1713, %v3441, 0
    %v3502 = vsel %vm1713, %v3442, 0
    %v3505 = vsel %vm1713, %v3443, 0
    %v3508 = vsel %vm1713, %v3444, 0
    %v3511 = vsel %vm1713, %v3445, 0
    %v3514 = vsel %vm1713, %v3446, 0
    %v3517 = vsel %vm1713, %v3447, 0
    %v3520 = vsel %vm1713, %v3448, 0
    %v3523 = vsel %vm1713, %v3449, 0
    %v3526 = vsel %vm1713, %v3450, 0
    %v3529 = vsel %vm1713, %v3451, 0
    %3531 = vmatprep.subr.bf16.mxu0 0
    %3532 = vmatpush1.bf16.msra.mxu0 %v3475
    %3533 = vmatprep.subr.bf16.mxu0 0
    %3534 = vmatpush1.bf16.msra.mxu0 %v3476
    %3535 = vmatprep.subr.bf16.mxu0 0
    %3536 = vmatpush1.bf16.msra.mxu0 %v3477
    %3537 = vmatprep.subr.bf16.mxu0 0
    %3538 = vmatpush1.bf16.msra.mxu0 %v3478
    %3539 = vmatprep.subr.bf16.mxu0 0
    %3540 = vmatpush1.bf16.msra.mxu0 0
    %3541 = vmatprep.subr.bf16.mxu0 0
    %3542 = vmatpush1.bf16.msra.mxu0 0
    %3543 = vmatprep.subr.bf16.mxu0 0
    %3544 = vmatpush1.bf16.msra.mxu0 0
    %3545 = vmatprep.subr.bf16.mxu0 0
    %3546 = vmatpush1.bf16.msra.mxu0 0
    %3547 = vmatprep.subr.bf16.mxu0 0
    %3548 = vmatpush1.bf16.msra.mxu0 0
    %3549 = vmatprep.subr.bf16.mxu0 0
    %3550 = vmatpush1.bf16.msra.mxu0 0
    %3551 = vmatprep.subr.bf16.mxu0 0
    %3552 = vmatpush1.bf16.msra.mxu0 0
    %3553 = vmatprep.subr.bf16.mxu0 0
    %3554 = vmatpush1.bf16.msra.mxu0 0
    %3555 = vmatprep.subr.bf16.mxu0 0
    %3556 = vmatpush1.bf16.msra.mxu0 0
    %3557 = vmatprep.subr.bf16.mxu0 0
    %3558 = vmatpush1.bf16.msra.mxu0 0
    %3559 = vmatprep.subr.bf16.mxu0 0
    %3560 = vmatpush1.bf16.msra.mxu0 0
    %3561 = vmatprep.subr.bf16.mxu0 0
    %3562 = vmatpush1.bf16.msra.mxu0 0
    %3563 = vmatprep.mubr.bf16.mxu0 0
    %3564 = vmatmul.mubr.bf16.gmra.mrb[0].mxu0 %v3484
    %v3565 = vpop.f32.mrb[0].mxu0
    %v3566 = vadd.f32 %v3457, %v3565
    %v3567 = vpop.f32.mrb[0].mxu0
    %v3568 = vpop.f32.mrb[0].mxu0
    %v3569 = vadd.f32 %v3457, %v3568
    %v3570 = vpop.f32.mrb[0].mxu0
    %3571 = vmatprep.mubr.bf16.mxu0 0
    %3572 = vmatmul.mubr.bf16.gmra.mrb[0].mxu0 %v3487
    %v3573 = vpop.f32.mrb[0].mxu0
    %v3574 = vadd.f32 %v3457, %v3573
    %v3575 = vpop.f32.mrb[0].mxu0
    %v3576 = vpop.f32.mrb[0].mxu0
    %v3577 = vadd.f32 %v3457, %v3576
    %v3578 = vpop.f32.mrb[0].mxu0
    %3579 = vmatprep.mubr.bf16.mxu0 0
    %3580 = vmatmul.mubr.bf16.gmra.mrb[0].mxu0 %v3490
    %v3581 = vpop.f32.mrb[0].mxu0
    %v3582 = vadd.f32 %v3457, %v3581
    %v3583 = vpop.f32.mrb[0].mxu0
    %v3584 = vpop.f32.mrb[0].mxu0
    %v3585 = vadd.f32 %v3457, %v3584
    %v3586 = vpop.f32.mrb[0].mxu0
    %3587 = vmatprep.mubr.bf16.mxu0 0
    %3588 = vmatmul.mubr.bf16.gmra.mrb[0].mxu0 %v3493
    %v3589 = vpop.f32.mrb[0].mxu0
    %v3590 = vadd.f32 %v3457, %v3589
    %v3591 = vpop.f32.mrb[0].mxu0
    %v3592 = vpop.f32.mrb[0].mxu0
    %v3593 = vadd.f32 %v3457, %v3592
    %v3594 = vpop.f32.mrb[0].mxu0
    %3595 = vmatprep.mubr.bf16.mxu0 0
    %3596 = vmatmul.mubr.bf16.gmra.mrb[0].mxu0 %v3496
    %v3597 = vpop.f32.mrb[0].mxu0
    %v3598 = vadd.f32 %v3457, %v3597
    %v3599 = vpop.f32.mrb[0].mxu0
    %v3600 = vpop.f32.mrb[0].mxu0
    %v3601 = vadd.f32 %v3457, %v3600
    %v3602 = vpop.f32.mrb[0].mxu0
    %3603 = vmatprep.mubr.bf16.mxu0 0
    %3604 = vmatmul.mubr.bf16.gmra.mrb[0].mxu0 %v3499
    %v3605 = vpop.f32.mrb[0].mxu0
    %v3606 = vadd.f32 %v3457, %v3605
    %v3607 = vpop.f32.mrb[0].mxu0
    %v3608 = vpop.f32.mrb[0].mxu0
    %v3609 = vadd.f32 %v3457, %v3608
    %v3610 = vpop.f32.mrb[0].mxu0
    %3611 = vmatprep.mubr.bf16.mxu0 0
    %3612 = vmatmul.mubr.bf16.gmra.mrb[0].mxu0 %v3502
    %v3613 = vpop.f32.mrb[0].mxu0
    %v3614 = vadd.f32 %v3457, %v3613
    %v3615 = vpop.f32.mrb[0].mxu0
    %v3616 = vpop.f32.mrb[0].mxu0
    %v3617 = vadd.f32 %v3457, %v3616
    %v3618 = vpop.f32.mrb[0].mxu0
    %3619 = vmatprep.mubr.bf16.mxu0 0
    %3620 = vmatmul.mubr.bf16.gmra.mrb[0].mxu0 %v3505
    %v3621 = vpop.f32.mrb[0].mxu0
    %v3622 = vadd.f32 %v3457, %v3621
    %v3623 = vpop.f32.mrb[0].mxu0
    %v3624 = vpop.f32.mrb[0].mxu0
    %v3625 = vadd.f32 %v3457, %v3624
    %v3626 = vpop.f32.mrb[0].mxu0
    %3627 = vmatprep.mubr.bf16.mxu0 0
    %3628 = vmatmul.mubr.bf16.gmra.mrb[0].mxu0 %v3508
    %v3629 = vpop.f32.mrb[0].mxu0
    %v3630 = vadd.f32 %v3457, %v3629
    %v3631 = vpop.f32.mrb[0].mxu0
    %v3632 = vpop.f32.mrb[0].mxu0
    %v3633 = vadd.f32 %v3457, %v3632
    %v3634 = vpop.f32.mrb[0].mxu0
    %3635 = vmatprep.mubr.bf16.mxu0 0
    %3636 = vmatmul.mubr.bf16.gmra.mrb[0].mxu0 %v3511
    %v3637 = vpop.f32.mrb[0].mxu0
    %v3638 = vadd.f32 %v3457, %v3637
    %v3639 = vpop.f32.mrb[0].mxu0
    %v3640 = vpop.f32.mrb[0].mxu0
    %v3641 = vadd.f32 %v3457, %v3640
    %v3642 = vpop.f32.mrb[0].mxu0
    %3643 = vmatprep.mubr.bf16.mxu0 0
    %3644 = vmatmul.mubr.bf16.gmra.mrb[0].mxu0 %v3514
    %v3645 = vpop.f32.mrb[0].mxu0
    %v3646 = vadd.f32 %v3457, %v3645
    %v3647 = vpop.f32.mrb[0].mxu0
    %v3648 = vpop.f32.mrb[0].mxu0
    %v3649 = vadd.f32 %v3457, %v3648
    %v3650 = vpop.f32.mrb[0].mxu0
    %3651 = vmatprep.mubr.bf16.mxu0 0
    %3652 = vmatmul.mubr.bf16.gmra.mrb[0].mxu0 %v3517
    %v3653 = vpop.f32.mrb[0].mxu0
    %v3654 = vadd.f32 %v3457, %v3653
    %v3655 = vpop.f32.mrb[0].mxu0
    %v3656 = vpop.f32.mrb[0].mxu0
    %v3657 = vadd.f32 %v3457, %v3656
    %v3658 = vpop.f32.mrb[0].mxu0
    %3659 = vmatprep.mubr.bf16.mxu0 0
    %3660 = vmatmul.mubr.bf16.gmra.mrb[0].mxu0 %v3520
    %v3661 = vpop.f32.mrb[0].mxu0
    %v3662 = vadd.f32 %v3457, %v3661
    %v3663 = vpop.f32.mrb[0].mxu0
    %v3664 = vpop.f32.mrb[0].mxu0
    %v3665 = vadd.f32 %v3457, %v3664
    %v3666 = vpop.f32.mrb[0].mxu0
    %3667 = vmatprep.mubr.bf16.mxu0 0
    %3668 = vmatmul.mubr.bf16.gmra.mrb[0].mxu0 %v3523
    %v3669 = vpop.f32.mrb[0].mxu0
    %v3670 = vadd.f32 %v3457, %v3669
    %v3671 = vpop.f32.mrb[0].mxu0
    %v3672 = vpop.f32.mrb[0].mxu0
    %v3673 = vadd.f32 %v3457, %v3672
    %v3674 = vpop.f32.mrb[0].mxu0
    %3675 = vmatprep.mubr.bf16.mxu0 0
    %3676 = vmatmul.mubr.bf16.gmra.mrb[0].mxu0 %v3526
    %v3677 = vpop.f32.mrb[0].mxu0
    %v3678 = vadd.f32 %v3457, %v3677
    %v3679 = vpop.f32.mrb[0].mxu0
    %v3680 = vpop.f32.mrb[0].mxu0
    %v3681 = vadd.f32 %v3457, %v3680
    %v3682 = vpop.f32.mrb[0].mxu0
    %3683 = vmatprep.mubr.bf16.mxu0 0
    %3684 = vmatmul.mubr.bf16.gmra.mrb[0].mxu0 %v3529
    %v3685 = vpop.f32.mrb[0].mxu0
    %v3686 = vadd.f32 %v3457, %v3685
    %v3687 = vpop.f32.mrb[0].mxu0
    %v3688 = vpop.f32.mrb[0].mxu0
    %v3689 = vadd.f32 %v3457, %v3688
    %v3690 = vpop.f32.mrb[0].mxu0
    %3691 = vdwg.mxu0
    %v3692 = vpack.c.bf16 %v3569, %v3566
    %v3693 = vpack.c.bf16 %v3577, %v3574
    %v3694 = vpack.c.bf16 %v3585, %v3582
    %v3695 = vpack.c.bf16 %v3593, %v3590
    %v3696 = vpack.c.bf16 %v3601, %v3598
    %v3697 = vpack.c.bf16 %v3609, %v3606
    %v3698 = vpack.c.bf16 %v3617, %v3614
    %v3699 = vpack.c.bf16 %v3625, %v3622
    %v3700 = vpack.c.bf16 %v3633, %v3630
    %v3701 = vpack.c.bf16 %v3641, %v3638
    %v3702 = vpack.c.bf16 %v3649, %v3646
    %v3703 = vpack.c.bf16 %v3657, %v3654
    %v3704 = vpack.c.bf16 %v3665, %v3662
    %v3705 = vpack.c.bf16 %v3673, %v3670
    %v3706 = vpack.c.bf16 %v3681, %v3678
    %v3707 = vpack.c.bf16 %v3689, %v3686
    %3708 = vmatprep.subr.bf16.mxu0 0
    %3709 = vmatpush1.bf16.msra.mxu0 %v3692
    %3710 = vmatprep.subr.bf16.mxu0 0
    %3711 = vmatpush1.bf16.msra.mxu0 %v3693
    %3712 = vmatprep.subr.bf16.mxu0 0
    %3713 = vmatpush1.bf16.msra.mxu0 %v3694
    %3714 = vmatprep.subr.bf16.mxu0 0
    %3715 = vmatpush1.bf16.msra.mxu0 %v3695
    %3716 = vmatprep.subr.bf16.mxu0 0
    %3717 = vmatpush1.bf16.msra.mxu0 %v3696
    %3718 = vmatprep.subr.bf16.mxu0 0
    %3719 = vmatpush1.bf16.msra.mxu0 %v3697
    %3720 = vmatprep.subr.bf16.mxu0 0
    %3721 = vmatpush1.bf16.msra.mxu0 %v3698
    %3722 = vmatprep.subr.bf16.mxu0 0
    %3723 = vmatpush1.bf16.msra.mxu0 %v3699
    %3724 = vmatprep.subr.bf16.mxu0 0
    %3725 = vmatpush1.bf16.msra.mxu0 %v3700
    %3726 = vmatprep.subr.bf16.mxu0 0
    %3727 = vmatpush1.bf16.msra.mxu0 %v3701
    %3728 = vmatprep.subr.bf16.mxu0 0
    %3729 = vmatpush1.bf16.msra.mxu0 %v3702
    %3730 = vmatprep.subr.bf16.mxu0 0
    %3731 = vmatpush1.bf16.msra.mxu0 %v3703
    %3732 = vmatprep.subr.bf16.mxu0 0
    %3733 = vmatpush1.bf16.msra.mxu0 %v3704
    %3734 = vmatprep.subr.bf16.mxu0 0
    %3735 = vmatpush1.bf16.msra.mxu0 %v3705
    %3736 = vmatprep.subr.bf16.mxu0 0
    %3737 = vmatpush1.bf16.msra.mxu0 %v3706
    %3738 = vmatprep.subr.bf16.mxu0 0
    %3739 = vmatpush1.bf16.msra.mxu0 %v3707
    %3740 = vmatprep.mubr.bf16.mxu0 %v1298
    %3741 = vmatmul.mubr.bf16.gmra.mrb[0].mxu0 %v1297
    %v3742 = vpop.f32.mrb[0].mxu0
    %v3743 = vadd.f32 0.0, %v3742
    %v3744 = vpop.f32.mrb[0].mxu0
    %v3745 = vpop.f32.mrb[0].mxu0
    %v3746 = vadd.f32 0.0, %v3745
    %v3747 = vpop.f32.mrb[0].mxu0
    %3748 = vmatprep.mubr.bf16.mxu0 %v1300
    %3749 = vmatmul.mubr.bf16.gmra.mrb[0].mxu0 %v1299
    %v3750 = vpop.f32.mrb[0].mxu0
    %v3751 = vadd.f32 0.0, %v3750
    %v3752 = vpop.f32.mrb[0].mxu0
    %v3753 = vpop.f32.mrb[0].mxu0
    %v3754 = vadd.f32 0.0, %v3753
    %v3755 = vpop.f32.mrb[0].mxu0
    %3756 = vmatprep.mubr.bf16.mxu0 %v1302
    %3757 = vmatmul.mubr.bf16.gmra.mrb[0].mxu0 %v1301
    %v3758 = vpop.f32.mrb[0].mxu0
    %v3759 = vadd.f32 0.0, %v3758
    %v3760 = vpop.f32.mrb[0].mxu0
    %v3761 = vpop.f32.mrb[0].mxu0
    %v3762 = vadd.f32 0.0, %v3761
    %v3763 = vpop.f32.mrb[0].mxu0
    %3764 = vmatprep.mubr.bf16.mxu0 %v1304
    %3765 = vmatmul.mubr.bf16.gmra.mrb[0].mxu0 %v1303
    %v3766 = vpop.f32.mrb[0].mxu0
    %v3767 = vadd.f32 0.0, %v3766
    %v3768 = vpop.f32.mrb[0].mxu0
    %v3769 = vpop.f32.mrb[0].mxu0
    %v3770 = vadd.f32 0.0, %v3769
    %v3771 = vpop.f32.mrb[0].mxu0
    %3772 = vdwg.mxu0
    %v3773 = vld [vmem:[#allocation22] sm:$0x1]
    %v3774 = vld [vmem:[#allocation19] sm:$0x1]
    %v3775 = vsel %vm1713, %v3743, 0.0
    %3776 = vadd.xlane.f32.xlu0 %v3775
    %v3777 = vpop.xlane.xlu0 %3776
    %v3778 = vsel %vm1713, %v3746, 0.0
    %3779 = vadd.xlane.f32.xlu0 %v3778
    %v3780 = vpop.xlane.xlu0 %3779
    %v3781 = vsel %vm1713, %v3751, 0.0
    %3782 = vadd.xlane.f32.xlu0 %v3781
    %v3783 = vpop.xlane.xlu0 %3782
    %v3784 = vsel %vm1713, %v3754, 0.0
    %3785 = vadd.xlane.f32.xlu0 %v3784
    %v3786 = vpop.xlane.xlu0 %3785
    %v3787 = vsel %vm1713, %v3759, 0.0
    %3788 = vadd.xlane.f32.xlu0 %v3787
    %v3789 = vpop.xlane.xlu0 %3788
    %v3790 = vsel %vm1713, %v3762, 0.0
    %3791 = vadd.xlane.f32.xlu0 %v3790
    %v3792 = vpop.xlane.xlu0 %3791
    %v3793 = vsel %vm1713, %v3767, 0.0
    %3794 = vadd.xlane.f32.xlu0 %v3793
    %v3795 = vpop.xlane.xlu0 %3794
    %v3796 = vsel %vm1713, %v3770, 0.0
    %3797 = vadd.xlane.f32.xlu0 %v3796
    %v3798 = vpop.xlane.xlu0 %3797
    %v3799 = vmul.f32 %v3777, %v2903
    %v3800 = vmul.f32 %v3780, %v2903
    %v3801 = vmul.f32 %v3783, %v2903
    %v3802 = vmul.f32 %v3786, %v2903
    %v3803 = vmul.f32 %v3789, %v2903
    %v3804 = vmul.f32 %v3792, %v2903
    %v3805 = vmul.f32 %v3795, %v2903
    %v3806 = vmul.f32 %v3798, %v2903
    %v3807 = vmul.f32 %v3743, %v3743
    %v3808 = vmul.f32 %v3746, %v3746
    %v3809 = vmul.f32 %v3751, %v3751
    %v3810 = vmul.f32 %v3754, %v3754
    %v3811 = vmul.f32 %v3759, %v3759
    %v3812 = vmul.f32 %v3762, %v3762
    %v3813 = vmul.f32 %v3767, %v3767
    %v3814 = vmul.f32 %v3770, %v3770
    %v3815 = vsel %vm1713, %v3807, 0.0
    %3816 = vadd.xlane.f32.xlu0 %v3815
    %v3817 = vpop.xlane.xlu0 %3816
    %v3818 = vsel %vm1713, %v3808, 0.0
    %3819 = vadd.xlane.f32.xlu0 %v3818
    %v3820 = vpop.xlane.xlu0 %3819
    %v3821 = vsel %vm1713, %v3809, 0.0
    %3822 = vadd.xlane.f32.xlu0 %v3821
    %v3823 = vpop.xlane.xlu0 %3822
    %v3824 = vsel %vm1713, %v3810, 0.0
    %3825 = vadd.xlane.f32.xlu0 %v3824
    %v3826 = vpop.xlane.xlu0 %3825
    %v3827 = vsel %vm1713, %v3811, 0.0
    %3828 = vadd.xlane.f32.xlu0 %v3827
    %v3829 = vpop.xlane.xlu0 %3828
    %v3830 = vsel %vm1713, %v3812, 0.0
    %3831 = vadd.xlane.f32.xlu0 %v3830
    %v3832 = vpop.xlane.xlu0 %3831
    %v3833 = vsel %vm1713, %v3813, 0.0
    %3834 = vadd.xlane.f32.xlu0 %v3833
    %v3835 = vpop.xlane.xlu0 %3834
    %v3836 = vsel %vm1713, %v3814, 0.0
    %3837 = vadd.xlane.f32.xlu0 %v3836
    %v3838 = vpop.xlane.xlu0 %3837
    %v3839 = vmul.f32 %v3817, %v2903
    %v3840 = vmul.f32 %v3820, %v2903
    %v3841 = vmul.f32 %v3823, %v2903
    %v3842 = vmul.f32 %v3826, %v2903
    %v3843 = vmul.f32 %v3829, %v2903
    %v3844 = vmul.f32 %v3832, %v2903
    %v3845 = vmul.f32 %v3835, %v2903
    %v3846 = vmul.f32 %v3838, %v2903
    %v3847 = vmul.f32 %v3799, %v3799
    %v3848 = vmul.f32 %v3800, %v3800
    %v3849 = vmul.f32 %v3801, %v3801
    %v3850 = vmul.f32 %v3802, %v3802
    %v3851 = vmul.f32 %v3803, %v3803
    %v3852 = vmul.f32 %v3804, %v3804
    %v3853 = vmul.f32 %v3805, %v3805
    %v3854 = vmul.f32 %v3806, %v3806
    %v3855 = vsub.f32 %v3839, %v3847
    %v3856 = vsub.f32 %v3840, %v3848
    %v3857 = vsub.f32 %v3841, %v3849
    %v3858 = vsub.f32 %v3842, %v3850
    %v3859 = vsub.f32 %v3843, %v3851
    %v3860 = vsub.f32 %v3844, %v3852
    %v3861 = vsub.f32 %v3845, %v3853
    %v3862 = vsub.f32 %v3846, %v3854
    %v3863 = vmax.f32 %v3855, 0.0
    %v3864 = vmax.f32 %v3856, 0.0
    %v3865 = vmax.f32 %v3857, 0.0
    %v3866 = vmax.f32 %v3858, 0.0
    %v3867 = vmax.f32 %v3859, 0.0
    %v3868 = vmax.f32 %v3860, 0.0
    %v3869 = vmax.f32 %v3861, 0.0
    %v3870 = vmax.f32 %v3862, 0.0
    %v3871 = vsub.f32 %v3743, %v3799
    %v3872 = vsub.f32 %v3746, %v3800
    %v3873 = vsub.f32 %v3751, %v3801
    %v3874 = vsub.f32 %v3754, %v3802
    %v3875 = vsub.f32 %v3759, %v3803
    %v3876 = vsub.f32 %v3762, %v3804
    %v3877 = vsub.f32 %v3767, %v3805
    %v3878 = vsub.f32 %v3770, %v3806
    %v3879 = vadd.f32 %v3863, 1e-05
    %v3880 = vadd.f32 %v3864, 1e-05
    %v3881 = vadd.f32 %v3865, 1e-05
    %v3882 = vadd.f32 %v3866, 1e-05
    %v3883 = vadd.f32 %v3867, 1e-05
    %v3884 = vadd.f32 %v3868, 1e-05
    %v3885 = vadd.f32 %v3869, 1e-05
    %v3886 = vadd.f32 %v3870, 1e-05
    %v3887 = vrsqrt.pop %v3879
    %v3888 = vrsqrt.pop %v3880
    %v3889 = vrsqrt.pop %v3881
    %v3890 = vrsqrt.pop %v3882
    %v3891 = vrsqrt.pop %v3883
    %v3892 = vrsqrt.pop %v3884
    %v3893 = vrsqrt.pop %v3885
    %v3894 = vrsqrt.pop %v3886
    %v3895 = vmul.f32 %v3871, %v3887
    %v3896 = vmul.f32 %v3872, %v3888
    %v3897 = vmul.f32 %v3873, %v3889
    %v3898 = vmul.f32 %v3874, %v3890
    %v3899 = vmul.f32 %v3875, %v3891
    %v3900 = vmul.f32 %v3876, %v3892
    %v3901 = vmul.f32 %v3877, %v3893
    %v3902 = vmul.f32 %v3878, %v3894
    %v3904 = vlaneseq
    %v3905 = vshrl.u32 %v3904, 7
    %v3906 = vsub.s32 0, %v3905
    %v3907 = vrot.slane %v3773, %v3906
    %v3909 = vmul.f32 %v3895, %v3907
    %v3910 = vmul.f32 %v3896, %v3907
    %v3911 = vmul.f32 %v3897, %v3907
    %v3912 = vmul.f32 %v3898, %v3907
    %v3913 = vmul.f32 %v3899, %v3907
    %v3914 = vmul.f32 %v3900, %v3907
    %v3915 = vmul.f32 %v3901, %v3907
    %v3916 = vmul.f32 %v3902, %v3907
    %v3918 = vlaneseq
    %v3919 = vshrl.u32 %v3918, 7
    %v3920 = vsub.s32 0, %v3919
    %v3921 = vrot.slane %v3774, %v3920
    %v3923 = vadd.f32 %v3909, %v3921
    %v3924 = vadd.f32 %v3910, %v3921
    %v3925 = vadd.f32 %v3911, %v3921
    %v3926 = vadd.f32 %v3912, %v3921
    %v3927 = vadd.f32 %v3913, %v3921
    %v3928 = vadd.f32 %v3914, %v3921
    %v3929 = vadd.f32 %v3915, %v3921
    %v3930 = vadd.f32 %v3916, %v3921
    %3939 = vrot.lane.b32.xlu0 %v1791, 64
    %v3940 = vpop.permute.xlu0 %3939
    %3941 = vrot.lane.b32.xlu0 %v1792, 64
    %v3942 = vpop.permute.xlu0 %3941
    %3943 = vrot.lane.b32.xlu0 %v1793, 64
    %v3944 = vpop.permute.xlu0 %3943
    %3945 = vrot.lane.b32.xlu0 %v1794, 64
    %v3946 = vpop.permute.xlu0 %3945
    %3947 = vrot.lane.b32.xlu0 %v1795, 64
    %v3948 = vpop.permute.xlu0 %3947
    %3949 = vrot.lane.b32.xlu0 %v1796, 64
    %v3950 = vpop.permute.xlu0 %3949
    %3951 = vrot.lane.b32.xlu0 %v1797, 64
    %v3952 = vpop.permute.xlu0 %3951
    %3953 = vrot.lane.b32.xlu0 %v1798, 64
    %v3954 = vpop.permute.xlu0 %3953
    %v3963 = vsel %vm1713, %v3923, %v3940
    %v3964 = vsel %vm1713, %v3924, %v3942
    %v3965 = vsel %vm1713, %v3925, %v3944
    %v3966 = vsel %vm1713, %v3926, %v3946
    %v3967 = vsel %vm1713, %v3927, %v3948
    %v3968 = vsel %vm1713, %v3928, %v3950
    %v3969 = vsel %vm1713, %v3929, %v3952
    %v3970 = vsel %vm1713, %v3930, %v3954
    %v3971 = vld [vmem:[%s97] sm:$0xf]
    %v3972 = vld [vmem:[%s97 + $0x4] sm:$0xf]
    %v3973 = vld [vmem:[%s97 + $0x8] sm:$0xf]
    %v3974 = vld [vmem:[%s97 + $0xc] sm:$0xf]
    %v3975 = vld [vmem:[%s97 + $0x10] sm:$0xf]
    %v3976 = vld [vmem:[%s97 + $0x14] sm:$0xf]
    %v3977 = vld [vmem:[%s97 + $0x18] sm:$0xf]
    %v3978 = vld [vmem:[%s97 + $0x1c] sm:$0xf]
    %v3979 = vld [vmem:[%s97 + $0x20] sm:$0xf]
    %v3980 = vld [vmem:[%s97 + $0x24] sm:$0xf]
    %v3981 = vld [vmem:[%s97 + $0x28] sm:$0xf]
    %v3982 = vld [vmem:[%s97 + $0x2c] sm:$0xf]
    %v3983 = vld [vmem:[%s97 + $0x30] sm:$0xf]
    %v3984 = vld [vmem:[%s97 + $0x34] sm:$0xf]
    %v3985 = vld [vmem:[%s97 + $0x38] sm:$0xf]
    %v3986 = vld [vmem:[%s97 + $0x3c] sm:$0xf]
    %v3987 = vpack.c.bf16 %v3964, %v3963
    %v3988 = vpack.c.bf16 %v3966, %v3965
    %v3989 = vpack.c.bf16 %v3968, %v3967
    %v3990 = vpack.c.bf16 %v3970, %v3969
    %v3991 = vld [vmem:[#allocation16] sm:$0x1]
    %v3993 = vlaneseq
    %v3994 = vshrl.u32 %v3993, 7
    %v3995 = vsub.s32 0, %v3994
    %v3996 = vrot.slane %v3991, %v3995
    %v4014 = vunpack.c.l.b16 %v3971
    %v4015 = vunpack.c.l.b16 %v3972
    %v4016 = vunpack.c.l.b16 %v3973
    %v4017 = vunpack.c.l.b16 %v3974
    %v4018 = vunpack.c.l.b16 %v3975
    %v4019 = vunpack.c.l.b16 %v3976
    %v4020 = vunpack.c.l.b16 %v3977
    %v4021 = vunpack.c.l.b16 %v3978
    %v4022 = vunpack.c.l.b16 %v3979
    %v4023 = vunpack.c.l.b16 %v3980
    %v4024 = vunpack.c.l.b16 %v3981
    %v4025 = vunpack.c.l.b16 %v3982
    %v4026 = vunpack.c.l.b16 %v3983
    %v4027 = vunpack.c.l.b16 %v3984
    %v4028 = vunpack.c.l.b16 %v3985
    %v4029 = vunpack.c.l.b16 %v3986
    %v4030 = vpack.c.b16 %v4015, %v4014
    %v4031 = vpack.c.b16 %v4017, %v4016
    %v4032 = vpack.c.b16 %v4019, %v4018
    %v4033 = vpack.c.b16 %v4021, %v4020
    %v4034 = vpack.c.b16 %v4023, %v4022
    %v4035 = vpack.c.b16 %v4025, %v4024
    %v4036 = vpack.c.b16 %v4027, %v4026
    %v4037 = vpack.c.b16 %v4029, %v4028
    %4046 = vmatprep.subr.bf16.mxu0 0
    %4047 = vmatpush1.bf16.msra.mxu0 %v4030
    %4048 = vmatprep.subr.bf16.mxu0 0
    %4049 = vmatpush1.bf16.msra.mxu0 %v4031
    %4050 = vmatprep.subr.bf16.mxu0 0
    %4051 = vmatpush1.bf16.msra.mxu0 %v4032
    %4052 = vmatprep.subr.bf16.mxu0 0
    %4053 = vmatpush1.bf16.msra.mxu0 %v4033
    %4054 = vmatprep.subr.bf16.mxu0 0
    %4055 = vmatpush1.bf16.msra.mxu0 %v4034
    %4056 = vmatprep.subr.bf16.mxu0 0
    %4057 = vmatpush1.bf16.msra.mxu0 %v4035
    %4058 = vmatprep.subr.bf16.mxu0 0
    %4059 = vmatpush1.bf16.msra.mxu0 %v4036
    %4060 = vmatprep.subr.bf16.mxu0 0
    %4061 = vmatpush1.bf16.msra.mxu0 %v4037
    %4062 = vmatprep.subr.bf16.mxu0 0
    %4063 = vmatpush1.bf16.msra.mxu0 0
    %4064 = vmatprep.subr.bf16.mxu0 0
    %4065 = vmatpush1.bf16.msra.mxu0 0
    %4066 = vmatprep.subr.bf16.mxu0 0
    %4067 = vmatpush1.bf16.msra.mxu0 0
    %4068 = vmatprep.subr.bf16.mxu0 0
    %4069 = vmatpush1.bf16.msra.mxu0 0
    %4070 = vmatprep.subr.bf16.mxu0 0
    %4071 = vmatpush1.bf16.msra.mxu0 0
    %4072 = vmatprep.subr.bf16.mxu0 0
    %4073 = vmatpush1.bf16.msra.mxu0 0
    %4074 = vmatprep.subr.bf16.mxu0 0
    %4075 = vmatpush1.bf16.msra.mxu0 0
    %4076 = vmatprep.subr.bf16.mxu0 0
    %4077 = vmatpush1.bf16.msra.mxu0 0
    %4078 = vmatprep.mubr.bf16.mxu0 0
    %4079 = vmatmul.mubr.bf16.gmra.mrb[0].mxu0 %v3987
    %v4080 = vpop.f32.mrb[0].mxu0
    %v4081 = vadd.f32 %v3996, %v4080
    %v4082 = vpop.f32.mrb[0].mxu0
    %v4083 = vpop.f32.mrb[0].mxu0
    %v4084 = vadd.f32 %v3996, %v4083
    %v4085 = vpop.f32.mrb[0].mxu0
    %4086 = vmatprep.mubr.bf16.mxu0 0
    %4087 = vmatmul.mubr.bf16.gmra.mrb[0].mxu0 %v3988
    %v4088 = vpop.f32.mrb[0].mxu0
    %v4089 = vadd.f32 %v3996, %v4088
    %v4090 = vpop.f32.mrb[0].mxu0
    %v4091 = vpop.f32.mrb[0].mxu0
    %v4092 = vadd.f32 %v3996, %v4091
    %v4093 = vpop.f32.mrb[0].mxu0
    %4094 = vmatprep.mubr.bf16.mxu0 0
    %4095 = vmatmul.mubr.bf16.gmra.mrb[0].mxu0 %v3989
    %v4096 = vpop.f32.mrb[0].mxu0
    %v4097 = vadd.f32 %v3996, %v4096
    %v4098 = vpop.f32.mrb[0].mxu0
    %v4099 = vpop.f32.mrb[0].mxu0
    %v4100 = vadd.f32 %v3996, %v4099
    %v4101 = vpop.f32.mrb[0].mxu0
    %4102 = vmatprep.mubr.bf16.mxu0 0
    %4103 = vmatmul.mubr.bf16.gmra.mrb[0].mxu0 %v3990
    %v4104 = vpop.f32.mrb[0].mxu0
    %v4105 = vadd.f32 %v3996, %v4104
    %v4106 = vpop.f32.mrb[0].mxu0
    %v4107 = vpop.f32.mrb[0].mxu0
    %v4108 = vadd.f32 %v3996, %v4107
    %v4109 = vpop.f32.mrb[0].mxu0
    %4110 = vdwg.mxu0
    %v4111 = vmax.f32 %v4081, 0.0
    %v4112 = vmax.f32 %v4084, 0.0
    %v4113 = vmax.f32 %v4089, 0.0
    %v4114 = vmax.f32 %v4092, 0.0
    %v4115 = vmax.f32 %v4097, 0.0
    %v4116 = vmax.f32 %v4100, 0.0
    %v4117 = vmax.f32 %v4105, 0.0
    %v4118 = vmax.f32 %v4108, 0.0
    %v4119 = vld [vmem:[%s99] sm:$0xf]
    %v4120 = vld [vmem:[%s99 + $0x4] sm:$0xf]
    %v4121 = vld [vmem:[%s99 + $0x8] sm:$0xf]
    %v4122 = vld [vmem:[%s99 + $0xc] sm:$0xf]
    %v4123 = vld [vmem:[%s99 + $0x10] sm:$0xf]
    %v4124 = vld [vmem:[%s99 + $0x14] sm:$0xf]
    %v4125 = vld [vmem:[%s99 + $0x18] sm:$0xf]
    %v4126 = vld [vmem:[%s99 + $0x1c] sm:$0xf]
    %v4127 = vpack.c.bf16 %v4112, %v4111
    %v4128 = vpack.c.bf16 %v4114, %v4113
    %v4129 = vpack.c.bf16 %v4116, %v4115
    %v4130 = vpack.c.bf16 %v4118, %v4117
    %v4131 = vld [vmem:[#allocation18] sm:$0x1]
    %v4133 = vlaneseq
    %v4134 = vshrl.u32 %v4133, 7
    %v4135 = vsub.s32 0, %v4134
    %v4136 = vrot.slane %v4131, %v4135
    %v4146 = vunpack.c.l.b16 %v4119
    %v4147 = vunpack.c.l.b16 %v4120
    %v4148 = vunpack.c.l.b16 %v4121
    %v4149 = vunpack.c.l.b16 %v4122
    %v4150 = vunpack.c.l.b16 %v4123
    %v4151 = vunpack.c.l.b16 %v4124
    %v4152 = vunpack.c.l.b16 %v4125
    %v4153 = vunpack.c.l.b16 %v4126
    %v4154 = vpack.c.b16 %v4147, %v4146
    %v4155 = vpack.c.b16 %v4149, %v4148
    %v4156 = vpack.c.b16 %v4151, %v4150
    %v4157 = vpack.c.b16 %v4153, %v4152
    %v4163 = vsel %vm1713, %v4127, 0
    %v4166 = vsel %vm1713, %v4128, 0
    %v4169 = vsel %vm1713, %v4129, 0
    %v4172 = vsel %vm1713, %v4130, 0
    %4174 = vmatprep.subr.bf16.mxu0 0
    %4175 = vmatpush1.bf16.msra.mxu0 %v4154
    %4176 = vmatprep.subr.bf16.mxu0 0
    %4177 = vmatpush1.bf16.msra.mxu0 %v4155
    %4178 = vmatprep.subr.bf16.mxu0 0
    %4179 = vmatpush1.bf16.msra.mxu0 %v4156
    %4180 = vmatprep.subr.bf16.mxu0 0
    %4181 = vmatpush1.bf16.msra.mxu0 %v4157
    %4182 = vmatprep.subr.bf16.mxu0 0
    %4183 = vmatpush1.bf16.msra.mxu0 0
    %4184 = vmatprep.subr.bf16.mxu0 0
    %4185 = vmatpush1.bf16.msra.mxu0 0
    %4186 = vmatprep.subr.bf16.mxu0 0
    %4187 = vmatpush1.bf16.msra.mxu0 0
    %4188 = vmatprep.subr.bf16.mxu0 0
    %4189 = vmatpush1.bf16.msra.mxu0 0
    %4190 = vmatprep.subr.bf16.mxu0 0
    %4191 = vmatpush1.bf16.msra.mxu0 0
    %4192 = vmatprep.subr.bf16.mxu0 0
    %4193 = vmatpush1.bf16.msra.mxu0 0
    %4194 = vmatprep.subr.bf16.mxu0 0
    %4195 = vmatpush1.bf16.msra.mxu0 0
    %4196 = vmatprep.subr.bf16.mxu0 0
    %4197 = vmatpush1.bf16.msra.mxu0 0
    %4198 = vmatprep.subr.bf16.mxu0 0
    %4199 = vmatpush1.bf16.msra.mxu0 0
    %4200 = vmatprep.subr.bf16.mxu0 0
    %4201 = vmatpush1.bf16.msra.mxu0 0
    %4202 = vmatprep.subr.bf16.mxu0 0
    %4203 = vmatpush1.bf16.msra.mxu0 0
    %4204 = vmatprep.subr.bf16.mxu0 0
    %4205 = vmatpush1.bf16.msra.mxu0 0
    %4206 = vmatprep.mubr.bf16.mxu0 0
    %4207 = vmatmul.mubr.bf16.gmra.mrb[0].mxu0 %v4163
    %v4208 = vpop.f32.mrb[0].mxu0
    %v4209 = vadd.f32 %v4136, %v4208
    %v4210 = vpop.f32.mrb[0].mxu0
    %v4211 = vpop.f32.mrb[0].mxu0
    %v4212 = vadd.f32 %v4136, %v4211
    %v4213 = vpop.f32.mrb[0].mxu0
    %4214 = vmatprep.mubr.bf16.mxu0 0
    %4215 = vmatmul.mubr.bf16.gmra.mrb[0].mxu0 %v4166
    %v4216 = vpop.f32.mrb[0].mxu0
    %v4217 = vadd.f32 %v4136, %v4216
    %v4218 = vpop.f32.mrb[0].mxu0
    %v4219 = vpop.f32.mrb[0].mxu0
    %v4220 = vadd.f32 %v4136, %v4219
    %v4221 = vpop.f32.mrb[0].mxu0
    %4222 = vmatprep.mubr.bf16.mxu0 0
    %4223 = vmatmul.mubr.bf16.gmra.mrb[0].mxu0 %v4169
    %v4224 = vpop.f32.mrb[0].mxu0
    %v4225 = vadd.f32 %v4136, %v4224
    %v4226 = vpop.f32.mrb[0].mxu0
    %v4227 = vpop.f32.mrb[0].mxu0
    %v4228 = vadd.f32 %v4136, %v4227
    %v4229 = vpop.f32.mrb[0].mxu0
    %4230 = vmatprep.mubr.bf16.mxu0 0
    %4231 = vmatmul.mubr.bf16.gmra.mrb[0].mxu0 %v4172
    %v4232 = vpop.f32.mrb[0].mxu0
    %v4233 = vadd.f32 %v4136, %v4232
    %v4234 = vpop.f32.mrb[0].mxu0
    %v4235 = vpop.f32.mrb[0].mxu0
    %v4236 = vadd.f32 %v4136, %v4235
    %v4237 = vpop.f32.mrb[0].mxu0
    %4238 = vdwg.mxu0
    %v4239 = vld [vmem:[%s43] sm:$0xf]
    %v4240 = vld [vmem:[%s43 + $0x4] sm:$0xf]
    %v4241 = vld [vmem:[%s43 + $0x8] sm:$0xf]
    %v4242 = vld [vmem:[%s43 + $0xc] sm:$0xf]
    %v4243 = vld [vmem:[%s43 + $0x10] sm:$0xf]
    %v4244 = vld [vmem:[%s43 + $0x14] sm:$0xf]
    %v4245 = vld [vmem:[%s43 + $0x18] sm:$0xf]
    %v4246 = vld [vmem:[%s43 + $0x1c] sm:$0xf]
    %v4255 = vunpack.c.l.b16 %v4239
    %v4256 = vunpack.c.l.b16 %v4240
    %v4257 = vunpack.c.l.b16 %v4241
    %v4258 = vunpack.c.l.b16 %v4242
    %v4259 = vunpack.c.l.b16 %v4243
    %v4260 = vunpack.c.l.b16 %v4244
    %v4261 = vunpack.c.l.b16 %v4245
    %v4262 = vunpack.c.l.b16 %v4246
    %v4263 = vpack.c.b16 %v4256, %v4255
    %v4264 = vpack.c.b16 %v4258, %v4257
    %v4265 = vpack.c.b16 %v4260, %v4259
    %v4266 = vpack.c.b16 %v4262, %v4261
    %4271 = vmatprep.subr.bf16.mxu0 0
    %4272 = vmatpush1.bf16.msra.mxu0 %v4263
    %4273 = vmatprep.subr.bf16.mxu0 0
    %4274 = vmatpush1.bf16.msra.mxu0 %v4264
    %4275 = vmatprep.subr.bf16.mxu0 0
    %4276 = vmatpush1.bf16.msra.mxu0 %v4265
    %4277 = vmatprep.subr.bf16.mxu0 0
    %4278 = vmatpush1.bf16.msra.mxu0 %v4266
    %4279 = vmatprep.subr.bf16.mxu0 0
    %4280 = vmatpush1.bf16.msra.mxu0 0
    %4281 = vmatprep.subr.bf16.mxu0 0
    %4282 = vmatpush1.bf16.msra.mxu0 0
    %4283 = vmatprep.subr.bf16.mxu0 0
    %4284 = vmatpush1.bf16.msra.mxu0 0
    %4285 = vmatprep.subr.bf16.mxu0 0
    %4286 = vmatpush1.bf16.msra.mxu0 0
    %4287 = vmatprep.subr.bf16.mxu0 0
    %4288 = vmatpush1.bf16.msra.mxu0 0
    %4289 = vmatprep.subr.bf16.mxu0 0
    %4290 = vmatpush1.bf16.msra.mxu0 0
    %4291 = vmatprep.subr.bf16.mxu0 0
    %4292 = vmatpush1.bf16.msra.mxu0 0
    %4293 = vmatprep.subr.bf16.mxu0 0
    %4294 = vmatpush1.bf16.msra.mxu0 0
    %4295 = vmatprep.subr.bf16.mxu0 0
    %4296 = vmatpush1.bf16.msra.mxu0 0
    %4297 = vmatprep.subr.bf16.mxu0 0
    %4298 = vmatpush1.bf16.msra.mxu0 0
    %4299 = vmatprep.subr.bf16.mxu0 0
    %4300 = vmatpush1.bf16.msra.mxu0 0
    %4301 = vmatprep.subr.bf16.mxu0 0
    %4302 = vmatpush1.bf16.msra.mxu0 0
    %4303 = vmatprep.mubr.bf16.mxu0 0
    %4304 = vmatmul.mubr.bf16.gmra.mrb[0].mxu0 %v2480
    %v4305 = vpop.f32.mrb[0].mxu0
    %v4306 = vadd.f32 0.0, %v4305
    %v4307 = vpop.f32.mrb[0].mxu0
    %v4308 = vpop.f32.mrb[0].mxu0
    %v4309 = vadd.f32 0.0, %v4308
    %v4310 = vpop.f32.mrb[0].mxu0
    %4311 = vmatprep.mubr.bf16.mxu0 0
    %4312 = vmatmul.mubr.bf16.gmra.mrb[0].mxu0 %v2483
    %v4313 = vpop.f32.mrb[0].mxu0
    %v4314 = vadd.f32 0.0, %v4313
    %v4315 = vpop.f32.mrb[0].mxu0
    %v4316 = vpop.f32.mrb[0].mxu0
    %v4317 = vadd.f32 0.0, %v4316
    %v4318 = vpop.f32.mrb[0].mxu0
    %4319 = vmatprep.mubr.bf16.mxu0 0
    %4320 = vmatmul.mubr.bf16.gmra.mrb[0].mxu0 %v2486
    %v4321 = vpop.f32.mrb[0].mxu0
    %v4322 = vadd.f32 0.0, %v4321
    %v4323 = vpop.f32.mrb[0].mxu0
    %v4324 = vpop.f32.mrb[0].mxu0
    %v4325 = vadd.f32 0.0, %v4324
    %v4326 = vpop.f32.mrb[0].mxu0
    %4327 = vmatprep.mubr.bf16.mxu0 0
    %4328 = vmatmul.mubr.bf16.gmra.mrb[0].mxu0 %v2489
    %v4329 = vpop.f32.mrb[0].mxu0
    %v4330 = vadd.f32 0.0, %v4329
    %v4331 = vpop.f32.mrb[0].mxu0
    %v4332 = vpop.f32.mrb[0].mxu0
    %v4333 = vadd.f32 0.0, %v4332
    %v4334 = vpop.f32.mrb[0].mxu0
    %4335 = vmatprep.mubr.bf16.mxu0 0
    %4336 = vmatmul.mubr.bf16.gmra.mrb[0].mxu0 %v2492
    %v4337 = vpop.f32.mrb[0].mxu0
    %v4338 = vadd.f32 0.0, %v4337
    %v4339 = vpop.f32.mrb[0].mxu0
    %v4340 = vpop.f32.mrb[0].mxu0
    %v4341 = vadd.f32 0.0, %v4340
    %v4342 = vpop.f32.mrb[0].mxu0
    %4343 = vmatprep.mubr.bf16.mxu0 0
    %4344 = vmatmul.mubr.bf16.gmra.mrb[0].mxu0 %v2495
    %v4345 = vpop.f32.mrb[0].mxu0
    %v4346 = vadd.f32 0.0, %v4345
    %v4347 = vpop.f32.mrb[0].mxu0
    %v4348 = vpop.f32.mrb[0].mxu0
    %v4349 = vadd.f32 0.0, %v4348
    %v4350 = vpop.f32.mrb[0].mxu0
    %4351 = vdwg.mxu0
    %v4352 = vld [vmem:[%s49] sm:$0xf]
    %v4353 = vld [vmem:[%s49 + $0x4] sm:$0xf]
    %v4354 = vld [vmem:[%s49 + $0x8] sm:$0xf]
    %v4355 = vld [vmem:[%s49 + $0xc] sm:$0xf]
    %v4356 = vld [vmem:[%s49 + $0x10] sm:$0xf]
    %v4357 = vld [vmem:[%s49 + $0x14] sm:$0xf]
    %v4358 = vld [vmem:[%s49 + $0x18] sm:$0xf]
    %v4359 = vld [vmem:[%s49 + $0x1c] sm:$0xf]
    %v4360 = vpack.c.bf16 %v4212, %v4209
    %v4361 = vpack.c.bf16 %v4220, %v4217
    %v4362 = vpack.c.bf16 %v4228, %v4225
    %v4363 = vpack.c.bf16 %v4236, %v4233
    %v4372 = vunpack.c.l.b16 %v4352
    %v4373 = vunpack.c.l.b16 %v4353
    %v4374 = vunpack.c.l.b16 %v4354
    %v4375 = vunpack.c.l.b16 %v4355
    %v4376 = vunpack.c.l.b16 %v4356
    %v4377 = vunpack.c.l.b16 %v4357
    %v4378 = vunpack.c.l.b16 %v4358
    %v4379 = vunpack.c.l.b16 %v4359
    %v4380 = vpack.c.b16 %v4373, %v4372
    %v4381 = vpack.c.b16 %v4375, %v4374
    %v4382 = vpack.c.b16 %v4377, %v4376
    %v4383 = vpack.c.b16 %v4379, %v4378
    %v4389 = vsel %vm1713, %v4360, 0
    %v4392 = vsel %vm1713, %v4361, 0
    %v4395 = vsel %vm1713, %v4362, 0
    %v4398 = vsel %vm1713, %v4363, 0
    %4400 = vmatprep.subr.bf16.mxu0 0
    %4401 = vmatpush1.bf16.msra.mxu0 %v4380
    %4402 = vmatprep.subr.bf16.mxu0 0
    %4403 = vmatpush1.bf16.msra.mxu0 %v4381
    %4404 = vmatprep.subr.bf16.mxu0 0
    %4405 = vmatpush1.bf16.msra.mxu0 %v4382
    %4406 = vmatprep.subr.bf16.mxu0 0
    %4407 = vmatpush1.bf16.msra.mxu0 %v4383
    %4408 = vmatprep.subr.bf16.mxu0 0
    %4409 = vmatpush1.bf16.msra.mxu0 0
    %4410 = vmatprep.subr.bf16.mxu0 0
    %4411 = vmatpush1.bf16.msra.mxu0 0
    %4412 = vmatprep.subr.bf16.mxu0 0
    %4413 = vmatpush1.bf16.msra.mxu0 0
    %4414 = vmatprep.subr.bf16.mxu0 0
    %4415 = vmatpush1.bf16.msra.mxu0 0
    %4416 = vmatprep.subr.bf16.mxu0 0
    %4417 = vmatpush1.bf16.msra.mxu0 0
    %4418 = vmatprep.subr.bf16.mxu0 0
    %4419 = vmatpush1.bf16.msra.mxu0 0
    %4420 = vmatprep.subr.bf16.mxu0 0
    %4421 = vmatpush1.bf16.msra.mxu0 0
    %4422 = vmatprep.subr.bf16.mxu0 0
    %4423 = vmatpush1.bf16.msra.mxu0 0
    %4424 = vmatprep.subr.bf16.mxu0 0
    %4425 = vmatpush1.bf16.msra.mxu0 0
    %4426 = vmatprep.subr.bf16.mxu0 0
    %4427 = vmatpush1.bf16.msra.mxu0 0
    %4428 = vmatprep.subr.bf16.mxu0 0
    %4429 = vmatpush1.bf16.msra.mxu0 0
    %4430 = vmatprep.subr.bf16.mxu0 0
    %4431 = vmatpush1.bf16.msra.mxu0 0
    %4432 = vmatprep.mubr.bf16.mxu0 0
    %4433 = vmatmul.mubr.bf16.gmra.mrb[0].mxu0 %v4389
    %v4434 = vpop.f32.mrb[0].mxu0
    %v4435 = vadd.f32 0.0, %v4434
    %v4436 = vpop.f32.mrb[0].mxu0
    %v4437 = vpop.f32.mrb[0].mxu0
    %v4438 = vadd.f32 0.0, %v4437
    %v4439 = vpop.f32.mrb[0].mxu0
    %4440 = vmatprep.mubr.bf16.mxu0 0
    %4441 = vmatmul.mubr.bf16.gmra.mrb[0].mxu0 %v4392
    %v4442 = vpop.f32.mrb[0].mxu0
    %v4443 = vadd.f32 0.0, %v4442
    %v4444 = vpop.f32.mrb[0].mxu0
    %v4445 = vpop.f32.mrb[0].mxu0
    %v4446 = vadd.f32 0.0, %v4445
    %v4447 = vpop.f32.mrb[0].mxu0
    %4448 = vmatprep.mubr.bf16.mxu0 0
    %4449 = vmatmul.mubr.bf16.gmra.mrb[0].mxu0 %v4395
    %v4450 = vpop.f32.mrb[0].mxu0
    %v4451 = vadd.f32 0.0, %v4450
    %v4452 = vpop.f32.mrb[0].mxu0
    %v4453 = vpop.f32.mrb[0].mxu0
    %v4454 = vadd.f32 0.0, %v4453
    %v4455 = vpop.f32.mrb[0].mxu0
    %4456 = vmatprep.mubr.bf16.mxu0 0
    %4457 = vmatmul.mubr.bf16.gmra.mrb[0].mxu0 %v4398
    %v4458 = vpop.f32.mrb[0].mxu0
    %v4459 = vadd.f32 0.0, %v4458
    %v4460 = vpop.f32.mrb[0].mxu0
    %v4461 = vpop.f32.mrb[0].mxu0
    %v4462 = vadd.f32 0.0, %v4461
    %v4463 = vpop.f32.mrb[0].mxu0
    %4464 = vdwg.mxu0
    %v4465 = vpack.c.bf16 %v4438, %v4435
    %v4466 = vpack.c.bf16 %v4446, %v4443
    %v4467 = vpack.c.bf16 %v4454, %v4451
    %v4468 = vpack.c.bf16 %v4462, %v4459
    %v4469 = vpack.c.bf16 %v4309, %v4306
    %v4470 = vpack.c.bf16 %v4317, %v4314
    %v4471 = vpack.c.bf16 %v4325, %v4322
    %v4472 = vpack.c.bf16 %v4333, %v4330
    %v4473 = vpack.c.bf16 %v4341, %v4338
    %v4474 = vpack.c.bf16 %v4349, %v4346
    %v4475 = vld [vmem:[%s29] sm:$0x1]
    %v4477 = vlaneseq
    %v4478 = vshrl.u32 %v4477, 7
    %v4479 = vsub.s32 0, %v4478
    %v4480 = vrot.slane %v4475, %v4479
    %4482 = vmatprep.subr.bf16.mxu0 0
    %4483 = vmatpush1.bf16.msra.mxu0 %v4465
    %4484 = vmatprep.subr.bf16.mxu0 0
    %4485 = vmatpush1.bf16.msra.mxu0 %v4466
    %4486 = vmatprep.subr.bf16.mxu0 0
    %4487 = vmatpush1.bf16.msra.mxu0 %v4467
    %4488 = vmatprep.subr.bf16.mxu0 0
    %4489 = vmatpush1.bf16.msra.mxu0 %v4468
    %4490 = vmatprep.subr.bf16.mxu0 0
    %4491 = vmatpush1.bf16.msra.mxu0 %v4469
    %4492 = vmatprep.subr.bf16.mxu0 0
    %4493 = vmatpush1.bf16.msra.mxu0 %v4470
    %4494 = vmatprep.subr.bf16.mxu0 0
    %4495 = vmatpush1.bf16.msra.mxu0 %v4471
    %4496 = vmatprep.subr.bf16.mxu0 0
    %4497 = vmatpush1.bf16.msra.mxu0 %v4472
    %4498 = vmatprep.subr.bf16.mxu0 0
    %4499 = vmatpush1.bf16.msra.mxu0 %v4473
    %4500 = vmatprep.subr.bf16.mxu0 0
    %4501 = vmatpush1.bf16.msra.mxu0 %v4474
    %4502 = vmatprep.subr.bf16.mxu0 0
    %4503 = vmatpush1.bf16.msra.mxu0 0
    %4504 = vmatprep.subr.bf16.mxu0 0
    %4505 = vmatpush1.bf16.msra.mxu0 0
    %4506 = vmatprep.subr.bf16.mxu0 0
    %4507 = vmatpush1.bf16.msra.mxu0 0
    %4508 = vmatprep.subr.bf16.mxu0 0
    %4509 = vmatpush1.bf16.msra.mxu0 0
    %4510 = vmatprep.subr.bf16.mxu0 0
    %4511 = vmatpush1.bf16.msra.mxu0 0
    %4512 = vmatprep.subr.bf16.mxu0 0
    %4513 = vmatpush1.bf16.msra.mxu0 0
    %4514 = vmatprep.mubr.bf16.mxu0 %v2597
    %4515 = vmatmul.mubr.bf16.gmra.mrb[0].mxu0 %v1200
    %v4516 = vpop.f32.mrb[0].mxu0
    %v4517 = vadd.f32 %v4480, %v4516
    %v4518 = vpop.f32.mrb[0].mxu0
    %v4519 = vpop.f32.mrb[0].mxu0
    %v4520 = vadd.f32 %v4480, %v4519
    %v4521 = vpop.f32.mrb[0].mxu0
    %4522 = vmatprep.mubr.bf16.mxu0 %v2600
    %4523 = vmatmul.mubr.bf16.gmra.mrb[0].mxu0 %v1202
    %v4524 = vpop.f32.mrb[0].mxu0
    %v4525 = vadd.f32 %v4480, %v4524
    %v4526 = vpop.f32.mrb[0].mxu0
    %v4527 = vpop.f32.mrb[0].mxu0
    %v4528 = vadd.f32 %v4480, %v4527
    %v4529 = vpop.f32.mrb[0].mxu0
    %4530 = vmatprep.mubr.bf16.mxu0 %v2603
    %4531 = vmatmul.mubr.bf16.gmra.mrb[0].mxu0 %v1204
    %v4532 = vpop.f32.mrb[0].mxu0
    %v4533 = vadd.f32 %v4480, %v4532
    %v4534 = vpop.f32.mrb[0].mxu0
    %v4535 = vpop.f32.mrb[0].mxu0
    %v4536 = vadd.f32 %v4480, %v4535
    %v4537 = vpop.f32.mrb[0].mxu0
    %4538 = vmatprep.mubr.bf16.mxu0 %v2606
    %4539 = vmatmul.mubr.bf16.gmra.mrb[0].mxu0 %v1206
    %v4540 = vpop.f32.mrb[0].mxu0
    %v4541 = vadd.f32 %v4480, %v4540
    %v4542 = vpop.f32.mrb[0].mxu0
    %v4543 = vpop.f32.mrb[0].mxu0
    %v4544 = vadd.f32 %v4480, %v4543
    %v4545 = vpop.f32.mrb[0].mxu0
    %4546 = vmatprep.mubr.bf16.mxu0 %v2609
    %4547 = vmatmul.mubr.bf16.gmra.mrb[0].mxu0 %v1208
    %v4548 = vpop.f32.mrb[0].mxu0
    %v4549 = vadd.f32 %v4480, %v4548
    %v4550 = vpop.f32.mrb[0].mxu0
    %v4551 = vpop.f32.mrb[0].mxu0
    %v4552 = vadd.f32 %v4480, %v4551
    %v4553 = vpop.f32.mrb[0].mxu0
    %4554 = vmatprep.mubr.bf16.mxu0 %v2612
    %4555 = vmatmul.mubr.bf16.gmra.mrb[0].mxu0 %v1210
    %v4556 = vpop.f32.mrb[0].mxu0
    %v4557 = vadd.f32 %v4480, %v4556
    %v4558 = vpop.f32.mrb[0].mxu0
    %v4559 = vpop.f32.mrb[0].mxu0
    %v4560 = vadd.f32 %v4480, %v4559
    %v4561 = vpop.f32.mrb[0].mxu0
    %4562 = vmatprep.mubr.bf16.mxu0 %v2615
    %4563 = vmatmul.mubr.bf16.gmra.mrb[0].mxu0 %v1212
    %v4564 = vpop.f32.mrb[0].mxu0
    %v4565 = vadd.f32 %v4480, %v4564
    %v4566 = vpop.f32.mrb[0].mxu0
    %v4567 = vpop.f32.mrb[0].mxu0
    %v4568 = vadd.f32 %v4480, %v4567
    %v4569 = vpop.f32.mrb[0].mxu0
    %4570 = vmatprep.mubr.bf16.mxu0 %v2618
    %4571 = vmatmul.mubr.bf16.gmra.mrb[0].mxu0 %v1214
    %v4572 = vpop.f32.mrb[0].mxu0
    %v4573 = vadd.f32 %v4480, %v4572
    %v4574 = vpop.f32.mrb[0].mxu0
    %v4575 = vpop.f32.mrb[0].mxu0
    %v4576 = vadd.f32 %v4480, %v4575
    %v4577 = vpop.f32.mrb[0].mxu0
    %4578 = vmatprep.mubr.bf16.mxu0 %v2621
    %4579 = vmatmul.mubr.bf16.gmra.mrb[0].mxu0 %v1216
    %v4580 = vpop.f32.mrb[0].mxu0
    %v4581 = vadd.f32 %v4480, %v4580
    %v4582 = vpop.f32.mrb[0].mxu0
    %v4583 = vpop.f32.mrb[0].mxu0
    %v4584 = vadd.f32 %v4480, %v4583
    %v4585 = vpop.f32.mrb[0].mxu0
    %4586 = vmatprep.mubr.bf16.mxu0 %v2624
    %4587 = vmatmul.mubr.bf16.gmra.mrb[0].mxu0 %v1218
    %v4588 = vpop.f32.mrb[0].mxu0
    %v4589 = vadd.f32 %v4480, %v4588
    %v4590 = vpop.f32.mrb[0].mxu0
    %v4591 = vpop.f32.mrb[0].mxu0
    %v4592 = vadd.f32 %v4480, %v4591
    %v4593 = vpop.f32.mrb[0].mxu0
    %4594 = vmatprep.mubr.bf16.mxu0 %v2627
    %4595 = vmatmul.mubr.bf16.gmra.mrb[0].mxu0 %v1220
    %v4596 = vpop.f32.mrb[0].mxu0
    %v4597 = vadd.f32 %v4480, %v4596
    %v4598 = vpop.f32.mrb[0].mxu0
    %v4599 = vpop.f32.mrb[0].mxu0
    %v4600 = vadd.f32 %v4480, %v4599
    %v4601 = vpop.f32.mrb[0].mxu0
    %4602 = vmatprep.mubr.bf16.mxu0 %v2630
    %4603 = vmatmul.mubr.bf16.gmra.mrb[0].mxu0 %v1222
    %v4604 = vpop.f32.mrb[0].mxu0
    %v4605 = vadd.f32 %v4480, %v4604
    %v4606 = vpop.f32.mrb[0].mxu0
    %v4607 = vpop.f32.mrb[0].mxu0
    %v4608 = vadd.f32 %v4480, %v4607
    %v4609 = vpop.f32.mrb[0].mxu0
    %4610 = vmatprep.mubr.bf16.mxu0 %v2633
    %4611 = vmatmul.mubr.bf16.gmra.mrb[0].mxu0 %v1224
    %v4612 = vpop.f32.mrb[0].mxu0
    %v4613 = vadd.f32 %v4480, %v4612
    %v4614 = vpop.f32.mrb[0].mxu0
    %v4615 = vpop.f32.mrb[0].mxu0
    %v4616 = vadd.f32 %v4480, %v4615
    %v4617 = vpop.f32.mrb[0].mxu0
    %4618 = vmatprep.mubr.bf16.mxu0 %v2636
    %4619 = vmatmul.mubr.bf16.gmra.mrb[0].mxu0 %v1226
    %v4620 = vpop.f32.mrb[0].mxu0
    %v4621 = vadd.f32 %v4480, %v4620
    %v4622 = vpop.f32.mrb[0].mxu0
    %v4623 = vpop.f32.mrb[0].mxu0
    %v4624 = vadd.f32 %v4480, %v4623
    %v4625 = vpop.f32.mrb[0].mxu0
    %4626 = vmatprep.mubr.bf16.mxu0 %v2639
    %4627 = vmatmul.mubr.bf16.gmra.mrb[0].mxu0 %v1228
    %v4628 = vpop.f32.mrb[0].mxu0
    %v4629 = vadd.f32 %v4480, %v4628
    %v4630 = vpop.f32.mrb[0].mxu0
    %v4631 = vpop.f32.mrb[0].mxu0
    %v4632 = vadd.f32 %v4480, %v4631
    %v4633 = vpop.f32.mrb[0].mxu0
    %4634 = vmatprep.mubr.bf16.mxu0 %v2642
    %4635 = vmatmul.mubr.bf16.gmra.mrb[0].mxu0 %v1230
    %v4636 = vpop.f32.mrb[0].mxu0
    %v4637 = vadd.f32 %v4480, %v4636
    %v4638 = vpop.f32.mrb[0].mxu0
    %v4639 = vpop.f32.mrb[0].mxu0
    %v4640 = vadd.f32 %v4480, %v4639
    %v4641 = vpop.f32.mrb[0].mxu0
    %4642 = vdwg.mxu0
    %v4643 = vld [vmem:[%s37] sm:$0x1]
    %v4644 = vld [vmem:[%s25] sm:$0x1]
    %v4645 = vsel %vm1713, %v4517, 0.0
    %4646 = vadd.xlane.f32.xlu0 %v4645
    %v4647 = vpop.xlane.xlu0 %4646
    %v4648 = vsel %vm1713, %v4520, 0.0
    %4649 = vadd.xlane.f32.xlu0 %v4648
    %v4650 = vpop.xlane.xlu0 %4649
    %v4651 = vsel %vm1713, %v4525, 0.0
    %4652 = vadd.xlane.f32.xlu0 %v4651
    %v4653 = vpop.xlane.xlu0 %4652
    %v4654 = vsel %vm1713, %v4528, 0.0
    %4655 = vadd.xlane.f32.xlu0 %v4654
    %v4656 = vpop.xlane.xlu0 %4655
    %v4657 = vsel %vm1713, %v4533, 0.0
    %4658 = vadd.xlane.f32.xlu0 %v4657
    %v4659 = vpop.xlane.xlu0 %4658
    %v4660 = vsel %vm1713, %v4536, 0.0
    %4661 = vadd.xlane.f32.xlu0 %v4660
    %v4662 = vpop.xlane.xlu0 %4661
    %v4663 = vsel %vm1713, %v4541, 0.0
    %4664 = vadd.xlane.f32.xlu0 %v4663
    %v4665 = vpop.xlane.xlu0 %4664
    %v4666 = vsel %vm1713, %v4544, 0.0
    %4667 = vadd.xlane.f32.xlu0 %v4666
    %v4668 = vpop.xlane.xlu0 %4667
    %v4669 = vsel %vm1713, %v4549, 0.0
    %4670 = vadd.xlane.f32.xlu0 %v4669
    %v4671 = vpop.xlane.xlu0 %4670
    %v4672 = vsel %vm1713, %v4552, 0.0
    %4673 = vadd.xlane.f32.xlu0 %v4672
    %v4674 = vpop.xlane.xlu0 %4673
    %v4675 = vsel %vm1713, %v4557, 0.0
    %4676 = vadd.xlane.f32.xlu0 %v4675
    %v4677 = vpop.xlane.xlu0 %4676
    %v4678 = vsel %vm1713, %v4560, 0.0
    %4679 = vadd.xlane.f32.xlu0 %v4678
    %v4680 = vpop.xlane.xlu0 %4679
    %v4681 = vsel %vm1713, %v4565, 0.0
    %4682 = vadd.xlane.f32.xlu0 %v4681
    %v4683 = vpop.xlane.xlu0 %4682
    %v4684 = vsel %vm1713, %v4568, 0.0
    %4685 = vadd.xlane.f32.xlu0 %v4684
    %v4686 = vpop.xlane.xlu0 %4685
    %v4687 = vsel %vm1713, %v4573, 0.0
    %4688 = vadd.xlane.f32.xlu0 %v4687
    %v4689 = vpop.xlane.xlu0 %4688
    %v4690 = vsel %vm1713, %v4576, 0.0
    %4691 = vadd.xlane.f32.xlu0 %v4690
    %v4692 = vpop.xlane.xlu0 %4691
    %v4693 = vsel %vm1713, %v4581, 0.0
    %4694 = vadd.xlane.f32.xlu0 %v4693
    %v4695 = vpop.xlane.xlu0 %4694
    %v4696 = vsel %vm1713, %v4584, 0.0
    %4697 = vadd.xlane.f32.xlu0 %v4696
    %v4698 = vpop.xlane.xlu0 %4697
    %v4699 = vsel %vm1713, %v4589, 0.0
    %4700 = vadd.xlane.f32.xlu0 %v4699
    %v4701 = vpop.xlane.xlu0 %4700
    %v4702 = vsel %vm1713, %v4592, 0.0
    %4703 = vadd.xlane.f32.xlu0 %v4702
    %v4704 = vpop.xlane.xlu0 %4703
    %v4705 = vsel %vm1713, %v4597, 0.0
    %4706 = vadd.xlane.f32.xlu0 %v4705
    %v4707 = vpop.xlane.xlu0 %4706
    %v4708 = vsel %vm1713, %v4600, 0.0
    %4709 = vadd.xlane.f32.xlu0 %v4708
    %v4710 = vpop.xlane.xlu0 %4709
    %v4711 = vsel %vm1713, %v4605, 0.0
    %4712 = vadd.xlane.f32.xlu0 %v4711
    %v4713 = vpop.xlane.xlu0 %4712
    %v4714 = vsel %vm1713, %v4608, 0.0
    %4715 = vadd.xlane.f32.xlu0 %v4714
    %v4716 = vpop.xlane.xlu0 %4715
    %v4717 = vsel %vm1713, %v4613, 0.0
    %4718 = vadd.xlane.f32.xlu0 %v4717
    %v4719 = vpop.xlane.xlu0 %4718
    %v4720 = vsel %vm1713, %v4616, 0.0
    %4721 = vadd.xlane.f32.xlu0 %v4720
    %v4722 = vpop.xlane.xlu0 %4721
    %v4723 = vsel %vm1713, %v4621, 0.0
    %4724 = vadd.xlane.f32.xlu0 %v4723
    %v4725 = vpop.xlane.xlu0 %4724
    %v4726 = vsel %vm1713, %v4624, 0.0
    %4727 = vadd.xlane.f32.xlu0 %v4726
    %v4728 = vpop.xlane.xlu0 %4727
    %v4729 = vsel %vm1713, %v4629, 0.0
    %4730 = vadd.xlane.f32.xlu0 %v4729
    %v4731 = vpop.xlane.xlu0 %4730
    %v4732 = vsel %vm1713, %v4632, 0.0
    %4733 = vadd.xlane.f32.xlu0 %v4732
    %v4734 = vpop.xlane.xlu0 %4733
    %v4735 = vsel %vm1713, %v4637, 0.0
    %4736 = vadd.xlane.f32.xlu0 %v4735
    %v4737 = vpop.xlane.xlu0 %4736
    %v4738 = vsel %vm1713, %v4640, 0.0
    %4739 = vadd.xlane.f32.xlu0 %v4738
    %v4740 = vpop.xlane.xlu0 %4739
    %v4741 = vmul.f32 %v4647, %v2903
    %v4742 = vmul.f32 %v4650, %v2903
    %v4743 = vmul.f32 %v4653, %v2903
    %v4744 = vmul.f32 %v4656, %v2903
    %v4745 = vmul.f32 %v4659, %v2903
    %v4746 = vmul.f32 %v4662, %v2903
    %v4747 = vmul.f32 %v4665, %v2903
    %v4748 = vmul.f32 %v4668, %v2903
    %v4749 = vmul.f32 %v4671, %v2903
    %v4750 = vmul.f32 %v4674, %v2903
    %v4751 = vmul.f32 %v4677, %v2903
    %v4752 = vmul.f32 %v4680, %v2903
    %v4753 = vmul.f32 %v4683, %v2903
    %v4754 = vmul.f32 %v4686, %v2903
    %v4755 = vmul.f32 %v4689, %v2903
    %v4756 = vmul.f32 %v4692, %v2903
    %v4757 = vmul.f32 %v4695, %v2903
    %v4758 = vmul.f32 %v4698, %v2903
    %v4759 = vmul.f32 %v4701, %v2903
    %v4760 = vmul.f32 %v4704, %v2903
    %v4761 = vmul.f32 %v4707, %v2903
    %v4762 = vmul.f32 %v4710, %v2903
    %v4763 = vmul.f32 %v4713, %v2903
    %v4764 = vmul.f32 %v4716, %v2903
    %v4765 = vmul.f32 %v4719, %v2903
    %v4766 = vmul.f32 %v4722, %v2903
    %v4767 = vmul.f32 %v4725, %v2903
    %v4768 = vmul.f32 %v4728, %v2903
    %v4769 = vmul.f32 %v4731, %v2903
    %v4770 = vmul.f32 %v4734, %v2903
    %v4771 = vmul.f32 %v4737, %v2903
    %v4772 = vmul.f32 %v4740, %v2903
    %v4773 = vmul.f32 %v4517, %v4517
    %v4774 = vmul.f32 %v4520, %v4520
    %v4775 = vmul.f32 %v4525, %v4525
    %v4776 = vmul.f32 %v4528, %v4528
    %v4777 = vmul.f32 %v4533, %v4533
    %v4778 = vmul.f32 %v4536, %v4536
    %v4779 = vmul.f32 %v4541, %v4541
    %v4780 = vmul.f32 %v4544, %v4544
    %v4781 = vmul.f32 %v4549, %v4549
    %v4782 = vmul.f32 %v4552, %v4552
    %v4783 = vmul.f32 %v4557, %v4557
    %v4784 = vmul.f32 %v4560, %v4560
    %v4785 = vmul.f32 %v4565, %v4565
    %v4786 = vmul.f32 %v4568, %v4568
    %v4787 = vmul.f32 %v4573, %v4573
    %v4788 = vmul.f32 %v4576, %v4576
    %v4789 = vmul.f32 %v4581, %v4581
    %v4790 = vmul.f32 %v4584, %v4584
    %v4791 = vmul.f32 %v4589, %v4589
    %v4792 = vmul.f32 %v4592, %v4592
    %v4793 = vmul.f32 %v4597, %v4597
    %v4794 = vmul.f32 %v4600, %v4600
    %v4795 = vmul.f32 %v4605, %v4605
    %v4796 = vmul.f32 %v4608, %v4608
    %v4797 = vmul.f32 %v4613, %v4613
    %v4798 = vmul.f32 %v4616, %v4616
    %v4799 = vmul.f32 %v4621, %v4621
    %v4800 = vmul.f32 %v4624, %v4624
    %v4801 = vmul.f32 %v4629, %v4629
    %v4802 = vmul.f32 %v4632, %v4632
    %v4803 = vmul.f32 %v4637, %v4637
    %v4804 = vmul.f32 %v4640, %v4640
    %v4805 = vsel %vm1713, %v4773, 0.0
    %4806 = vadd.xlane.f32.xlu0 %v4805
    %v4807 = vpop.xlane.xlu0 %4806
    %v4808 = vsel %vm1713, %v4774, 0.0
    %4809 = vadd.xlane.f32.xlu0 %v4808
    %v4810 = vpop.xlane.xlu0 %4809
    %v4811 = vsel %vm1713, %v4775, 0.0
    %4812 = vadd.xlane.f32.xlu0 %v4811
    %v4813 = vpop.xlane.xlu0 %4812
    %v4814 = vsel %vm1713, %v4776, 0.0
    %4815 = vadd.xlane.f32.xlu0 %v4814
    %v4816 = vpop.xlane.xlu0 %4815
    %v4817 = vsel %vm1713, %v4777, 0.0
    %4818 = vadd.xlane.f32.xlu0 %v4817
    %v4819 = vpop.xlane.xlu0 %4818
    %v4820 = vsel %vm1713, %v4778, 0.0
    %4821 = vadd.xlane.f32.xlu0 %v4820
    %v4822 = vpop.xlane.xlu0 %4821
    %v4823 = vsel %vm1713, %v4779, 0.0
    %4824 = vadd.xlane.f32.xlu0 %v4823
    %v4825 = vpop.xlane.xlu0 %4824
    %v4826 = vsel %vm1713, %v4780, 0.0
    %4827 = vadd.xlane.f32.xlu0 %v4826
    %v4828 = vpop.xlane.xlu0 %4827
    %v4829 = vsel %vm1713, %v4781, 0.0
    %4830 = vadd.xlane.f32.xlu0 %v4829
    %v4831 = vpop.xlane.xlu0 %4830
    %v4832 = vsel %vm1713, %v4782, 0.0
    %4833 = vadd.xlane.f32.xlu0 %v4832
    %v4834 = vpop.xlane.xlu0 %4833
    %v4835 = vsel %vm1713, %v4783, 0.0
    %4836 = vadd.xlane.f32.xlu0 %v4835
    %v4837 = vpop.xlane.xlu0 %4836
    %v4838 = vsel %vm1713, %v4784, 0.0
    %4839 = vadd.xlane.f32.xlu0 %v4838
    %v4840 = vpop.xlane.xlu0 %4839
    %v4841 = vsel %vm1713, %v4785, 0.0
    %4842 = vadd.xlane.f32.xlu0 %v4841
    %v4843 = vpop.xlane.xlu0 %4842
    %v4844 = vsel %vm1713, %v4786, 0.0
    %4845 = vadd.xlane.f32.xlu0 %v4844
    %v4846 = vpop.xlane.xlu0 %4845
    %v4847 = vsel %vm1713, %v4787, 0.0
    %4848 = vadd.xlane.f32.xlu0 %v4847
    %v4849 = vpop.xlane.xlu0 %4848
    %v4850 = vsel %vm1713, %v4788, 0.0
    %4851 = vadd.xlane.f32.xlu0 %v4850
    %v4852 = vpop.xlane.xlu0 %4851
    %v4853 = vsel %vm1713, %v4789, 0.0
    %4854 = vadd.xlane.f32.xlu0 %v4853
    %v4855 = vpop.xlane.xlu0 %4854
    %v4856 = vsel %vm1713, %v4790, 0.0
    %4857 = vadd.xlane.f32.xlu0 %v4856
    %v4858 = vpop.xlane.xlu0 %4857
    %v4859 = vsel %vm1713, %v4791, 0.0
    %4860 = vadd.xlane.f32.xlu0 %v4859
    %v4861 = vpop.xlane.xlu0 %4860
    %v4862 = vsel %vm1713, %v4792, 0.0
    %4863 = vadd.xlane.f32.xlu0 %v4862
    %v4864 = vpop.xlane.xlu0 %4863
    %v4865 = vsel %vm1713, %v4793, 0.0
    %4866 = vadd.xlane.f32.xlu0 %v4865
    %v4867 = vpop.xlane.xlu0 %4866
    %v4868 = vsel %vm1713, %v4794, 0.0
    %4869 = vadd.xlane.f32.xlu0 %v4868
    %v4870 = vpop.xlane.xlu0 %4869
    %v4871 = vsel %vm1713, %v4795, 0.0
    %4872 = vadd.xlane.f32.xlu0 %v4871
    %v4873 = vpop.xlane.xlu0 %4872
    %v4874 = vsel %vm1713, %v4796, 0.0
    %4875 = vadd.xlane.f32.xlu0 %v4874
    %v4876 = vpop.xlane.xlu0 %4875
    %v4877 = vsel %vm1713, %v4797, 0.0
    %4878 = vadd.xlane.f32.xlu0 %v4877
    %v4879 = vpop.xlane.xlu0 %4878
    %v4880 = vsel %vm1713, %v4798, 0.0
    %4881 = vadd.xlane.f32.xlu0 %v4880
    %v4882 = vpop.xlane.xlu0 %4881
    %v4883 = vsel %vm1713, %v4799, 0.0
    %4884 = vadd.xlane.f32.xlu0 %v4883
    %v4885 = vpop.xlane.xlu0 %4884
    %v4886 = vsel %vm1713, %v4800, 0.0
    %4887 = vadd.xlane.f32.xlu0 %v4886
    %v4888 = vpop.xlane.xlu0 %4887
    %v4889 = vsel %vm1713, %v4801, 0.0
    %4890 = vadd.xlane.f32.xlu0 %v4889
    %v4891 = vpop.xlane.xlu0 %4890
    %v4892 = vsel %vm1713, %v4802, 0.0
    %4893 = vadd.xlane.f32.xlu0 %v4892
    %v4894 = vpop.xlane.xlu0 %4893
    %v4895 = vsel %vm1713, %v4803, 0.0
    %4896 = vadd.xlane.f32.xlu0 %v4895
    %v4897 = vpop.xlane.xlu0 %4896
    %v4898 = vsel %vm1713, %v4804, 0.0
    %4899 = vadd.xlane.f32.xlu0 %v4898
    %v4900 = vpop.xlane.xlu0 %4899
    %v4901 = vmul.f32 %v4807, %v2903
    %v4902 = vmul.f32 %v4810, %v2903
    %v4903 = vmul.f32 %v4813, %v2903
    %v4904 = vmul.f32 %v4816, %v2903
    %v4905 = vmul.f32 %v4819, %v2903
    %v4906 = vmul.f32 %v4822, %v2903
    %v4907 = vmul.f32 %v4825, %v2903
    %v4908 = vmul.f32 %v4828, %v2903
    %v4909 = vmul.f32 %v4831, %v2903
    %v4910 = vmul.f32 %v4834, %v2903
    %v4911 = vmul.f32 %v4837, %v2903
    %v4912 = vmul.f32 %v4840, %v2903
    %v4913 = vmul.f32 %v4843, %v2903
    %v4914 = vmul.f32 %v4846, %v2903
    %v4915 = vmul.f32 %v4849, %v2903
    %v4916 = vmul.f32 %v4852, %v2903
    %v4917 = vmul.f32 %v4855, %v2903
    %v4918 = vmul.f32 %v4858, %v2903
    %v4919 = vmul.f32 %v4861, %v2903
    %v4920 = vmul.f32 %v4864, %v2903
    %v4921 = vmul.f32 %v4867, %v2903
    %v4922 = vmul.f32 %v4870, %v2903
    %v4923 = vmul.f32 %v4873, %v2903
    %v4924 = vmul.f32 %v4876, %v2903
    %v4925 = vmul.f32 %v4879, %v2903
    %v4926 = vmul.f32 %v4882, %v2903
    %v4927 = vmul.f32 %v4885, %v2903
    %v4928 = vmul.f32 %v4888, %v2903
    %v4929 = vmul.f32 %v4891, %v2903
    %v4930 = vmul.f32 %v4894, %v2903
    %v4931 = vmul.f32 %v4897, %v2903
    %v4932 = vmul.f32 %v4900, %v2903
    %v4933 = vmul.f32 %v4741, %v4741
    %v4934 = vmul.f32 %v4742, %v4742
    %v4935 = vmul.f32 %v4743, %v4743
    %v4936 = vmul.f32 %v4744, %v4744
    %v4937 = vmul.f32 %v4745, %v4745
    %v4938 = vmul.f32 %v4746, %v4746
    %v4939 = vmul.f32 %v4747, %v4747
    %v4940 = vmul.f32 %v4748, %v4748
    %v4941 = vmul.f32 %v4749, %v4749
    %v4942 = vmul.f32 %v4750, %v4750
    %v4943 = vmul.f32 %v4751, %v4751
    %v4944 = vmul.f32 %v4752, %v4752
    %v4945 = vmul.f32 %v4753, %v4753
    %v4946 = vmul.f32 %v4754, %v4754
    %v4947 = vmul.f32 %v4755, %v4755
    %v4948 = vmul.f32 %v4756, %v4756
    %v4949 = vmul.f32 %v4757, %v4757
    %v4950 = vmul.f32 %v4758, %v4758
    %v4951 = vmul.f32 %v4759, %v4759
    %v4952 = vmul.f32 %v4760, %v4760
    %v4953 = vmul.f32 %v4761, %v4761
    %v4954 = vmul.f32 %v4762, %v4762
    %v4955 = vmul.f32 %v4763, %v4763
    %v4956 = vmul.f32 %v4764, %v4764
    %v4957 = vmul.f32 %v4765, %v4765
    %v4958 = vmul.f32 %v4766, %v4766
    %v4959 = vmul.f32 %v4767, %v4767
    %v4960 = vmul.f32 %v4768, %v4768
    %v4961 = vmul.f32 %v4769, %v4769
    %v4962 = vmul.f32 %v4770, %v4770
    %v4963 = vmul.f32 %v4771, %v4771
    %v4964 = vmul.f32 %v4772, %v4772
    %v4965 = vsub.f32 %v4901, %v4933
    %v4966 = vsub.f32 %v4902, %v4934
    %v4967 = vsub.f32 %v4903, %v4935
    %v4968 = vsub.f32 %v4904, %v4936
    %v4969 = vsub.f32 %v4905, %v4937
    %v4970 = vsub.f32 %v4906, %v4938
    %v4971 = vsub.f32 %v4907, %v4939
    %v4972 = vsub.f32 %v4908, %v4940
    %v4973 = vsub.f32 %v4909, %v4941
    %v4974 = vsub.f32 %v4910, %v4942
    %v4975 = vsub.f32 %v4911, %v4943
    %v4976 = vsub.f32 %v4912, %v4944
    %v4977 = vsub.f32 %v4913, %v4945
    %v4978 = vsub.f32 %v4914, %v4946
    %v4979 = vsub.f32 %v4915, %v4947
    %v4980 = vsub.f32 %v4916, %v4948
    %v4981 = vsub.f32 %v4917, %v4949
    %v4982 = vsub.f32 %v4918, %v4950
    %v4983 = vsub.f32 %v4919, %v4951
    %v4984 = vsub.f32 %v4920, %v4952
    %v4985 = vsub.f32 %v4921, %v4953
    %v4986 = vsub.f32 %v4922, %v4954
    %v4987 = vsub.f32 %v4923, %v4955
    %v4988 = vsub.f32 %v4924, %v4956
    %v4989 = vsub.f32 %v4925, %v4957
    %v4990 = vsub.f32 %v4926, %v4958
    %v4991 = vsub.f32 %v4927, %v4959
    %v4992 = vsub.f32 %v4928, %v4960
    %v4993 = vsub.f32 %v4929, %v4961
    %v4994 = vsub.f32 %v4930, %v4962
    %v4995 = vsub.f32 %v4931, %v4963
    %v4996 = vsub.f32 %v4932, %v4964
    %v4997 = vmax.f32 %v4965, 0.0
    %v4998 = vmax.f32 %v4966, 0.0
    %v4999 = vmax.f32 %v4967, 0.0
    %v5000 = vmax.f32 %v4968, 0.0
    %v5001 = vmax.f32 %v4969, 0.0
    %v5002 = vmax.f32 %v4970, 0.0
    %v5003 = vmax.f32 %v4971, 0.0
    %v5004 = vmax.f32 %v4972, 0.0
    %v5005 = vmax.f32 %v4973, 0.0
    %v5006 = vmax.f32 %v4974, 0.0
    %v5007 = vmax.f32 %v4975, 0.0
    %v5008 = vmax.f32 %v4976, 0.0
    %v5009 = vmax.f32 %v4977, 0.0
    %v5010 = vmax.f32 %v4978, 0.0
    %v5011 = vmax.f32 %v4979, 0.0
    %v5012 = vmax.f32 %v4980, 0.0
    %v5013 = vmax.f32 %v4981, 0.0
    %v5014 = vmax.f32 %v4982, 0.0
    %v5015 = vmax.f32 %v4983, 0.0
    %v5016 = vmax.f32 %v4984, 0.0
    %v5017 = vmax.f32 %v4985, 0.0
    %v5018 = vmax.f32 %v4986, 0.0
    %v5019 = vmax.f32 %v4987, 0.0
    %v5020 = vmax.f32 %v4988, 0.0
    %v5021 = vmax.f32 %v4989, 0.0
    %v5022 = vmax.f32 %v4990, 0.0
    %v5023 = vmax.f32 %v4991, 0.0
    %v5024 = vmax.f32 %v4992, 0.0
    %v5025 = vmax.f32 %v4993, 0.0
    %v5026 = vmax.f32 %v4994, 0.0
    %v5027 = vmax.f32 %v4995, 0.0
    %v5028 = vmax.f32 %v4996, 0.0
    %v5029 = vsub.f32 %v4517, %v4741
    %v5030 = vsub.f32 %v4520, %v4742
    %v5031 = vsub.f32 %v4525, %v4743
    %v5032 = vsub.f32 %v4528, %v4744
    %v5033 = vsub.f32 %v4533, %v4745
    %v5034 = vsub.f32 %v4536, %v4746
    %v5035 = vsub.f32 %v4541, %v4747
    %v5036 = vsub.f32 %v4544, %v4748
    %v5037 = vsub.f32 %v4549, %v4749
    %v5038 = vsub.f32 %v4552, %v4750
    %v5039 = vsub.f32 %v4557, %v4751
    %v5040 = vsub.f32 %v4560, %v4752
    %v5041 = vsub.f32 %v4565, %v4753
    %v5042 = vsub.f32 %v4568, %v4754
    %v5043 = vsub.f32 %v4573, %v4755
    %v5044 = vsub.f32 %v4576, %v4756
    %v5045 = vsub.f32 %v4581, %v4757
    %v5046 = vsub.f32 %v4584, %v4758
    %v5047 = vsub.f32 %v4589, %v4759
    %v5048 = vsub.f32 %v4592, %v4760
    %v5049 = vsub.f32 %v4597, %v4761
    %v5050 = vsub.f32 %v4600, %v4762
    %v5051 = vsub.f32 %v4605, %v4763
    %v5052 = vsub.f32 %v4608, %v4764
    %v5053 = vsub.f32 %v4613, %v4765
    %v5054 = vsub.f32 %v4616, %v4766
    %v5055 = vsub.f32 %v4621, %v4767
    %v5056 = vsub.f32 %v4624, %v4768
    %v5057 = vsub.f32 %v4629, %v4769
    %v5058 = vsub.f32 %v4632, %v4770
    %v5059 = vsub.f32 %v4637, %v4771
    %v5060 = vsub.f32 %v4640, %v4772
    %v5061 = vadd.f32 %v4997, 1e-05
    %v5062 = vadd.f32 %v4998, 1e-05
    %v5063 = vadd.f32 %v4999, 1e-05
    %v5064 = vadd.f32 %v5000, 1e-05
    %v5065 = vadd.f32 %v5001, 1e-05
    %v5066 = vadd.f32 %v5002, 1e-05
    %v5067 = vadd.f32 %v5003, 1e-05
    %v5068 = vadd.f32 %v5004, 1e-05
    %v5069 = vadd.f32 %v5005, 1e-05
    %v5070 = vadd.f32 %v5006, 1e-05
    %v5071 = vadd.f32 %v5007, 1e-05
    %v5072 = vadd.f32 %v5008, 1e-05
    %v5073 = vadd.f32 %v5009, 1e-05
    %v5074 = vadd.f32 %v5010, 1e-05
    %v5075 = vadd.f32 %v5011, 1e-05
    %v5076 = vadd.f32 %v5012, 1e-05
    %v5077 = vadd.f32 %v5013, 1e-05
    %v5078 = vadd.f32 %v5014, 1e-05
    %v5079 = vadd.f32 %v5015, 1e-05
    %v5080 = vadd.f32 %v5016, 1e-05
    %v5081 = vadd.f32 %v5017, 1e-05
    %v5082 = vadd.f32 %v5018, 1e-05
    %v5083 = vadd.f32 %v5019, 1e-05
    %v5084 = vadd.f32 %v5020, 1e-05
    %v5085 = vadd.f32 %v5021, 1e-05
    %v5086 = vadd.f32 %v5022, 1e-05
    %v5087 = vadd.f32 %v5023, 1e-05
    %v5088 = vadd.f32 %v5024, 1e-05
    %v5089 = vadd.f32 %v5025, 1e-05
    %v5090 = vadd.f32 %v5026, 1e-05
    %v5091 = vadd.f32 %v5027, 1e-05
    %v5092 = vadd.f32 %v5028, 1e-05
    %v5093 = vrsqrt.pop %v5061
    %v5094 = vrsqrt.pop %v5062
    %v5095 = vrsqrt.pop %v5063
    %v5096 = vrsqrt.pop %v5064
    %v5097 = vrsqrt.pop %v5065
    %v5098 = vrsqrt.pop %v5066
    %v5099 = vrsqrt.pop %v5067
    %v5100 = vrsqrt.pop %v5068
    %v5101 = vrsqrt.pop %v5069
    %v5102 = vrsqrt.pop %v5070
    %v5103 = vrsqrt.pop %v5071
    %v5104 = vrsqrt.pop %v5072
    %v5105 = vrsqrt.pop %v5073
    %v5106 = vrsqrt.pop %v5074
    %v5107 = vrsqrt.pop %v5075
    %v5108 = vrsqrt.pop %v5076
    %v5109 = vrsqrt.pop %v5077
    %v5110 = vrsqrt.pop %v5078
    %v5111 = vrsqrt.pop %v5079
    %v5112 = vrsqrt.pop %v5080
    %v5113 = vrsqrt.pop %v5081
    %v5114 = vrsqrt.pop %v5082
    %v5115 = vrsqrt.pop %v5083
    %v5116 = vrsqrt.pop %v5084
    %v5117 = vrsqrt.pop %v5085
    %v5118 = vrsqrt.pop %v5086
    %v5119 = vrsqrt.pop %v5087
    %v5120 = vrsqrt.pop %v5088
    %v5121 = vrsqrt.pop %v5089
    %v5122 = vrsqrt.pop %v5090
    %v5123 = vrsqrt.pop %v5091
    %v5124 = vrsqrt.pop %v5092
    %v5125 = vmul.f32 %v5029, %v5093
    %v5126 = vmul.f32 %v5030, %v5094
    %v5127 = vmul.f32 %v5031, %v5095
    %v5128 = vmul.f32 %v5032, %v5096
    %v5129 = vmul.f32 %v5033, %v5097
    %v5130 = vmul.f32 %v5034, %v5098
    %v5131 = vmul.f32 %v5035, %v5099
    %v5132 = vmul.f32 %v5036, %v5100
    %v5133 = vmul.f32 %v5037, %v5101
    %v5134 = vmul.f32 %v5038, %v5102
    %v5135 = vmul.f32 %v5039, %v5103
    %v5136 = vmul.f32 %v5040, %v5104
    %v5137 = vmul.f32 %v5041, %v5105
    %v5138 = vmul.f32 %v5042, %v5106
    %v5139 = vmul.f32 %v5043, %v5107
    %v5140 = vmul.f32 %v5044, %v5108
    %v5141 = vmul.f32 %v5045, %v5109
    %v5142 = vmul.f32 %v5046, %v5110
    %v5143 = vmul.f32 %v5047, %v5111
    %v5144 = vmul.f32 %v5048, %v5112
    %v5145 = vmul.f32 %v5049, %v5113
    %v5146 = vmul.f32 %v5050, %v5114
    %v5147 = vmul.f32 %v5051, %v5115
    %v5148 = vmul.f32 %v5052, %v5116
    %v5149 = vmul.f32 %v5053, %v5117
    %v5150 = vmul.f32 %v5054, %v5118
    %v5151 = vmul.f32 %v5055, %v5119
    %v5152 = vmul.f32 %v5056, %v5120
    %v5153 = vmul.f32 %v5057, %v5121
    %v5154 = vmul.f32 %v5058, %v5122
    %v5155 = vmul.f32 %v5059, %v5123
    %v5156 = vmul.f32 %v5060, %v5124
    %v5158 = vlaneseq
    %v5159 = vshrl.u32 %v5158, 7
    %v5160 = vsub.s32 0, %v5159
    %v5161 = vrot.slane %v4643, %v5160
    %v5163 = vmul.f32 %v5125, %v5161
    %v5164 = vmul.f32 %v5126, %v5161
    %v5165 = vmul.f32 %v5127, %v5161
    %v5166 = vmul.f32 %v5128, %v5161
    %v5167 = vmul.f32 %v5129, %v5161
    %v5168 = vmul.f32 %v5130, %v5161
    %v5169 = vmul.f32 %v5131, %v5161
    %v5170 = vmul.f32 %v5132, %v5161
    %v5171 = vmul.f32 %v5133, %v5161
    %v5172 = vmul.f32 %v5134, %v5161
    %v5173 = vmul.f32 %v5135, %v5161
    %v5174 = vmul.f32 %v5136, %v5161
    %v5175 = vmul.f32 %v5137, %v5161
    %v5176 = vmul.f32 %v5138, %v5161
    %v5177 = vmul.f32 %v5139, %v5161
    %v5178 = vmul.f32 %v5140, %v5161
    %v5179 = vmul.f32 %v5141, %v5161
    %v5180 = vmul.f32 %v5142, %v5161
    %v5181 = vmul.f32 %v5143, %v5161
    %v5182 = vmul.f32 %v5144, %v5161
    %v5183 = vmul.f32 %v5145, %v5161
    %v5184 = vmul.f32 %v5146, %v5161
    %v5185 = vmul.f32 %v5147, %v5161
    %v5186 = vmul.f32 %v5148, %v5161
    %v5187 = vmul.f32 %v5149, %v5161
    %v5188 = vmul.f32 %v5150, %v5161
    %v5189 = vmul.f32 %v5151, %v5161
    %v5190 = vmul.f32 %v5152, %v5161
    %v5191 = vmul.f32 %v5153, %v5161
    %v5192 = vmul.f32 %v5154, %v5161
    %v5193 = vmul.f32 %v5155, %v5161
    %v5194 = vmul.f32 %v5156, %v5161
    %v5196 = vlaneseq
    %v5197 = vshrl.u32 %v5196, 7
    %v5198 = vsub.s32 0, %v5197
    %v5199 = vrot.slane %v4644, %v5198
    %v5201 = vadd.f32 %v5163, %v5199
    %v5202 = vadd.f32 %v5164, %v5199
    %v5203 = vadd.f32 %v5165, %v5199
    %v5204 = vadd.f32 %v5166, %v5199
    %v5205 = vadd.f32 %v5167, %v5199
    %v5206 = vadd.f32 %v5168, %v5199
    %v5207 = vadd.f32 %v5169, %v5199
    %v5208 = vadd.f32 %v5170, %v5199
    %v5209 = vadd.f32 %v5171, %v5199
    %v5210 = vadd.f32 %v5172, %v5199
    %v5211 = vadd.f32 %v5173, %v5199
    %v5212 = vadd.f32 %v5174, %v5199
    %v5213 = vadd.f32 %v5175, %v5199
    %v5214 = vadd.f32 %v5176, %v5199
    %v5215 = vadd.f32 %v5177, %v5199
    %v5216 = vadd.f32 %v5178, %v5199
    %v5217 = vadd.f32 %v5179, %v5199
    %v5218 = vadd.f32 %v5180, %v5199
    %v5219 = vadd.f32 %v5181, %v5199
    %v5220 = vadd.f32 %v5182, %v5199
    %v5221 = vadd.f32 %v5183, %v5199
    %v5222 = vadd.f32 %v5184, %v5199
    %v5223 = vadd.f32 %v5185, %v5199
    %v5224 = vadd.f32 %v5186, %v5199
    %v5225 = vadd.f32 %v5187, %v5199
    %v5226 = vadd.f32 %v5188, %v5199
    %v5227 = vadd.f32 %v5189, %v5199
    %v5228 = vadd.f32 %v5190, %v5199
    %v5229 = vadd.f32 %v5191, %v5199
    %v5230 = vadd.f32 %v5192, %v5199
    %v5231 = vadd.f32 %v5193, %v5199
    %v5232 = vadd.f32 %v5194, %v5199
    %v5233 = vmax.f32 %v5201, 0.0
    %v5234 = vmax.f32 %v5202, 0.0
    %v5235 = vmax.f32 %v5203, 0.0
    %v5236 = vmax.f32 %v5204, 0.0
    %v5237 = vmax.f32 %v5205, 0.0
    %v5238 = vmax.f32 %v5206, 0.0
    %v5239 = vmax.f32 %v5207, 0.0
    %v5240 = vmax.f32 %v5208, 0.0
    %v5241 = vmax.f32 %v5209, 0.0
    %v5242 = vmax.f32 %v5210, 0.0
    %v5243 = vmax.f32 %v5211, 0.0
    %v5244 = vmax.f32 %v5212, 0.0
    %v5245 = vmax.f32 %v5213, 0.0
    %v5246 = vmax.f32 %v5214, 0.0
    %v5247 = vmax.f32 %v5215, 0.0
    %v5248 = vmax.f32 %v5216, 0.0
    %v5249 = vmax.f32 %v5217, 0.0
    %v5250 = vmax.f32 %v5218, 0.0
    %v5251 = vmax.f32 %v5219, 0.0
    %v5252 = vmax.f32 %v5220, 0.0
    %v5253 = vmax.f32 %v5221, 0.0
    %v5254 = vmax.f32 %v5222, 0.0
    %v5255 = vmax.f32 %v5223, 0.0
    %v5256 = vmax.f32 %v5224, 0.0
    %v5257 = vmax.f32 %v5225, 0.0
    %v5258 = vmax.f32 %v5226, 0.0
    %v5259 = vmax.f32 %v5227, 0.0
    %v5260 = vmax.f32 %v5228, 0.0
    %v5261 = vmax.f32 %v5229, 0.0
    %v5262 = vmax.f32 %v5230, 0.0
    %v5263 = vmax.f32 %v5231, 0.0
    %v5264 = vmax.f32 %v5232, 0.0
    %v5265 = vld [vmem:[%s41] sm:$0xf]
    %v5266 = vld [vmem:[%s41 + $0x4] sm:$0xf]
    %v5267 = vld [vmem:[%s41 + $0x8] sm:$0xf]
    %v5268 = vld [vmem:[%s41 + $0xc] sm:$0xf]
    %v5269 = vld [vmem:[%s41 + $0x10] sm:$0xf]
    %v5270 = vld [vmem:[%s41 + $0x14] sm:$0xf]
    %v5271 = vld [vmem:[%s41 + $0x18] sm:$0xf]
    %v5272 = vld [vmem:[%s41 + $0x1c] sm:$0xf]
    %v5273 = vpack.c.bf16 %v5234, %v5233
    %v5274 = vpack.c.bf16 %v5236, %v5235
    %v5275 = vpack.c.bf16 %v5238, %v5237
    %v5276 = vpack.c.bf16 %v5240, %v5239
    %v5277 = vpack.c.bf16 %v5242, %v5241
    %v5278 = vpack.c.bf16 %v5244, %v5243
    %v5279 = vpack.c.bf16 %v5246, %v5245
    %v5280 = vpack.c.bf16 %v5248, %v5247
    %v5281 = vpack.c.bf16 %v5250, %v5249
    %v5282 = vpack.c.bf16 %v5252, %v5251
    %v5283 = vpack.c.bf16 %v5254, %v5253
    %v5284 = vpack.c.bf16 %v5256, %v5255
    %v5285 = vpack.c.bf16 %v5258, %v5257
    %v5286 = vpack.c.bf16 %v5260, %v5259
    %v5287 = vpack.c.bf16 %v5262, %v5261
    %v5288 = vpack.c.bf16 %v5264, %v5263
    %v5289 = vld [vmem:[%s27] sm:$0x1]
    %v5291 = vlaneseq
    %v5292 = vshrl.u32 %v5291, 7
    %v5293 = vsub.s32 0, %v5292
    %v5294 = vrot.slane %v5289, %v5293
    %v5304 = vunpack.c.l.b16 %v5265
    %v5305 = vunpack.c.l.b16 %v5266
    %v5306 = vunpack.c.l.b16 %v5267
    %v5307 = vunpack.c.l.b16 %v5268
    %v5308 = vunpack.c.l.b16 %v5269
    %v5309 = vunpack.c.l.b16 %v5270
    %v5310 = vunpack.c.l.b16 %v5271
    %v5311 = vunpack.c.l.b16 %v5272
    %v5312 = vpack.c.b16 %v5305, %v5304
    %v5313 = vpack.c.b16 %v5307, %v5306
    %v5314 = vpack.c.b16 %v5309, %v5308
    %v5315 = vpack.c.b16 %v5311, %v5310
    %v5321 = vsel %vm1713, %v5273, 0
    %v5324 = vsel %vm1713, %v5274, 0
    %v5327 = vsel %vm1713, %v5275, 0
    %v5330 = vsel %vm1713, %v5276, 0
    %v5333 = vsel %vm1713, %v5277, 0
    %v5336 = vsel %vm1713, %v5278, 0
    %v5339 = vsel %vm1713, %v5279, 0
    %v5342 = vsel %vm1713, %v5280, 0
    %v5345 = vsel %vm1713, %v5281, 0
    %v5348 = vsel %vm1713, %v5282, 0
    %v5351 = vsel %vm1713, %v5283, 0
    %v5354 = vsel %vm1713, %v5284, 0
    %v5357 = vsel %vm1713, %v5285, 0
    %v5360 = vsel %vm1713, %v5286, 0
    %v5363 = vsel %vm1713, %v5287, 0
    %v5366 = vsel %vm1713, %v5288, 0
    %5368 = vmatprep.subr.bf16.mxu0 0
    %5369 = vmatpush1.bf16.msra.mxu0 %v5312
    %5370 = vmatprep.subr.bf16.mxu0 0
    %5371 = vmatpush1.bf16.msra.mxu0 %v5313
    %5372 = vmatprep.subr.bf16.mxu0 0
    %5373 = vmatpush1.bf16.msra.mxu0 %v5314
    %5374 = vmatprep.subr.bf16.mxu0 0
    %5375 = vmatpush1.bf16.msra.mxu0 %v5315
    %5376 = vmatprep.subr.bf16.mxu0 0
    %5377 = vmatpush1.bf16.msra.mxu0 0
    %5378 = vmatprep.subr.bf16.mxu0 0
    %5379 = vmatpush1.bf16.msra.mxu0 0
    %5380 = vmatprep.subr.bf16.mxu0 0
    %5381 = vmatpush1.bf16.msra.mxu0 0
    %5382 = vmatprep.subr.bf16.mxu0 0
    %5383 = vmatpush1.bf16.msra.mxu0 0
    %5384 = vmatprep.subr.bf16.mxu0 0
    %5385 = vmatpush1.bf16.msra.mxu0 0
    %5386 = vmatprep.subr.bf16.mxu0 0
    %5387 = vmatpush1.bf16.msra.mxu0 0
    %5388 = vmatprep.subr.bf16.mxu0 0
    %5389 = vmatpush1.bf16.msra.mxu0 0
    %5390 = vmatprep.subr.bf16.mxu0 0
    %5391 = vmatpush1.bf16.msra.mxu0 0
    %5392 = vmatprep.subr.bf16.mxu0 0
    %5393 = vmatpush1.bf16.msra.mxu0 0
    %5394 = vmatprep.subr.bf16.mxu0 0
    %5395 = vmatpush1.bf16.msra.mxu0 0
    %5396 = vmatprep.subr.bf16.mxu0 0
    %5397 = vmatpush1.bf16.msra.mxu0 0
    %5398 = vmatprep.subr.bf16.mxu0 0
    %5399 = vmatpush1.bf16.msra.mxu0 0
    %5400 = vmatprep.mubr.bf16.mxu0 0
    %5401 = vmatmul.mubr.bf16.gmra.mrb[0].mxu0 %v5321
    %v5402 = vpop.f32.mrb[0].mxu0
    %v5403 = vadd.f32 %v5294, %v5402
    %v5404 = vpop.f32.mrb[0].mxu0
    %v5405 = vpop.f32.mrb[0].mxu0
    %v5406 = vadd.f32 %v5294, %v5405
    %v5407 = vpop.f32.mrb[0].mxu0
    %5408 = vmatprep.mubr.bf16.mxu0 0
    %5409 = vmatmul.mubr.bf16.gmra.mrb[0].mxu0 %v5324
    %v5410 = vpop.f32.mrb[0].mxu0
    %v5411 = vadd.f32 %v5294, %v5410
    %v5412 = vpop.f32.mrb[0].mxu0
    %v5413 = vpop.f32.mrb[0].mxu0
    %v5414 = vadd.f32 %v5294, %v5413
    %v5415 = vpop.f32.mrb[0].mxu0
    %5416 = vmatprep.mubr.bf16.mxu0 0
    %5417 = vmatmul.mubr.bf16.gmra.mrb[0].mxu0 %v5327
    %v5418 = vpop.f32.mrb[0].mxu0
    %v5419 = vadd.f32 %v5294, %v5418
    %v5420 = vpop.f32.mrb[0].mxu0
    %v5421 = vpop.f32.mrb[0].mxu0
    %v5422 = vadd.f32 %v5294, %v5421
    %v5423 = vpop.f32.mrb[0].mxu0
    %5424 = vmatprep.mubr.bf16.mxu0 0
    %5425 = vmatmul.mubr.bf16.gmra.mrb[0].mxu0 %v5330
    %v5426 = vpop.f32.mrb[0].mxu0
    %v5427 = vadd.f32 %v5294, %v5426
    %v5428 = vpop.f32.mrb[0].mxu0
    %v5429 = vpop.f32.mrb[0].mxu0
    %v5430 = vadd.f32 %v5294, %v5429
    %v5431 = vpop.f32.mrb[0].mxu0
    %5432 = vmatprep.mubr.bf16.mxu0 0
    %5433 = vmatmul.mubr.bf16.gmra.mrb[0].mxu0 %v5333
    %v5434 = vpop.f32.mrb[0].mxu0
    %v5435 = vadd.f32 %v5294, %v5434
    %v5436 = vpop.f32.mrb[0].mxu0
    %v5437 = vpop.f32.mrb[0].mxu0
    %v5438 = vadd.f32 %v5294, %v5437
    %v5439 = vpop.f32.mrb[0].mxu0
    %5440 = vmatprep.mubr.bf16.mxu0 0
    %5441 = vmatmul.mubr.bf16.gmra.mrb[0].mxu0 %v5336
    %v5442 = vpop.f32.mrb[0].mxu0
    %v5443 = vadd.f32 %v5294, %v5442
    %v5444 = vpop.f32.mrb[0].mxu0
    %v5445 = vpop.f32.mrb[0].mxu0
    %v5446 = vadd.f32 %v5294, %v5445
    %v5447 = vpop.f32.mrb[0].mxu0
    %5448 = vmatprep.mubr.bf16.mxu0 0
    %5449 = vmatmul.mubr.bf16.gmra.mrb[0].mxu0 %v5339
    %v5450 = vpop.f32.mrb[0].mxu0
    %v5451 = vadd.f32 %v5294, %v5450
    %v5452 = vpop.f32.mrb[0].mxu0
    %v5453 = vpop.f32.mrb[0].mxu0
    %v5454 = vadd.f32 %v5294, %v5453
    %v5455 = vpop.f32.mrb[0].mxu0
    %5456 = vmatprep.mubr.bf16.mxu0 0
    %5457 = vmatmul.mubr.bf16.gmra.mrb[0].mxu0 %v5342
    %v5458 = vpop.f32.mrb[0].mxu0
    %v5459 = vadd.f32 %v5294, %v5458
    %v5460 = vpop.f32.mrb[0].mxu0
    %v5461 = vpop.f32.mrb[0].mxu0
    %v5462 = vadd.f32 %v5294, %v5461
    %v5463 = vpop.f32.mrb[0].mxu0
    %5464 = vmatprep.mubr.bf16.mxu0 0
    %5465 = vmatmul.mubr.bf16.gmra.mrb[0].mxu0 %v5345
    %v5466 = vpop.f32.mrb[0].mxu0
    %v5467 = vadd.f32 %v5294, %v5466
    %v5468 = vpop.f32.mrb[0].mxu0
    %v5469 = vpop.f32.mrb[0].mxu0
    %v5470 = vadd.f32 %v5294, %v5469
    %v5471 = vpop.f32.mrb[0].mxu0
    %5472 = vmatprep.mubr.bf16.mxu0 0
    %5473 = vmatmul.mubr.bf16.gmra.mrb[0].mxu0 %v5348
    %v5474 = vpop.f32.mrb[0].mxu0
    %v5475 = vadd.f32 %v5294, %v5474
    %v5476 = vpop.f32.mrb[0].mxu0
    %v5477 = vpop.f32.mrb[0].mxu0
    %v5478 = vadd.f32 %v5294, %v5477
    %v5479 = vpop.f32.mrb[0].mxu0
    %5480 = vmatprep.mubr.bf16.mxu0 0
    %5481 = vmatmul.mubr.bf16.gmra.mrb[0].mxu0 %v5351
    %v5482 = vpop.f32.mrb[0].mxu0
    %v5483 = vadd.f32 %v5294, %v5482
    %v5484 = vpop.f32.mrb[0].mxu0
    %v5485 = vpop.f32.mrb[0].mxu0
    %v5486 = vadd.f32 %v5294, %v5485
    %v5487 = vpop.f32.mrb[0].mxu0
    %5488 = vmatprep.mubr.bf16.mxu0 0
    %5489 = vmatmul.mubr.bf16.gmra.mrb[0].mxu0 %v5354
    %v5490 = vpop.f32.mrb[0].mxu0
    %v5491 = vadd.f32 %v5294, %v5490
    %v5492 = vpop.f32.mrb[0].mxu0
    %v5493 = vpop.f32.mrb[0].mxu0
    %v5494 = vadd.f32 %v5294, %v5493
    %v5495 = vpop.f32.mrb[0].mxu0
    %5496 = vmatprep.mubr.bf16.mxu0 0
    %5497 = vmatmul.mubr.bf16.gmra.mrb[0].mxu0 %v5357
    %v5498 = vpop.f32.mrb[0].mxu0
    %v5499 = vadd.f32 %v5294, %v5498
    %v5500 = vpop.f32.mrb[0].mxu0
    %v5501 = vpop.f32.mrb[0].mxu0
    %v5502 = vadd.f32 %v5294, %v5501
    %v5503 = vpop.f32.mrb[0].mxu0
    %5504 = vmatprep.mubr.bf16.mxu0 0
    %5505 = vmatmul.mubr.bf16.gmra.mrb[0].mxu0 %v5360
    %v5506 = vpop.f32.mrb[0].mxu0
    %v5507 = vadd.f32 %v5294, %v5506
    %v5508 = vpop.f32.mrb[0].mxu0
    %v5509 = vpop.f32.mrb[0].mxu0
    %v5510 = vadd.f32 %v5294, %v5509
    %v5511 = vpop.f32.mrb[0].mxu0
    %5512 = vmatprep.mubr.bf16.mxu0 0
    %5513 = vmatmul.mubr.bf16.gmra.mrb[0].mxu0 %v5363
    %v5514 = vpop.f32.mrb[0].mxu0
    %v5515 = vadd.f32 %v5294, %v5514
    %v5516 = vpop.f32.mrb[0].mxu0
    %v5517 = vpop.f32.mrb[0].mxu0
    %v5518 = vadd.f32 %v5294, %v5517
    %v5519 = vpop.f32.mrb[0].mxu0
    %5520 = vmatprep.mubr.bf16.mxu0 0
    %5521 = vmatmul.mubr.bf16.gmra.mrb[0].mxu0 %v5366
    %v5522 = vpop.f32.mrb[0].mxu0
    %v5523 = vadd.f32 %v5294, %v5522
    %v5524 = vpop.f32.mrb[0].mxu0
    %v5525 = vpop.f32.mrb[0].mxu0
    %v5526 = vadd.f32 %v5294, %v5525
    %v5527 = vpop.f32.mrb[0].mxu0
    %5528 = vdwg.mxu0
    %v5529 = vpack.c.bf16 %v5406, %v5403
    %v5530 = vpack.c.bf16 %v5414, %v5411
    %v5531 = vpack.c.bf16 %v5422, %v5419
    %v5532 = vpack.c.bf16 %v5430, %v5427
    %v5533 = vpack.c.bf16 %v5438, %v5435
    %v5534 = vpack.c.bf16 %v5446, %v5443
    %v5535 = vpack.c.bf16 %v5454, %v5451
    %v5536 = vpack.c.bf16 %v5462, %v5459
    %v5537 = vpack.c.bf16 %v5470, %v5467
    %v5538 = vpack.c.bf16 %v5478, %v5475
    %v5539 = vpack.c.bf16 %v5486, %v5483
    %v5540 = vpack.c.bf16 %v5494, %v5491
    %v5541 = vpack.c.bf16 %v5502, %v5499
    %v5542 = vpack.c.bf16 %v5510, %v5507
    %v5543 = vpack.c.bf16 %v5518, %v5515
    %v5544 = vpack.c.bf16 %v5526, %v5523
    %5545 = vmatprep.subr.bf16.mxu0 0
    %5546 = vmatpush1.bf16.msra.mxu0 %v5529
    %5547 = vmatprep.subr.bf16.mxu0 0
    %5548 = vmatpush1.bf16.msra.mxu0 %v5530
    %5549 = vmatprep.subr.bf16.mxu0 0
    %5550 = vmatpush1.bf16.msra.mxu0 %v5531
    %5551 = vmatprep.subr.bf16.mxu0 0
    %5552 = vmatpush1.bf16.msra.mxu0 %v5532
    %5553 = vmatprep.subr.bf16.mxu0 0
    %5554 = vmatpush1.bf16.msra.mxu0 %v5533
    %5555 = vmatprep.subr.bf16.mxu0 0
    %5556 = vmatpush1.bf16.msra.mxu0 %v5534
    %5557 = vmatprep.subr.bf16.mxu0 0
    %5558 = vmatpush1.bf16.msra.mxu0 %v5535
    %5559 = vmatprep.subr.bf16.mxu0 0
    %5560 = vmatpush1.bf16.msra.mxu0 %v5536
    %5561 = vmatprep.subr.bf16.mxu0 0
    %5562 = vmatpush1.bf16.msra.mxu0 %v5537
    %5563 = vmatprep.subr.bf16.mxu0 0
    %5564 = vmatpush1.bf16.msra.mxu0 %v5538
    %5565 = vmatprep.subr.bf16.mxu0 0
    %5566 = vmatpush1.bf16.msra.mxu0 %v5539
    %5567 = vmatprep.subr.bf16.mxu0 0
    %5568 = vmatpush1.bf16.msra.mxu0 %v5540
    %5569 = vmatprep.subr.bf16.mxu0 0
    %5570 = vmatpush1.bf16.msra.mxu0 %v5541
    %5571 = vmatprep.subr.bf16.mxu0 0
    %5572 = vmatpush1.bf16.msra.mxu0 %v5542
    %5573 = vmatprep.subr.bf16.mxu0 0
    %5574 = vmatpush1.bf16.msra.mxu0 %v5543
    %5575 = vmatprep.subr.bf16.mxu0 0
    %5576 = vmatpush1.bf16.msra.mxu0 %v5544
    %5577 = vmatprep.mubr.bf16.mxu0 %v1390
    %5578 = vmatmul.mubr.bf16.gmra.mrb[0].mxu0 %v1389
    %v5579 = vpop.f32.mrb[0].mxu0
    %v5580 = vadd.f32 0.0, %v5579
    %v5581 = vpop.f32.mrb[0].mxu0
    %v5582 = vpop.f32.mrb[0].mxu0
    %v5583 = vadd.f32 0.0, %v5582
    %v5584 = vpop.f32.mrb[0].mxu0
    %5585 = vmatprep.mubr.bf16.mxu0 %v1392
    %5586 = vmatmul.mubr.bf16.gmra.mrb[0].mxu0 %v1391
    %v5587 = vpop.f32.mrb[0].mxu0
    %v5588 = vadd.f32 0.0, %v5587
    %v5589 = vpop.f32.mrb[0].mxu0
    %v5590 = vpop.f32.mrb[0].mxu0
    %v5591 = vadd.f32 0.0, %v5590
    %v5592 = vpop.f32.mrb[0].mxu0
    %5593 = vmatprep.mubr.bf16.mxu0 %v1394
    %5594 = vmatmul.mubr.bf16.gmra.mrb[0].mxu0 %v1393
    %v5595 = vpop.f32.mrb[0].mxu0
    %v5596 = vadd.f32 0.0, %v5595
    %v5597 = vpop.f32.mrb[0].mxu0
    %v5598 = vpop.f32.mrb[0].mxu0
    %v5599 = vadd.f32 0.0, %v5598
    %v5600 = vpop.f32.mrb[0].mxu0
    %5601 = vmatprep.mubr.bf16.mxu0 %v1396
    %5602 = vmatmul.mubr.bf16.gmra.mrb[0].mxu0 %v1395
    %v5603 = vpop.f32.mrb[0].mxu0
    %v5604 = vadd.f32 0.0, %v5603
    %v5605 = vpop.f32.mrb[0].mxu0
    %v5606 = vpop.f32.mrb[0].mxu0
    %v5607 = vadd.f32 0.0, %v5606
    %v5608 = vpop.f32.mrb[0].mxu0
    %5609 = vmatprep.mubr.bf16.mxu0 %v1398
    %5610 = vmatmul.mubr.bf16.gmra.mrb[0].mxu0 %v1397
    %v5611 = vpop.f32.mrb[0].mxu0
    %v5612 = vadd.f32 0.0, %v5611
    %v5613 = vpop.f32.mrb[0].mxu0
    %v5614 = vpop.f32.mrb[0].mxu0
    %v5615 = vadd.f32 0.0, %v5614
    %v5616 = vpop.f32.mrb[0].mxu0
    %5617 = vmatprep.mubr.bf16.mxu0 %v1400
    %5618 = vmatmul.mubr.bf16.gmra.mrb[0].mxu0 %v1399
    %v5619 = vpop.f32.mrb[0].mxu0
    %v5620 = vadd.f32 0.0, %v5619
    %v5621 = vpop.f32.mrb[0].mxu0
    %v5622 = vpop.f32.mrb[0].mxu0
    %v5623 = vadd.f32 0.0, %v5622
    %v5624 = vpop.f32.mrb[0].mxu0
    %5625 = vdwg.mxu0
    %v5626 = vld [vmem:[%s39] sm:$0x1]
    %v5627 = vld [vmem:[%s35] sm:$0x1]
    %v5628 = vsel %vm1713, %v5580, 0.0
    %5629 = vadd.xlane.f32.xlu0 %v5628
    %v5630 = vpop.xlane.xlu0 %5629
    %v5631 = vsel %vm1713, %v5583, 0.0
    %5632 = vadd.xlane.f32.xlu0 %v5631
    %v5633 = vpop.xlane.xlu0 %5632
    %v5634 = vsel %vm1713, %v5588, 0.0
    %5635 = vadd.xlane.f32.xlu0 %v5634
    %v5636 = vpop.xlane.xlu0 %5635
    %v5637 = vsel %vm1713, %v5591, 0.0
    %5638 = vadd.xlane.f32.xlu0 %v5637
    %v5639 = vpop.xlane.xlu0 %5638
    %v5640 = vsel %vm1713, %v5596, 0.0
    %5641 = vadd.xlane.f32.xlu0 %v5640
    %v5642 = vpop.xlane.xlu0 %5641
    %v5643 = vsel %vm1713, %v5599, 0.0
    %5644 = vadd.xlane.f32.xlu0 %v5643
    %v5645 = vpop.xlane.xlu0 %5644
    %v5646 = vsel %vm1713, %v5604, 0.0
    %5647 = vadd.xlane.f32.xlu0 %v5646
    %v5648 = vpop.xlane.xlu0 %5647
    %v5649 = vsel %vm1713, %v5607, 0.0
    %5650 = vadd.xlane.f32.xlu0 %v5649
    %v5651 = vpop.xlane.xlu0 %5650
    %v5652 = vsel %vm1713, %v5612, 0.0
    %5653 = vadd.xlane.f32.xlu0 %v5652
    %v5654 = vpop.xlane.xlu0 %5653
    %v5655 = vsel %vm1713, %v5615, 0.0
    %5656 = vadd.xlane.f32.xlu0 %v5655
    %v5657 = vpop.xlane.xlu0 %5656
    %v5658 = vsel %vm1713, %v5620, 0.0
    %5659 = vadd.xlane.f32.xlu0 %v5658
    %v5660 = vpop.xlane.xlu0 %5659
    %v5661 = vsel %vm1713, %v5623, 0.0
    %5662 = vadd.xlane.f32.xlu0 %v5661
    %v5663 = vpop.xlane.xlu0 %5662
    %v5664 = vmul.f32 %v5630, %v2903
    %v5665 = vmul.f32 %v5633, %v2903
    %v5666 = vmul.f32 %v5636, %v2903
    %v5667 = vmul.f32 %v5639, %v2903
    %v5668 = vmul.f32 %v5642, %v2903
    %v5669 = vmul.f32 %v5645, %v2903
    %v5670 = vmul.f32 %v5648, %v2903
    %v5671 = vmul.f32 %v5651, %v2903
    %v5672 = vmul.f32 %v5654, %v2903
    %v5673 = vmul.f32 %v5657, %v2903
    %v5674 = vmul.f32 %v5660, %v2903
    %v5675 = vmul.f32 %v5663, %v2903
    %v5676 = vmul.f32 %v5580, %v5580
    %v5677 = vmul.f32 %v5583, %v5583
    %v5678 = vmul.f32 %v5588, %v5588
    %v5679 = vmul.f32 %v5591, %v5591
    %v5680 = vmul.f32 %v5596, %v5596
    %v5681 = vmul.f32 %v5599, %v5599
    %v5682 = vmul.f32 %v5604, %v5604
    %v5683 = vmul.f32 %v5607, %v5607
    %v5684 = vmul.f32 %v5612, %v5612
    %v5685 = vmul.f32 %v5615, %v5615
    %v5686 = vmul.f32 %v5620, %v5620
    %v5687 = vmul.f32 %v5623, %v5623
    %v5688 = vsel %vm1713, %v5676, 0.0
    %5689 = vadd.xlane.f32.xlu0 %v5688
    %v5690 = vpop.xlane.xlu0 %5689
    %v5691 = vsel %vm1713, %v5677, 0.0
    %5692 = vadd.xlane.f32.xlu0 %v5691
    %v5693 = vpop.xlane.xlu0 %5692
    %v5694 = vsel %vm1713, %v5678, 0.0
    %5695 = vadd.xlane.f32.xlu0 %v5694
    %v5696 = vpop.xlane.xlu0 %5695
    %v5697 = vsel %vm1713, %v5679, 0.0
    %5698 = vadd.xlane.f32.xlu0 %v5697
    %v5699 = vpop.xlane.xlu0 %5698
    %v5700 = vsel %vm1713, %v5680, 0.0
    %5701 = vadd.xlane.f32.xlu0 %v5700
    %v5702 = vpop.xlane.xlu0 %5701
    %v5703 = vsel %vm1713, %v5681, 0.0
    %5704 = vadd.xlane.f32.xlu0 %v5703
    %v5705 = vpop.xlane.xlu0 %5704
    %v5706 = vsel %vm1713, %v5682, 0.0
    %5707 = vadd.xlane.f32.xlu0 %v5706
    %v5708 = vpop.xlane.xlu0 %5707
    %v5709 = vsel %vm1713, %v5683, 0.0
    %5710 = vadd.xlane.f32.xlu0 %v5709
    %v5711 = vpop.xlane.xlu0 %5710
    %v5712 = vsel %vm1713, %v5684, 0.0
    %5713 = vadd.xlane.f32.xlu0 %v5712
    %v5714 = vpop.xlane.xlu0 %5713
    %v5715 = vsel %vm1713, %v5685, 0.0
    %5716 = vadd.xlane.f32.xlu0 %v5715
    %v5717 = vpop.xlane.xlu0 %5716
    %v5718 = vsel %vm1713, %v5686, 0.0
    %5719 = vadd.xlane.f32.xlu0 %v5718
    %v5720 = vpop.xlane.xlu0 %5719
    %v5721 = vsel %vm1713, %v5687, 0.0
    %5722 = vadd.xlane.f32.xlu0 %v5721
    %v5723 = vpop.xlane.xlu0 %5722
    %v5724 = vmul.f32 %v5690, %v2903
    %v5725 = vmul.f32 %v5693, %v2903
    %v5726 = vmul.f32 %v5696, %v2903
    %v5727 = vmul.f32 %v5699, %v2903
    %v5728 = vmul.f32 %v5702, %v2903
    %v5729 = vmul.f32 %v5705, %v2903
    %v5730 = vmul.f32 %v5708, %v2903
    %v5731 = vmul.f32 %v5711, %v2903
    %v5732 = vmul.f32 %v5714, %v2903
    %v5733 = vmul.f32 %v5717, %v2903
    %v5734 = vmul.f32 %v5720, %v2903
    %v5735 = vmul.f32 %v5723, %v2903
    %v5736 = vmul.f32 %v5664, %v5664
    %v5737 = vmul.f32 %v5665, %v5665
    %v5738 = vmul.f32 %v5666, %v5666
    %v5739 = vmul.f32 %v5667, %v5667
    %v5740 = vmul.f32 %v5668, %v5668
    %v5741 = vmul.f32 %v5669, %v5669
    %v5742 = vmul.f32 %v5670, %v5670
    %v5743 = vmul.f32 %v5671, %v5671
    %v5744 = vmul.f32 %v5672, %v5672
    %v5745 = vmul.f32 %v5673, %v5673
    %v5746 = vmul.f32 %v5674, %v5674
    %v5747 = vmul.f32 %v5675, %v5675
    %v5748 = vsub.f32 %v5724, %v5736
    %v5749 = vsub.f32 %v5725, %v5737
    %v5750 = vsub.f32 %v5726, %v5738
    %v5751 = vsub.f32 %v5727, %v5739
    %v5752 = vsub.f32 %v5728, %v5740
    %v5753 = vsub.f32 %v5729, %v5741
    %v5754 = vsub.f32 %v5730, %v5742
    %v5755 = vsub.f32 %v5731, %v5743
    %v5756 = vsub.f32 %v5732, %v5744
    %v5757 = vsub.f32 %v5733, %v5745
    %v5758 = vsub.f32 %v5734, %v5746
    %v5759 = vsub.f32 %v5735, %v5747
    %v5760 = vmax.f32 %v5748, 0.0
    %v5761 = vmax.f32 %v5749, 0.0
    %v5762 = vmax.f32 %v5750, 0.0
    %v5763 = vmax.f32 %v5751, 0.0
    %v5764 = vmax.f32 %v5752, 0.0
    %v5765 = vmax.f32 %v5753, 0.0
    %v5766 = vmax.f32 %v5754, 0.0
    %v5767 = vmax.f32 %v5755, 0.0
    %v5768 = vmax.f32 %v5756, 0.0
    %v5769 = vmax.f32 %v5757, 0.0
    %v5770 = vmax.f32 %v5758, 0.0
    %v5771 = vmax.f32 %v5759, 0.0
    %v5772 = vsub.f32 %v5580, %v5664
    %v5773 = vsub.f32 %v5583, %v5665
    %v5774 = vsub.f32 %v5588, %v5666
    %v5775 = vsub.f32 %v5591, %v5667
    %v5776 = vsub.f32 %v5596, %v5668
    %v5777 = vsub.f32 %v5599, %v5669
    %v5778 = vsub.f32 %v5604, %v5670
    %v5779 = vsub.f32 %v5607, %v5671
    %v5780 = vsub.f32 %v5612, %v5672
    %v5781 = vsub.f32 %v5615, %v5673
    %v5782 = vsub.f32 %v5620, %v5674
    %v5783 = vsub.f32 %v5623, %v5675
    %v5784 = vadd.f32 %v5760, 1e-05
    %v5785 = vadd.f32 %v5761, 1e-05
    %v5786 = vadd.f32 %v5762, 1e-05
    %v5787 = vadd.f32 %v5763, 1e-05
    %v5788 = vadd.f32 %v5764, 1e-05
    %v5789 = vadd.f32 %v5765, 1e-05
    %v5790 = vadd.f32 %v5766, 1e-05
    %v5791 = vadd.f32 %v5767, 1e-05
    %v5792 = vadd.f32 %v5768, 1e-05
    %v5793 = vadd.f32 %v5769, 1e-05
    %v5794 = vadd.f32 %v5770, 1e-05
    %v5795 = vadd.f32 %v5771, 1e-05
    %v5796 = vrsqrt.pop %v5784
    %v5797 = vrsqrt.pop %v5785
    %v5798 = vrsqrt.pop %v5786
    %v5799 = vrsqrt.pop %v5787
    %v5800 = vrsqrt.pop %v5788
    %v5801 = vrsqrt.pop %v5789
    %v5802 = vrsqrt.pop %v5790
    %v5803 = vrsqrt.pop %v5791
    %v5804 = vrsqrt.pop %v5792
    %v5805 = vrsqrt.pop %v5793
    %v5806 = vrsqrt.pop %v5794
    %v5807 = vrsqrt.pop %v5795
    %v5808 = vmul.f32 %v5772, %v5796
    %v5809 = vmul.f32 %v5773, %v5797
    %v5810 = vmul.f32 %v5774, %v5798
    %v5811 = vmul.f32 %v5775, %v5799
    %v5812 = vmul.f32 %v5776, %v5800
    %v5813 = vmul.f32 %v5777, %v5801
    %v5814 = vmul.f32 %v5778, %v5802
    %v5815 = vmul.f32 %v5779, %v5803
    %v5816 = vmul.f32 %v5780, %v5804
    %v5817 = vmul.f32 %v5781, %v5805
    %v5818 = vmul.f32 %v5782, %v5806
    %v5819 = vmul.f32 %v5783, %v5807
    %v5821 = vlaneseq
    %v5822 = vshrl.u32 %v5821, 7
    %v5823 = vsub.s32 0, %v5822
    %v5824 = vrot.slane %v5626, %v5823
    %v5826 = vmul.f32 %v5808, %v5824
    %v5827 = vmul.f32 %v5809, %v5824
    %v5828 = vmul.f32 %v5810, %v5824
    %v5829 = vmul.f32 %v5811, %v5824
    %v5830 = vmul.f32 %v5812, %v5824
    %v5831 = vmul.f32 %v5813, %v5824
    %v5832 = vmul.f32 %v5814, %v5824
    %v5833 = vmul.f32 %v5815, %v5824
    %v5834 = vmul.f32 %v5816, %v5824
    %v5835 = vmul.f32 %v5817, %v5824
    %v5836 = vmul.f32 %v5818, %v5824
    %v5837 = vmul.f32 %v5819, %v5824
    %v5839 = vlaneseq
    %v5840 = vshrl.u32 %v5839, 7
    %v5841 = vsub.s32 0, %v5840
    %v5842 = vrot.slane %v5627, %v5841
    %v5844 = vadd.f32 %v5826, %v5842
    %v5845 = vadd.f32 %v5827, %v5842
    %v5846 = vadd.f32 %v5828, %v5842
    %v5847 = vadd.f32 %v5829, %v5842
    %v5848 = vadd.f32 %v5830, %v5842
    %v5849 = vadd.f32 %v5831, %v5842
    %v5850 = vadd.f32 %v5832, %v5842
    %v5851 = vadd.f32 %v5833, %v5842
    %v5852 = vadd.f32 %v5834, %v5842
    %v5853 = vadd.f32 %v5835, %v5842
    %v5854 = vadd.f32 %v5836, %v5842
    %v5855 = vadd.f32 %v5837, %v5842
    %5868 = vrot.lane.b32.xlu0 %v2316, 64
    %v5869 = vpop.permute.xlu0 %5868
    %5870 = vrot.lane.b32.xlu0 %v2317, 64
    %v5871 = vpop.permute.xlu0 %5870
    %5872 = vrot.lane.b32.xlu0 %v2318, 64
    %v5873 = vpop.permute.xlu0 %5872
    %5874 = vrot.lane.b32.xlu0 %v2319, 64
    %v5875 = vpop.permute.xlu0 %5874
    %5876 = vrot.lane.b32.xlu0 %v2320, 64
    %v5877 = vpop.permute.xlu0 %5876
    %5878 = vrot.lane.b32.xlu0 %v2321, 64
    %v5879 = vpop.permute.xlu0 %5878
    %5880 = vrot.lane.b32.xlu0 %v2322, 64
    %v5881 = vpop.permute.xlu0 %5880
    %5882 = vrot.lane.b32.xlu0 %v2323, 64
    %v5883 = vpop.permute.xlu0 %5882
    %5884 = vrot.lane.b32.xlu0 %v2324, 64
    %v5885 = vpop.permute.xlu0 %5884
    %5886 = vrot.lane.b32.xlu0 %v2325, 64
    %v5887 = vpop.permute.xlu0 %5886
    %5888 = vrot.lane.b32.xlu0 %v2326, 64
    %v5889 = vpop.permute.xlu0 %5888
    %5890 = vrot.lane.b32.xlu0 %v2327, 64
    %v5891 = vpop.permute.xlu0 %5890
    %v5904 = vsel %vm1713, %v5844, %v5869
    %v5905 = vsel %vm1713, %v5845, %v5871
    %v5906 = vsel %vm1713, %v5846, %v5873
    %v5907 = vsel %vm1713, %v5847, %v5875
    %v5908 = vsel %vm1713, %v5848, %v5877
    %v5909 = vsel %vm1713, %v5849, %v5879
    %v5910 = vsel %vm1713, %v5850, %v5881
    %v5911 = vsel %vm1713, %v5851, %v5883
    %v5912 = vsel %vm1713, %v5852, %v5885
    %v5913 = vsel %vm1713, %v5853, %v5887
    %v5914 = vsel %vm1713, %v5854, %v5889
    %v5915 = vsel %vm1713, %v5855, %v5891
    %v5916 = vld [vmem:[%s45] sm:$0xf]
    %v5917 = vld [vmem:[%s45 + $0x4] sm:$0xf]
    %v5918 = vld [vmem:[%s45 + $0x8] sm:$0xf]
    %v5919 = vld [vmem:[%s45 + $0xc] sm:$0xf]
    %v5920 = vld [vmem:[%s45 + $0x10] sm:$0xf]
    %v5921 = vld [vmem:[%s45 + $0x14] sm:$0xf]
    %v5922 = vld [vmem:[%s45 + $0x18] sm:$0xf]
    %v5923 = vld [vmem:[%s45 + $0x1c] sm:$0xf]
    %v5924 = vld [vmem:[%s45 + $0x20] sm:$0xf]
    %v5925 = vld [vmem:[%s45 + $0x24] sm:$0xf]
    %v5926 = vld [vmem:[%s45 + $0x28] sm:$0xf]
    %v5927 = vld [vmem:[%s45 + $0x2c] sm:$0xf]
    %v5928 = vld [vmem:[%s45 + $0x30] sm:$0xf]
    %v5929 = vld [vmem:[%s45 + $0x34] sm:$0xf]
    %v5930 = vld [vmem:[%s45 + $0x38] sm:$0xf]
    %v5931 = vld [vmem:[%s45 + $0x3c] sm:$0xf]
    %v5932 = vpack.c.bf16 %v5905, %v5904
    %v5933 = vpack.c.bf16 %v5907, %v5906
    %v5934 = vpack.c.bf16 %v5909, %v5908
    %v5935 = vpack.c.bf16 %v5911, %v5910
    %v5936 = vpack.c.bf16 %v5913, %v5912
    %v5937 = vpack.c.bf16 %v5915, %v5914
    %v5938 = vld [vmem:[%s31] sm:$0x1]
    %v5940 = vlaneseq
    %v5941 = vshrl.u32 %v5940, 7
    %v5942 = vsub.s32 0, %v5941
    %v5943 = vrot.slane %v5938, %v5942
    %v5961 = vunpack.c.l.b16 %v5916
    %v5962 = vunpack.c.l.b16 %v5917
    %v5963 = vunpack.c.l.b16 %v5918
    %v5964 = vunpack.c.l.b16 %v5919
    %v5965 = vunpack.c.l.b16 %v5920
    %v5966 = vunpack.c.l.b16 %v5921
    %v5967 = vunpack.c.l.b16 %v5922
    %v5968 = vunpack.c.l.b16 %v5923
    %v5969 = vunpack.c.l.b16 %v5924
    %v5970 = vunpack.c.l.b16 %v5925
    %v5971 = vunpack.c.l.b16 %v5926
    %v5972 = vunpack.c.l.b16 %v5927
    %v5973 = vunpack.c.l.b16 %v5928
    %v5974 = vunpack.c.l.b16 %v5929
    %v5975 = vunpack.c.l.b16 %v5930
    %v5976 = vunpack.c.l.b16 %v5931
    %v5977 = vpack.c.b16 %v5962, %v5961
    %v5978 = vpack.c.b16 %v5964, %v5963
    %v5979 = vpack.c.b16 %v5966, %v5965
    %v5980 = vpack.c.b16 %v5968, %v5967
    %v5981 = vpack.c.b16 %v5970, %v5969
    %v5982 = vpack.c.b16 %v5972, %v5971
    %v5983 = vpack.c.b16 %v5974, %v5973
    %v5984 = vpack.c.b16 %v5976, %v5975
    %5993 = vmatprep.subr.bf16.mxu0 0
    %5994 = vmatpush1.bf16.msra.mxu0 %v5977
    %5995 = vmatprep.subr.bf16.mxu0 0
    %5996 = vmatpush1.bf16.msra.mxu0 %v5978
    %5997 = vmatprep.subr.bf16.mxu0 0
    %5998 = vmatpush1.bf16.msra.mxu0 %v5979
    %5999 = vmatprep.subr.bf16.mxu0 0
    %6000 = vmatpush1.bf16.msra.mxu0 %v5980
    %6001 = vmatprep.subr.bf16.mxu0 0
    %6002 = vmatpush1.bf16.msra.mxu0 %v5981
    %6003 = vmatprep.subr.bf16.mxu0 0
    %6004 = vmatpush1.bf16.msra.mxu0 %v5982
    %6005 = vmatprep.subr.bf16.mxu0 0
    %6006 = vmatpush1.bf16.msra.mxu0 %v5983
    %6007 = vmatprep.subr.bf16.mxu0 0
    %6008 = vmatpush1.bf16.msra.mxu0 %v5984
    %6009 = vmatprep.subr.bf16.mxu0 0
    %6010 = vmatpush1.bf16.msra.mxu0 0
    %6011 = vmatprep.subr.bf16.mxu0 0
    %6012 = vmatpush1.bf16.msra.mxu0 0
    %6013 = vmatprep.subr.bf16.mxu0 0
    %6014 = vmatpush1.bf16.msra.mxu0 0
    %6015 = vmatprep.subr.bf16.mxu0 0
    %6016 = vmatpush1.bf16.msra.mxu0 0
    %6017 = vmatprep.subr.bf16.mxu0 0
    %6018 = vmatpush1.bf16.msra.mxu0 0
    %6019 = vmatprep.subr.bf16.mxu0 0
    %6020 = vmatpush1.bf16.msra.mxu0 0
    %6021 = vmatprep.subr.bf16.mxu0 0
    %6022 = vmatpush1.bf16.msra.mxu0 0
    %6023 = vmatprep.subr.bf16.mxu0 0
    %6024 = vmatpush1.bf16.msra.mxu0 0
    %6025 = vmatprep.mubr.bf16.mxu0 0
    %6026 = vmatmul.mubr.bf16.gmra.mrb[0].mxu0 %v5932
    %v6027 = vpop.f32.mrb[0].mxu0
    %v6028 = vadd.f32 %v5943, %v6027
    %v6029 = vpop.f32.mrb[0].mxu0
    %v6030 = vpop.f32.mrb[0].mxu0
    %v6031 = vadd.f32 %v5943, %v6030
    %v6032 = vpop.f32.mrb[0].mxu0
    %6033 = vmatprep.mubr.bf16.mxu0 0
    %6034 = vmatmul.mubr.bf16.gmra.mrb[0].mxu0 %v5933
    %v6035 = vpop.f32.mrb[0].mxu0
    %v6036 = vadd.f32 %v5943, %v6035
    %v6037 = vpop.f32.mrb[0].mxu0
    %v6038 = vpop.f32.mrb[0].mxu0
    %v6039 = vadd.f32 %v5943, %v6038
    %v6040 = vpop.f32.mrb[0].mxu0
    %6041 = vmatprep.mubr.bf16.mxu0 0
    %6042 = vmatmul.mubr.bf16.gmra.mrb[0].mxu0 %v5934
    %v6043 = vpop.f32.mrb[0].mxu0
    %v6044 = vadd.f32 %v5943, %v6043
    %v6045 = vpop.f32.mrb[0].mxu0
    %v6046 = vpop.f32.mrb[0].mxu0
    %v6047 = vadd.f32 %v5943, %v6046
    %v6048 = vpop.f32.mrb[0].mxu0
    %6049 = vmatprep.mubr.bf16.mxu0 0
    %6050 = vmatmul.mubr.bf16.gmra.mrb[0].mxu0 %v5935
    %v6051 = vpop.f32.mrb[0].mxu0
    %v6052 = vadd.f32 %v5943, %v6051
    %v6053 = vpop.f32.mrb[0].mxu0
    %v6054 = vpop.f32.mrb[0].mxu0
    %v6055 = vadd.f32 %v5943, %v6054
    %v6056 = vpop.f32.mrb[0].mxu0
    %6057 = vmatprep.mubr.bf16.mxu0 0
    %6058 = vmatmul.mubr.bf16.gmra.mrb[0].mxu0 %v5936
    %v6059 = vpop.f32.mrb[0].mxu0
    %v6060 = vadd.f32 %v5943, %v6059
    %v6061 = vpop.f32.mrb[0].mxu0
    %v6062 = vpop.f32.mrb[0].mxu0
    %v6063 = vadd.f32 %v5943, %v6062
    %v6064 = vpop.f32.mrb[0].mxu0
    %6065 = vmatprep.mubr.bf16.mxu0 0
    %6066 = vmatmul.mubr.bf16.gmra.mrb[0].mxu0 %v5937
    %v6067 = vpop.f32.mrb[0].mxu0
    %v6068 = vadd.f32 %v5943, %v6067
    %v6069 = vpop.f32.mrb[0].mxu0
    %v6070 = vpop.f32.mrb[0].mxu0
    %v6071 = vadd.f32 %v5943, %v6070
    %v6072 = vpop.f32.mrb[0].mxu0
    %6073 = vdwg.mxu0
    %v6074 = vmax.f32 %v6028, 0.0
    %v6075 = vmax.f32 %v6031, 0.0
    %v6076 = vmax.f32 %v6036, 0.0
    %v6077 = vmax.f32 %v6039, 0.0
    %v6078 = vmax.f32 %v6044, 0.0
    %v6079 = vmax.f32 %v6047, 0.0
    %v6080 = vmax.f32 %v6052, 0.0
    %v6081 = vmax.f32 %v6055, 0.0
    %v6082 = vmax.f32 %v6060, 0.0
    %v6083 = vmax.f32 %v6063, 0.0
    %v6084 = vmax.f32 %v6068, 0.0
    %v6085 = vmax.f32 %v6071, 0.0
    %v6086 = vld [vmem:[%s47] sm:$0xf]
    %v6087 = vld [vmem:[%s47 + $0x4] sm:$0xf]
    %v6088 = vld [vmem:[%s47 + $0x8] sm:$0xf]
    %v6089 = vld [vmem:[%s47 + $0xc] sm:$0xf]
    %v6090 = vld [vmem:[%s47 + $0x10] sm:$0xf]
    %v6091 = vld [vmem:[%s47 + $0x14] sm:$0xf]
    %v6092 = vld [vmem:[%s47 + $0x18] sm:$0xf]
    %v6093 = vld [vmem:[%s47 + $0x1c] sm:$0xf]
    %v6094 = vpack.c.bf16 %v6075, %v6074
    %v6095 = vpack.c.bf16 %v6077, %v6076
    %v6096 = vpack.c.bf16 %v6079, %v6078
    %v6097 = vpack.c.bf16 %v6081, %v6080
    %v6098 = vpack.c.bf16 %v6083, %v6082
    %v6099 = vpack.c.bf16 %v6085, %v6084
    %v6100 = vld [vmem:[%s33] sm:$0x1]
    %v6102 = vlaneseq
    %v6103 = vshrl.u32 %v6102, 7
    %v6104 = vsub.s32 0, %v6103
    %v6105 = vrot.slane %v6100, %v6104
    %v6115 = vunpack.c.l.b16 %v6086
    %v6116 = vunpack.c.l.b16 %v6087
    %v6117 = vunpack.c.l.b16 %v6088
    %v6118 = vunpack.c.l.b16 %v6089
    %v6119 = vunpack.c.l.b16 %v6090
    %v6120 = vunpack.c.l.b16 %v6091
    %v6121 = vunpack.c.l.b16 %v6092
    %v6122 = vunpack.c.l.b16 %v6093
    %v6123 = vpack.c.b16 %v6116, %v6115
    %v6124 = vpack.c.b16 %v6118, %v6117
    %v6125 = vpack.c.b16 %v6120, %v6119
    %v6126 = vpack.c.b16 %v6122, %v6121
    %v6132 = vsel %vm1713, %v6094, 0
    %v6135 = vsel %vm1713, %v6095, 0
    %v6138 = vsel %vm1713, %v6096, 0
    %v6141 = vsel %vm1713, %v6097, 0
    %v6144 = vsel %vm1713, %v6098, 0
    %v6147 = vsel %vm1713, %v6099, 0
    %6149 = vmatprep.subr.bf16.mxu0 0
    %6150 = vmatpush1.bf16.msra.mxu0 %v6123
    %6151 = vmatprep.subr.bf16.mxu0 0
    %6152 = vmatpush1.bf16.msra.mxu0 %v6124
    %6153 = vmatprep.subr.bf16.mxu0 0
    %6154 = vmatpush1.bf16.msra.mxu0 %v6125
    %6155 = vmatprep.subr.bf16.mxu0 0
    %6156 = vmatpush1.bf16.msra.mxu0 %v6126
    %6157 = vmatprep.subr.bf16.mxu0 0
    %6158 = vmatpush1.bf16.msra.mxu0 0
    %6159 = vmatprep.subr.bf16.mxu0 0
    %6160 = vmatpush1.bf16.msra.mxu0 0
    %6161 = vmatprep.subr.bf16.mxu0 0
    %6162 = vmatpush1.bf16.msra.mxu0 0
    %6163 = vmatprep.subr.bf16.mxu0 0
    %6164 = vmatpush1.bf16.msra.mxu0 0
    %6165 = vmatprep.subr.bf16.mxu0 0
    %6166 = vmatpush1.bf16.msra.mxu0 0
    %6167 = vmatprep.subr.bf16.mxu0 0
    %6168 = vmatpush1.bf16.msra.mxu0 0
    %6169 = vmatprep.subr.bf16.mxu0 0
    %6170 = vmatpush1.bf16.msra.mxu0 0
    %6171 = vmatprep.subr.bf16.mxu0 0
    %6172 = vmatpush1.bf16.msra.mxu0 0
    %6173 = vmatprep.subr.bf16.mxu0 0
    %6174 = vmatpush1.bf16.msra.mxu0 0
    %6175 = vmatprep.subr.bf16.mxu0 0
    %6176 = vmatpush1.bf16.msra.mxu0 0
    %6177 = vmatprep.subr.bf16.mxu0 0
    %6178 = vmatpush1.bf16.msra.mxu0 0
    %6179 = vmatprep.subr.bf16.mxu0 0
    %6180 = vmatpush1.bf16.msra.mxu0 0
    %6181 = vmatprep.mubr.bf16.mxu0 0
    %6182 = vmatmul.mubr.bf16.gmra.mrb[0].mxu0 %v6132
    %v6183 = vpop.f32.mrb[0].mxu0
    %v6184 = vadd.f32 %v6105, %v6183
    %v6185 = vpop.f32.mrb[0].mxu0
    %v6186 = vpop.f32.mrb[0].mxu0
    %v6187 = vadd.f32 %v6105, %v6186
    %v6188 = vpop.f32.mrb[0].mxu0
    %6189 = vmatprep.mubr.bf16.mxu0 0
    %6190 = vmatmul.mubr.bf16.gmra.mrb[0].mxu0 %v6135
    %v6191 = vpop.f32.mrb[0].mxu0
    %v6192 = vadd.f32 %v6105, %v6191
    %v6193 = vpop.f32.mrb[0].mxu0
    %v6194 = vpop.f32.mrb[0].mxu0
    %v6195 = vadd.f32 %v6105, %v6194
    %v6196 = vpop.f32.mrb[0].mxu0
    %6197 = vmatprep.mubr.bf16.mxu0 0
    %6198 = vmatmul.mubr.bf16.gmra.mrb[0].mxu0 %v6138
    %v6199 = vpop.f32.mrb[0].mxu0
    %v6200 = vadd.f32 %v6105, %v6199
    %v6201 = vpop.f32.mrb[0].mxu0
    %v6202 = vpop.f32.mrb[0].mxu0
    %v6203 = vadd.f32 %v6105, %v6202
    %v6204 = vpop.f32.mrb[0].mxu0
    %6205 = vmatprep.mubr.bf16.mxu0 0
    %6206 = vmatmul.mubr.bf16.gmra.mrb[0].mxu0 %v6141
    %v6207 = vpop.f32.mrb[0].mxu0
    %v6208 = vadd.f32 %v6105, %v6207
    %v6209 = vpop.f32.mrb[0].mxu0
    %v6210 = vpop.f32.mrb[0].mxu0
    %v6211 = vadd.f32 %v6105, %v6210
    %v6212 = vpop.f32.mrb[0].mxu0
    %6213 = vmatprep.mubr.bf16.mxu0 0
    %6214 = vmatmul.mubr.bf16.gmra.mrb[0].mxu0 %v6144
    %v6215 = vpop.f32.mrb[0].mxu0
    %v6216 = vadd.f32 %v6105, %v6215
    %v6217 = vpop.f32.mrb[0].mxu0
    %v6218 = vpop.f32.mrb[0].mxu0
    %v6219 = vadd.f32 %v6105, %v6218
    %v6220 = vpop.f32.mrb[0].mxu0
    %6221 = vmatprep.mubr.bf16.mxu0 0
    %6222 = vmatmul.mubr.bf16.gmra.mrb[0].mxu0 %v6147
    %v6223 = vpop.f32.mrb[0].mxu0
    %v6224 = vadd.f32 %v6105, %v6223
    %v6225 = vpop.f32.mrb[0].mxu0
    %v6226 = vpop.f32.mrb[0].mxu0
    %v6227 = vadd.f32 %v6105, %v6226
    %v6228 = vpop.f32.mrb[0].mxu0
    %6229 = vdwg.mxu0
    %v6230 = vld [vmem:[%s121] sm:$0xf]
    %v6231 = vld [vmem:[%s121 + $0x4] sm:$0xf]
    %v6232 = vld [vmem:[%s121 + $0x8] sm:$0xf]
    %v6233 = vld [vmem:[%s121 + $0xc] sm:$0xf]
    %v6234 = vld [vmem:[%s121 + $0x10] sm:$0xf]
    %v6235 = vld [vmem:[%s121 + $0x14] sm:$0xf]
    %v6236 = vld [vmem:[%s121 + $0x18] sm:$0xf]
    %v6237 = vld [vmem:[%s121 + $0x1c] sm:$0xf]
    %v6246 = vunpack.c.l.b16 %v6230
    %v6247 = vunpack.c.l.b16 %v6231
    %v6248 = vunpack.c.l.b16 %v6232
    %v6249 = vunpack.c.l.b16 %v6233
    %v6250 = vunpack.c.l.b16 %v6234
    %v6251 = vunpack.c.l.b16 %v6235
    %v6252 = vunpack.c.l.b16 %v6236
    %v6253 = vunpack.c.l.b16 %v6237
    %v6254 = vpack.c.b16 %v6247, %v6246
    %v6255 = vpack.c.b16 %v6249, %v6248
    %v6256 = vpack.c.b16 %v6251, %v6250
    %v6257 = vpack.c.b16 %v6253, %v6252
    %6262 = vmatprep.subr.bf16.mxu0 0
    %6263 = vmatpush1.bf16.msra.mxu0 %v6254
    %6264 = vmatprep.subr.bf16.mxu0 0
    %6265 = vmatpush1.bf16.msra.mxu0 %v6255
    %6266 = vmatprep.subr.bf16.mxu0 0
    %6267 = vmatpush1.bf16.msra.mxu0 %v6256
    %6268 = vmatprep.subr.bf16.mxu0 0
    %6269 = vmatpush1.bf16.msra.mxu0 %v6257
    %6270 = vmatprep.subr.bf16.mxu0 0
    %6271 = vmatpush1.bf16.msra.mxu0 0
    %6272 = vmatprep.subr.bf16.mxu0 0
    %6273 = vmatpush1.bf16.msra.mxu0 0
    %6274 = vmatprep.subr.bf16.mxu0 0
    %6275 = vmatpush1.bf16.msra.mxu0 0
    %6276 = vmatprep.subr.bf16.mxu0 0
    %6277 = vmatpush1.bf16.msra.mxu0 0
    %6278 = vmatprep.subr.bf16.mxu0 0
    %6279 = vmatpush1.bf16.msra.mxu0 0
    %6280 = vmatprep.subr.bf16.mxu0 0
    %6281 = vmatpush1.bf16.msra.mxu0 0
    %6282 = vmatprep.subr.bf16.mxu0 0
    %6283 = vmatpush1.bf16.msra.mxu0 0
    %6284 = vmatprep.subr.bf16.mxu0 0
    %6285 = vmatpush1.bf16.msra.mxu0 0
    %6286 = vmatprep.subr.bf16.mxu0 0
    %6287 = vmatpush1.bf16.msra.mxu0 0
    %6288 = vmatprep.subr.bf16.mxu0 0
    %6289 = vmatpush1.bf16.msra.mxu0 0
    %6290 = vmatprep.subr.bf16.mxu0 0
    %6291 = vmatpush1.bf16.msra.mxu0 0
    %6292 = vmatprep.subr.bf16.mxu0 0
    %6293 = vmatpush1.bf16.msra.mxu0 0
    %6294 = vmatprep.mubr.bf16.mxu0 0
    %6295 = vmatmul.mubr.bf16.gmra.mrb[0].mxu0 %v4389
    %v6296 = vpop.f32.mrb[0].mxu0
    %v6297 = vadd.f32 0.0, %v6296
    %v6298 = vpop.f32.mrb[0].mxu0
    %v6299 = vpop.f32.mrb[0].mxu0
    %v6300 = vadd.f32 0.0, %v6299
    %v6301 = vpop.f32.mrb[0].mxu0
    %6302 = vmatprep.mubr.bf16.mxu0 0
    %6303 = vmatmul.mubr.bf16.gmra.mrb[0].mxu0 %v4392
    %v6304 = vpop.f32.mrb[0].mxu0
    %v6305 = vadd.f32 0.0, %v6304
    %v6306 = vpop.f32.mrb[0].mxu0
    %v6307 = vpop.f32.mrb[0].mxu0
    %v6308 = vadd.f32 0.0, %v6307
    %v6309 = vpop.f32.mrb[0].mxu0
    %6310 = vmatprep.mubr.bf16.mxu0 0
    %6311 = vmatmul.mubr.bf16.gmra.mrb[0].mxu0 %v4395
    %v6312 = vpop.f32.mrb[0].mxu0
    %v6313 = vadd.f32 0.0, %v6312
    %v6314 = vpop.f32.mrb[0].mxu0
    %v6315 = vpop.f32.mrb[0].mxu0
    %v6316 = vadd.f32 0.0, %v6315
    %v6317 = vpop.f32.mrb[0].mxu0
    %6318 = vmatprep.mubr.bf16.mxu0 0
    %6319 = vmatmul.mubr.bf16.gmra.mrb[0].mxu0 %v4398
    %v6320 = vpop.f32.mrb[0].mxu0
    %v6321 = vadd.f32 0.0, %v6320
    %v6322 = vpop.f32.mrb[0].mxu0
    %v6323 = vpop.f32.mrb[0].mxu0
    %v6324 = vadd.f32 0.0, %v6323
    %v6325 = vpop.f32.mrb[0].mxu0
    %6326 = vdwg.mxu0
    %v6327 = vld [vmem:[%s127] sm:$0xf]
    %v6328 = vld [vmem:[%s127 + $0x4] sm:$0xf]
    %v6329 = vld [vmem:[%s127 + $0x8] sm:$0xf]
    %v6330 = vld [vmem:[%s127 + $0xc] sm:$0xf]
    %v6331 = vld [vmem:[%s127 + $0x10] sm:$0xf]
    %v6332 = vld [vmem:[%s127 + $0x14] sm:$0xf]
    %v6333 = vld [vmem:[%s127 + $0x18] sm:$0xf]
    %v6334 = vld [vmem:[%s127 + $0x1c] sm:$0xf]
    %v6335 = vpack.c.bf16 %v6187, %v6184
    %v6336 = vpack.c.bf16 %v6195, %v6192
    %v6337 = vpack.c.bf16 %v6203, %v6200
    %v6338 = vpack.c.bf16 %v6211, %v6208
    %v6339 = vpack.c.bf16 %v6219, %v6216
    %v6340 = vpack.c.bf16 %v6227, %v6224
    %v6349 = vunpack.c.l.b16 %v6327
    %v6350 = vunpack.c.l.b16 %v6328
    %v6351 = vunpack.c.l.b16 %v6329
    %v6352 = vunpack.c.l.b16 %v6330
    %v6353 = vunpack.c.l.b16 %v6331
    %v6354 = vunpack.c.l.b16 %v6332
    %v6355 = vunpack.c.l.b16 %v6333
    %v6356 = vunpack.c.l.b16 %v6334
    %v6357 = vpack.c.b16 %v6350, %v6349
    %v6358 = vpack.c.b16 %v6352, %v6351
    %v6359 = vpack.c.b16 %v6354, %v6353
    %v6360 = vpack.c.b16 %v6356, %v6355
    %v6366 = vsel %vm1713, %v6335, 0
    %v6369 = vsel %vm1713, %v6336, 0
    %v6372 = vsel %vm1713, %v6337, 0
    %v6375 = vsel %vm1713, %v6338, 0
    %v6378 = vsel %vm1713, %v6339, 0
    %v6381 = vsel %vm1713, %v6340, 0
    %6383 = vmatprep.subr.bf16.mxu0 0
    %6384 = vmatpush1.bf16.msra.mxu0 %v6357
    %6385 = vmatprep.subr.bf16.mxu0 0
    %6386 = vmatpush1.bf16.msra.mxu0 %v6358
    %6387 = vmatprep.subr.bf16.mxu0 0
    %6388 = vmatpush1.bf16.msra.mxu0 %v6359
    %6389 = vmatprep.subr.bf16.mxu0 0
    %6390 = vmatpush1.bf16.msra.mxu0 %v6360
    %6391 = vmatprep.subr.bf16.mxu0 0
    %6392 = vmatpush1.bf16.msra.mxu0 0
    %6393 = vmatprep.subr.bf16.mxu0 0
    %6394 = vmatpush1.bf16.msra.mxu0 0
    %6395 = vmatprep.subr.bf16.mxu0 0
    %6396 = vmatpush1.bf16.msra.mxu0 0
    %6397 = vmatprep.subr.bf16.mxu0 0
    %6398 = vmatpush1.bf16.msra.mxu0 0
    %6399 = vmatprep.subr.bf16.mxu0 0
    %6400 = vmatpush1.bf16.msra.mxu0 0
    %6401 = vmatprep.subr.bf16.mxu0 0
    %6402 = vmatpush1.bf16.msra.mxu0 0
    %6403 = vmatprep.subr.bf16.mxu0 0
    %6404 = vmatpush1.bf16.msra.mxu0 0
    %6405 = vmatprep.subr.bf16.mxu0 0
    %6406 = vmatpush1.bf16.msra.mxu0 0
    %6407 = vmatprep.subr.bf16.mxu0 0
    %6408 = vmatpush1.bf16.msra.mxu0 0
    %6409 = vmatprep.subr.bf16.mxu0 0
    %6410 = vmatpush1.bf16.msra.mxu0 0
    %6411 = vmatprep.subr.bf16.mxu0 0
    %6412 = vmatpush1.bf16.msra.mxu0 0
    %6413 = vmatprep.subr.bf16.mxu0 0
    %6414 = vmatpush1.bf16.msra.mxu0 0
    %6415 = vmatprep.mubr.bf16.mxu0 0
    %6416 = vmatmul.mubr.bf16.gmra.mrb[0].mxu0 %v6366
    %v6417 = vpop.f32.mrb[0].mxu0
    %v6418 = vadd.f32 0.0, %v6417
    %v6419 = vpop.f32.mrb[0].mxu0
    %v6420 = vpop.f32.mrb[0].mxu0
    %v6421 = vadd.f32 0.0, %v6420
    %v6422 = vpop.f32.mrb[0].mxu0
    %6423 = vmatprep.mubr.bf16.mxu0 0
    %6424 = vmatmul.mubr.bf16.gmra.mrb[0].mxu0 %v6369
    %v6425 = vpop.f32.mrb[0].mxu0
    %v6426 = vadd.f32 0.0, %v6425
    %v6427 = vpop.f32.mrb[0].mxu0
    %v6428 = vpop.f32.mrb[0].mxu0
    %v6429 = vadd.f32 0.0, %v6428
    %v6430 = vpop.f32.mrb[0].mxu0
    %6431 = vmatprep.mubr.bf16.mxu0 0
    %6432 = vmatmul.mubr.bf16.gmra.mrb[0].mxu0 %v6372
    %v6433 = vpop.f32.mrb[0].mxu0
    %v6434 = vadd.f32 0.0, %v6433
    %v6435 = vpop.f32.mrb[0].mxu0
    %v6436 = vpop.f32.mrb[0].mxu0
    %v6437 = vadd.f32 0.0, %v6436
    %v6438 = vpop.f32.mrb[0].mxu0
    %6439 = vmatprep.mubr.bf16.mxu0 0
    %6440 = vmatmul.mubr.bf16.gmra.mrb[0].mxu0 %v6375
    %v6441 = vpop.f32.mrb[0].mxu0
    %v6442 = vadd.f32 0.0, %v6441
    %v6443 = vpop.f32.mrb[0].mxu0
    %v6444 = vpop.f32.mrb[0].mxu0
    %v6445 = vadd.f32 0.0, %v6444
    %v6446 = vpop.f32.mrb[0].mxu0
    %6447 = vmatprep.mubr.bf16.mxu0 0
    %6448 = vmatmul.mubr.bf16.gmra.mrb[0].mxu0 %v6378
    %v6449 = vpop.f32.mrb[0].mxu0
    %v6450 = vadd.f32 0.0, %v6449
    %v6451 = vpop.f32.mrb[0].mxu0
    %v6452 = vpop.f32.mrb[0].mxu0
    %v6453 = vadd.f32 0.0, %v6452
    %v6454 = vpop.f32.mrb[0].mxu0
    %6455 = vmatprep.mubr.bf16.mxu0 0
    %6456 = vmatmul.mubr.bf16.gmra.mrb[0].mxu0 %v6381
    %v6457 = vpop.f32.mrb[0].mxu0
    %v6458 = vadd.f32 0.0, %v6457
    %v6459 = vpop.f32.mrb[0].mxu0
    %v6460 = vpop.f32.mrb[0].mxu0
    %v6461 = vadd.f32 0.0, %v6460
    %v6462 = vpop.f32.mrb[0].mxu0
    %6463 = vdwg.mxu0
    %v6464 = vpack.c.bf16 %v6300, %v6297
    %v6465 = vpack.c.bf16 %v6308, %v6305
    %v6466 = vpack.c.bf16 %v6316, %v6313
    %v6467 = vpack.c.bf16 %v6324, %v6321
    %v6468 = vpack.c.bf16 %v6421, %v6418
    %v6469 = vpack.c.bf16 %v6429, %v6426
    %v6470 = vpack.c.bf16 %v6437, %v6434
    %v6471 = vpack.c.bf16 %v6445, %v6442
    %v6472 = vpack.c.bf16 %v6453, %v6450
    %v6473 = vpack.c.bf16 %v6461, %v6458
    %v6474 = vld [vmem:[#allocation27] sm:$0x1]
    %v6476 = vlaneseq
    %v6477 = vshrl.u32 %v6476, 7
    %v6478 = vsub.s32 0, %v6477
    %v6479 = vrot.slane %v6474, %v6478
    %6481 = vmatprep.subr.bf16.mxu0 0
    %6482 = vmatpush1.bf16.msra.mxu0 %v6464
    %6483 = vmatprep.subr.bf16.mxu0 0
    %6484 = vmatpush1.bf16.msra.mxu0 %v6465
    %6485 = vmatprep.subr.bf16.mxu0 0
    %6486 = vmatpush1.bf16.msra.mxu0 %v6466
    %6487 = vmatprep.subr.bf16.mxu0 0
    %6488 = vmatpush1.bf16.msra.mxu0 %v6467
    %6489 = vmatprep.subr.bf16.mxu0 0
    %6490 = vmatpush1.bf16.msra.mxu0 %v6468
    %6491 = vmatprep.subr.bf16.mxu0 0
    %6492 = vmatpush1.bf16.msra.mxu0 %v6469
    %6493 = vmatprep.subr.bf16.mxu0 0
    %6494 = vmatpush1.bf16.msra.mxu0 %v6470
    %6495 = vmatprep.subr.bf16.mxu0 0
    %6496 = vmatpush1.bf16.msra.mxu0 %v6471
    %6497 = vmatprep.subr.bf16.mxu0 0
    %6498 = vmatpush1.bf16.msra.mxu0 %v6472
    %6499 = vmatprep.subr.bf16.mxu0 0
    %6500 = vmatpush1.bf16.msra.mxu0 %v6473
    %6501 = vmatprep.subr.bf16.mxu0 0
    %6502 = vmatpush1.bf16.msra.mxu0 0
    %6503 = vmatprep.subr.bf16.mxu0 0
    %6504 = vmatpush1.bf16.msra.mxu0 0
    %6505 = vmatprep.subr.bf16.mxu0 0
    %6506 = vmatpush1.bf16.msra.mxu0 0
    %6507 = vmatprep.subr.bf16.mxu0 0
    %6508 = vmatpush1.bf16.msra.mxu0 0
    %6509 = vmatprep.subr.bf16.mxu0 0
    %6510 = vmatpush1.bf16.msra.mxu0 0
    %6511 = vmatprep.subr.bf16.mxu0 0
    %6512 = vmatpush1.bf16.msra.mxu0 0
    %6513 = vmatprep.mubr.bf16.mxu0 %v2597
    %6514 = vmatmul.mubr.bf16.gmra.mrb[0].mxu0 %v1200
    %v6515 = vpop.f32.mrb[0].mxu0
    %v6516 = vadd.f32 %v6479, %v6515
    %v6517 = vpop.f32.mrb[0].mxu0
    %v6518 = vpop.f32.mrb[0].mxu0
    %v6519 = vadd.f32 %v6479, %v6518
    %v6520 = vpop.f32.mrb[0].mxu0
    %6521 = vmatprep.mubr.bf16.mxu0 %v2600
    %6522 = vmatmul.mubr.bf16.gmra.mrb[0].mxu0 %v1202
    %v6523 = vpop.f32.mrb[0].mxu0
    %v6524 = vadd.f32 %v6479, %v6523
    %v6525 = vpop.f32.mrb[0].mxu0
    %v6526 = vpop.f32.mrb[0].mxu0
    %v6527 = vadd.f32 %v6479, %v6526
    %v6528 = vpop.f32.mrb[0].mxu0
    %6529 = vmatprep.mubr.bf16.mxu0 %v2603
    %6530 = vmatmul.mubr.bf16.gmra.mrb[0].mxu0 %v1204
    %v6531 = vpop.f32.mrb[0].mxu0
    %v6532 = vadd.f32 %v6479, %v6531
    %v6533 = vpop.f32.mrb[0].mxu0
    %v6534 = vpop.f32.mrb[0].mxu0
    %v6535 = vadd.f32 %v6479, %v6534
    %v6536 = vpop.f32.mrb[0].mxu0
    %6537 = vmatprep.mubr.bf16.mxu0 %v2606
    %6538 = vmatmul.mubr.bf16.gmra.mrb[0].mxu0 %v1206
    %v6539 = vpop.f32.mrb[0].mxu0
    %v6540 = vadd.f32 %v6479, %v6539
    %v6541 = vpop.f32.mrb[0].mxu0
    %v6542 = vpop.f32.mrb[0].mxu0
    %v6543 = vadd.f32 %v6479, %v6542
    %v6544 = vpop.f32.mrb[0].mxu0
    %6545 = vmatprep.mubr.bf16.mxu0 %v2609
    %6546 = vmatmul.mubr.bf16.gmra.mrb[0].mxu0 %v1208
    %v6547 = vpop.f32.mrb[0].mxu0
    %v6548 = vadd.f32 %v6479, %v6547
    %v6549 = vpop.f32.mrb[0].mxu0
    %v6550 = vpop.f32.mrb[0].mxu0
    %v6551 = vadd.f32 %v6479, %v6550
    %v6552 = vpop.f32.mrb[0].mxu0
    %6553 = vmatprep.mubr.bf16.mxu0 %v2612
    %6554 = vmatmul.mubr.bf16.gmra.mrb[0].mxu0 %v1210
    %v6555 = vpop.f32.mrb[0].mxu0
    %v6556 = vadd.f32 %v6479, %v6555
    %v6557 = vpop.f32.mrb[0].mxu0
    %v6558 = vpop.f32.mrb[0].mxu0
    %v6559 = vadd.f32 %v6479, %v6558
    %v6560 = vpop.f32.mrb[0].mxu0
    %6561 = vmatprep.mubr.bf16.mxu0 %v2615
    %6562 = vmatmul.mubr.bf16.gmra.mrb[0].mxu0 %v1212
    %v6563 = vpop.f32.mrb[0].mxu0
    %v6564 = vadd.f32 %v6479, %v6563
    %v6565 = vpop.f32.mrb[0].mxu0
    %v6566 = vpop.f32.mrb[0].mxu0
    %v6567 = vadd.f32 %v6479, %v6566
    %v6568 = vpop.f32.mrb[0].mxu0
    %6569 = vmatprep.mubr.bf16.mxu0 %v2618
    %6570 = vmatmul.mubr.bf16.gmra.mrb[0].mxu0 %v1214
    %v6571 = vpop.f32.mrb[0].mxu0
    %v6572 = vadd.f32 %v6479, %v6571
    %v6573 = vpop.f32.mrb[0].mxu0
    %v6574 = vpop.f32.mrb[0].mxu0
    %v6575 = vadd.f32 %v6479, %v6574
    %v6576 = vpop.f32.mrb[0].mxu0
    %6577 = vmatprep.mubr.bf16.mxu0 %v2621
    %6578 = vmatmul.mubr.bf16.gmra.mrb[0].mxu0 %v1216
    %v6579 = vpop.f32.mrb[0].mxu0
    %v6580 = vadd.f32 %v6479, %v6579
    %v6581 = vpop.f32.mrb[0].mxu0
    %v6582 = vpop.f32.mrb[0].mxu0
    %v6583 = vadd.f32 %v6479, %v6582
    %v6584 = vpop.f32.mrb[0].mxu0
    %6585 = vmatprep.mubr.bf16.mxu0 %v2624
    %6586 = vmatmul.mubr.bf16.gmra.mrb[0].mxu0 %v1218
    %v6587 = vpop.f32.mrb[0].mxu0
    %v6588 = vadd.f32 %v6479, %v6587
    %v6589 = vpop.f32.mrb[0].mxu0
    %v6590 = vpop.f32.mrb[0].mxu0
    %v6591 = vadd.f32 %v6479, %v6590
    %v6592 = vpop.f32.mrb[0].mxu0
    %6593 = vmatprep.mubr.bf16.mxu0 %v2627
    %6594 = vmatmul.mubr.bf16.gmra.mrb[0].mxu0 %v1220
    %v6595 = vpop.f32.mrb[0].mxu0
    %v6596 = vadd.f32 %v6479, %v6595
    %v6597 = vpop.f32.mrb[0].mxu0
    %v6598 = vpop.f32.mrb[0].mxu0
    %v6599 = vadd.f32 %v6479, %v6598
    %v6600 = vpop.f32.mrb[0].mxu0
    %6601 = vmatprep.mubr.bf16.mxu0 %v2630
    %6602 = vmatmul.mubr.bf16.gmra.mrb[0].mxu0 %v1222
    %v6603 = vpop.f32.mrb[0].mxu0
    %v6604 = vadd.f32 %v6479, %v6603
    %v6605 = vpop.f32.mrb[0].mxu0
    %v6606 = vpop.f32.mrb[0].mxu0
    %v6607 = vadd.f32 %v6479, %v6606
    %v6608 = vpop.f32.mrb[0].mxu0
    %6609 = vmatprep.mubr.bf16.mxu0 %v2633
    %6610 = vmatmul.mubr.bf16.gmra.mrb[0].mxu0 %v1224
    %v6611 = vpop.f32.mrb[0].mxu0
    %v6612 = vadd.f32 %v6479, %v6611
    %v6613 = vpop.f32.mrb[0].mxu0
    %v6614 = vpop.f32.mrb[0].mxu0
    %v6615 = vadd.f32 %v6479, %v6614
    %v6616 = vpop.f32.mrb[0].mxu0
    %6617 = vmatprep.mubr.bf16.mxu0 %v2636
    %6618 = vmatmul.mubr.bf16.gmra.mrb[0].mxu0 %v1226
    %v6619 = vpop.f32.mrb[0].mxu0
    %v6620 = vadd.f32 %v6479, %v6619
    %v6621 = vpop.f32.mrb[0].mxu0
    %v6622 = vpop.f32.mrb[0].mxu0
    %v6623 = vadd.f32 %v6479, %v6622
    %v6624 = vpop.f32.mrb[0].mxu0
    %6625 = vmatprep.mubr.bf16.mxu0 %v2639
    %6626 = vmatmul.mubr.bf16.gmra.mrb[0].mxu0 %v1228
    %v6627 = vpop.f32.mrb[0].mxu0
    %v6628 = vadd.f32 %v6479, %v6627
    %v6629 = vpop.f32.mrb[0].mxu0
    %v6630 = vpop.f32.mrb[0].mxu0
    %v6631 = vadd.f32 %v6479, %v6630
    %v6632 = vpop.f32.mrb[0].mxu0
    %6633 = vmatprep.mubr.bf16.mxu0 %v2642
    %6634 = vmatmul.mubr.bf16.gmra.mrb[0].mxu0 %v1230
    %v6635 = vpop.f32.mrb[0].mxu0
    %v6636 = vadd.f32 %v6479, %v6635
    %v6637 = vpop.f32.mrb[0].mxu0
    %v6638 = vpop.f32.mrb[0].mxu0
    %v6639 = vadd.f32 %v6479, %v6638
    %v6640 = vpop.f32.mrb[0].mxu0
    %6641 = vdwg.mxu0
    %v6642 = vld [vmem:[#allocation33] sm:$0x1]
    %v6643 = vld [vmem:[#allocation24] sm:$0x1]
    %v6644 = vsel %vm1713, %v6516, 0.0
    %6645 = vadd.xlane.f32.xlu0 %v6644
    %v6646 = vpop.xlane.xlu0 %6645
    %v6647 = vsel %vm1713, %v6519, 0.0
    %6648 = vadd.xlane.f32.xlu0 %v6647
    %v6649 = vpop.xlane.xlu0 %6648
    %v6650 = vsel %vm1713, %v6524, 0.0
    %6651 = vadd.xlane.f32.xlu0 %v6650
    %v6652 = vpop.xlane.xlu0 %6651
    %v6653 = vsel %vm1713, %v6527, 0.0
    %6654 = vadd.xlane.f32.xlu0 %v6653
    %v6655 = vpop.xlane.xlu0 %6654
    %v6656 = vsel %vm1713, %v6532, 0.0
    %6657 = vadd.xlane.f32.xlu0 %v6656
    %v6658 = vpop.xlane.xlu0 %6657
    %v6659 = vsel %vm1713, %v6535, 0.0
    %6660 = vadd.xlane.f32.xlu0 %v6659
    %v6661 = vpop.xlane.xlu0 %6660
    %v6662 = vsel %vm1713, %v6540, 0.0
    %6663 = vadd.xlane.f32.xlu0 %v6662
    %v6664 = vpop.xlane.xlu0 %6663
    %v6665 = vsel %vm1713, %v6543, 0.0
    %6666 = vadd.xlane.f32.xlu0 %v6665
    %v6667 = vpop.xlane.xlu0 %6666
    %v6668 = vsel %vm1713, %v6548, 0.0
    %6669 = vadd.xlane.f32.xlu0 %v6668
    %v6670 = vpop.xlane.xlu0 %6669
    %v6671 = vsel %vm1713, %v6551, 0.0
    %6672 = vadd.xlane.f32.xlu0 %v6671
    %v6673 = vpop.xlane.xlu0 %6672
    %v6674 = vsel %vm1713, %v6556, 0.0
    %6675 = vadd.xlane.f32.xlu0 %v6674
    %v6676 = vpop.xlane.xlu0 %6675
    %v6677 = vsel %vm1713, %v6559, 0.0
    %6678 = vadd.xlane.f32.xlu0 %v6677
    %v6679 = vpop.xlane.xlu0 %6678
    %v6680 = vsel %vm1713, %v6564, 0.0
    %6681 = vadd.xlane.f32.xlu0 %v6680
    %v6682 = vpop.xlane.xlu0 %6681
    %v6683 = vsel %vm1713, %v6567, 0.0
    %6684 = vadd.xlane.f32.xlu0 %v6683
    %v6685 = vpop.xlane.xlu0 %6684
    %v6686 = vsel %vm1713, %v6572, 0.0
    %6687 = vadd.xlane.f32.xlu0 %v6686
    %v6688 = vpop.xlane.xlu0 %6687
    %v6689 = vsel %vm1713, %v6575, 0.0
    %6690 = vadd.xlane.f32.xlu0 %v6689
    %v6691 = vpop.xlane.xlu0 %6690
    %v6692 = vsel %vm1713, %v6580, 0.0
    %6693 = vadd.xlane.f32.xlu0 %v6692
    %v6694 = vpop.xlane.xlu0 %6693
    %v6695 = vsel %vm1713, %v6583, 0.0
    %6696 = vadd.xlane.f32.xlu0 %v6695
    %v6697 = vpop.xlane.xlu0 %6696
    %v6698 = vsel %vm1713, %v6588, 0.0
    %6699 = vadd.xlane.f32.xlu0 %v6698
    %v6700 = vpop.xlane.xlu0 %6699
    %v6701 = vsel %vm1713, %v6591, 0.0
    %6702 = vadd.xlane.f32.xlu0 %v6701
    %v6703 = vpop.xlane.xlu0 %6702
    %v6704 = vsel %vm1713, %v6596, 0.0
    %6705 = vadd.xlane.f32.xlu0 %v6704
    %v6706 = vpop.xlane.xlu0 %6705
    %v6707 = vsel %vm1713, %v6599, 0.0
    %6708 = vadd.xlane.f32.xlu0 %v6707
    %v6709 = vpop.xlane.xlu0 %6708
    %v6710 = vsel %vm1713, %v6604, 0.0
    %6711 = vadd.xlane.f32.xlu0 %v6710
    %v6712 = vpop.xlane.xlu0 %6711
    %v6713 = vsel %vm1713, %v6607, 0.0
    %6714 = vadd.xlane.f32.xlu0 %v6713
    %v6715 = vpop.xlane.xlu0 %6714
    %v6716 = vsel %vm1713, %v6612, 0.0
    %6717 = vadd.xlane.f32.xlu0 %v6716
    %v6718 = vpop.xlane.xlu0 %6717
    %v6719 = vsel %vm1713, %v6615, 0.0
    %6720 = vadd.xlane.f32.xlu0 %v6719
    %v6721 = vpop.xlane.xlu0 %6720
    %v6722 = vsel %vm1713, %v6620, 0.0
    %6723 = vadd.xlane.f32.xlu0 %v6722
    %v6724 = vpop.xlane.xlu0 %6723
    %v6725 = vsel %vm1713, %v6623, 0.0
    %6726 = vadd.xlane.f32.xlu0 %v6725
    %v6727 = vpop.xlane.xlu0 %6726
    %v6728 = vsel %vm1713, %v6628, 0.0
    %6729 = vadd.xlane.f32.xlu0 %v6728
    %v6730 = vpop.xlane.xlu0 %6729
    %v6731 = vsel %vm1713, %v6631, 0.0
    %6732 = vadd.xlane.f32.xlu0 %v6731
    %v6733 = vpop.xlane.xlu0 %6732
    %v6734 = vsel %vm1713, %v6636, 0.0
    %6735 = vadd.xlane.f32.xlu0 %v6734
    %v6736 = vpop.xlane.xlu0 %6735
    %v6737 = vsel %vm1713, %v6639, 0.0
    %6738 = vadd.xlane.f32.xlu0 %v6737
    %v6739 = vpop.xlane.xlu0 %6738
    %v6740 = vmul.f32 %v6646, %v2903
    %v6741 = vmul.f32 %v6649, %v2903
    %v6742 = vmul.f32 %v6652, %v2903
    %v6743 = vmul.f32 %v6655, %v2903
    %v6744 = vmul.f32 %v6658, %v2903
    %v6745 = vmul.f32 %v6661, %v2903
    %v6746 = vmul.f32 %v6664, %v2903
    %v6747 = vmul.f32 %v6667, %v2903
    %v6748 = vmul.f32 %v6670, %v2903
    %v6749 = vmul.f32 %v6673, %v2903
    %v6750 = vmul.f32 %v6676, %v2903
    %v6751 = vmul.f32 %v6679, %v2903
    %v6752 = vmul.f32 %v6682, %v2903
    %v6753 = vmul.f32 %v6685, %v2903
    %v6754 = vmul.f32 %v6688, %v2903
    %v6755 = vmul.f32 %v6691, %v2903
    %v6756 = vmul.f32 %v6694, %v2903
    %v6757 = vmul.f32 %v6697, %v2903
    %v6758 = vmul.f32 %v6700, %v2903
    %v6759 = vmul.f32 %v6703, %v2903
    %v6760 = vmul.f32 %v6706, %v2903
    %v6761 = vmul.f32 %v6709, %v2903
    %v6762 = vmul.f32 %v6712, %v2903
    %v6763 = vmul.f32 %v6715, %v2903
    %v6764 = vmul.f32 %v6718, %v2903
    %v6765 = vmul.f32 %v6721, %v2903
    %v6766 = vmul.f32 %v6724, %v2903
    %v6767 = vmul.f32 %v6727, %v2903
    %v6768 = vmul.f32 %v6730, %v2903
    %v6769 = vmul.f32 %v6733, %v2903
    %v6770 = vmul.f32 %v6736, %v2903
    %v6771 = vmul.f32 %v6739, %v2903
    %v6772 = vmul.f32 %v6516, %v6516
    %v6773 = vmul.f32 %v6519, %v6519
    %v6774 = vmul.f32 %v6524, %v6524
    %v6775 = vmul.f32 %v6527, %v6527
    %v6776 = vmul.f32 %v6532, %v6532
    %v6777 = vmul.f32 %v6535, %v6535
    %v6778 = vmul.f32 %v6540, %v6540
    %v6779 = vmul.f32 %v6543, %v6543
    %v6780 = vmul.f32 %v6548, %v6548
    %v6781 = vmul.f32 %v6551, %v6551
    %v6782 = vmul.f32 %v6556, %v6556
    %v6783 = vmul.f32 %v6559, %v6559
    %v6784 = vmul.f32 %v6564, %v6564
    %v6785 = vmul.f32 %v6567, %v6567
    %v6786 = vmul.f32 %v6572, %v6572
    %v6787 = vmul.f32 %v6575, %v6575
    %v6788 = vmul.f32 %v6580, %v6580
    %v6789 = vmul.f32 %v6583, %v6583
    %v6790 = vmul.f32 %v6588, %v6588
    %v6791 = vmul.f32 %v6591, %v6591
    %v6792 = vmul.f32 %v6596, %v6596
    %v6793 = vmul.f32 %v6599, %v6599
    %v6794 = vmul.f32 %v6604, %v6604
    %v6795 = vmul.f32 %v6607, %v6607
    %v6796 = vmul.f32 %v6612, %v6612
    %v6797 = vmul.f32 %v6615, %v6615
    %v6798 = vmul.f32 %v6620, %v6620
    %v6799 = vmul.f32 %v6623, %v6623
    %v6800 = vmul.f32 %v6628, %v6628
    %v6801 = vmul.f32 %v6631, %v6631
    %v6802 = vmul.f32 %v6636, %v6636
    %v6803 = vmul.f32 %v6639, %v6639
    %v6804 = vsel %vm1713, %v6772, 0.0
    %6805 = vadd.xlane.f32.xlu0 %v6804
    %v6806 = vpop.xlane.xlu0 %6805
    %v6807 = vsel %vm1713, %v6773, 0.0
    %6808 = vadd.xlane.f32.xlu0 %v6807
    %v6809 = vpop.xlane.xlu0 %6808
    %v6810 = vsel %vm1713, %v6774, 0.0
    %6811 = vadd.xlane.f32.xlu0 %v6810
    %v6812 = vpop.xlane.xlu0 %6811
    %v6813 = vsel %vm1713, %v6775, 0.0
    %6814 = vadd.xlane.f32.xlu0 %v6813
    %v6815 = vpop.xlane.xlu0 %6814
    %v6816 = vsel %vm1713, %v6776, 0.0
    %6817 = vadd.xlane.f32.xlu0 %v6816
    %v6818 = vpop.xlane.xlu0 %6817
    %v6819 = vsel %vm1713, %v6777, 0.0
    %6820 = vadd.xlane.f32.xlu0 %v6819
    %v6821 = vpop.xlane.xlu0 %6820
    %v6822 = vsel %vm1713, %v6778, 0.0
    %6823 = vadd.xlane.f32.xlu0 %v6822
    %v6824 = vpop.xlane.xlu0 %6823
    %v6825 = vsel %vm1713, %v6779, 0.0
    %6826 = vadd.xlane.f32.xlu0 %v6825
    %v6827 = vpop.xlane.xlu0 %6826
    %v6828 = vsel %vm1713, %v6780, 0.0
    %6829 = vadd.xlane.f32.xlu0 %v6828
    %v6830 = vpop.xlane.xlu0 %6829
    %v6831 = vsel %vm1713, %v6781, 0.0
    %6832 = vadd.xlane.f32.xlu0 %v6831
    %v6833 = vpop.xlane.xlu0 %6832
    %v6834 = vsel %vm1713, %v6782, 0.0
    %6835 = vadd.xlane.f32.xlu0 %v6834
    %v6836 = vpop.xlane.xlu0 %6835
    %v6837 = vsel %vm1713, %v6783, 0.0
    %6838 = vadd.xlane.f32.xlu0 %v6837
    %v6839 = vpop.xlane.xlu0 %6838
    %v6840 = vsel %vm1713, %v6784, 0.0
    %6841 = vadd.xlane.f32.xlu0 %v6840
    %v6842 = vpop.xlane.xlu0 %6841
    %v6843 = vsel %vm1713, %v6785, 0.0
    %6844 = vadd.xlane.f32.xlu0 %v6843
    %v6845 = vpop.xlane.xlu0 %6844
    %v6846 = vsel %vm1713, %v6786, 0.0
    %6847 = vadd.xlane.f32.xlu0 %v6846
    %v6848 = vpop.xlane.xlu0 %6847
    %v6849 = vsel %vm1713, %v6787, 0.0
    %6850 = vadd.xlane.f32.xlu0 %v6849
    %v6851 = vpop.xlane.xlu0 %6850
    %v6852 = vsel %vm1713, %v6788, 0.0
    %6853 = vadd.xlane.f32.xlu0 %v6852
    %v6854 = vpop.xlane.xlu0 %6853
    %v6855 = vsel %vm1713, %v6789, 0.0
    %6856 = vadd.xlane.f32.xlu0 %v6855
    %v6857 = vpop.xlane.xlu0 %6856
    %v6858 = vsel %vm1713, %v6790, 0.0
    %6859 = vadd.xlane.f32.xlu0 %v6858
    %v6860 = vpop.xlane.xlu0 %6859
    %v6861 = vsel %vm1713, %v6791, 0.0
    %6862 = vadd.xlane.f32.xlu0 %v6861
    %v6863 = vpop.xlane.xlu0 %6862
    %v6864 = vsel %vm1713, %v6792, 0.0
    %6865 = vadd.xlane.f32.xlu0 %v6864
    %v6866 = vpop.xlane.xlu0 %6865
    %v6867 = vsel %vm1713, %v6793, 0.0
    %6868 = vadd.xlane.f32.xlu0 %v6867
    %v6869 = vpop.xlane.xlu0 %6868
    %v6870 = vsel %vm1713, %v6794, 0.0
    %6871 = vadd.xlane.f32.xlu0 %v6870
    %v6872 = vpop.xlane.xlu0 %6871
    %v6873 = vsel %vm1713, %v6795, 0.0
    %6874 = vadd.xlane.f32.xlu0 %v6873
    %v6875 = vpop.xlane.xlu0 %6874
    %v6876 = vsel %vm1713, %v6796, 0.0
    %6877 = vadd.xlane.f32.xlu0 %v6876
    %v6878 = vpop.xlane.xlu0 %6877
    %v6879 = vsel %vm1713, %v6797, 0.0
    %6880 = vadd.xlane.f32.xlu0 %v6879
    %v6881 = vpop.xlane.xlu0 %6880
    %v6882 = vsel %vm1713, %v6798, 0.0
    %6883 = vadd.xlane.f32.xlu0 %v6882
    %v6884 = vpop.xlane.xlu0 %6883
    %v6885 = vsel %vm1713, %v6799, 0.0
    %6886 = vadd.xlane.f32.xlu0 %v6885
    %v6887 = vpop.xlane.xlu0 %6886
    %v6888 = vsel %vm1713, %v6800, 0.0
    %6889 = vadd.xlane.f32.xlu0 %v6888
    %v6890 = vpop.xlane.xlu0 %6889
    %v6891 = vsel %vm1713, %v6801, 0.0
    %6892 = vadd.xlane.f32.xlu0 %v6891
    %v6893 = vpop.xlane.xlu0 %6892
    %v6894 = vsel %vm1713, %v6802, 0.0
    %6895 = vadd.xlane.f32.xlu0 %v6894
    %v6896 = vpop.xlane.xlu0 %6895
    %v6897 = vsel %vm1713, %v6803, 0.0
    %6898 = vadd.xlane.f32.xlu0 %v6897
    %v6899 = vpop.xlane.xlu0 %6898
    %v6900 = vmul.f32 %v6806, %v2903
    %v6901 = vmul.f32 %v6809, %v2903
    %v6902 = vmul.f32 %v6812, %v2903
    %v6903 = vmul.f32 %v6815, %v2903
    %v6904 = vmul.f32 %v6818, %v2903
    %v6905 = vmul.f32 %v6821, %v2903
    %v6906 = vmul.f32 %v6824, %v2903
    %v6907 = vmul.f32 %v6827, %v2903
    %v6908 = vmul.f32 %v6830, %v2903
    %v6909 = vmul.f32 %v6833, %v2903
    %v6910 = vmul.f32 %v6836, %v2903
    %v6911 = vmul.f32 %v6839, %v2903
    %v6912 = vmul.f32 %v6842, %v2903
    %v6913 = vmul.f32 %v6845, %v2903
    %v6914 = vmul.f32 %v6848, %v2903
    %v6915 = vmul.f32 %v6851, %v2903
    %v6916 = vmul.f32 %v6854, %v2903
    %v6917 = vmul.f32 %v6857, %v2903
    %v6918 = vmul.f32 %v6860, %v2903
    %v6919 = vmul.f32 %v6863, %v2903
    %v6920 = vmul.f32 %v6866, %v2903
    %v6921 = vmul.f32 %v6869, %v2903
    %v6922 = vmul.f32 %v6872, %v2903
    %v6923 = vmul.f32 %v6875, %v2903
    %v6924 = vmul.f32 %v6878, %v2903
    %v6925 = vmul.f32 %v6881, %v2903
    %v6926 = vmul.f32 %v6884, %v2903
    %v6927 = vmul.f32 %v6887, %v2903
    %v6928 = vmul.f32 %v6890, %v2903
    %v6929 = vmul.f32 %v6893, %v2903
    %v6930 = vmul.f32 %v6896, %v2903
    %v6931 = vmul.f32 %v6899, %v2903
    %v6932 = vmul.f32 %v6740, %v6740
    %v6933 = vmul.f32 %v6741, %v6741
    %v6934 = vmul.f32 %v6742, %v6742
    %v6935 = vmul.f32 %v6743, %v6743
    %v6936 = vmul.f32 %v6744, %v6744
    %v6937 = vmul.f32 %v6745, %v6745
    %v6938 = vmul.f32 %v6746, %v6746
    %v6939 = vmul.f32 %v6747, %v6747
    %v6940 = vmul.f32 %v6748, %v6748
    %v6941 = vmul.f32 %v6749, %v6749
    %v6942 = vmul.f32 %v6750, %v6750
    %v6943 = vmul.f32 %v6751, %v6751
    %v6944 = vmul.f32 %v6752, %v6752
    %v6945 = vmul.f32 %v6753, %v6753
    %v6946 = vmul.f32 %v6754, %v6754
    %v6947 = vmul.f32 %v6755, %v6755
    %v6948 = vmul.f32 %v6756, %v6756
    %v6949 = vmul.f32 %v6757, %v6757
    %v6950 = vmul.f32 %v6758, %v6758
    %v6951 = vmul.f32 %v6759, %v6759
    %v6952 = vmul.f32 %v6760, %v6760
    %v6953 = vmul.f32 %v6761, %v6761
    %v6954 = vmul.f32 %v6762, %v6762
    %v6955 = vmul.f32 %v6763, %v6763
    %v6956 = vmul.f32 %v6764, %v6764
    %v6957 = vmul.f32 %v6765, %v6765
    %v6958 = vmul.f32 %v6766, %v6766
    %v6959 = vmul.f32 %v6767, %v6767
    %v6960 = vmul.f32 %v6768, %v6768
    %v6961 = vmul.f32 %v6769, %v6769
    %v6962 = vmul.f32 %v6770, %v6770
    %v6963 = vmul.f32 %v6771, %v6771
    %v6964 = vsub.f32 %v6900, %v6932
    %v6965 = vsub.f32 %v6901, %v6933
    %v6966 = vsub.f32 %v6902, %v6934
    %v6967 = vsub.f32 %v6903, %v6935
    %v6968 = vsub.f32 %v6904, %v6936
    %v6969 = vsub.f32 %v6905, %v6937
    %v6970 = vsub.f32 %v6906, %v6938
    %v6971 = vsub.f32 %v6907, %v6939
    %v6972 = vsub.f32 %v6908, %v6940
    %v6973 = vsub.f32 %v6909, %v6941
    %v6974 = vsub.f32 %v6910, %v6942
    %v6975 = vsub.f32 %v6911, %v6943
    %v6976 = vsub.f32 %v6912, %v6944
    %v6977 = vsub.f32 %v6913, %v6945
    %v6978 = vsub.f32 %v6914, %v6946
    %v6979 = vsub.f32 %v6915, %v6947
    %v6980 = vsub.f32 %v6916, %v6948
    %v6981 = vsub.f32 %v6917, %v6949
    %v6982 = vsub.f32 %v6918, %v6950
    %v6983 = vsub.f32 %v6919, %v6951
    %v6984 = vsub.f32 %v6920, %v6952
    %v6985 = vsub.f32 %v6921, %v6953
    %v6986 = vsub.f32 %v6922, %v6954
    %v6987 = vsub.f32 %v6923, %v6955
    %v6988 = vsub.f32 %v6924, %v6956
    %v6989 = vsub.f32 %v6925, %v6957
    %v6990 = vsub.f32 %v6926, %v6958
    %v6991 = vsub.f32 %v6927, %v6959
    %v6992 = vsub.f32 %v6928, %v6960
    %v6993 = vsub.f32 %v6929, %v6961
    %v6994 = vsub.f32 %v6930, %v6962
    %v6995 = vsub.f32 %v6931, %v6963
    %v6996 = vmax.f32 %v6964, 0.0
    %v6997 = vmax.f32 %v6965, 0.0
    %v6998 = vmax.f32 %v6966, 0.0
    %v6999 = vmax.f32 %v6967, 0.0
    %v7000 = vmax.f32 %v6968, 0.0
    %v7001 = vmax.f32 %v6969, 0.0
    %v7002 = vmax.f32 %v6970, 0.0
    %v7003 = vmax.f32 %v6971, 0.0
    %v7004 = vmax.f32 %v6972, 0.0
    %v7005 = vmax.f32 %v6973, 0.0
    %v7006 = vmax.f32 %v6974, 0.0
    %v7007 = vmax.f32 %v6975, 0.0
    %v7008 = vmax.f32 %v6976, 0.0
    %v7009 = vmax.f32 %v6977, 0.0
    %v7010 = vmax.f32 %v6978, 0.0
    %v7011 = vmax.f32 %v6979, 0.0
    %v7012 = vmax.f32 %v6980, 0.0
    %v7013 = vmax.f32 %v6981, 0.0
    %v7014 = vmax.f32 %v6982, 0.0
    %v7015 = vmax.f32 %v6983, 0.0
    %v7016 = vmax.f32 %v6984, 0.0
    %v7017 = vmax.f32 %v6985, 0.0
    %v7018 = vmax.f32 %v6986, 0.0
    %v7019 = vmax.f32 %v6987, 0.0
    %v7020 = vmax.f32 %v6988, 0.0
    %v7021 = vmax.f32 %v6989, 0.0
    %v7022 = vmax.f32 %v6990, 0.0
    %v7023 = vmax.f32 %v6991, 0.0
    %v7024 = vmax.f32 %v6992, 0.0
    %v7025 = vmax.f32 %v6993, 0.0
    %v7026 = vmax.f32 %v6994, 0.0
    %v7027 = vmax.f32 %v6995, 0.0
    %v7028 = vsub.f32 %v6516, %v6740
    %v7029 = vsub.f32 %v6519, %v6741
    %v7030 = vsub.f32 %v6524, %v6742
    %v7031 = vsub.f32 %v6527, %v6743
    %v7032 = vsub.f32 %v6532, %v6744
    %v7033 = vsub.f32 %v6535, %v6745
    %v7034 = vsub.f32 %v6540, %v6746
    %v7035 = vsub.f32 %v6543, %v6747
    %v7036 = vsub.f32 %v6548, %v6748
    %v7037 = vsub.f32 %v6551, %v6749
    %v7038 = vsub.f32 %v6556, %v6750
    %v7039 = vsub.f32 %v6559, %v6751
    %v7040 = vsub.f32 %v6564, %v6752
    %v7041 = vsub.f32 %v6567, %v6753
    %v7042 = vsub.f32 %v6572, %v6754
    %v7043 = vsub.f32 %v6575, %v6755
    %v7044 = vsub.f32 %v6580, %v6756
    %v7045 = vsub.f32 %v6583, %v6757
    %v7046 = vsub.f32 %v6588, %v6758
    %v7047 = vsub.f32 %v6591, %v6759
    %v7048 = vsub.f32 %v6596, %v6760
    %v7049 = vsub.f32 %v6599, %v6761
    %v7050 = vsub.f32 %v6604, %v6762
    %v7051 = vsub.f32 %v6607, %v6763
    %v7052 = vsub.f32 %v6612, %v6764
    %v7053 = vsub.f32 %v6615, %v6765
    %v7054 = vsub.f32 %v6620, %v6766
    %v7055 = vsub.f32 %v6623, %v6767
    %v7056 = vsub.f32 %v6628, %v6768
    %v7057 = vsub.f32 %v6631, %v6769
    %v7058 = vsub.f32 %v6636, %v6770
    %v7059 = vsub.f32 %v6639, %v6771
    %v7060 = vadd.f32 %v6996, 1e-05
    %v7061 = vadd.f32 %v6997, 1e-05
    %v7062 = vadd.f32 %v6998, 1e-05
    %v7063 = vadd.f32 %v6999, 1e-05
    %v7064 = vadd.f32 %v7000, 1e-05
    %v7065 = vadd.f32 %v7001, 1e-05
    %v7066 = vadd.f32 %v7002, 1e-05
    %v7067 = vadd.f32 %v7003, 1e-05
    %v7068 = vadd.f32 %v7004, 1e-05
    %v7069 = vadd.f32 %v7005, 1e-05
    %v7070 = vadd.f32 %v7006, 1e-05
    %v7071 = vadd.f32 %v7007, 1e-05
    %v7072 = vadd.f32 %v7008, 1e-05
    %v7073 = vadd.f32 %v7009, 1e-05
    %v7074 = vadd.f32 %v7010, 1e-05
    %v7075 = vadd.f32 %v7011, 1e-05
    %v7076 = vadd.f32 %v7012, 1e-05
    %v7077 = vadd.f32 %v7013, 1e-05
    %v7078 = vadd.f32 %v7014, 1e-05
    %v7079 = vadd.f32 %v7015, 1e-05
    %v7080 = vadd.f32 %v7016, 1e-05
    %v7081 = vadd.f32 %v7017, 1e-05
    %v7082 = vadd.f32 %v7018, 1e-05
    %v7083 = vadd.f32 %v7019, 1e-05
    %v7084 = vadd.f32 %v7020, 1e-05
    %v7085 = vadd.f32 %v7021, 1e-05
    %v7086 = vadd.f32 %v7022, 1e-05
    %v7087 = vadd.f32 %v7023, 1e-05
    %v7088 = vadd.f32 %v7024, 1e-05
    %v7089 = vadd.f32 %v7025, 1e-05
    %v7090 = vadd.f32 %v7026, 1e-05
    %v7091 = vadd.f32 %v7027, 1e-05
    %v7092 = vrsqrt.pop %v7060
    %v7093 = vrsqrt.pop %v7061
    %v7094 = vrsqrt.pop %v7062
    %v7095 = vrsqrt.pop %v7063
    %v7096 = vrsqrt.pop %v7064
    %v7097 = vrsqrt.pop %v7065
    %v7098 = vrsqrt.pop %v7066
    %v7099 = vrsqrt.pop %v7067
    %v7100 = vrsqrt.pop %v7068
    %v7101 = vrsqrt.pop %v7069
    %v7102 = vrsqrt.pop %v7070
    %v7103 = vrsqrt.pop %v7071
    %v7104 = vrsqrt.pop %v7072
    %v7105 = vrsqrt.pop %v7073
    %v7106 = vrsqrt.pop %v7074
    %v7107 = vrsqrt.pop %v7075
    %v7108 = vrsqrt.pop %v7076
    %v7109 = vrsqrt.pop %v7077
    %v7110 = vrsqrt.pop %v7078
    %v7111 = vrsqrt.pop %v7079
    %v7112 = vrsqrt.pop %v7080
    %v7113 = vrsqrt.pop %v7081
    %v7114 = vrsqrt.pop %v7082
    %v7115 = vrsqrt.pop %v7083
    %v7116 = vrsqrt.pop %v7084
    %v7117 = vrsqrt.pop %v7085
    %v7118 = vrsqrt.pop %v7086
    %v7119 = vrsqrt.pop %v7087
    %v7120 = vrsqrt.pop %v7088
    %v7121 = vrsqrt.pop %v7089
    %v7122 = vrsqrt.pop %v7090
    %v7123 = vrsqrt.pop %v7091
    %v7124 = vmul.f32 %v7028, %v7092
    %v7125 = vmul.f32 %v7029, %v7093
    %v7126 = vmul.f32 %v7030, %v7094
    %v7127 = vmul.f32 %v7031, %v7095
    %v7128 = vmul.f32 %v7032, %v7096
    %v7129 = vmul.f32 %v7033, %v7097
    %v7130 = vmul.f32 %v7034, %v7098
    %v7131 = vmul.f32 %v7035, %v7099
    %v7132 = vmul.f32 %v7036, %v7100
    %v7133 = vmul.f32 %v7037, %v7101
    %v7134 = vmul.f32 %v7038, %v7102
    %v7135 = vmul.f32 %v7039, %v7103
    %v7136 = vmul.f32 %v7040, %v7104
    %v7137 = vmul.f32 %v7041, %v7105
    %v7138 = vmul.f32 %v7042, %v7106
    %v7139 = vmul.f32 %v7043, %v7107
    %v7140 = vmul.f32 %v7044, %v7108
    %v7141 = vmul.f32 %v7045, %v7109
    %v7142 = vmul.f32 %v7046, %v7110
    %v7143 = vmul.f32 %v7047, %v7111
    %v7144 = vmul.f32 %v7048, %v7112
    %v7145 = vmul.f32 %v7049, %v7113
    %v7146 = vmul.f32 %v7050, %v7114
    %v7147 = vmul.f32 %v7051, %v7115
    %v7148 = vmul.f32 %v7052, %v7116
    %v7149 = vmul.f32 %v7053, %v7117
    %v7150 = vmul.f32 %v7054, %v7118
    %v7151 = vmul.f32 %v7055, %v7119
    %v7152 = vmul.f32 %v7056, %v7120
    %v7153 = vmul.f32 %v7057, %v7121
    %v7154 = vmul.f32 %v7058, %v7122
    %v7155 = vmul.f32 %v7059, %v7123
    %v7157 = vlaneseq
    %v7158 = vshrl.u32 %v7157, 7
    %v7159 = vsub.s32 0, %v7158
    %v7160 = vrot.slane %v6642, %v7159
    %v7162 = vmul.f32 %v7124, %v7160
    %v7163 = vmul.f32 %v7125, %v7160
    %v7164 = vmul.f32 %v7126, %v7160
    %v7165 = vmul.f32 %v7127, %v7160
    %v7166 = vmul.f32 %v7128, %v7160
    %v7167 = vmul.f32 %v7129, %v7160
    %v7168 = vmul.f32 %v7130, %v7160
    %v7169 = vmul.f32 %v7131, %v7160
    %v7170 = vmul.f32 %v7132, %v7160
    %v7171 = vmul.f32 %v7133, %v7160
    %v7172 = vmul.f32 %v7134, %v7160
    %v7173 = vmul.f32 %v7135, %v7160
    %v7174 = vmul.f32 %v7136, %v7160
    %v7175 = vmul.f32 %v7137, %v7160
    %v7176 = vmul.f32 %v7138, %v7160
    %v7177 = vmul.f32 %v7139, %v7160
    %v7178 = vmul.f32 %v7140, %v7160
    %v7179 = vmul.f32 %v7141, %v7160
    %v7180 = vmul.f32 %v7142, %v7160
    %v7181 = vmul.f32 %v7143, %v7160
    %v7182 = vmul.f32 %v7144, %v7160
    %v7183 = vmul.f32 %v7145, %v7160
    %v7184 = vmul.f32 %v7146, %v7160
    %v7185 = vmul.f32 %v7147, %v7160
    %v7186 = vmul.f32 %v7148, %v7160
    %v7187 = vmul.f32 %v7149, %v7160
    %v7188 = vmul.f32 %v7150, %v7160
    %v7189 = vmul.f32 %v7151, %v7160
    %v7190 = vmul.f32 %v7152, %v7160
    %v7191 = vmul.f32 %v7153, %v7160
    %v7192 = vmul.f32 %v7154, %v7160
    %v7193 = vmul.f32 %v7155, %v7160
    %v7195 = vlaneseq
    %v7196 = vshrl.u32 %v7195, 7
    %v7197 = vsub.s32 0, %v7196
    %v7198 = vrot.slane %v6643, %v7197
    %v7200 = vadd.f32 %v7162, %v7198
    %v7201 = vadd.f32 %v7163, %v7198
    %v7202 = vadd.f32 %v7164, %v7198
    %v7203 = vadd.f32 %v7165, %v7198
    %v7204 = vadd.f32 %v7166, %v7198
    %v7205 = vadd.f32 %v7167, %v7198
    %v7206 = vadd.f32 %v7168, %v7198
    %v7207 = vadd.f32 %v7169, %v7198
    %v7208 = vadd.f32 %v7170, %v7198
    %v7209 = vadd.f32 %v7171, %v7198
    %v7210 = vadd.f32 %v7172, %v7198
    %v7211 = vadd.f32 %v7173, %v7198
    %v7212 = vadd.f32 %v7174, %v7198
    %v7213 = vadd.f32 %v7175, %v7198
    %v7214 = vadd.f32 %v7176, %v7198
    %v7215 = vadd.f32 %v7177, %v7198
    %v7216 = vadd.f32 %v7178, %v7198
    %v7217 = vadd.f32 %v7179, %v7198
    %v7218 = vadd.f32 %v7180, %v7198
    %v7219 = vadd.f32 %v7181, %v7198
    %v7220 = vadd.f32 %v7182, %v7198
    %v7221 = vadd.f32 %v7183, %v7198
    %v7222 = vadd.f32 %v7184, %v7198
    %v7223 = vadd.f32 %v7185, %v7198
    %v7224 = vadd.f32 %v7186, %v7198
    %v7225 = vadd.f32 %v7187, %v7198
    %v7226 = vadd.f32 %v7188, %v7198
    %v7227 = vadd.f32 %v7189, %v7198
    %v7228 = vadd.f32 %v7190, %v7198
    %v7229 = vadd.f32 %v7191, %v7198
    %v7230 = vadd.f32 %v7192, %v7198
    %v7231 = vadd.f32 %v7193, %v7198
    %v7232 = vmax.f32 %v7200, 0.0
    %v7233 = vmax.f32 %v7201, 0.0
    %v7234 = vmax.f32 %v7202, 0.0
    %v7235 = vmax.f32 %v7203, 0.0
    %v7236 = vmax.f32 %v7204, 0.0
    %v7237 = vmax.f32 %v7205, 0.0
    %v7238 = vmax.f32 %v7206, 0.0
    %v7239 = vmax.f32 %v7207, 0.0
    %v7240 = vmax.f32 %v7208, 0.0
    %v7241 = vmax.f32 %v7209, 0.0
    %v7242 = vmax.f32 %v7210, 0.0
    %v7243 = vmax.f32 %v7211, 0.0
    %v7244 = vmax.f32 %v7212, 0.0
    %v7245 = vmax.f32 %v7213, 0.0
    %v7246 = vmax.f32 %v7214, 0.0
    %v7247 = vmax.f32 %v7215, 0.0
    %v7248 = vmax.f32 %v7216, 0.0
    %v7249 = vmax.f32 %v7217, 0.0
    %v7250 = vmax.f32 %v7218, 0.0
    %v7251 = vmax.f32 %v7219, 0.0
    %v7252 = vmax.f32 %v7220, 0.0
    %v7253 = vmax.f32 %v7221, 0.0
    %v7254 = vmax.f32 %v7222, 0.0
    %v7255 = vmax.f32 %v7223, 0.0
    %v7256 = vmax.f32 %v7224, 0.0
    %v7257 = vmax.f32 %v7225, 0.0
    %v7258 = vmax.f32 %v7226, 0.0
    %v7259 = vmax.f32 %v7227, 0.0
    %v7260 = vmax.f32 %v7228, 0.0
    %v7261 = vmax.f32 %v7229, 0.0
    %v7262 = vmax.f32 %v7230, 0.0
    %v7263 = vmax.f32 %v7231, 0.0
    %v7264 = vld [vmem:[%s119] sm:$0xf]
    %v7265 = vld [vmem:[%s119 + $0x4] sm:$0xf]
    %v7266 = vld [vmem:[%s119 + $0x8] sm:$0xf]
    %v7267 = vld [vmem:[%s119 + $0xc] sm:$0xf]
    %v7268 = vld [vmem:[%s119 + $0x10] sm:$0xf]
    %v7269 = vld [vmem:[%s119 + $0x14] sm:$0xf]
    %v7270 = vld [vmem:[%s119 + $0x18] sm:$0xf]
    %v7271 = vld [vmem:[%s119 + $0x1c] sm:$0xf]
    %v7272 = vpack.c.bf16 %v7233, %v7232
    %v7273 = vpack.c.bf16 %v7235, %v7234
    %v7274 = vpack.c.bf16 %v7237, %v7236
    %v7275 = vpack.c.bf16 %v7239, %v7238
    %v7276 = vpack.c.bf16 %v7241, %v7240
    %v7277 = vpack.c.bf16 %v7243, %v7242
    %v7278 = vpack.c.bf16 %v7245, %v7244
    %v7279 = vpack.c.bf16 %v7247, %v7246
    %v7280 = vpack.c.bf16 %v7249, %v7248
    %v7281 = vpack.c.bf16 %v7251, %v7250
    %v7282 = vpack.c.bf16 %v7253, %v7252
    %v7283 = vpack.c.bf16 %v7255, %v7254
    %v7284 = vpack.c.bf16 %v7257, %v7256
    %v7285 = vpack.c.bf16 %v7259, %v7258
    %v7286 = vpack.c.bf16 %v7261, %v7260
    %v7287 = vpack.c.bf16 %v7263, %v7262
    %v7288 = vld [vmem:[#allocation25] sm:$0x1]
    %v7290 = vlaneseq
    %v7291 = vshrl.u32 %v7290, 7
    %v7292 = vsub.s32 0, %v7291
    %v7293 = vrot.slane %v7288, %v7292
    %v7303 = vunpack.c.l.b16 %v7264
    %v7304 = vunpack.c.l.b16 %v7265
    %v7305 = vunpack.c.l.b16 %v7266
    %v7306 = vunpack.c.l.b16 %v7267
    %v7307 = vunpack.c.l.b16 %v7268
    %v7308 = vunpack.c.l.b16 %v7269
    %v7309 = vunpack.c.l.b16 %v7270
    %v7310 = vunpack.c.l.b16 %v7271
    %v7311 = vpack.c.b16 %v7304, %v7303
    %v7312 = vpack.c.b16 %v7306, %v7305
    %v7313 = vpack.c.b16 %v7308, %v7307
    %v7314 = vpack.c.b16 %v7310, %v7309
    %v7320 = vsel %vm1713, %v7272, 0
    %v7323 = vsel %vm1713, %v7273, 0
    %v7326 = vsel %vm1713, %v7274, 0
    %v7329 = vsel %vm1713, %v7275, 0
    %v7332 = vsel %vm1713, %v7276, 0
    %v7335 = vsel %vm1713, %v7277, 0
    %v7338 = vsel %vm1713, %v7278, 0
    %v7341 = vsel %vm1713, %v7279, 0
    %v7344 = vsel %vm1713, %v7280, 0
    %v7347 = vsel %vm1713, %v7281, 0
    %v7350 = vsel %vm1713, %v7282, 0
    %v7353 = vsel %vm1713, %v7283, 0
    %v7356 = vsel %vm1713, %v7284, 0
    %v7359 = vsel %vm1713, %v7285, 0
    %v7362 = vsel %vm1713, %v7286, 0
    %v7365 = vsel %vm1713, %v7287, 0
    %7367 = vmatprep.subr.bf16.mxu0 0
    %7368 = vmatpush1.bf16.msra.mxu0 %v7311
    %7369 = vmatprep.subr.bf16.mxu0 0
    %7370 = vmatpush1.bf16.msra.mxu0 %v7312
    %7371 = vmatprep.subr.bf16.mxu0 0
    %7372 = vmatpush1.bf16.msra.mxu0 %v7313
    %7373 = vmatprep.subr.bf16.mxu0 0
    %7374 = vmatpush1.bf16.msra.mxu0 %v7314
    %7375 = vmatprep.subr.bf16.mxu0 0
    %7376 = vmatpush1.bf16.msra.mxu0 0
    %7377 = vmatprep.subr.bf16.mxu0 0
    %7378 = vmatpush1.bf16.msra.mxu0 0
    %7379 = vmatprep.subr.bf16.mxu0 0
    %7380 = vmatpush1.bf16.msra.mxu0 0
    %7381 = vmatprep.subr.bf16.mxu0 0
    %7382 = vmatpush1.bf16.msra.mxu0 0
    %7383 = vmatprep.subr.bf16.mxu0 0
    %7384 = vmatpush1.bf16.msra.mxu0 0
    %7385 = vmatprep.subr.bf16.mxu0 0
    %7386 = vmatpush1.bf16.msra.mxu0 0
    %7387 = vmatprep.subr.bf16.mxu0 0
    %7388 = vmatpush1.bf16.msra.mxu0 0
    %7389 = vmatprep.subr.bf16.mxu0 0
    %7390 = vmatpush1.bf16.msra.mxu0 0
    %7391 = vmatprep.subr.bf16.mxu0 0
    %7392 = vmatpush1.bf16.msra.mxu0 0
    %7393 = vmatprep.subr.bf16.mxu0 0
    %7394 = vmatpush1.bf16.msra.mxu0 0
    %7395 = vmatprep.subr.bf16.mxu0 0
    %7396 = vmatpush1.bf16.msra.mxu0 0
    %7397 = vmatprep.subr.bf16.mxu0 0
    %7398 = vmatpush1.bf16.msra.mxu0 0
    %7399 = vmatprep.mubr.bf16.mxu0 0
    %7400 = vmatmul.mubr.bf16.gmra.mrb[0].mxu0 %v7320
    %v7401 = vpop.f32.mrb[0].mxu0
    %v7402 = vadd.f32 %v7293, %v7401
    %v7403 = vpop.f32.mrb[0].mxu0
    %v7404 = vpop.f32.mrb[0].mxu0
    %v7405 = vadd.f32 %v7293, %v7404
    %v7406 = vpop.f32.mrb[0].mxu0
    %7407 = vmatprep.mubr.bf16.mxu0 0
    %7408 = vmatmul.mubr.bf16.gmra.mrb[0].mxu0 %v7323
    %v7409 = vpop.f32.mrb[0].mxu0
    %v7410 = vadd.f32 %v7293, %v7409
    %v7411 = vpop.f32.mrb[0].mxu0
    %v7412 = vpop.f32.mrb[0].mxu0
    %v7413 = vadd.f32 %v7293, %v7412
    %v7414 = vpop.f32.mrb[0].mxu0
    %7415 = vmatprep.mubr.bf16.mxu0 0
    %7416 = vmatmul.mubr.bf16.gmra.mrb[0].mxu0 %v7326
    %v7417 = vpop.f32.mrb[0].mxu0
    %v7418 = vadd.f32 %v7293, %v7417
    %v7419 = vpop.f32.mrb[0].mxu0
    %v7420 = vpop.f32.mrb[0].mxu0
    %v7421 = vadd.f32 %v7293, %v7420
    %v7422 = vpop.f32.mrb[0].mxu0
    %7423 = vmatprep.mubr.bf16.mxu0 0
    %7424 = vmatmul.mubr.bf16.gmra.mrb[0].mxu0 %v7329
    %v7425 = vpop.f32.mrb[0].mxu0
    %v7426 = vadd.f32 %v7293, %v7425
    %v7427 = vpop.f32.mrb[0].mxu0
    %v7428 = vpop.f32.mrb[0].mxu0
    %v7429 = vadd.f32 %v7293, %v7428
    %v7430 = vpop.f32.mrb[0].mxu0
    %7431 = vmatprep.mubr.bf16.mxu0 0
    %7432 = vmatmul.mubr.bf16.gmra.mrb[0].mxu0 %v7332
    %v7433 = vpop.f32.mrb[0].mxu0
    %v7434 = vadd.f32 %v7293, %v7433
    %v7435 = vpop.f32.mrb[0].mxu0
    %v7436 = vpop.f32.mrb[0].mxu0
    %v7437 = vadd.f32 %v7293, %v7436
    %v7438 = vpop.f32.mrb[0].mxu0
    %7439 = vmatprep.mubr.bf16.mxu0 0
    %7440 = vmatmul.mubr.bf16.gmra.mrb[0].mxu0 %v7335
    %v7441 = vpop.f32.mrb[0].mxu0
    %v7442 = vadd.f32 %v7293, %v7441
    %v7443 = vpop.f32.mrb[0].mxu0
    %v7444 = vpop.f32.mrb[0].mxu0
    %v7445 = vadd.f32 %v7293, %v7444
    %v7446 = vpop.f32.mrb[0].mxu0
    %7447 = vmatprep.mubr.bf16.mxu0 0
    %7448 = vmatmul.mubr.bf16.gmra.mrb[0].mxu0 %v7338
    %v7449 = vpop.f32.mrb[0].mxu0
    %v7450 = vadd.f32 %v7293, %v7449
    %v7451 = vpop.f32.mrb[0].mxu0
    %v7452 = vpop.f32.mrb[0].mxu0
    %v7453 = vadd.f32 %v7293, %v7452
    %v7454 = vpop.f32.mrb[0].mxu0
    %7455 = vmatprep.mubr.bf16.mxu0 0
    %7456 = vmatmul.mubr.bf16.gmra.mrb[0].mxu0 %v7341
    %v7457 = vpop.f32.mrb[0].mxu0
    %v7458 = vadd.f32 %v7293, %v7457
    %v7459 = vpop.f32.mrb[0].mxu0
    %v7460 = vpop.f32.mrb[0].mxu0
    %v7461 = vadd.f32 %v7293, %v7460
    %v7462 = vpop.f32.mrb[0].mxu0
    %7463 = vmatprep.mubr.bf16.mxu0 0
    %7464 = vmatmul.mubr.bf16.gmra.mrb[0].mxu0 %v7344
    %v7465 = vpop.f32.mrb[0].mxu0
    %v7466 = vadd.f32 %v7293, %v7465
    %v7467 = vpop.f32.mrb[0].mxu0
    %v7468 = vpop.f32.mrb[0].mxu0
    %v7469 = vadd.f32 %v7293, %v7468
    %v7470 = vpop.f32.mrb[0].mxu0
    %7471 = vmatprep.mubr.bf16.mxu0 0
    %7472 = vmatmul.mubr.bf16.gmra.mrb[0].mxu0 %v7347
    %v7473 = vpop.f32.mrb[0].mxu0
    %v7474 = vadd.f32 %v7293, %v7473
    %v7475 = vpop.f32.mrb[0].mxu0
    %v7476 = vpop.f32.mrb[0].mxu0
    %v7477 = vadd.f32 %v7293, %v7476
    %v7478 = vpop.f32.mrb[0].mxu0
    %7479 = vmatprep.mubr.bf16.mxu0 0
    %7480 = vmatmul.mubr.bf16.gmra.mrb[0].mxu0 %v7350
    %v7481 = vpop.f32.mrb[0].mxu0
    %v7482 = vadd.f32 %v7293, %v7481
    %v7483 = vpop.f32.mrb[0].mxu0
    %v7484 = vpop.f32.mrb[0].mxu0
    %v7485 = vadd.f32 %v7293, %v7484
    %v7486 = vpop.f32.mrb[0].mxu0
    %7487 = vmatprep.mubr.bf16.mxu0 0
    %7488 = vmatmul.mubr.bf16.gmra.mrb[0].mxu0 %v7353
    %v7489 = vpop.f32.mrb[0].mxu0
    %v7490 = vadd.f32 %v7293, %v7489
    %v7491 = vpop.f32.mrb[0].mxu0
    %v7492 = vpop.f32.mrb[0].mxu0
    %v7493 = vadd.f32 %v7293, %v7492
    %v7494 = vpop.f32.mrb[0].mxu0
    %7495 = vmatprep.mubr.bf16.mxu0 0
    %7496 = vmatmul.mubr.bf16.gmra.mrb[0].mxu0 %v7356
    %v7497 = vpop.f32.mrb[0].mxu0
    %v7498 = vadd.f32 %v7293, %v7497
    %v7499 = vpop.f32.mrb[0].mxu0
    %v7500 = vpop.f32.mrb[0].mxu0
    %v7501 = vadd.f32 %v7293, %v7500
    %v7502 = vpop.f32.mrb[0].mxu0
    %7503 = vmatprep.mubr.bf16.mxu0 0
    %7504 = vmatmul.mubr.bf16.gmra.mrb[0].mxu0 %v7359
    %v7505 = vpop.f32.mrb[0].mxu0
    %v7506 = vadd.f32 %v7293, %v7505
    %v7507 = vpop.f32.mrb[0].mxu0
    %v7508 = vpop.f32.mrb[0].mxu0
    %v7509 = vadd.f32 %v7293, %v7508
    %v7510 = vpop.f32.mrb[0].mxu0
    %7511 = vmatprep.mubr.bf16.mxu0 0
    %7512 = vmatmul.mubr.bf16.gmra.mrb[0].mxu0 %v7362
    %v7513 = vpop.f32.mrb[0].mxu0
    %v7514 = vadd.f32 %v7293, %v7513
    %v7515 = vpop.f32.mrb[0].mxu0
    %v7516 = vpop.f32.mrb[0].mxu0
    %v7517 = vadd.f32 %v7293, %v7516
    %v7518 = vpop.f32.mrb[0].mxu0
    %7519 = vmatprep.mubr.bf16.mxu0 0
    %7520 = vmatmul.mubr.bf16.gmra.mrb[0].mxu0 %v7365
    %v7521 = vpop.f32.mrb[0].mxu0
    %v7522 = vadd.f32 %v7293, %v7521
    %v7523 = vpop.f32.mrb[0].mxu0
    %v7524 = vpop.f32.mrb[0].mxu0
    %v7525 = vadd.f32 %v7293, %v7524
    %v7526 = vpop.f32.mrb[0].mxu0
    %7527 = vdwg.mxu0
    %v7528 = vpack.c.bf16 %v7405, %v7402
    %v7529 = vpack.c.bf16 %v7413, %v7410
    %v7530 = vpack.c.bf16 %v7421, %v7418
    %v7531 = vpack.c.bf16 %v7429, %v7426
    %v7532 = vpack.c.bf16 %v7437, %v7434
    %v7533 = vpack.c.bf16 %v7445, %v7442
    %v7534 = vpack.c.bf16 %v7453, %v7450
    %v7535 = vpack.c.bf16 %v7461, %v7458
    %v7536 = vpack.c.bf16 %v7469, %v7466
    %v7537 = vpack.c.bf16 %v7477, %v7474
    %v7538 = vpack.c.bf16 %v7485, %v7482
    %v7539 = vpack.c.bf16 %v7493, %v7490
    %v7540 = vpack.c.bf16 %v7501, %v7498
    %v7541 = vpack.c.bf16 %v7509, %v7506
    %v7542 = vpack.c.bf16 %v7517, %v7514
    %v7543 = vpack.c.bf16 %v7525, %v7522
    %7544 = vmatprep.subr.bf16.mxu0 0
    %7545 = vmatpush1.bf16.msra.mxu0 %v7528
    %7546 = vmatprep.subr.bf16.mxu0 0
    %7547 = vmatpush1.bf16.msra.mxu0 %v7529
    %7548 = vmatprep.subr.bf16.mxu0 0
    %7549 = vmatpush1.bf16.msra.mxu0 %v7530
    %7550 = vmatprep.subr.bf16.mxu0 0
    %7551 = vmatpush1.bf16.msra.mxu0 %v7531
    %7552 = vmatprep.subr.bf16.mxu0 0
    %7553 = vmatpush1.bf16.msra.mxu0 %v7532
    %7554 = vmatprep.subr.bf16.mxu0 0
    %7555 = vmatpush1.bf16.msra.mxu0 %v7533
    %7556 = vmatprep.subr.bf16.mxu0 0
    %7557 = vmatpush1.bf16.msra.mxu0 %v7534
    %7558 = vmatprep.subr.bf16.mxu0 0
    %7559 = vmatpush1.bf16.msra.mxu0 %v7535
    %7560 = vmatprep.subr.bf16.mxu0 0
    %7561 = vmatpush1.bf16.msra.mxu0 %v7536
    %7562 = vmatprep.subr.bf16.mxu0 0
    %7563 = vmatpush1.bf16.msra.mxu0 %v7537
    %7564 = vmatprep.subr.bf16.mxu0 0
    %7565 = vmatpush1.bf16.msra.mxu0 %v7538
    %7566 = vmatprep.subr.bf16.mxu0 0
    %7567 = vmatpush1.bf16.msra.mxu0 %v7539
    %7568 = vmatprep.subr.bf16.mxu0 0
    %7569 = vmatpush1.bf16.msra.mxu0 %v7540
    %7570 = vmatprep.subr.bf16.mxu0 0
    %7571 = vmatpush1.bf16.msra.mxu0 %v7541
    %7572 = vmatprep.subr.bf16.mxu0 0
    %7573 = vmatpush1.bf16.msra.mxu0 %v7542
    %7574 = vmatprep.subr.bf16.mxu0 0
    %7575 = vmatpush1.bf16.msra.mxu0 %v7543
    %7576 = vmatprep.mubr.bf16.mxu0 %v1298
    %7577 = vmatmul.mubr.bf16.gmra.mrb[0].mxu0 %v1297
    %v7578 = vpop.f32.mrb[0].mxu0
    %v7579 = vadd.f32 0.0, %v7578
    %v7580 = vpop.f32.mrb[0].mxu0
    %v7581 = vpop.f32.mrb[0].mxu0
    %v7582 = vadd.f32 0.0, %v7581
    %v7583 = vpop.f32.mrb[0].mxu0
    %7584 = vmatprep.mubr.bf16.mxu0 %v1300
    %7585 = vmatmul.mubr.bf16.gmra.mrb[0].mxu0 %v1299
    %v7586 = vpop.f32.mrb[0].mxu0
    %v7587 = vadd.f32 0.0, %v7586
    %v7588 = vpop.f32.mrb[0].mxu0
    %v7589 = vpop.f32.mrb[0].mxu0
    %v7590 = vadd.f32 0.0, %v7589
    %v7591 = vpop.f32.mrb[0].mxu0
    %7592 = vmatprep.mubr.bf16.mxu0 %v1302
    %7593 = vmatmul.mubr.bf16.gmra.mrb[0].mxu0 %v1301
    %v7594 = vpop.f32.mrb[0].mxu0
    %v7595 = vadd.f32 0.0, %v7594
    %v7596 = vpop.f32.mrb[0].mxu0
    %v7597 = vpop.f32.mrb[0].mxu0
    %v7598 = vadd.f32 0.0, %v7597
    %v7599 = vpop.f32.mrb[0].mxu0
    %7600 = vmatprep.mubr.bf16.mxu0 %v1304
    %7601 = vmatmul.mubr.bf16.gmra.mrb[0].mxu0 %v1303
    %v7602 = vpop.f32.mrb[0].mxu0
    %v7603 = vadd.f32 0.0, %v7602
    %v7604 = vpop.f32.mrb[0].mxu0
    %v7605 = vpop.f32.mrb[0].mxu0
    %v7606 = vadd.f32 0.0, %v7605
    %v7607 = vpop.f32.mrb[0].mxu0
    %7608 = vdwg.mxu0
    %v7609 = vld [vmem:[#allocation34] sm:$0x1]
    %v7610 = vld [vmem:[#allocation31] sm:$0x1]
    %v7611 = vsel %vm1713, %v7579, 0.0
    %7612 = vadd.xlane.f32.xlu0 %v7611
    %v7613 = vpop.xlane.xlu0 %7612
    %v7614 = vsel %vm1713, %v7582, 0.0
    %7615 = vadd.xlane.f32.xlu0 %v7614
    %v7616 = vpop.xlane.xlu0 %7615
    %v7617 = vsel %vm1713, %v7587, 0.0
    %7618 = vadd.xlane.f32.xlu0 %v7617
    %v7619 = vpop.xlane.xlu0 %7618
    %v7620 = vsel %vm1713, %v7590, 0.0
    %7621 = vadd.xlane.f32.xlu0 %v7620
    %v7622 = vpop.xlane.xlu0 %7621
    %v7623 = vsel %vm1713, %v7595, 0.0
    %7624 = vadd.xlane.f32.xlu0 %v7623
    %v7625 = vpop.xlane.xlu0 %7624
    %v7626 = vsel %vm1713, %v7598, 0.0
    %7627 = vadd.xlane.f32.xlu0 %v7626
    %v7628 = vpop.xlane.xlu0 %7627
    %v7629 = vsel %vm1713, %v7603, 0.0
    %7630 = vadd.xlane.f32.xlu0 %v7629
    %v7631 = vpop.xlane.xlu0 %7630
    %v7632 = vsel %vm1713, %v7606, 0.0
    %7633 = vadd.xlane.f32.xlu0 %v7632
    %v7634 = vpop.xlane.xlu0 %7633
    %v7635 = vmul.f32 %v7613, %v2903
    %v7636 = vmul.f32 %v7616, %v2903
    %v7637 = vmul.f32 %v7619, %v2903
    %v7638 = vmul.f32 %v7622, %v2903
    %v7639 = vmul.f32 %v7625, %v2903
    %v7640 = vmul.f32 %v7628, %v2903
    %v7641 = vmul.f32 %v7631, %v2903
    %v7642 = vmul.f32 %v7634, %v2903
    %v7643 = vmul.f32 %v7579, %v7579
    %v7644 = vmul.f32 %v7582, %v7582
    %v7645 = vmul.f32 %v7587, %v7587
    %v7646 = vmul.f32 %v7590, %v7590
    %v7647 = vmul.f32 %v7595, %v7595
    %v7648 = vmul.f32 %v7598, %v7598
    %v7649 = vmul.f32 %v7603, %v7603
    %v7650 = vmul.f32 %v7606, %v7606
    %v7651 = vsel %vm1713, %v7643, 0.0
    %7652 = vadd.xlane.f32.xlu0 %v7651
    %v7653 = vpop.xlane.xlu0 %7652
    %v7654 = vsel %vm1713, %v7644, 0.0
    %7655 = vadd.xlane.f32.xlu0 %v7654
    %v7656 = vpop.xlane.xlu0 %7655
    %v7657 = vsel %vm1713, %v7645, 0.0
    %7658 = vadd.xlane.f32.xlu0 %v7657
    %v7659 = vpop.xlane.xlu0 %7658
    %v7660 = vsel %vm1713, %v7646, 0.0
    %7661 = vadd.xlane.f32.xlu0 %v7660
    %v7662 = vpop.xlane.xlu0 %7661
    %v7663 = vsel %vm1713, %v7647, 0.0
    %7664 = vadd.xlane.f32.xlu0 %v7663
    %v7665 = vpop.xlane.xlu0 %7664
    %v7666 = vsel %vm1713, %v7648, 0.0
    %7667 = vadd.xlane.f32.xlu0 %v7666
    %v7668 = vpop.xlane.xlu0 %7667
    %v7669 = vsel %vm1713, %v7649, 0.0
    %7670 = vadd.xlane.f32.xlu0 %v7669
    %v7671 = vpop.xlane.xlu0 %7670
    %v7672 = vsel %vm1713, %v7650, 0.0
    %7673 = vadd.xlane.f32.xlu0 %v7672
    %v7674 = vpop.xlane.xlu0 %7673
    %v7675 = vmul.f32 %v7653, %v2903
    %v7676 = vmul.f32 %v7656, %v2903
    %v7677 = vmul.f32 %v7659, %v2903
    %v7678 = vmul.f32 %v7662, %v2903
    %v7679 = vmul.f32 %v7665, %v2903
    %v7680 = vmul.f32 %v7668, %v2903
    %v7681 = vmul.f32 %v7671, %v2903
    %v7682 = vmul.f32 %v7674, %v2903
    %v7683 = vmul.f32 %v7635, %v7635
    %v7684 = vmul.f32 %v7636, %v7636
    %v7685 = vmul.f32 %v7637, %v7637
    %v7686 = vmul.f32 %v7638, %v7638
    %v7687 = vmul.f32 %v7639, %v7639
    %v7688 = vmul.f32 %v7640, %v7640
    %v7689 = vmul.f32 %v7641, %v7641
    %v7690 = vmul.f32 %v7642, %v7642
    %v7691 = vsub.f32 %v7675, %v7683
    %v7692 = vsub.f32 %v7676, %v7684
    %v7693 = vsub.f32 %v7677, %v7685
    %v7694 = vsub.f32 %v7678, %v7686
    %v7695 = vsub.f32 %v7679, %v7687
    %v7696 = vsub.f32 %v7680, %v7688
    %v7697 = vsub.f32 %v7681, %v7689
    %v7698 = vsub.f32 %v7682, %v7690
    %v7699 = vmax.f32 %v7691, 0.0
    %v7700 = vmax.f32 %v7692, 0.0
    %v7701 = vmax.f32 %v7693, 0.0
    %v7702 = vmax.f32 %v7694, 0.0
    %v7703 = vmax.f32 %v7695, 0.0
    %v7704 = vmax.f32 %v7696, 0.0
    %v7705 = vmax.f32 %v7697, 0.0
    %v7706 = vmax.f32 %v7698, 0.0
    %v7707 = vsub.f32 %v7579, %v7635
    %v7708 = vsub.f32 %v7582, %v7636
    %v7709 = vsub.f32 %v7587, %v7637
    %v7710 = vsub.f32 %v7590, %v7638
    %v7711 = vsub.f32 %v7595, %v7639
    %v7712 = vsub.f32 %v7598, %v7640
    %v7713 = vsub.f32 %v7603, %v7641
    %v7714 = vsub.f32 %v7606, %v7642
    %v7715 = vadd.f32 %v7699, 1e-05
    %v7716 = vadd.f32 %v7700, 1e-05
    %v7717 = vadd.f32 %v7701, 1e-05
    %v7718 = vadd.f32 %v7702, 1e-05
    %v7719 = vadd.f32 %v7703, 1e-05
    %v7720 = vadd.f32 %v7704, 1e-05
    %v7721 = vadd.f32 %v7705, 1e-05
    %v7722 = vadd.f32 %v7706, 1e-05
    %v7723 = vrsqrt.pop %v7715
    %v7724 = vrsqrt.pop %v7716
    %v7725 = vrsqrt.pop %v7717
    %v7726 = vrsqrt.pop %v7718
    %v7727 = vrsqrt.pop %v7719
    %v7728 = vrsqrt.pop %v7720
    %v7729 = vrsqrt.pop %v7721
    %v7730 = vrsqrt.pop %v7722
    %v7731 = vmul.f32 %v7707, %v7723
    %v7732 = vmul.f32 %v7708, %v7724
    %v7733 = vmul.f32 %v7709, %v7725
    %v7734 = vmul.f32 %v7710, %v7726
    %v7735 = vmul.f32 %v7711, %v7727
    %v7736 = vmul.f32 %v7712, %v7728
    %v7737 = vmul.f32 %v7713, %v7729
    %v7738 = vmul.f32 %v7714, %v7730
    %v7740 = vlaneseq
    %v7741 = vshrl.u32 %v7740, 7
    %v7742 = vsub.s32 0, %v7741
    %v7743 = vrot.slane %v7609, %v7742
    %v7745 = vmul.f32 %v7731, %v7743
    %v7746 = vmul.f32 %v7732, %v7743
    %v7747 = vmul.f32 %v7733, %v7743
    %v7748 = vmul.f32 %v7734, %v7743
    %v7749 = vmul.f32 %v7735, %v7743
    %v7750 = vmul.f32 %v7736, %v7743
    %v7751 = vmul.f32 %v7737, %v7743
    %v7752 = vmul.f32 %v7738, %v7743
    %v7754 = vlaneseq
    %v7755 = vshrl.u32 %v7754, 7
    %v7756 = vsub.s32 0, %v7755
    %v7757 = vrot.slane %v7610, %v7756
    %v7759 = vadd.f32 %v7745, %v7757
    %v7760 = vadd.f32 %v7746, %v7757
    %v7761 = vadd.f32 %v7747, %v7757
    %v7762 = vadd.f32 %v7748, %v7757
    %v7763 = vadd.f32 %v7749, %v7757
    %v7764 = vadd.f32 %v7750, %v7757
    %v7765 = vadd.f32 %v7751, %v7757
    %v7766 = vadd.f32 %v7752, %v7757
    %7775 = vrot.lane.b32.xlu0 %v4209, 64
    %v7776 = vpop.permute.xlu0 %7775
    %7777 = vrot.lane.b32.xlu0 %v4212, 64
    %v7778 = vpop.permute.xlu0 %7777
    %7779 = vrot.lane.b32.xlu0 %v4217, 64
    %v7780 = vpop.permute.xlu0 %7779
    %7781 = vrot.lane.b32.xlu0 %v4220, 64
    %v7782 = vpop.permute.xlu0 %7781
    %7783 = vrot.lane.b32.xlu0 %v4225, 64
    %v7784 = vpop.permute.xlu0 %7783
    %7785 = vrot.lane.b32.xlu0 %v4228, 64
    %v7786 = vpop.permute.xlu0 %7785
    %7787 = vrot.lane.b32.xlu0 %v4233, 64
    %v7788 = vpop.permute.xlu0 %7787
    %7789 = vrot.lane.b32.xlu0 %v4236, 64
    %v7790 = vpop.permute.xlu0 %7789
    %v7799 = vsel %vm1713, %v7759, %v7776
    %v7800 = vsel %vm1713, %v7760, %v7778
    %v7801 = vsel %vm1713, %v7761, %v7780
    %v7802 = vsel %vm1713, %v7762, %v7782
    %v7803 = vsel %vm1713, %v7763, %v7784
    %v7804 = vsel %vm1713, %v7764, %v7786
    %v7805 = vsel %vm1713, %v7765, %v7788
    %v7806 = vsel %vm1713, %v7766, %v7790
    %v7807 = vld [vmem:[%s123] sm:$0xf]
    %v7808 = vld [vmem:[%s123 + $0x4] sm:$0xf]
    %v7809 = vld [vmem:[%s123 + $0x8] sm:$0xf]
    %v7810 = vld [vmem:[%s123 + $0xc] sm:$0xf]
    %v7811 = vld [vmem:[%s123 + $0x10] sm:$0xf]
    %v7812 = vld [vmem:[%s123 + $0x14] sm:$0xf]
    %v7813 = vld [vmem:[%s123 + $0x18] sm:$0xf]
    %v7814 = vld [vmem:[%s123 + $0x1c] sm:$0xf]
    %v7815 = vld [vmem:[%s123 + $0x20] sm:$0xf]
    %v7816 = vld [vmem:[%s123 + $0x24] sm:$0xf]
    %v7817 = vld [vmem:[%s123 + $0x28] sm:$0xf]
    %v7818 = vld [vmem:[%s123 + $0x2c] sm:$0xf]
    %v7819 = vld [vmem:[%s123 + $0x30] sm:$0xf]
    %v7820 = vld [vmem:[%s123 + $0x34] sm:$0xf]
    %v7821 = vld [vmem:[%s123 + $0x38] sm:$0xf]
    %v7822 = vld [vmem:[%s123 + $0x3c] sm:$0xf]
    %v7823 = vpack.c.bf16 %v7800, %v7799
    %v7824 = vpack.c.bf16 %v7802, %v7801
    %v7825 = vpack.c.bf16 %v7804, %v7803
    %v7826 = vpack.c.bf16 %v7806, %v7805
    %v7827 = vld [vmem:[#allocation28] sm:$0x1]
    %v7829 = vlaneseq
    %v7830 = vshrl.u32 %v7829, 7
    %v7831 = vsub.s32 0, %v7830
    %v7832 = vrot.slane %v7827, %v7831
    %v7850 = vunpack.c.l.b16 %v7807
    %v7851 = vunpack.c.l.b16 %v7808
    %v7852 = vunpack.c.l.b16 %v7809
    %v7853 = vunpack.c.l.b16 %v7810
    %v7854 = vunpack.c.l.b16 %v7811
    %v7855 = vunpack.c.l.b16 %v7812
    %v7856 = vunpack.c.l.b16 %v7813
    %v7857 = vunpack.c.l.b16 %v7814
    %v7858 = vunpack.c.l.b16 %v7815
    %v7859 = vunpack.c.l.b16 %v7816
    %v7860 = vunpack.c.l.b16 %v7817
    %v7861 = vunpack.c.l.b16 %v7818
    %v7862 = vunpack.c.l.b16 %v7819
    %v7863 = vunpack.c.l.b16 %v7820
    %v7864 = vunpack.c.l.b16 %v7821
    %v7865 = vunpack.c.l.b16 %v7822
    %v7866 = vpack.c.b16 %v7851, %v7850
    %v7867 = vpack.c.b16 %v7853, %v7852
    %v7868 = vpack.c.b16 %v7855, %v7854
    %v7869 = vpack.c.b16 %v7857, %v7856
    %v7870 = vpack.c.b16 %v7859, %v7858
    %v7871 = vpack.c.b16 %v7861, %v7860
    %v7872 = vpack.c.b16 %v7863, %v7862
    %v7873 = vpack.c.b16 %v7865, %v7864
    %7882 = vmatprep.subr.bf16.mxu0 0
    %7883 = vmatpush1.bf16.msra.mxu0 %v7866
    %7884 = vmatprep.subr.bf16.mxu0 0
    %7885 = vmatpush1.bf16.msra.mxu0 %v7867
    %7886 = vmatprep.subr.bf16.mxu0 0
    %7887 = vmatpush1.bf16.msra.mxu0 %v7868
    %7888 = vmatprep.subr.bf16.mxu0 0
    %7889 = vmatpush1.bf16.msra.mxu0 %v7869
    %7890 = vmatprep.subr.bf16.mxu0 0
    %7891 = vmatpush1.bf16.msra.mxu0 %v7870
    %7892 = vmatprep.subr.bf16.mxu0 0
    %7893 = vmatpush1.bf16.msra.mxu0 %v7871
    %7894 = vmatprep.subr.bf16.mxu0 0
    %7895 = vmatpush1.bf16.msra.mxu0 %v7872
    %7896 = vmatprep.subr.bf16.mxu0 0
    %7897 = vmatpush1.bf16.msra.mxu0 %v7873
    %7898 = vmatprep.subr.bf16.mxu0 0
    %7899 = vmatpush1.bf16.msra.mxu0 0
    %7900 = vmatprep.subr.bf16.mxu0 0
    %7901 = vmatpush1.bf16.msra.mxu0 0
    %7902 = vmatprep.subr.bf16.mxu0 0
    %7903 = vmatpush1.bf16.msra.mxu0 0
    %7904 = vmatprep.subr.bf16.mxu0 0
    %7905 = vmatpush1.bf16.msra.mxu0 0
    %7906 = vmatprep.subr.bf16.mxu0 0
    %7907 = vmatpush1.bf16.msra.mxu0 0
    %7908 = vmatprep.subr.bf16.mxu0 0
    %7909 = vmatpush1.bf16.msra.mxu0 0
    %7910 = vmatprep.subr.bf16.mxu0 0
    %7911 = vmatpush1.bf16.msra.mxu0 0
    %7912 = vmatprep.subr.bf16.mxu0 0
    %7913 = vmatpush1.bf16.msra.mxu0 0
    %7914 = vmatprep.mubr.bf16.mxu0 0
    %7915 = vmatmul.mubr.bf16.gmra.mrb[0].mxu0 %v7823
    %v7916 = vpop.f32.mrb[0].mxu0
    %v7917 = vadd.f32 %v7832, %v7916
    %v7918 = vpop.f32.mrb[0].mxu0
    %v7919 = vpop.f32.mrb[0].mxu0
    %v7920 = vadd.f32 %v7832, %v7919
    %v7921 = vpop.f32.mrb[0].mxu0
    %7922 = vmatprep.mubr.bf16.mxu0 0
    %7923 = vmatmul.mubr.bf16.gmra.mrb[0].mxu0 %v7824
    %v7924 = vpop.f32.mrb[0].mxu0
    %v7925 = vadd.f32 %v7832, %v7924
    %v7926 = vpop.f32.mrb[0].mxu0
    %v7927 = vpop.f32.mrb[0].mxu0
    %v7928 = vadd.f32 %v7832, %v7927
    %v7929 = vpop.f32.mrb[0].mxu0
    %7930 = vmatprep.mubr.bf16.mxu0 0
    %7931 = vmatmul.mubr.bf16.gmra.mrb[0].mxu0 %v7825
    %v7932 = vpop.f32.mrb[0].mxu0
    %v7933 = vadd.f32 %v7832, %v7932
    %v7934 = vpop.f32.mrb[0].mxu0
    %v7935 = vpop.f32.mrb[0].mxu0
    %v7936 = vadd.f32 %v7832, %v7935
    %v7937 = vpop.f32.mrb[0].mxu0
    %7938 = vmatprep.mubr.bf16.mxu0 0
    %7939 = vmatmul.mubr.bf16.gmra.mrb[0].mxu0 %v7826
    %v7940 = vpop.f32.mrb[0].mxu0
    %v7941 = vadd.f32 %v7832, %v7940
    %v7942 = vpop.f32.mrb[0].mxu0
    %v7943 = vpop.f32.mrb[0].mxu0
    %v7944 = vadd.f32 %v7832, %v7943
    %v7945 = vpop.f32.mrb[0].mxu0
    %7946 = vdwg.mxu0
    %v7947 = vmax.f32 %v7917, 0.0
    %v7948 = vmax.f32 %v7920, 0.0
    %v7949 = vmax.f32 %v7925, 0.0
    %v7950 = vmax.f32 %v7928, 0.0
    %v7951 = vmax.f32 %v7933, 0.0
    %v7952 = vmax.f32 %v7936, 0.0
    %v7953 = vmax.f32 %v7941, 0.0
    %v7954 = vmax.f32 %v7944, 0.0
    %v7955 = vld [vmem:[%s125] sm:$0xf]
    %v7956 = vld [vmem:[%s125 + $0x4] sm:$0xf]
    %v7957 = vld [vmem:[%s125 + $0x8] sm:$0xf]
    %v7958 = vld [vmem:[%s125 + $0xc] sm:$0xf]
    %v7959 = vld [vmem:[%s125 + $0x10] sm:$0xf]
    %v7960 = vld [vmem:[%s125 + $0x14] sm:$0xf]
    %v7961 = vld [vmem:[%s125 + $0x18] sm:$0xf]
    %v7962 = vld [vmem:[%s125 + $0x1c] sm:$0xf]
    %v7963 = vpack.c.bf16 %v7948, %v7947
    %v7964 = vpack.c.bf16 %v7950, %v7949
    %v7965 = vpack.c.bf16 %v7952, %v7951
    %v7966 = vpack.c.bf16 %v7954, %v7953
    %v7967 = vld [vmem:[#allocation30] sm:$0x1]
    %v7969 = vlaneseq
    %v7970 = vshrl.u32 %v7969, 7
    %v7971 = vsub.s32 0, %v7970
    %v7972 = vrot.slane %v7967, %v7971
    %v7982 = vunpack.c.l.b16 %v7955
    %v7983 = vunpack.c.l.b16 %v7956
    %v7984 = vunpack.c.l.b16 %v7957
    %v7985 = vunpack.c.l.b16 %v7958
    %v7986 = vunpack.c.l.b16 %v7959
    %v7987 = vunpack.c.l.b16 %v7960
    %v7988 = vunpack.c.l.b16 %v7961
    %v7989 = vunpack.c.l.b16 %v7962
    %v7990 = vpack.c.b16 %v7983, %v7982
    %v7991 = vpack.c.b16 %v7985, %v7984
    %v7992 = vpack.c.b16 %v7987, %v7986
    %v7993 = vpack.c.b16 %v7989, %v7988
    %v7999 = vsel %vm1713, %v7963, 0
    %v8002 = vsel %vm1713, %v7964, 0
    %v8005 = vsel %vm1713, %v7965, 0
    %v8008 = vsel %vm1713, %v7966, 0
    %8010 = vmatprep.subr.bf16.mxu0 0
    %8011 = vmatpush1.bf16.msra.mxu0 %v7990
    %8012 = vmatprep.subr.bf16.mxu0 0
    %8013 = vmatpush1.bf16.msra.mxu0 %v7991
    %8014 = vmatprep.subr.bf16.mxu0 0
    %8015 = vmatpush1.bf16.msra.mxu0 %v7992
    %8016 = vmatprep.subr.bf16.mxu0 0
    %8017 = vmatpush1.bf16.msra.mxu0 %v7993
    %8018 = vmatprep.subr.bf16.mxu0 0
    %8019 = vmatpush1.bf16.msra.mxu0 0
    %8020 = vmatprep.subr.bf16.mxu0 0
    %8021 = vmatpush1.bf16.msra.mxu0 0
    %8022 = vmatprep.subr.bf16.mxu0 0
    %8023 = vmatpush1.bf16.msra.mxu0 0
    %8024 = vmatprep.subr.bf16.mxu0 0
    %8025 = vmatpush1.bf16.msra.mxu0 0
    %8026 = vmatprep.subr.bf16.mxu0 0
    %8027 = vmatpush1.bf16.msra.mxu0 0
    %8028 = vmatprep.subr.bf16.mxu0 0
    %8029 = vmatpush1.bf16.msra.mxu0 0
    %8030 = vmatprep.subr.bf16.mxu0 0
    %8031 = vmatpush1.bf16.msra.mxu0 0
    %8032 = vmatprep.subr.bf16.mxu0 0
    %8033 = vmatpush1.bf16.msra.mxu0 0
    %8034 = vmatprep.subr.bf16.mxu0 0
    %8035 = vmatpush1.bf16.msra.mxu0 0
    %8036 = vmatprep.subr.bf16.mxu0 0
    %8037 = vmatpush1.bf16.msra.mxu0 0
    %8038 = vmatprep.subr.bf16.mxu0 0
    %8039 = vmatpush1.bf16.msra.mxu0 0
    %8040 = vmatprep.subr.bf16.mxu0 0
    %8041 = vmatpush1.bf16.msra.mxu0 0
    %8042 = vmatprep.mubr.bf16.mxu0 0
    %8043 = vmatmul.mubr.bf16.gmra.mrb[0].mxu0 %v7999
    %v8044 = vpop.f32.mrb[0].mxu0
    %v8045 = vadd.f32 %v7972, %v8044
    %v8046 = vpop.f32.mrb[0].mxu0
    %v8047 = vpop.f32.mrb[0].mxu0
    %v8048 = vadd.f32 %v7972, %v8047
    %v8049 = vpop.f32.mrb[0].mxu0
    %8050 = vmatprep.mubr.bf16.mxu0 0
    %8051 = vmatmul.mubr.bf16.gmra.mrb[0].mxu0 %v8002
    %v8052 = vpop.f32.mrb[0].mxu0
    %v8053 = vadd.f32 %v7972, %v8052
    %v8054 = vpop.f32.mrb[0].mxu0
    %v8055 = vpop.f32.mrb[0].mxu0
    %v8056 = vadd.f32 %v7972, %v8055
    %v8057 = vpop.f32.mrb[0].mxu0
    %8058 = vmatprep.mubr.bf16.mxu0 0
    %8059 = vmatmul.mubr.bf16.gmra.mrb[0].mxu0 %v8005
    %v8060 = vpop.f32.mrb[0].mxu0
    %v8061 = vadd.f32 %v7972, %v8060
    %v8062 = vpop.f32.mrb[0].mxu0
    %v8063 = vpop.f32.mrb[0].mxu0
    %v8064 = vadd.f32 %v7972, %v8063
    %v8065 = vpop.f32.mrb[0].mxu0
    %8066 = vmatprep.mubr.bf16.mxu0 0
    %8067 = vmatmul.mubr.bf16.gmra.mrb[0].mxu0 %v8008
    %v8068 = vpop.f32.mrb[0].mxu0
    %v8069 = vadd.f32 %v7972, %v8068
    %v8070 = vpop.f32.mrb[0].mxu0
    %v8071 = vpop.f32.mrb[0].mxu0
    %v8072 = vadd.f32 %v7972, %v8071
    %v8073 = vpop.f32.mrb[0].mxu0
    %8074 = vdwg.mxu0
    %v8075 = vld [vmem:[%s69] sm:$0xf]
    %v8076 = vld [vmem:[%s69 + $0x4] sm:$0xf]
    %v8077 = vld [vmem:[%s69 + $0x8] sm:$0xf]
    %v8078 = vld [vmem:[%s69 + $0xc] sm:$0xf]
    %v8079 = vld [vmem:[%s69 + $0x10] sm:$0xf]
    %v8080 = vld [vmem:[%s69 + $0x14] sm:$0xf]
    %v8081 = vld [vmem:[%s69 + $0x18] sm:$0xf]
    %v8082 = vld [vmem:[%s69 + $0x1c] sm:$0xf]
    %v8091 = vunpack.c.l.b16 %v8075
    %v8092 = vunpack.c.l.b16 %v8076
    %v8093 = vunpack.c.l.b16 %v8077
    %v8094 = vunpack.c.l.b16 %v8078
    %v8095 = vunpack.c.l.b16 %v8079
    %v8096 = vunpack.c.l.b16 %v8080
    %v8097 = vunpack.c.l.b16 %v8081
    %v8098 = vunpack.c.l.b16 %v8082
    %v8099 = vpack.c.b16 %v8092, %v8091
    %v8100 = vpack.c.b16 %v8094, %v8093
    %v8101 = vpack.c.b16 %v8096, %v8095
    %v8102 = vpack.c.b16 %v8098, %v8097
    %8107 = vmatprep.subr.bf16.mxu0 0
    %8108 = vmatpush1.bf16.msra.mxu0 %v8099
    %8109 = vmatprep.subr.bf16.mxu0 0
    %8110 = vmatpush1.bf16.msra.mxu0 %v8100
    %8111 = vmatprep.subr.bf16.mxu0 0
    %8112 = vmatpush1.bf16.msra.mxu0 %v8101
    %8113 = vmatprep.subr.bf16.mxu0 0
    %8114 = vmatpush1.bf16.msra.mxu0 %v8102
    %8115 = vmatprep.subr.bf16.mxu0 0
    %8116 = vmatpush1.bf16.msra.mxu0 0
    %8117 = vmatprep.subr.bf16.mxu0 0
    %8118 = vmatpush1.bf16.msra.mxu0 0
    %8119 = vmatprep.subr.bf16.mxu0 0
    %8120 = vmatpush1.bf16.msra.mxu0 0
    %8121 = vmatprep.subr.bf16.mxu0 0
    %8122 = vmatpush1.bf16.msra.mxu0 0
    %8123 = vmatprep.subr.bf16.mxu0 0
    %8124 = vmatpush1.bf16.msra.mxu0 0
    %8125 = vmatprep.subr.bf16.mxu0 0
    %8126 = vmatpush1.bf16.msra.mxu0 0
    %8127 = vmatprep.subr.bf16.mxu0 0
    %8128 = vmatpush1.bf16.msra.mxu0 0
    %8129 = vmatprep.subr.bf16.mxu0 0
    %8130 = vmatpush1.bf16.msra.mxu0 0
    %8131 = vmatprep.subr.bf16.mxu0 0
    %8132 = vmatpush1.bf16.msra.mxu0 0
    %8133 = vmatprep.subr.bf16.mxu0 0
    %8134 = vmatpush1.bf16.msra.mxu0 0
    %8135 = vmatprep.subr.bf16.mxu0 0
    %8136 = vmatpush1.bf16.msra.mxu0 0
    %8137 = vmatprep.subr.bf16.mxu0 0
    %8138 = vmatpush1.bf16.msra.mxu0 0
    %8139 = vmatprep.mubr.bf16.mxu0 0
    %8140 = vmatmul.mubr.bf16.gmra.mrb[0].mxu0 %v6366
    %v8141 = vpop.f32.mrb[0].mxu0
    %v8142 = vadd.f32 0.0, %v8141
    %v8143 = vpop.f32.mrb[0].mxu0
    %v8144 = vpop.f32.mrb[0].mxu0
    %v8145 = vadd.f32 0.0, %v8144
    %v8146 = vpop.f32.mrb[0].mxu0
    %8147 = vmatprep.mubr.bf16.mxu0 0
    %8148 = vmatmul.mubr.bf16.gmra.mrb[0].mxu0 %v6369
    %v8149 = vpop.f32.mrb[0].mxu0
    %v8150 = vadd.f32 0.0, %v8149
    %v8151 = vpop.f32.mrb[0].mxu0
    %v8152 = vpop.f32.mrb[0].mxu0
    %v8153 = vadd.f32 0.0, %v8152
    %v8154 = vpop.f32.mrb[0].mxu0
    %8155 = vmatprep.mubr.bf16.mxu0 0
    %8156 = vmatmul.mubr.bf16.gmra.mrb[0].mxu0 %v6372
    %v8157 = vpop.f32.mrb[0].mxu0
    %v8158 = vadd.f32 0.0, %v8157
    %v8159 = vpop.f32.mrb[0].mxu0
    %v8160 = vpop.f32.mrb[0].mxu0
    %v8161 = vadd.f32 0.0, %v8160
    %v8162 = vpop.f32.mrb[0].mxu0
    %8163 = vmatprep.mubr.bf16.mxu0 0
    %8164 = vmatmul.mubr.bf16.gmra.mrb[0].mxu0 %v6375
    %v8165 = vpop.f32.mrb[0].mxu0
    %v8166 = vadd.f32 0.0, %v8165
    %v8167 = vpop.f32.mrb[0].mxu0
    %v8168 = vpop.f32.mrb[0].mxu0
    %v8169 = vadd.f32 0.0, %v8168
    %v8170 = vpop.f32.mrb[0].mxu0
    %8171 = vmatprep.mubr.bf16.mxu0 0
    %8172 = vmatmul.mubr.bf16.gmra.mrb[0].mxu0 %v6378
    %v8173 = vpop.f32.mrb[0].mxu0
    %v8174 = vadd.f32 0.0, %v8173
    %v8175 = vpop.f32.mrb[0].mxu0
    %v8176 = vpop.f32.mrb[0].mxu0
    %v8177 = vadd.f32 0.0, %v8176
    %v8178 = vpop.f32.mrb[0].mxu0
    %8179 = vmatprep.mubr.bf16.mxu0 0
    %8180 = vmatmul.mubr.bf16.gmra.mrb[0].mxu0 %v6381
    %v8181 = vpop.f32.mrb[0].mxu0
    %v8182 = vadd.f32 0.0, %v8181
    %v8183 = vpop.f32.mrb[0].mxu0
    %v8184 = vpop.f32.mrb[0].mxu0
    %v8185 = vadd.f32 0.0, %v8184
    %v8186 = vpop.f32.mrb[0].mxu0
    %8187 = vdwg.mxu0
    %v8188 = vld [vmem:[%s75] sm:$0xf]
    %v8189 = vld [vmem:[%s75 + $0x4] sm:$0xf]
    %v8190 = vld [vmem:[%s75 + $0x8] sm:$0xf]
    %v8191 = vld [vmem:[%s75 + $0xc] sm:$0xf]
    %v8192 = vld [vmem:[%s75 + $0x10] sm:$0xf]
    %v8193 = vld [vmem:[%s75 + $0x14] sm:$0xf]
    %v8194 = vld [vmem:[%s75 + $0x18] sm:$0xf]
    %v8195 = vld [vmem:[%s75 + $0x1c] sm:$0xf]
    %v8196 = vpack.c.bf16 %v8048, %v8045
    %v8197 = vpack.c.bf16 %v8056, %v8053
    %v8198 = vpack.c.bf16 %v8064, %v8061
    %v8199 = vpack.c.bf16 %v8072, %v8069
    %v8208 = vunpack.c.l.b16 %v8188
    %v8209 = vunpack.c.l.b16 %v8189
    %v8210 = vunpack.c.l.b16 %v8190
    %v8211 = vunpack.c.l.b16 %v8191
    %v8212 = vunpack.c.l.b16 %v8192
    %v8213 = vunpack.c.l.b16 %v8193
    %v8214 = vunpack.c.l.b16 %v8194
    %v8215 = vunpack.c.l.b16 %v8195
    %v8216 = vpack.c.b16 %v8209, %v8208
    %v8217 = vpack.c.b16 %v8211, %v8210
    %v8218 = vpack.c.b16 %v8213, %v8212
    %v8219 = vpack.c.b16 %v8215, %v8214
    %v8225 = vsel %vm1713, %v8196, 0
    %v8228 = vsel %vm1713, %v8197, 0
    %v8231 = vsel %vm1713, %v8198, 0
    %v8234 = vsel %vm1713, %v8199, 0
    %8236 = vmatprep.subr.bf16.mxu0 0
    %8237 = vmatpush1.bf16.msra.mxu0 %v8216
    %8238 = vmatprep.subr.bf16.mxu0 0
    %8239 = vmatpush1.bf16.msra.mxu0 %v8217
    %8240 = vmatprep.subr.bf16.mxu0 0
    %8241 = vmatpush1.bf16.msra.mxu0 %v8218
    %8242 = vmatprep.subr.bf16.mxu0 0
    %8243 = vmatpush1.bf16.msra.mxu0 %v8219
    %8244 = vmatprep.subr.bf16.mxu0 0
    %8245 = vmatpush1.bf16.msra.mxu0 0
    %8246 = vmatprep.subr.bf16.mxu0 0
    %8247 = vmatpush1.bf16.msra.mxu0 0
    %8248 = vmatprep.subr.bf16.mxu0 0
    %8249 = vmatpush1.bf16.msra.mxu0 0
    %8250 = vmatprep.subr.bf16.mxu0 0
    %8251 = vmatpush1.bf16.msra.mxu0 0
    %8252 = vmatprep.subr.bf16.mxu0 0
    %8253 = vmatpush1.bf16.msra.mxu0 0
    %8254 = vmatprep.subr.bf16.mxu0 0
    %8255 = vmatpush1.bf16.msra.mxu0 0
    %8256 = vmatprep.subr.bf16.mxu0 0
    %8257 = vmatpush1.bf16.msra.mxu0 0
    %8258 = vmatprep.subr.bf16.mxu0 0
    %8259 = vmatpush1.bf16.msra.mxu0 0
    %8260 = vmatprep.subr.bf16.mxu0 0
    %8261 = vmatpush1.bf16.msra.mxu0 0
    %8262 = vmatprep.subr.bf16.mxu0 0
    %8263 = vmatpush1.bf16.msra.mxu0 0
    %8264 = vmatprep.subr.bf16.mxu0 0
    %8265 = vmatpush1.bf16.msra.mxu0 0
    %8266 = vmatprep.subr.bf16.mxu0 0
    %8267 = vmatpush1.bf16.msra.mxu0 0
    %8268 = vmatprep.mubr.bf16.mxu0 0
    %8269 = vmatmul.mubr.bf16.gmra.mrb[0].mxu0 %v8225
    %v8270 = vpop.f32.mrb[0].mxu0
    %v8271 = vadd.f32 0.0, %v8270
    %v8272 = vpop.f32.mrb[0].mxu0
    %v8273 = vpop.f32.mrb[0].mxu0
    %v8274 = vadd.f32 0.0, %v8273
    %v8275 = vpop.f32.mrb[0].mxu0
    %8276 = vmatprep.mubr.bf16.mxu0 0
    %8277 = vmatmul.mubr.bf16.gmra.mrb[0].mxu0 %v8228
    %v8278 = vpop.f32.mrb[0].mxu0
    %v8279 = vadd.f32 0.0, %v8278
    %v8280 = vpop.f32.mrb[0].mxu0
    %v8281 = vpop.f32.mrb[0].mxu0
    %v8282 = vadd.f32 0.0, %v8281
    %v8283 = vpop.f32.mrb[0].mxu0
    %8284 = vmatprep.mubr.bf16.mxu0 0
    %8285 = vmatmul.mubr.bf16.gmra.mrb[0].mxu0 %v8231
    %v8286 = vpop.f32.mrb[0].mxu0
    %v8287 = vadd.f32 0.0, %v8286
    %v8288 = vpop.f32.mrb[0].mxu0
    %v8289 = vpop.f32.mrb[0].mxu0
    %v8290 = vadd.f32 0.0, %v8289
    %v8291 = vpop.f32.mrb[0].mxu0
    %8292 = vmatprep.mubr.bf16.mxu0 0
    %8293 = vmatmul.mubr.bf16.gmra.mrb[0].mxu0 %v8234
    %v8294 = vpop.f32.mrb[0].mxu0
    %v8295 = vadd.f32 0.0, %v8294
    %v8296 = vpop.f32.mrb[0].mxu0
    %v8297 = vpop.f32.mrb[0].mxu0
    %v8298 = vadd.f32 0.0, %v8297
    %v8299 = vpop.f32.mrb[0].mxu0
    %8300 = vdwg.mxu0
    %v8301 = vpack.c.bf16 %v8274, %v8271
    %v8302 = vpack.c.bf16 %v8282, %v8279
    %v8303 = vpack.c.bf16 %v8290, %v8287
    %v8304 = vpack.c.bf16 %v8298, %v8295
    %v8305 = vpack.c.bf16 %v8145, %v8142
    %v8306 = vpack.c.bf16 %v8153, %v8150
    %v8307 = vpack.c.bf16 %v8161, %v8158
    %v8308 = vpack.c.bf16 %v8169, %v8166
    %v8309 = vpack.c.bf16 %v8177, %v8174
    %v8310 = vpack.c.bf16 %v8185, %v8182
    %v8311 = vld [vmem:[#allocation2] sm:$0x1]
    %v8313 = vlaneseq
    %v8314 = vshrl.u32 %v8313, 7
    %v8315 = vsub.s32 0, %v8314
    %v8316 = vrot.slane %v8311, %v8315
    %8318 = vmatprep.subr.bf16.mxu0 0
    %8319 = vmatpush1.bf16.msra.mxu0 %v8301
    %8320 = vmatprep.subr.bf16.mxu0 0
    %8321 = vmatpush1.bf16.msra.mxu0 %v8302
    %8322 = vmatprep.subr.bf16.mxu0 0
    %8323 = vmatpush1.bf16.msra.mxu0 %v8303
    %8324 = vmatprep.subr.bf16.mxu0 0
    %8325 = vmatpush1.bf16.msra.mxu0 %v8304
    %8326 = vmatprep.subr.bf16.mxu0 0
    %8327 = vmatpush1.bf16.msra.mxu0 %v8305
    %8328 = vmatprep.subr.bf16.mxu0 0
    %8329 = vmatpush1.bf16.msra.mxu0 %v8306
    %8330 = vmatprep.subr.bf16.mxu0 0
    %8331 = vmatpush1.bf16.msra.mxu0 %v8307
    %8332 = vmatprep.subr.bf16.mxu0 0
    %8333 = vmatpush1.bf16.msra.mxu0 %v8308
    %8334 = vmatprep.subr.bf16.mxu0 0
    %8335 = vmatpush1.bf16.msra.mxu0 %v8309
    %8336 = vmatprep.subr.bf16.mxu0 0
    %8337 = vmatpush1.bf16.msra.mxu0 %v8310
    %8338 = vmatprep.subr.bf16.mxu0 0
    %8339 = vmatpush1.bf16.msra.mxu0 0
    %8340 = vmatprep.subr.bf16.mxu0 0
    %8341 = vmatpush1.bf16.msra.mxu0 0
    %8342 = vmatprep.subr.bf16.mxu0 0
    %8343 = vmatpush1.bf16.msra.mxu0 0
    %8344 = vmatprep.subr.bf16.mxu0 0
    %8345 = vmatpush1.bf16.msra.mxu0 0
    %8346 = vmatprep.subr.bf16.mxu0 0
    %8347 = vmatpush1.bf16.msra.mxu0 0
    %8348 = vmatprep.subr.bf16.mxu0 0
    %8349 = vmatpush1.bf16.msra.mxu0 0
    %8350 = vmatprep.mubr.bf16.mxu0 %v2597
    %8351 = vmatmul.mubr.bf16.gmra.mrb[0].mxu0 %v1200
    %v8352 = vpop.f32.mrb[0].mxu0
    %v8353 = vadd.f32 %v8316, %v8352
    %v8354 = vpop.f32.mrb[0].mxu0
    %v8355 = vpop.f32.mrb[0].mxu0
    %v8356 = vadd.f32 %v8316, %v8355
    %v8357 = vpop.f32.mrb[0].mxu0
    %8358 = vmatprep.mubr.bf16.mxu0 %v2600
    %8359 = vmatmul.mubr.bf16.gmra.mrb[0].mxu0 %v1202
    %v8360 = vpop.f32.mrb[0].mxu0
    %v8361 = vadd.f32 %v8316, %v8360
    %v8362 = vpop.f32.mrb[0].mxu0
    %v8363 = vpop.f32.mrb[0].mxu0
    %v8364 = vadd.f32 %v8316, %v8363
    %v8365 = vpop.f32.mrb[0].mxu0
    %8366 = vmatprep.mubr.bf16.mxu0 %v2603
    %8367 = vmatmul.mubr.bf16.gmra.mrb[0].mxu0 %v1204
    %v8368 = vpop.f32.mrb[0].mxu0
    %v8369 = vadd.f32 %v8316, %v8368
    %v8370 = vpop.f32.mrb[0].mxu0
    %v8371 = vpop.f32.mrb[0].mxu0
    %v8372 = vadd.f32 %v8316, %v8371
    %v8373 = vpop.f32.mrb[0].mxu0
    %8374 = vmatprep.mubr.bf16.mxu0 %v2606
    %8375 = vmatmul.mubr.bf16.gmra.mrb[0].mxu0 %v1206
    %v8376 = vpop.f32.mrb[0].mxu0
    %v8377 = vadd.f32 %v8316, %v8376
    %v8378 = vpop.f32.mrb[0].mxu0
    %v8379 = vpop.f32.mrb[0].mxu0
    %v8380 = vadd.f32 %v8316, %v8379
    %v8381 = vpop.f32.mrb[0].mxu0
    %8382 = vmatprep.mubr.bf16.mxu0 %v2609
    %8383 = vmatmul.mubr.bf16.gmra.mrb[0].mxu0 %v1208
    %v8384 = vpop.f32.mrb[0].mxu0
    %v8385 = vadd.f32 %v8316, %v8384
    %v8386 = vpop.f32.mrb[0].mxu0
    %v8387 = vpop.f32.mrb[0].mxu0
    %v8388 = vadd.f32 %v8316, %v8387
    %v8389 = vpop.f32.mrb[0].mxu0
    %8390 = vmatprep.mubr.bf16.mxu0 %v2612
    %8391 = vmatmul.mubr.bf16.gmra.mrb[0].mxu0 %v1210
    %v8392 = vpop.f32.mrb[0].mxu0
    %v8393 = vadd.f32 %v8316, %v8392
    %v8394 = vpop.f32.mrb[0].mxu0
    %v8395 = vpop.f32.mrb[0].mxu0
    %v8396 = vadd.f32 %v8316, %v8395
    %v8397 = vpop.f32.mrb[0].mxu0
    %8398 = vmatprep.mubr.bf16.mxu0 %v2615
    %8399 = vmatmul.mubr.bf16.gmra.mrb[0].mxu0 %v1212
    %v8400 = vpop.f32.mrb[0].mxu0
    %v8401 = vadd.f32 %v8316, %v8400
    %v8402 = vpop.f32.mrb[0].mxu0
    %v8403 = vpop.f32.mrb[0].mxu0
    %v8404 = vadd.f32 %v8316, %v8403
    %v8405 = vpop.f32.mrb[0].mxu0
    %8406 = vmatprep.mubr.bf16.mxu0 %v2618
    %8407 = vmatmul.mubr.bf16.gmra.mrb[0].mxu0 %v1214
    %v8408 = vpop.f32.mrb[0].mxu0
    %v8409 = vadd.f32 %v8316, %v8408
    %v8410 = vpop.f32.mrb[0].mxu0
    %v8411 = vpop.f32.mrb[0].mxu0
    %v8412 = vadd.f32 %v8316, %v8411
    %v8413 = vpop.f32.mrb[0].mxu0
    %8414 = vmatprep.mubr.bf16.mxu0 %v2621
    %8415 = vmatmul.mubr.bf16.gmra.mrb[0].mxu0 %v1216
    %v8416 = vpop.f32.mrb[0].mxu0
    %v8417 = vadd.f32 %v8316, %v8416
    %v8418 = vpop.f32.mrb[0].mxu0
    %v8419 = vpop.f32.mrb[0].mxu0
    %v8420 = vadd.f32 %v8316, %v8419
    %v8421 = vpop.f32.mrb[0].mxu0
    %8422 = vmatprep.mubr.bf16.mxu0 %v2624
    %8423 = vmatmul.mubr.bf16.gmra.mrb[0].mxu0 %v1218
    %v8424 = vpop.f32.mrb[0].mxu0
    %v8425 = vadd.f32 %v8316, %v8424
    %v8426 = vpop.f32.mrb[0].mxu0
    %v8427 = vpop.f32.mrb[0].mxu0
    %v8428 = vadd.f32 %v8316, %v8427
    %v8429 = vpop.f32.mrb[0].mxu0
    %8430 = vmatprep.mubr.bf16.mxu0 %v2627
    %8431 = vmatmul.mubr.bf16.gmra.mrb[0].mxu0 %v1220
    %v8432 = vpop.f32.mrb[0].mxu0
    %v8433 = vadd.f32 %v8316, %v8432
    %v8434 = vpop.f32.mrb[0].mxu0
    %v8435 = vpop.f32.mrb[0].mxu0
    %v8436 = vadd.f32 %v8316, %v8435
    %v8437 = vpop.f32.mrb[0].mxu0
    %8438 = vmatprep.mubr.bf16.mxu0 %v2630
    %8439 = vmatmul.mubr.bf16.gmra.mrb[0].mxu0 %v1222
    %v8440 = vpop.f32.mrb[0].mxu0
    %v8441 = vadd.f32 %v8316, %v8440
    %v8442 = vpop.f32.mrb[0].mxu0
    %v8443 = vpop.f32.mrb[0].mxu0
    %v8444 = vadd.f32 %v8316, %v8443
    %v8445 = vpop.f32.mrb[0].mxu0
    %8446 = vmatprep.mubr.bf16.mxu0 %v2633
    %8447 = vmatmul.mubr.bf16.gmra.mrb[0].mxu0 %v1224
    %v8448 = vpop.f32.mrb[0].mxu0
    %v8449 = vadd.f32 %v8316, %v8448
    %v8450 = vpop.f32.mrb[0].mxu0
    %v8451 = vpop.f32.mrb[0].mxu0
    %v8452 = vadd.f32 %v8316, %v8451
    %v8453 = vpop.f32.mrb[0].mxu0
    %8454 = vmatprep.mubr.bf16.mxu0 %v2636
    %8455 = vmatmul.mubr.bf16.gmra.mrb[0].mxu0 %v1226
    %v8456 = vpop.f32.mrb[0].mxu0
    %v8457 = vadd.f32 %v8316, %v8456
    %v8458 = vpop.f32.mrb[0].mxu0
    %v8459 = vpop.f32.mrb[0].mxu0
    %v8460 = vadd.f32 %v8316, %v8459
    %v8461 = vpop.f32.mrb[0].mxu0
    %8462 = vmatprep.mubr.bf16.mxu0 %v2639
    %8463 = vmatmul.mubr.bf16.gmra.mrb[0].mxu0 %v1228
    %v8464 = vpop.f32.mrb[0].mxu0
    %v8465 = vadd.f32 %v8316, %v8464
    %v8466 = vpop.f32.mrb[0].mxu0
    %v8467 = vpop.f32.mrb[0].mxu0
    %v8468 = vadd.f32 %v8316, %v8467
    %v8469 = vpop.f32.mrb[0].mxu0
    %8470 = vmatprep.mubr.bf16.mxu0 %v2642
    %8471 = vmatmul.mubr.bf16.gmra.mrb[0].mxu0 %v1230
    %v8472 = vpop.f32.mrb[0].mxu0
    %v8473 = vadd.f32 %v8316, %v8472
    %v8474 = vpop.f32.mrb[0].mxu0
    %v8475 = vpop.f32.mrb[0].mxu0
    %v8476 = vadd.f32 %v8316, %v8475
    %v8477 = vpop.f32.mrb[0].mxu0
    %8478 = vdwg.mxu0
    %v8479 = vld [vmem:[#allocation9] sm:$0x1]
    %v8480 = vld [vmem:[%s51] sm:$0x1]
    %v8481 = vsel %vm1713, %v8353, 0.0
    %8482 = vadd.xlane.f32.xlu0 %v8481
    %v8483 = vpop.xlane.xlu0 %8482
    %v8484 = vsel %vm1713, %v8356, 0.0
    %8485 = vadd.xlane.f32.xlu0 %v8484
    %v8486 = vpop.xlane.xlu0 %8485
    %v8487 = vsel %vm1713, %v8361, 0.0
    %8488 = vadd.xlane.f32.xlu0 %v8487
    %v8489 = vpop.xlane.xlu0 %8488
    %v8490 = vsel %vm1713, %v8364, 0.0
    %8491 = vadd.xlane.f32.xlu0 %v8490
    %v8492 = vpop.xlane.xlu0 %8491
    %v8493 = vsel %vm1713, %v8369, 0.0
    %8494 = vadd.xlane.f32.xlu0 %v8493
    %v8495 = vpop.xlane.xlu0 %8494
    %v8496 = vsel %vm1713, %v8372, 0.0
    %8497 = vadd.xlane.f32.xlu0 %v8496
    %v8498 = vpop.xlane.xlu0 %8497
    %v8499 = vsel %vm1713, %v8377, 0.0
    %8500 = vadd.xlane.f32.xlu0 %v8499
    %v8501 = vpop.xlane.xlu0 %8500
    %v8502 = vsel %vm1713, %v8380, 0.0
    %8503 = vadd.xlane.f32.xlu0 %v8502
    %v8504 = vpop.xlane.xlu0 %8503
    %v8505 = vsel %vm1713, %v8385, 0.0
    %8506 = vadd.xlane.f32.xlu0 %v8505
    %v8507 = vpop.xlane.xlu0 %8506
    %v8508 = vsel %vm1713, %v8388, 0.0
    %8509 = vadd.xlane.f32.xlu0 %v8508
    %v8510 = vpop.xlane.xlu0 %8509
    %v8511 = vsel %vm1713, %v8393, 0.0
    %8512 = vadd.xlane.f32.xlu0 %v8511
    %v8513 = vpop.xlane.xlu0 %8512
    %v8514 = vsel %vm1713, %v8396, 0.0
    %8515 = vadd.xlane.f32.xlu0 %v8514
    %v8516 = vpop.xlane.xlu0 %8515
    %v8517 = vsel %vm1713, %v8401, 0.0
    %8518 = vadd.xlane.f32.xlu0 %v8517
    %v8519 = vpop.xlane.xlu0 %8518
    %v8520 = vsel %vm1713, %v8404, 0.0
    %8521 = vadd.xlane.f32.xlu0 %v8520
    %v8522 = vpop.xlane.xlu0 %8521
    %v8523 = vsel %vm1713, %v8409, 0.0
    %8524 = vadd.xlane.f32.xlu0 %v8523
    %v8525 = vpop.xlane.xlu0 %8524
    %v8526 = vsel %vm1713, %v8412, 0.0
    %8527 = vadd.xlane.f32.xlu0 %v8526
    %v8528 = vpop.xlane.xlu0 %8527
    %v8529 = vsel %vm1713, %v8417, 0.0
    %8530 = vadd.xlane.f32.xlu0 %v8529
    %v8531 = vpop.xlane.xlu0 %8530
    %v8532 = vsel %vm1713, %v8420, 0.0
    %8533 = vadd.xlane.f32.xlu0 %v8532
    %v8534 = vpop.xlane.xlu0 %8533
    %v8535 = vsel %vm1713, %v8425, 0.0
    %8536 = vadd.xlane.f32.xlu0 %v8535
    %v8537 = vpop.xlane.xlu0 %8536
    %v8538 = vsel %vm1713, %v8428, 0.0
    %8539 = vadd.xlane.f32.xlu0 %v8538
    %v8540 = vpop.xlane.xlu0 %8539
    %v8541 = vsel %vm1713, %v8433, 0.0
    %8542 = vadd.xlane.f32.xlu0 %v8541
    %v8543 = vpop.xlane.xlu0 %8542
    %v8544 = vsel %vm1713, %v8436, 0.0
    %8545 = vadd.xlane.f32.xlu0 %v8544
    %v8546 = vpop.xlane.xlu0 %8545
    %v8547 = vsel %vm1713, %v8441, 0.0
    %8548 = vadd.xlane.f32.xlu0 %v8547
    %v8549 = vpop.xlane.xlu0 %8548
    %v8550 = vsel %vm1713, %v8444, 0.0
    %8551 = vadd.xlane.f32.xlu0 %v8550
    %v8552 = vpop.xlane.xlu0 %8551
    %v8553 = vsel %vm1713, %v8449, 0.0
    %8554 = vadd.xlane.f32.xlu0 %v8553
    %v8555 = vpop.xlane.xlu0 %8554
    %v8556 = vsel %vm1713, %v8452, 0.0
    %8557 = vadd.xlane.f32.xlu0 %v8556
    %v8558 = vpop.xlane.xlu0 %8557
    %v8559 = vsel %vm1713, %v8457, 0.0
    %8560 = vadd.xlane.f32.xlu0 %v8559
    %v8561 = vpop.xlane.xlu0 %8560
    %v8562 = vsel %vm1713, %v8460, 0.0
    %8563 = vadd.xlane.f32.xlu0 %v8562
    %v8564 = vpop.xlane.xlu0 %8563
    %v8565 = vsel %vm1713, %v8465, 0.0
    %8566 = vadd.xlane.f32.xlu0 %v8565
    %v8567 = vpop.xlane.xlu0 %8566
    %v8568 = vsel %vm1713, %v8468, 0.0
    %8569 = vadd.xlane.f32.xlu0 %v8568
    %v8570 = vpop.xlane.xlu0 %8569
    %v8571 = vsel %vm1713, %v8473, 0.0
    %8572 = vadd.xlane.f32.xlu0 %v8571
    %v8573 = vpop.xlane.xlu0 %8572
    %v8574 = vsel %vm1713, %v8476, 0.0
    %8575 = vadd.xlane.f32.xlu0 %v8574
    %v8576 = vpop.xlane.xlu0 %8575
    %v8577 = vmul.f32 %v8483, %v2903
    %v8578 = vmul.f32 %v8486, %v2903
    %v8579 = vmul.f32 %v8489, %v2903
    %v8580 = vmul.f32 %v8492, %v2903
    %v8581 = vmul.f32 %v8495, %v2903
    %v8582 = vmul.f32 %v8498, %v2903
    %v8583 = vmul.f32 %v8501, %v2903
    %v8584 = vmul.f32 %v8504, %v2903
    %v8585 = vmul.f32 %v8507, %v2903
    %v8586 = vmul.f32 %v8510, %v2903
    %v8587 = vmul.f32 %v8513, %v2903
    %v8588 = vmul.f32 %v8516, %v2903
    %v8589 = vmul.f32 %v8519, %v2903
    %v8590 = vmul.f32 %v8522, %v2903
    %v8591 = vmul.f32 %v8525, %v2903
    %v8592 = vmul.f32 %v8528, %v2903
    %v8593 = vmul.f32 %v8531, %v2903
    %v8594 = vmul.f32 %v8534, %v2903
    %v8595 = vmul.f32 %v8537, %v2903
    %v8596 = vmul.f32 %v8540, %v2903
    %v8597 = vmul.f32 %v8543, %v2903
    %v8598 = vmul.f32 %v8546, %v2903
    %v8599 = vmul.f32 %v8549, %v2903
    %v8600 = vmul.f32 %v8552, %v2903
    %v8601 = vmul.f32 %v8555, %v2903
    %v8602 = vmul.f32 %v8558, %v2903
    %v8603 = vmul.f32 %v8561, %v2903
    %v8604 = vmul.f32 %v8564, %v2903
    %v8605 = vmul.f32 %v8567, %v2903
    %v8606 = vmul.f32 %v8570, %v2903
    %v8607 = vmul.f32 %v8573, %v2903
    %v8608 = vmul.f32 %v8576, %v2903
    %v8609 = vmul.f32 %v8353, %v8353
    %v8610 = vmul.f32 %v8356, %v8356
    %v8611 = vmul.f32 %v8361, %v8361
    %v8612 = vmul.f32 %v8364, %v8364
    %v8613 = vmul.f32 %v8369, %v8369
    %v8614 = vmul.f32 %v8372, %v8372
    %v8615 = vmul.f32 %v8377, %v8377
    %v8616 = vmul.f32 %v8380, %v8380
    %v8617 = vmul.f32 %v8385, %v8385
    %v8618 = vmul.f32 %v8388, %v8388
    %v8619 = vmul.f32 %v8393, %v8393
    %v8620 = vmul.f32 %v8396, %v8396
    %v8621 = vmul.f32 %v8401, %v8401
    %v8622 = vmul.f32 %v8404, %v8404
    %v8623 = vmul.f32 %v8409, %v8409
    %v8624 = vmul.f32 %v8412, %v8412
    %v8625 = vmul.f32 %v8417, %v8417
    %v8626 = vmul.f32 %v8420, %v8420
    %v8627 = vmul.f32 %v8425, %v8425
    %v8628 = vmul.f32 %v8428, %v8428
    %v8629 = vmul.f32 %v8433, %v8433
    %v8630 = vmul.f32 %v8436, %v8436
    %v8631 = vmul.f32 %v8441, %v8441
    %v8632 = vmul.f32 %v8444, %v8444
    %v8633 = vmul.f32 %v8449, %v8449
    %v8634 = vmul.f32 %v8452, %v8452
    %v8635 = vmul.f32 %v8457, %v8457
    %v8636 = vmul.f32 %v8460, %v8460
    %v8637 = vmul.f32 %v8465, %v8465
    %v8638 = vmul.f32 %v8468, %v8468
    %v8639 = vmul.f32 %v8473, %v8473
    %v8640 = vmul.f32 %v8476, %v8476
    %v8641 = vsel %vm1713, %v8609, 0.0
    %8642 = vadd.xlane.f32.xlu0 %v8641
    %v8643 = vpop.xlane.xlu0 %8642
    %v8644 = vsel %vm1713, %v8610, 0.0
    %8645 = vadd.xlane.f32.xlu0 %v8644
    %v8646 = vpop.xlane.xlu0 %8645
    %v8647 = vsel %vm1713, %v8611, 0.0
    %8648 = vadd.xlane.f32.xlu0 %v8647
    %v8649 = vpop.xlane.xlu0 %8648
    %v8650 = vsel %vm1713, %v8612, 0.0
    %8651 = vadd.xlane.f32.xlu0 %v8650
    %v8652 = vpop.xlane.xlu0 %8651
    %v8653 = vsel %vm1713, %v8613, 0.0
    %8654 = vadd.xlane.f32.xlu0 %v8653
    %v8655 = vpop.xlane.xlu0 %8654
    %v8656 = vsel %vm1713, %v8614, 0.0
    %8657 = vadd.xlane.f32.xlu0 %v8656
    %v8658 = vpop.xlane.xlu0 %8657
    %v8659 = vsel %vm1713, %v8615, 0.0
    %8660 = vadd.xlane.f32.xlu0 %v8659
    %v8661 = vpop.xlane.xlu0 %8660
    %v8662 = vsel %vm1713, %v8616, 0.0
    %8663 = vadd.xlane.f32.xlu0 %v8662
    %v8664 = vpop.xlane.xlu0 %8663
    %v8665 = vsel %vm1713, %v8617, 0.0
    %8666 = vadd.xlane.f32.xlu0 %v8665
    %v8667 = vpop.xlane.xlu0 %8666
    %v8668 = vsel %vm1713, %v8618, 0.0
    %8669 = vadd.xlane.f32.xlu0 %v8668
    %v8670 = vpop.xlane.xlu0 %8669
    %v8671 = vsel %vm1713, %v8619, 0.0
    %8672 = vadd.xlane.f32.xlu0 %v8671
    %v8673 = vpop.xlane.xlu0 %8672
    %v8674 = vsel %vm1713, %v8620, 0.0
    %8675 = vadd.xlane.f32.xlu0 %v8674
    %v8676 = vpop.xlane.xlu0 %8675
    %v8677 = vsel %vm1713, %v8621, 0.0
    %8678 = vadd.xlane.f32.xlu0 %v8677
    %v8679 = vpop.xlane.xlu0 %8678
    %v8680 = vsel %vm1713, %v8622, 0.0
    %8681 = vadd.xlane.f32.xlu0 %v8680
    %v8682 = vpop.xlane.xlu0 %8681
    %v8683 = vsel %vm1713, %v8623, 0.0
    %8684 = vadd.xlane.f32.xlu0 %v8683
    %v8685 = vpop.xlane.xlu0 %8684
    %v8686 = vsel %vm1713, %v8624, 0.0
    %8687 = vadd.xlane.f32.xlu0 %v8686
    %v8688 = vpop.xlane.xlu0 %8687
    %v8689 = vsel %vm1713, %v8625, 0.0
    %8690 = vadd.xlane.f32.xlu0 %v8689
    %v8691 = vpop.xlane.xlu0 %8690
    %v8692 = vsel %vm1713, %v8626, 0.0
    %8693 = vadd.xlane.f32.xlu0 %v8692
    %v8694 = vpop.xlane.xlu0 %8693
    %v8695 = vsel %vm1713, %v8627, 0.0
    %8696 = vadd.xlane.f32.xlu0 %v8695
    %v8697 = vpop.xlane.xlu0 %8696
    %v8698 = vsel %vm1713, %v8628, 0.0
    %8699 = vadd.xlane.f32.xlu0 %v8698
    %v8700 = vpop.xlane.xlu0 %8699
    %v8701 = vsel %vm1713, %v8629, 0.0
    %8702 = vadd.xlane.f32.xlu0 %v8701
    %v8703 = vpop.xlane.xlu0 %8702
    %v8704 = vsel %vm1713, %v8630, 0.0
    %8705 = vadd.xlane.f32.xlu0 %v8704
    %v8706 = vpop.xlane.xlu0 %8705
    %v8707 = vsel %vm1713, %v8631, 0.0
    %8708 = vadd.xlane.f32.xlu0 %v8707
    %v8709 = vpop.xlane.xlu0 %8708
    %v8710 = vsel %vm1713, %v8632, 0.0
    %8711 = vadd.xlane.f32.xlu0 %v8710
    %v8712 = vpop.xlane.xlu0 %8711
    %v8713 = vsel %vm1713, %v8633, 0.0
    %8714 = vadd.xlane.f32.xlu0 %v8713
    %v8715 = vpop.xlane.xlu0 %8714
    %v8716 = vsel %vm1713, %v8634, 0.0
    %8717 = vadd.xlane.f32.xlu0 %v8716
    %v8718 = vpop.xlane.xlu0 %8717
    %v8719 = vsel %vm1713, %v8635, 0.0
    %8720 = vadd.xlane.f32.xlu0 %v8719
    %v8721 = vpop.xlane.xlu0 %8720
    %v8722 = vsel %vm1713, %v8636, 0.0
    %8723 = vadd.xlane.f32.xlu0 %v8722
    %v8724 = vpop.xlane.xlu0 %8723
    %v8725 = vsel %vm1713, %v8637, 0.0
    %8726 = vadd.xlane.f32.xlu0 %v8725
    %v8727 = vpop.xlane.xlu0 %8726
    %v8728 = vsel %vm1713, %v8638, 0.0
    %8729 = vadd.xlane.f32.xlu0 %v8728
    %v8730 = vpop.xlane.xlu0 %8729
    %v8731 = vsel %vm1713, %v8639, 0.0
    %8732 = vadd.xlane.f32.xlu0 %v8731
    %v8733 = vpop.xlane.xlu0 %8732
    %v8734 = vsel %vm1713, %v8640, 0.0
    %8735 = vadd.xlane.f32.xlu0 %v8734
    %v8736 = vpop.xlane.xlu0 %8735
    %v8737 = vmul.f32 %v8643, %v2903
    %v8738 = vmul.f32 %v8646, %v2903
    %v8739 = vmul.f32 %v8649, %v2903
    %v8740 = vmul.f32 %v8652, %v2903
    %v8741 = vmul.f32 %v8655, %v2903
    %v8742 = vmul.f32 %v8658, %v2903
    %v8743 = vmul.f32 %v8661, %v2903
    %v8744 = vmul.f32 %v8664, %v2903
    %v8745 = vmul.f32 %v8667, %v2903
    %v8746 = vmul.f32 %v8670, %v2903
    %v8747 = vmul.f32 %v8673, %v2903
    %v8748 = vmul.f32 %v8676, %v2903
    %v8749 = vmul.f32 %v8679, %v2903
    %v8750 = vmul.f32 %v8682, %v2903
    %v8751 = vmul.f32 %v8685, %v2903
    %v8752 = vmul.f32 %v8688, %v2903
    %v8753 = vmul.f32 %v8691, %v2903
    %v8754 = vmul.f32 %v8694, %v2903
    %v8755 = vmul.f32 %v8697, %v2903
    %v8756 = vmul.f32 %v8700, %v2903
    %v8757 = vmul.f32 %v8703, %v2903
    %v8758 = vmul.f32 %v8706, %v2903
    %v8759 = vmul.f32 %v8709, %v2903
    %v8760 = vmul.f32 %v8712, %v2903
    %v8761 = vmul.f32 %v8715, %v2903
    %v8762 = vmul.f32 %v8718, %v2903
    %v8763 = vmul.f32 %v8721, %v2903
    %v8764 = vmul.f32 %v8724, %v2903
    %v8765 = vmul.f32 %v8727, %v2903
    %v8766 = vmul.f32 %v8730, %v2903
    %v8767 = vmul.f32 %v8733, %v2903
    %v8768 = vmul.f32 %v8736, %v2903
    %v8769 = vmul.f32 %v8577, %v8577
    %v8770 = vmul.f32 %v8578, %v8578
    %v8771 = vmul.f32 %v8579, %v8579
    %v8772 = vmul.f32 %v8580, %v8580
    %v8773 = vmul.f32 %v8581, %v8581
    %v8774 = vmul.f32 %v8582, %v8582
    %v8775 = vmul.f32 %v8583, %v8583
    %v8776 = vmul.f32 %v8584, %v8584
    %v8777 = vmul.f32 %v8585, %v8585
    %v8778 = vmul.f32 %v8586, %v8586
    %v8779 = vmul.f32 %v8587, %v8587
    %v8780 = vmul.f32 %v8588, %v8588
    %v8781 = vmul.f32 %v8589, %v8589
    %v8782 = vmul.f32 %v8590, %v8590
    %v8783 = vmul.f32 %v8591, %v8591
    %v8784 = vmul.f32 %v8592, %v8592
    %v8785 = vmul.f32 %v8593, %v8593
    %v8786 = vmul.f32 %v8594, %v8594
    %v8787 = vmul.f32 %v8595, %v8595
    %v8788 = vmul.f32 %v8596, %v8596
    %v8789 = vmul.f32 %v8597, %v8597
    %v8790 = vmul.f32 %v8598, %v8598
    %v8791 = vmul.f32 %v8599, %v8599
    %v8792 = vmul.f32 %v8600, %v8600
    %v8793 = vmul.f32 %v8601, %v8601
    %v8794 = vmul.f32 %v8602, %v8602
    %v8795 = vmul.f32 %v8603, %v8603
    %v8796 = vmul.f32 %v8604, %v8604
    %v8797 = vmul.f32 %v8605, %v8605
    %v8798 = vmul.f32 %v8606, %v8606
    %v8799 = vmul.f32 %v8607, %v8607
    %v8800 = vmul.f32 %v8608, %v8608
    %v8801 = vsub.f32 %v8737, %v8769
    %v8802 = vsub.f32 %v8738, %v8770
    %v8803 = vsub.f32 %v8739, %v8771
    %v8804 = vsub.f32 %v8740, %v8772
    %v8805 = vsub.f32 %v8741, %v8773
    %v8806 = vsub.f32 %v8742, %v8774
    %v8807 = vsub.f32 %v8743, %v8775
    %v8808 = vsub.f32 %v8744, %v8776
    %v8809 = vsub.f32 %v8745, %v8777
    %v8810 = vsub.f32 %v8746, %v8778
    %v8811 = vsub.f32 %v8747, %v8779
    %v8812 = vsub.f32 %v8748, %v8780
    %v8813 = vsub.f32 %v8749, %v8781
    %v8814 = vsub.f32 %v8750, %v8782
    %v8815 = vsub.f32 %v8751, %v8783
    %v8816 = vsub.f32 %v8752, %v8784
    %v8817 = vsub.f32 %v8753, %v8785
    %v8818 = vsub.f32 %v8754, %v8786
    %v8819 = vsub.f32 %v8755, %v8787
    %v8820 = vsub.f32 %v8756, %v8788
    %v8821 = vsub.f32 %v8757, %v8789
    %v8822 = vsub.f32 %v8758, %v8790
    %v8823 = vsub.f32 %v8759, %v8791
    %v8824 = vsub.f32 %v8760, %v8792
    %v8825 = vsub.f32 %v8761, %v8793
    %v8826 = vsub.f32 %v8762, %v8794
    %v8827 = vsub.f32 %v8763, %v8795
    %v8828 = vsub.f32 %v8764, %v8796
    %v8829 = vsub.f32 %v8765, %v8797
    %v8830 = vsub.f32 %v8766, %v8798
    %v8831 = vsub.f32 %v8767, %v8799
    %v8832 = vsub.f32 %v8768, %v8800
    %v8833 = vmax.f32 %v8801, 0.0
    %v8834 = vmax.f32 %v8802, 0.0
    %v8835 = vmax.f32 %v8803, 0.0
    %v8836 = vmax.f32 %v8804, 0.0
    %v8837 = vmax.f32 %v8805, 0.0
    %v8838 = vmax.f32 %v8806, 0.0
    %v8839 = vmax.f32 %v8807, 0.0
    %v8840 = vmax.f32 %v8808, 0.0
    %v8841 = vmax.f32 %v8809, 0.0
    %v8842 = vmax.f32 %v8810, 0.0
    %v8843 = vmax.f32 %v8811, 0.0
    %v8844 = vmax.f32 %v8812, 0.0
    %v8845 = vmax.f32 %v8813, 0.0
    %v8846 = vmax.f32 %v8814, 0.0
    %v8847 = vmax.f32 %v8815, 0.0
    %v8848 = vmax.f32 %v8816, 0.0
    %v8849 = vmax.f32 %v8817, 0.0
    %v8850 = vmax.f32 %v8818, 0.0
    %v8851 = vmax.f32 %v8819, 0.0
    %v8852 = vmax.f32 %v8820, 0.0
    %v8853 = vmax.f32 %v8821, 0.0
    %v8854 = vmax.f32 %v8822, 0.0
    %v8855 = vmax.f32 %v8823, 0.0
    %v8856 = vmax.f32 %v8824, 0.0
    %v8857 = vmax.f32 %v8825, 0.0
    %v8858 = vmax.f32 %v8826, 0.0
    %v8859 = vmax.f32 %v8827, 0.0
    %v8860 = vmax.f32 %v8828, 0.0
    %v8861 = vmax.f32 %v8829, 0.0
    %v8862 = vmax.f32 %v8830, 0.0
    %v8863 = vmax.f32 %v8831, 0.0
    %v8864 = vmax.f32 %v8832, 0.0
    %v8865 = vsub.f32 %v8353, %v8577
    %v8866 = vsub.f32 %v8356, %v8578
    %v8867 = vsub.f32 %v8361, %v8579
    %v8868 = vsub.f32 %v8364, %v8580
    %v8869 = vsub.f32 %v8369, %v8581
    %v8870 = vsub.f32 %v8372, %v8582
    %v8871 = vsub.f32 %v8377, %v8583
    %v8872 = vsub.f32 %v8380, %v8584
    %v8873 = vsub.f32 %v8385, %v8585
    %v8874 = vsub.f32 %v8388, %v8586
    %v8875 = vsub.f32 %v8393, %v8587
    %v8876 = vsub.f32 %v8396, %v8588
    %v8877 = vsub.f32 %v8401, %v8589
    %v8878 = vsub.f32 %v8404, %v8590
    %v8879 = vsub.f32 %v8409, %v8591
    %v8880 = vsub.f32 %v8412, %v8592
    %v8881 = vsub.f32 %v8417, %v8593
    %v8882 = vsub.f32 %v8420, %v8594
    %v8883 = vsub.f32 %v8425, %v8595
    %v8884 = vsub.f32 %v8428, %v8596
    %v8885 = vsub.f32 %v8433, %v8597
    %v8886 = vsub.f32 %v8436, %v8598
    %v8887 = vsub.f32 %v8441, %v8599
    %v8888 = vsub.f32 %v8444, %v8600
    %v8889 = vsub.f32 %v8449, %v8601
    %v8890 = vsub.f32 %v8452, %v8602
    %v8891 = vsub.f32 %v8457, %v8603
    %v8892 = vsub.f32 %v8460, %v8604
    %v8893 = vsub.f32 %v8465, %v8605
    %v8894 = vsub.f32 %v8468, %v8606
    %v8895 = vsub.f32 %v8473, %v8607
    %v8896 = vsub.f32 %v8476, %v8608
    %v8897 = vadd.f32 %v8833, 1e-05
    %v8898 = vadd.f32 %v8834, 1e-05
    %v8899 = vadd.f32 %v8835, 1e-05
    %v8900 = vadd.f32 %v8836, 1e-05
    %v8901 = vadd.f32 %v8837, 1e-05
    %v8902 = vadd.f32 %v8838, 1e-05
    %v8903 = vadd.f32 %v8839, 1e-05
    %v8904 = vadd.f32 %v8840, 1e-05
    %v8905 = vadd.f32 %v8841, 1e-05
    %v8906 = vadd.f32 %v8842, 1e-05
    %v8907 = vadd.f32 %v8843, 1e-05
    %v8908 = vadd.f32 %v8844, 1e-05
    %v8909 = vadd.f32 %v8845, 1e-05
    %v8910 = vadd.f32 %v8846, 1e-05
    %v8911 = vadd.f32 %v8847, 1e-05
    %v8912 = vadd.f32 %v8848, 1e-05
    %v8913 = vadd.f32 %v8849, 1e-05
    %v8914 = vadd.f32 %v8850, 1e-05
    %v8915 = vadd.f32 %v8851, 1e-05
    %v8916 = vadd.f32 %v8852, 1e-05
    %v8917 = vadd.f32 %v8853, 1e-05
    %v8918 = vadd.f32 %v8854, 1e-05
    %v8919 = vadd.f32 %v8855, 1e-05
    %v8920 = vadd.f32 %v8856, 1e-05
    %v8921 = vadd.f32 %v8857, 1e-05
    %v8922 = vadd.f32 %v8858, 1e-05
    %v8923 = vadd.f32 %v8859, 1e-05
    %v8924 = vadd.f32 %v8860, 1e-05
    %v8925 = vadd.f32 %v8861, 1e-05
    %v8926 = vadd.f32 %v8862, 1e-05
    %v8927 = vadd.f32 %v8863, 1e-05
    %v8928 = vadd.f32 %v8864, 1e-05
    %v8929 = vrsqrt.pop %v8897
    %v8930 = vrsqrt.pop %v8898
    %v8931 = vrsqrt.pop %v8899
    %v8932 = vrsqrt.pop %v8900
    %v8933 = vrsqrt.pop %v8901
    %v8934 = vrsqrt.pop %v8902
    %v8935 = vrsqrt.pop %v8903
    %v8936 = vrsqrt.pop %v8904
    %v8937 = vrsqrt.pop %v8905
    %v8938 = vrsqrt.pop %v8906
    %v8939 = vrsqrt.pop %v8907
    %v8940 = vrsqrt.pop %v8908
    %v8941 = vrsqrt.pop %v8909
    %v8942 = vrsqrt.pop %v8910
    %v8943 = vrsqrt.pop %v8911
    %v8944 = vrsqrt.pop %v8912
    %v8945 = vrsqrt.pop %v8913
    %v8946 = vrsqrt.pop %v8914
    %v8947 = vrsqrt.pop %v8915
    %v8948 = vrsqrt.pop %v8916
    %v8949 = vrsqrt.pop %v8917
    %v8950 = vrsqrt.pop %v8918
    %v8951 = vrsqrt.pop %v8919
    %v8952 = vrsqrt.pop %v8920
    %v8953 = vrsqrt.pop %v8921
    %v8954 = vrsqrt.pop %v8922
    %v8955 = vrsqrt.pop %v8923
    %v8956 = vrsqrt.pop %v8924
    %v8957 = vrsqrt.pop %v8925
    %v8958 = vrsqrt.pop %v8926
    %v8959 = vrsqrt.pop %v8927
    %v8960 = vrsqrt.pop %v8928
    %v8961 = vmul.f32 %v8865, %v8929
    %v8962 = vmul.f32 %v8866, %v8930
    %v8963 = vmul.f32 %v8867, %v8931
    %v8964 = vmul.f32 %v8868, %v8932
    %v8965 = vmul.f32 %v8869, %v8933
    %v8966 = vmul.f32 %v8870, %v8934
    %v8967 = vmul.f32 %v8871, %v8935
    %v8968 = vmul.f32 %v8872, %v8936
    %v8969 = vmul.f32 %v8873, %v8937
    %v8970 = vmul.f32 %v8874, %v8938
    %v8971 = vmul.f32 %v8875, %v8939
    %v8972 = vmul.f32 %v8876, %v8940
    %v8973 = vmul.f32 %v8877, %v8941
    %v8974 = vmul.f32 %v8878, %v8942
    %v8975 = vmul.f32 %v8879, %v8943
    %v8976 = vmul.f32 %v8880, %v8944
    %v8977 = vmul.f32 %v8881, %v8945
    %v8978 = vmul.f32 %v8882, %v8946
    %v8979 = vmul.f32 %v8883, %v8947
    %v8980 = vmul.f32 %v8884, %v8948
    %v8981 = vmul.f32 %v8885, %v8949
    %v8982 = vmul.f32 %v8886, %v8950
    %v8983 = vmul.f32 %v8887, %v8951
    %v8984 = vmul.f32 %v8888, %v8952
    %v8985 = vmul.f32 %v8889, %v8953
    %v8986 = vmul.f32 %v8890, %v8954
    %v8987 = vmul.f32 %v8891, %v8955
    %v8988 = vmul.f32 %v8892, %v8956
    %v8989 = vmul.f32 %v8893, %v8957
    %v8990 = vmul.f32 %v8894, %v8958
    %v8991 = vmul.f32 %v8895, %v8959
    %v8992 = vmul.f32 %v8896, %v8960
    %v8994 = vlaneseq
    %v8995 = vshrl.u32 %v8994, 7
    %v8996 = vsub.s32 0, %v8995
    %v8997 = vrot.slane %v8479, %v8996
    %v8999 = vmul.f32 %v8961, %v8997
    %v9000 = vmul.f32 %v8962, %v8997
    %v9001 = vmul.f32 %v8963, %v8997
    %v9002 = vmul.f32 %v8964, %v8997
    %v9003 = vmul.f32 %v8965, %v8997
    %v9004 = vmul.f32 %v8966, %v8997
    %v9005 = vmul.f32 %v8967, %v8997
    %v9006 = vmul.f32 %v8968, %v8997
    %v9007 = vmul.f32 %v8969, %v8997
    %v9008 = vmul.f32 %v8970, %v8997
    %v9009 = vmul.f32 %v8971, %v8997
    %v9010 = vmul.f32 %v8972, %v8997
    %v9011 = vmul.f32 %v8973, %v8997
    %v9012 = vmul.f32 %v8974, %v8997
    %v9013 = vmul.f32 %v8975, %v8997
    %v9014 = vmul.f32 %v8976, %v8997
    %v9015 = vmul.f32 %v8977, %v8997
    %v9016 = vmul.f32 %v8978, %v8997
    %v9017 = vmul.f32 %v8979, %v8997
    %v9018 = vmul.f32 %v8980, %v8997
    %v9019 = vmul.f32 %v8981, %v8997
    %v9020 = vmul.f32 %v8982, %v8997
    %v9021 = vmul.f32 %v8983, %v8997
    %v9022 = vmul.f32 %v8984, %v8997
    %v9023 = vmul.f32 %v8985, %v8997
    %v9024 = vmul.f32 %v8986, %v8997
    %v9025 = vmul.f32 %v8987, %v8997
    %v9026 = vmul.f32 %v8988, %v8997
    %v9027 = vmul.f32 %v8989, %v8997
    %v9028 = vmul.f32 %v8990, %v8997
    %v9029 = vmul.f32 %v8991, %v8997
    %v9030 = vmul.f32 %v8992, %v8997
    %v9032 = vlaneseq
    %v9033 = vshrl.u32 %v9032, 7
    %v9034 = vsub.s32 0, %v9033
    %v9035 = vrot.slane %v8480, %v9034
    %v9037 = vadd.f32 %v8999, %v9035
    %v9038 = vadd.f32 %v9000, %v9035
    %v9039 = vadd.f32 %v9001, %v9035
    %v9040 = vadd.f32 %v9002, %v9035
    %v9041 = vadd.f32 %v9003, %v9035
    %v9042 = vadd.f32 %v9004, %v9035
    %v9043 = vadd.f32 %v9005, %v9035
    %v9044 = vadd.f32 %v9006, %v9035
    %v9045 = vadd.f32 %v9007, %v9035
    %v9046 = vadd.f32 %v9008, %v9035
    %v9047 = vadd.f32 %v9009, %v9035
    %v9048 = vadd.f32 %v9010, %v9035
    %v9049 = vadd.f32 %v9011, %v9035
    %v9050 = vadd.f32 %v9012, %v9035
    %v9051 = vadd.f32 %v9013, %v9035
    %v9052 = vadd.f32 %v9014, %v9035
    %v9053 = vadd.f32 %v9015, %v9035
    %v9054 = vadd.f32 %v9016, %v9035
    %v9055 = vadd.f32 %v9017, %v9035
    %v9056 = vadd.f32 %v9018, %v9035
    %v9057 = vadd.f32 %v9019, %v9035
    %v9058 = vadd.f32 %v9020, %v9035
    %v9059 = vadd.f32 %v9021, %v9035
    %v9060 = vadd.f32 %v9022, %v9035
    %v9061 = vadd.f32 %v9023, %v9035
    %v9062 = vadd.f32 %v9024, %v9035
    %v9063 = vadd.f32 %v9025, %v9035
    %v9064 = vadd.f32 %v9026, %v9035
    %v9065 = vadd.f32 %v9027, %v9035
    %v9066 = vadd.f32 %v9028, %v9035
    %v9067 = vadd.f32 %v9029, %v9035
    %v9068 = vadd.f32 %v9030, %v9035
    %v9069 = vmax.f32 %v9037, 0.0
    %v9070 = vmax.f32 %v9038, 0.0
    %v9071 = vmax.f32 %v9039, 0.0
    %v9072 = vmax.f32 %v9040, 0.0
    %v9073 = vmax.f32 %v9041, 0.0
    %v9074 = vmax.f32 %v9042, 0.0
    %v9075 = vmax.f32 %v9043, 0.0
    %v9076 = vmax.f32 %v9044, 0.0
    %v9077 = vmax.f32 %v9045, 0.0
    %v9078 = vmax.f32 %v9046, 0.0
    %v9079 = vmax.f32 %v9047, 0.0
    %v9080 = vmax.f32 %v9048, 0.0
    %v9081 = vmax.f32 %v9049, 0.0
    %v9082 = vmax.f32 %v9050, 0.0
    %v9083 = vmax.f32 %v9051, 0.0
    %v9084 = vmax.f32 %v9052, 0.0
    %v9085 = vmax.f32 %v9053, 0.0
    %v9086 = vmax.f32 %v9054, 0.0
    %v9087 = vmax.f32 %v9055, 0.0
    %v9088 = vmax.f32 %v9056, 0.0
    %v9089 = vmax.f32 %v9057, 0.0
    %v9090 = vmax.f32 %v9058, 0.0
    %v9091 = vmax.f32 %v9059, 0.0
    %v9092 = vmax.f32 %v9060, 0.0
    %v9093 = vmax.f32 %v9061, 0.0
    %v9094 = vmax.f32 %v9062, 0.0
    %v9095 = vmax.f32 %v9063, 0.0
    %v9096 = vmax.f32 %v9064, 0.0
    %v9097 = vmax.f32 %v9065, 0.0
    %v9098 = vmax.f32 %v9066, 0.0
    %v9099 = vmax.f32 %v9067, 0.0
    %v9100 = vmax.f32 %v9068, 0.0
    %v9101 = vld [vmem:[%s67] sm:$0xf]
    %v9102 = vld [vmem:[%s67 + $0x4] sm:$0xf]
    %v9103 = vld [vmem:[%s67 + $0x8] sm:$0xf]
    %v9104 = vld [vmem:[%s67 + $0xc] sm:$0xf]
    %v9105 = vld [vmem:[%s67 + $0x10] sm:$0xf]
    %v9106 = vld [vmem:[%s67 + $0x14] sm:$0xf]
    %v9107 = vld [vmem:[%s67 + $0x18] sm:$0xf]
    %v9108 = vld [vmem:[%s67 + $0x1c] sm:$0xf]
    %v9109 = vpack.c.bf16 %v9070, %v9069
    %v9110 = vpack.c.bf16 %v9072, %v9071
    %v9111 = vpack.c.bf16 %v9074, %v9073
    %v9112 = vpack.c.bf16 %v9076, %v9075
    %v9113 = vpack.c.bf16 %v9078, %v9077
    %v9114 = vpack.c.bf16 %v9080, %v9079
    %v9115 = vpack.c.bf16 %v9082, %v9081
    %v9116 = vpack.c.bf16 %v9084, %v9083
    %v9117 = vpack.c.bf16 %v9086, %v9085
    %v9118 = vpack.c.bf16 %v9088, %v9087
    %v9119 = vpack.c.bf16 %v9090, %v9089
    %v9120 = vpack.c.bf16 %v9092, %v9091
    %v9121 = vpack.c.bf16 %v9094, %v9093
    %v9122 = vpack.c.bf16 %v9096, %v9095
    %v9123 = vpack.c.bf16 %v9098, %v9097
    %v9124 = vpack.c.bf16 %v9100, %v9099
    %v9125 = vld [vmem:[%s53] sm:$0x1]
    %v9127 = vlaneseq
    %v9128 = vshrl.u32 %v9127, 7
    %v9129 = vsub.s32 0, %v9128
    %v9130 = vrot.slane %v9125, %v9129
    %v9140 = vunpack.c.l.b16 %v9101
    %v9141 = vunpack.c.l.b16 %v9102
    %v9142 = vunpack.c.l.b16 %v9103
    %v9143 = vunpack.c.l.b16 %v9104
    %v9144 = vunpack.c.l.b16 %v9105
    %v9145 = vunpack.c.l.b16 %v9106
    %v9146 = vunpack.c.l.b16 %v9107
    %v9147 = vunpack.c.l.b16 %v9108
    %v9148 = vpack.c.b16 %v9141, %v9140
    %v9149 = vpack.c.b16 %v9143, %v9142
    %v9150 = vpack.c.b16 %v9145, %v9144
    %v9151 = vpack.c.b16 %v9147, %v9146
    %v9157 = vsel %vm1713, %v9109, 0
    %v9160 = vsel %vm1713, %v9110, 0
    %v9163 = vsel %vm1713, %v9111, 0
    %v9166 = vsel %vm1713, %v9112, 0
    %v9169 = vsel %vm1713, %v9113, 0
    %v9172 = vsel %vm1713, %v9114, 0
    %v9175 = vsel %vm1713, %v9115, 0
    %v9178 = vsel %vm1713, %v9116, 0
    %v9181 = vsel %vm1713, %v9117, 0
    %v9184 = vsel %vm1713, %v9118, 0
    %v9187 = vsel %vm1713, %v9119, 0
    %v9190 = vsel %vm1713, %v9120, 0
    %v9193 = vsel %vm1713, %v9121, 0
    %v9196 = vsel %vm1713, %v9122, 0
    %v9199 = vsel %vm1713, %v9123, 0
    %v9202 = vsel %vm1713, %v9124, 0
    %9204 = vmatprep.subr.bf16.mxu0 0
    %9205 = vmatpush1.bf16.msra.mxu0 %v9148
    %9206 = vmatprep.subr.bf16.mxu0 0
    %9207 = vmatpush1.bf16.msra.mxu0 %v9149
    %9208 = vmatprep.subr.bf16.mxu0 0
    %9209 = vmatpush1.bf16.msra.mxu0 %v9150
    %9210 = vmatprep.subr.bf16.mxu0 0
    %9211 = vmatpush1.bf16.msra.mxu0 %v9151
    %9212 = vmatprep.subr.bf16.mxu0 0
    %9213 = vmatpush1.bf16.msra.mxu0 0
    %9214 = vmatprep.subr.bf16.mxu0 0
    %9215 = vmatpush1.bf16.msra.mxu0 0
    %9216 = vmatprep.subr.bf16.mxu0 0
    %9217 = vmatpush1.bf16.msra.mxu0 0
    %9218 = vmatprep.subr.bf16.mxu0 0
    %9219 = vmatpush1.bf16.msra.mxu0 0
    %9220 = vmatprep.subr.bf16.mxu0 0
    %9221 = vmatpush1.bf16.msra.mxu0 0
    %9222 = vmatprep.subr.bf16.mxu0 0
    %9223 = vmatpush1.bf16.msra.mxu0 0
    %9224 = vmatprep.subr.bf16.mxu0 0
    %9225 = vmatpush1.bf16.msra.mxu0 0
    %9226 = vmatprep.subr.bf16.mxu0 0
    %9227 = vmatpush1.bf16.msra.mxu0 0
    %9228 = vmatprep.subr.bf16.mxu0 0
    %9229 = vmatpush1.bf16.msra.mxu0 0
    %9230 = vmatprep.subr.bf16.mxu0 0
    %9231 = vmatpush1.bf16.msra.mxu0 0
    %9232 = vmatprep.subr.bf16.mxu0 0
    %9233 = vmatpush1.bf16.msra.mxu0 0
    %9234 = vmatprep.subr.bf16.mxu0 0
    %9235 = vmatpush1.bf16.msra.mxu0 0
    %9236 = vmatprep.mubr.bf16.mxu0 0
    %9237 = vmatmul.mubr.bf16.gmra.mrb[0].mxu0 %v9157
    %v9238 = vpop.f32.mrb[0].mxu0
    %v9239 = vadd.f32 %v9130, %v9238
    %v9240 = vpop.f32.mrb[0].mxu0
    %v9241 = vpop.f32.mrb[0].mxu0
    %v9242 = vadd.f32 %v9130, %v9241
    %v9243 = vpop.f32.mrb[0].mxu0
    %9244 = vmatprep.mubr.bf16.mxu0 0
    %9245 = vmatmul.mubr.bf16.gmra.mrb[0].mxu0 %v9160
    %v9246 = vpop.f32.mrb[0].mxu0
    %v9247 = vadd.f32 %v9130, %v9246
    %v9248 = vpop.f32.mrb[0].mxu0
    %v9249 = vpop.f32.mrb[0].mxu0
    %v9250 = vadd.f32 %v9130, %v9249
    %v9251 = vpop.f32.mrb[0].mxu0
    %9252 = vmatprep.mubr.bf16.mxu0 0
    %9253 = vmatmul.mubr.bf16.gmra.mrb[0].mxu0 %v9163
    %v9254 = vpop.f32.mrb[0].mxu0
    %v9255 = vadd.f32 %v9130, %v9254
    %v9256 = vpop.f32.mrb[0].mxu0
    %v9257 = vpop.f32.mrb[0].mxu0
    %v9258 = vadd.f32 %v9130, %v9257
    %v9259 = vpop.f32.mrb[0].mxu0
    %9260 = vmatprep.mubr.bf16.mxu0 0
    %9261 = vmatmul.mubr.bf16.gmra.mrb[0].mxu0 %v9166
    %v9262 = vpop.f32.mrb[0].mxu0
    %v9263 = vadd.f32 %v9130, %v9262
    %v9264 = vpop.f32.mrb[0].mxu0
    %v9265 = vpop.f32.mrb[0].mxu0
    %v9266 = vadd.f32 %v9130, %v9265
    %v9267 = vpop.f32.mrb[0].mxu0
    %9268 = vmatprep.mubr.bf16.mxu0 0
    %9269 = vmatmul.mubr.bf16.gmra.mrb[0].mxu0 %v9169
    %v9270 = vpop.f32.mrb[0].mxu0
    %v9271 = vadd.f32 %v9130, %v9270
    %v9272 = vpop.f32.mrb[0].mxu0
    %v9273 = vpop.f32.mrb[0].mxu0
    %v9274 = vadd.f32 %v9130, %v9273
    %v9275 = vpop.f32.mrb[0].mxu0
    %9276 = vmatprep.mubr.bf16.mxu0 0
    %9277 = vmatmul.mubr.bf16.gmra.mrb[0].mxu0 %v9172
    %v9278 = vpop.f32.mrb[0].mxu0
    %v9279 = vadd.f32 %v9130, %v9278
    %v9280 = vpop.f32.mrb[0].mxu0
    %v9281 = vpop.f32.mrb[0].mxu0
    %v9282 = vadd.f32 %v9130, %v9281
    %v9283 = vpop.f32.mrb[0].mxu0
    %9284 = vmatprep.mubr.bf16.mxu0 0
    %9285 = vmatmul.mubr.bf16.gmra.mrb[0].mxu0 %v9175
    %v9286 = vpop.f32.mrb[0].mxu0
    %v9287 = vadd.f32 %v9130, %v9286
    %v9288 = vpop.f32.mrb[0].mxu0
    %v9289 = vpop.f32.mrb[0].mxu0
    %v9290 = vadd.f32 %v9130, %v9289
    %v9291 = vpop.f32.mrb[0].mxu0
    %9292 = vmatprep.mubr.bf16.mxu0 0
    %9293 = vmatmul.mubr.bf16.gmra.mrb[0].mxu0 %v9178
    %v9294 = vpop.f32.mrb[0].mxu0
    %v9295 = vadd.f32 %v9130, %v9294
    %v9296 = vpop.f32.mrb[0].mxu0
    %v9297 = vpop.f32.mrb[0].mxu0
    %v9298 = vadd.f32 %v9130, %v9297
    %v9299 = vpop.f32.mrb[0].mxu0
    %9300 = vmatprep.mubr.bf16.mxu0 0
    %9301 = vmatmul.mubr.bf16.gmra.mrb[0].mxu0 %v9181
    %v9302 = vpop.f32.mrb[0].mxu0
    %v9303 = vadd.f32 %v9130, %v9302
    %v9304 = vpop.f32.mrb[0].mxu0
    %v9305 = vpop.f32.mrb[0].mxu0
    %v9306 = vadd.f32 %v9130, %v9305
    %v9307 = vpop.f32.mrb[0].mxu0
    %9308 = vmatprep.mubr.bf16.mxu0 0
    %9309 = vmatmul.mubr.bf16.gmra.mrb[0].mxu0 %v9184
    %v9310 = vpop.f32.mrb[0].mxu0
    %v9311 = vadd.f32 %v9130, %v9310
    %v9312 = vpop.f32.mrb[0].mxu0
    %v9313 = vpop.f32.mrb[0].mxu0
    %v9314 = vadd.f32 %v9130, %v9313
    %v9315 = vpop.f32.mrb[0].mxu0
    %9316 = vmatprep.mubr.bf16.mxu0 0
    %9317 = vmatmul.mubr.bf16.gmra.mrb[0].mxu0 %v9187
    %v9318 = vpop.f32.mrb[0].mxu0
    %v9319 = vadd.f32 %v9130, %v9318
    %v9320 = vpop.f32.mrb[0].mxu0
    %v9321 = vpop.f32.mrb[0].mxu0
    %v9322 = vadd.f32 %v9130, %v9321
    %v9323 = vpop.f32.mrb[0].mxu0
    %9324 = vmatprep.mubr.bf16.mxu0 0
    %9325 = vmatmul.mubr.bf16.gmra.mrb[0].mxu0 %v9190
    %v9326 = vpop.f32.mrb[0].mxu0
    %v9327 = vadd.f32 %v9130, %v9326
    %v9328 = vpop.f32.mrb[0].mxu0
    %v9329 = vpop.f32.mrb[0].mxu0
    %v9330 = vadd.f32 %v9130, %v9329
    %v9331 = vpop.f32.mrb[0].mxu0
    %9332 = vmatprep.mubr.bf16.mxu0 0
    %9333 = vmatmul.mubr.bf16.gmra.mrb[0].mxu0 %v9193
    %v9334 = vpop.f32.mrb[0].mxu0
    %v9335 = vadd.f32 %v9130, %v9334
    %v9336 = vpop.f32.mrb[0].mxu0
    %v9337 = vpop.f32.mrb[0].mxu0
    %v9338 = vadd.f32 %v9130, %v9337
    %v9339 = vpop.f32.mrb[0].mxu0
    %9340 = vmatprep.mubr.bf16.mxu0 0
    %9341 = vmatmul.mubr.bf16.gmra.mrb[0].mxu0 %v9196
    %v9342 = vpop.f32.mrb[0].mxu0
    %v9343 = vadd.f32 %v9130, %v9342
    %v9344 = vpop.f32.mrb[0].mxu0
    %v9345 = vpop.f32.mrb[0].mxu0
    %v9346 = vadd.f32 %v9130, %v9345
    %v9347 = vpop.f32.mrb[0].mxu0
    %9348 = vmatprep.mubr.bf16.mxu0 0
    %9349 = vmatmul.mubr.bf16.gmra.mrb[0].mxu0 %v9199
    %v9350 = vpop.f32.mrb[0].mxu0
    %v9351 = vadd.f32 %v9130, %v9350
    %v9352 = vpop.f32.mrb[0].mxu0
    %v9353 = vpop.f32.mrb[0].mxu0
    %v9354 = vadd.f32 %v9130, %v9353
    %v9355 = vpop.f32.mrb[0].mxu0
    %9356 = vmatprep.mubr.bf16.mxu0 0
    %9357 = vmatmul.mubr.bf16.gmra.mrb[0].mxu0 %v9202
    %v9358 = vpop.f32.mrb[0].mxu0
    %v9359 = vadd.f32 %v9130, %v9358
    %v9360 = vpop.f32.mrb[0].mxu0
    %v9361 = vpop.f32.mrb[0].mxu0
    %v9362 = vadd.f32 %v9130, %v9361
    %v9363 = vpop.f32.mrb[0].mxu0
    %9364 = vdwg.mxu0
    %v9365 = vpack.c.bf16 %v9242, %v9239
    %v9366 = vpack.c.bf16 %v9250, %v9247
    %v9367 = vpack.c.bf16 %v9258, %v9255
    %v9368 = vpack.c.bf16 %v9266, %v9263
    %v9369 = vpack.c.bf16 %v9274, %v9271
    %v9370 = vpack.c.bf16 %v9282, %v9279
    %v9371 = vpack.c.bf16 %v9290, %v9287
    %v9372 = vpack.c.bf16 %v9298, %v9295
    %v9373 = vpack.c.bf16 %v9306, %v9303
    %v9374 = vpack.c.bf16 %v9314, %v9311
    %v9375 = vpack.c.bf16 %v9322, %v9319
    %v9376 = vpack.c.bf16 %v9330, %v9327
    %v9377 = vpack.c.bf16 %v9338, %v9335
    %v9378 = vpack.c.bf16 %v9346, %v9343
    %v9379 = vpack.c.bf16 %v9354, %v9351
    %v9380 = vpack.c.bf16 %v9362, %v9359
    %9381 = vmatprep.subr.bf16.mxu0 0
    %9382 = vmatpush1.bf16.msra.mxu0 %v9365
    %9383 = vmatprep.subr.bf16.mxu0 0
    %9384 = vmatpush1.bf16.msra.mxu0 %v9366
    %9385 = vmatprep.subr.bf16.mxu0 0
    %9386 = vmatpush1.bf16.msra.mxu0 %v9367
    %9387 = vmatprep.subr.bf16.mxu0 0
    %9388 = vmatpush1.bf16.msra.mxu0 %v9368
    %9389 = vmatprep.subr.bf16.mxu0 0
    %9390 = vmatpush1.bf16.msra.mxu0 %v9369
    %9391 = vmatprep.subr.bf16.mxu0 0
    %9392 = vmatpush1.bf16.msra.mxu0 %v9370
    %9393 = vmatprep.subr.bf16.mxu0 0
    %9394 = vmatpush1.bf16.msra.mxu0 %v9371
    %9395 = vmatprep.subr.bf16.mxu0 0
    %9396 = vmatpush1.bf16.msra.mxu0 %v9372
    %9397 = vmatprep.subr.bf16.mxu0 0
    %9398 = vmatpush1.bf16.msra.mxu0 %v9373
    %9399 = vmatprep.subr.bf16.mxu0 0
    %9400 = vmatpush1.bf16.msra.mxu0 %v9374
    %9401 = vmatprep.subr.bf16.mxu0 0
    %9402 = vmatpush1.bf16.msra.mxu0 %v9375
    %9403 = vmatprep.subr.bf16.mxu0 0
    %9404 = vmatpush1.bf16.msra.mxu0 %v9376
    %9405 = vmatprep.subr.bf16.mxu0 0
    %9406 = vmatpush1.bf16.msra.mxu0 %v9377
    %9407 = vmatprep.subr.bf16.mxu0 0
    %9408 = vmatpush1.bf16.msra.mxu0 %v9378
    %9409 = vmatprep.subr.bf16.mxu0 0
    %9410 = vmatpush1.bf16.msra.mxu0 %v9379
    %9411 = vmatprep.subr.bf16.mxu0 0
    %9412 = vmatpush1.bf16.msra.mxu0 %v9380
    %9413 = vmatprep.mubr.bf16.mxu0 %v1390
    %9414 = vmatmul.mubr.bf16.gmra.mrb[0].mxu0 %v1389
    %v9415 = vpop.f32.mrb[0].mxu0
    %v9416 = vadd.f32 0.0, %v9415
    %v9417 = vpop.f32.mrb[0].mxu0
    %v9418 = vpop.f32.mrb[0].mxu0
    %v9419 = vadd.f32 0.0, %v9418
    %v9420 = vpop.f32.mrb[0].mxu0
    %9421 = vmatprep.mubr.bf16.mxu0 %v1392
    %9422 = vmatmul.mubr.bf16.gmra.mrb[0].mxu0 %v1391
    %v9423 = vpop.f32.mrb[0].mxu0
    %v9424 = vadd.f32 0.0, %v9423
    %v9425 = vpop.f32.mrb[0].mxu0
    %v9426 = vpop.f32.mrb[0].mxu0
    %v9427 = vadd.f32 0.0, %v9426
    %v9428 = vpop.f32.mrb[0].mxu0
    %9429 = vmatprep.mubr.bf16.mxu0 %v1394
    %9430 = vmatmul.mubr.bf16.gmra.mrb[0].mxu0 %v1393
    %v9431 = vpop.f32.mrb[0].mxu0
    %v9432 = vadd.f32 0.0, %v9431
    %v9433 = vpop.f32.mrb[0].mxu0
    %v9434 = vpop.f32.mrb[0].mxu0
    %v9435 = vadd.f32 0.0, %v9434
    %v9436 = vpop.f32.mrb[0].mxu0
    %9437 = vmatprep.mubr.bf16.mxu0 %v1396
    %9438 = vmatmul.mubr.bf16.gmra.mrb[0].mxu0 %v1395
    %v9439 = vpop.f32.mrb[0].mxu0
    %v9440 = vadd.f32 0.0, %v9439
    %v9441 = vpop.f32.mrb[0].mxu0
    %v9442 = vpop.f32.mrb[0].mxu0
    %v9443 = vadd.f32 0.0, %v9442
    %v9444 = vpop.f32.mrb[0].mxu0
    %9445 = vmatprep.mubr.bf16.mxu0 %v1398
    %9446 = vmatmul.mubr.bf16.gmra.mrb[0].mxu0 %v1397
    %v9447 = vpop.f32.mrb[0].mxu0
    %v9448 = vadd.f32 0.0, %v9447
    %v9449 = vpop.f32.mrb[0].mxu0
    %v9450 = vpop.f32.mrb[0].mxu0
    %v9451 = vadd.f32 0.0, %v9450
    %v9452 = vpop.f32.mrb[0].mxu0
    %9453 = vmatprep.mubr.bf16.mxu0 %v1400
    %9454 = vmatmul.mubr.bf16.gmra.mrb[0].mxu0 %v1399
    %v9455 = vpop.f32.mrb[0].mxu0
    %v9456 = vadd.f32 0.0, %v9455
    %v9457 = vpop.f32.mrb[0].mxu0
    %v9458 = vpop.f32.mrb[0].mxu0
    %v9459 = vadd.f32 0.0, %v9458
    %v9460 = vpop.f32.mrb[0].mxu0
    %9461 = vdwg.mxu0
    %v9462 = vld [vmem:[#allocation10] sm:$0x1]
    %v9463 = vld [vmem:[#allocation7] sm:$0x1]
    %v9464 = vsel %vm1713, %v9416, 0.0
    %9465 = vadd.xlane.f32.xlu0 %v9464
    %v9466 = vpop.xlane.xlu0 %9465
    %v9467 = vsel %vm1713, %v9419, 0.0
    %9468 = vadd.xlane.f32.xlu0 %v9467
    %v9469 = vpop.xlane.xlu0 %9468
    %v9470 = vsel %vm1713, %v9424, 0.0
    %9471 = vadd.xlane.f32.xlu0 %v9470
    %v9472 = vpop.xlane.xlu0 %9471
    %v9473 = vsel %vm1713, %v9427, 0.0
    %9474 = vadd.xlane.f32.xlu0 %v9473
    %v9475 = vpop.xlane.xlu0 %9474
    %v9476 = vsel %vm1713, %v9432, 0.0
    %9477 = vadd.xlane.f32.xlu0 %v9476
    %v9478 = vpop.xlane.xlu0 %9477
    %v9479 = vsel %vm1713, %v9435, 0.0
    %9480 = vadd.xlane.f32.xlu0 %v9479
    %v9481 = vpop.xlane.xlu0 %9480
    %v9482 = vsel %vm1713, %v9440, 0.0
    %9483 = vadd.xlane.f32.xlu0 %v9482
    %v9484 = vpop.xlane.xlu0 %9483
    %v9485 = vsel %vm1713, %v9443, 0.0
    %9486 = vadd.xlane.f32.xlu0 %v9485
    %v9487 = vpop.xlane.xlu0 %9486
    %v9488 = vsel %vm1713, %v9448, 0.0
    %9489 = vadd.xlane.f32.xlu0 %v9488
    %v9490 = vpop.xlane.xlu0 %9489
    %v9491 = vsel %vm1713, %v9451, 0.0
    %9492 = vadd.xlane.f32.xlu0 %v9491
    %v9493 = vpop.xlane.xlu0 %9492
    %v9494 = vsel %vm1713, %v9456, 0.0
    %9495 = vadd.xlane.f32.xlu0 %v9494
    %v9496 = vpop.xlane.xlu0 %9495
    %v9497 = vsel %vm1713, %v9459, 0.0
    %9498 = vadd.xlane.f32.xlu0 %v9497
    %v9499 = vpop.xlane.xlu0 %9498
    %v9500 = vmul.f32 %v9466, %v2903
    %v9501 = vmul.f32 %v9469, %v2903
    %v9502 = vmul.f32 %v9472, %v2903
    %v9503 = vmul.f32 %v9475, %v2903
    %v9504 = vmul.f32 %v9478, %v2903
    %v9505 = vmul.f32 %v9481, %v2903
    %v9506 = vmul.f32 %v9484, %v2903
    %v9507 = vmul.f32 %v9487, %v2903
    %v9508 = vmul.f32 %v9490, %v2903
    %v9509 = vmul.f32 %v9493, %v2903
    %v9510 = vmul.f32 %v9496, %v2903
    %v9511 = vmul.f32 %v9499, %v2903
    %v9512 = vmul.f32 %v9416, %v9416
    %v9513 = vmul.f32 %v9419, %v9419
    %v9514 = vmul.f32 %v9424, %v9424
    %v9515 = vmul.f32 %v9427, %v9427
    %v9516 = vmul.f32 %v9432, %v9432
    %v9517 = vmul.f32 %v9435, %v9435
    %v9518 = vmul.f32 %v9440, %v9440
    %v9519 = vmul.f32 %v9443, %v9443
    %v9520 = vmul.f32 %v9448, %v9448
    %v9521 = vmul.f32 %v9451, %v9451
    %v9522 = vmul.f32 %v9456, %v9456
    %v9523 = vmul.f32 %v9459, %v9459
    %v9524 = vsel %vm1713, %v9512, 0.0
    %9525 = vadd.xlane.f32.xlu0 %v9524
    %v9526 = vpop.xlane.xlu0 %9525
    %v9527 = vsel %vm1713, %v9513, 0.0
    %9528 = vadd.xlane.f32.xlu0 %v9527
    %v9529 = vpop.xlane.xlu0 %9528
    %v9530 = vsel %vm1713, %v9514, 0.0
    %9531 = vadd.xlane.f32.xlu0 %v9530
    %v9532 = vpop.xlane.xlu0 %9531
    %v9533 = vsel %vm1713, %v9515, 0.0
    %9534 = vadd.xlane.f32.xlu0 %v9533
    %v9535 = vpop.xlane.xlu0 %9534
    %v9536 = vsel %vm1713, %v9516, 0.0
    %9537 = vadd.xlane.f32.xlu0 %v9536
    %v9538 = vpop.xlane.xlu0 %9537
    %v9539 = vsel %vm1713, %v9517, 0.0
    %9540 = vadd.xlane.f32.xlu0 %v9539
    %v9541 = vpop.xlane.xlu0 %9540
    %v9542 = vsel %vm1713, %v9518, 0.0
    %9543 = vadd.xlane.f32.xlu0 %v9542
    %v9544 = vpop.xlane.xlu0 %9543
    %v9545 = vsel %vm1713, %v9519, 0.0
    %9546 = vadd.xlane.f32.xlu0 %v9545
    %v9547 = vpop.xlane.xlu0 %9546
    %v9548 = vsel %vm1713, %v9520, 0.0
    %9549 = vadd.xlane.f32.xlu0 %v9548
    %v9550 = vpop.xlane.xlu0 %9549
    %v9551 = vsel %vm1713, %v9521, 0.0
    %9552 = vadd.xlane.f32.xlu0 %v9551
    %v9553 = vpop.xlane.xlu0 %9552
    %v9554 = vsel %vm1713, %v9522, 0.0
    %9555 = vadd.xlane.f32.xlu0 %v9554
    %v9556 = vpop.xlane.xlu0 %9555
    %v9557 = vsel %vm1713, %v9523, 0.0
    %9558 = vadd.xlane.f32.xlu0 %v9557
    %v9559 = vpop.xlane.xlu0 %9558
    %v9560 = vmul.f32 %v9526, %v2903
    %v9561 = vmul.f32 %v9529, %v2903
    %v9562 = vmul.f32 %v9532, %v2903
    %v9563 = vmul.f32 %v9535, %v2903
    %v9564 = vmul.f32 %v9538, %v2903
    %v9565 = vmul.f32 %v9541, %v2903
    %v9566 = vmul.f32 %v9544, %v2903
    %v9567 = vmul.f32 %v9547, %v2903
    %v9568 = vmul.f32 %v9550, %v2903
    %v9569 = vmul.f32 %v9553, %v2903
    %v9570 = vmul.f32 %v9556, %v2903
    %v9571 = vmul.f32 %v9559, %v2903
    %v9572 = vmul.f32 %v9500, %v9500
    %v9573 = vmul.f32 %v9501, %v9501
    %v9574 = vmul.f32 %v9502, %v9502
    %v9575 = vmul.f32 %v9503, %v9503
    %v9576 = vmul.f32 %v9504, %v9504
    %v9577 = vmul.f32 %v9505, %v9505
    %v9578 = vmul.f32 %v9506, %v9506
    %v9579 = vmul.f32 %v9507, %v9507
    %v9580 = vmul.f32 %v9508, %v9508
    %v9581 = vmul.f32 %v9509, %v9509
    %v9582 = vmul.f32 %v9510, %v9510
    %v9583 = vmul.f32 %v9511, %v9511
    %v9584 = vsub.f32 %v9560, %v9572
    %v9585 = vsub.f32 %v9561, %v9573
    %v9586 = vsub.f32 %v9562, %v9574
    %v9587 = vsub.f32 %v9563, %v9575
    %v9588 = vsub.f32 %v9564, %v9576
    %v9589 = vsub.f32 %v9565, %v9577
    %v9590 = vsub.f32 %v9566, %v9578
    %v9591 = vsub.f32 %v9567, %v9579
    %v9592 = vsub.f32 %v9568, %v9580
    %v9593 = vsub.f32 %v9569, %v9581
    %v9594 = vsub.f32 %v9570, %v9582
    %v9595 = vsub.f32 %v9571, %v9583
    %v9596 = vmax.f32 %v9584, 0.0
    %v9597 = vmax.f32 %v9585, 0.0
    %v9598 = vmax.f32 %v9586, 0.0
    %v9599 = vmax.f32 %v9587, 0.0
    %v9600 = vmax.f32 %v9588, 0.0
    %v9601 = vmax.f32 %v9589, 0.0
    %v9602 = vmax.f32 %v9590, 0.0
    %v9603 = vmax.f32 %v9591, 0.0
    %v9604 = vmax.f32 %v9592, 0.0
    %v9605 = vmax.f32 %v9593, 0.0
    %v9606 = vmax.f32 %v9594, 0.0
    %v9607 = vmax.f32 %v9595, 0.0
    %v9608 = vsub.f32 %v9416, %v9500
    %v9609 = vsub.f32 %v9419, %v9501
    %v9610 = vsub.f32 %v9424, %v9502
    %v9611 = vsub.f32 %v9427, %v9503
    %v9612 = vsub.f32 %v9432, %v9504
    %v9613 = vsub.f32 %v9435, %v9505
    %v9614 = vsub.f32 %v9440, %v9506
    %v9615 = vsub.f32 %v9443, %v9507
    %v9616 = vsub.f32 %v9448, %v9508
    %v9617 = vsub.f32 %v9451, %v9509
    %v9618 = vsub.f32 %v9456, %v9510
    %v9619 = vsub.f32 %v9459, %v9511
    %v9620 = vadd.f32 %v9596, 1e-05
    %v9621 = vadd.f32 %v9597, 1e-05
    %v9622 = vadd.f32 %v9598, 1e-05
    %v9623 = vadd.f32 %v9599, 1e-05
    %v9624 = vadd.f32 %v9600, 1e-05
    %v9625 = vadd.f32 %v9601, 1e-05
    %v9626 = vadd.f32 %v9602, 1e-05
    %v9627 = vadd.f32 %v9603, 1e-05
    %v9628 = vadd.f32 %v9604, 1e-05
    %v9629 = vadd.f32 %v9605, 1e-05
    %v9630 = vadd.f32 %v9606, 1e-05
    %v9631 = vadd.f32 %v9607, 1e-05
    %v9632 = vrsqrt.pop %v9620
    %v9633 = vrsqrt.pop %v9621
    %v9634 = vrsqrt.pop %v9622
    %v9635 = vrsqrt.pop %v9623
    %v9636 = vrsqrt.pop %v9624
    %v9637 = vrsqrt.pop %v9625
    %v9638 = vrsqrt.pop %v9626
    %v9639 = vrsqrt.pop %v9627
    %v9640 = vrsqrt.pop %v9628
    %v9641 = vrsqrt.pop %v9629
    %v9642 = vrsqrt.pop %v9630
    %v9643 = vrsqrt.pop %v9631
    %v9644 = vmul.f32 %v9608, %v9632
    %v9645 = vmul.f32 %v9609, %v9633
    %v9646 = vmul.f32 %v9610, %v9634
    %v9647 = vmul.f32 %v9611, %v9635
    %v9648 = vmul.f32 %v9612, %v9636
    %v9649 = vmul.f32 %v9613, %v9637
    %v9650 = vmul.f32 %v9614, %v9638
    %v9651 = vmul.f32 %v9615, %v9639
    %v9652 = vmul.f32 %v9616, %v9640
    %v9653 = vmul.f32 %v9617, %v9641
    %v9654 = vmul.f32 %v9618, %v9642
    %v9655 = vmul.f32 %v9619, %v9643
    %v9657 = vlaneseq
    %v9658 = vshrl.u32 %v9657, 7
    %v9659 = vsub.s32 0, %v9658
    %v9660 = vrot.slane %v9462, %v9659
    %v9662 = vmul.f32 %v9644, %v9660
    %v9663 = vmul.f32 %v9645, %v9660
    %v9664 = vmul.f32 %v9646, %v9660
    %v9665 = vmul.f32 %v9647, %v9660
    %v9666 = vmul.f32 %v9648, %v9660
    %v9667 = vmul.f32 %v9649, %v9660
    %v9668 = vmul.f32 %v9650, %v9660
    %v9669 = vmul.f32 %v9651, %v9660
    %v9670 = vmul.f32 %v9652, %v9660
    %v9671 = vmul.f32 %v9653, %v9660
    %v9672 = vmul.f32 %v9654, %v9660
    %v9673 = vmul.f32 %v9655, %v9660
    %v9675 = vlaneseq
    %v9676 = vshrl.u32 %v9675, 7
    %v9677 = vsub.s32 0, %v9676
    %v9678 = vrot.slane %v9463, %v9677
    %v9680 = vadd.f32 %v9662, %v9678
    %v9681 = vadd.f32 %v9663, %v9678
    %v9682 = vadd.f32 %v9664, %v9678
    %v9683 = vadd.f32 %v9665, %v9678
    %v9684 = vadd.f32 %v9666, %v9678
    %v9685 = vadd.f32 %v9667, %v9678
    %v9686 = vadd.f32 %v9668, %v9678
    %v9687 = vadd.f32 %v9669, %v9678
    %v9688 = vadd.f32 %v9670, %v9678
    %v9689 = vadd.f32 %v9671, %v9678
    %v9690 = vadd.f32 %v9672, %v9678
    %v9691 = vadd.f32 %v9673, %v9678
    %9704 = vrot.lane.b32.xlu0 %v6184, 64
    %v9705 = vpop.permute.xlu0 %9704
    %9706 = vrot.lane.b32.xlu0 %v6187, 64
    %v9707 = vpop.permute.xlu0 %9706
    %9708 = vrot.lane.b32.xlu0 %v6192, 64
    %v9709 = vpop.permute.xlu0 %9708
    %9710 = vrot.lane.b32.xlu0 %v6195, 64
    %v9711 = vpop.permute.xlu0 %9710
    %9712 = vrot.lane.b32.xlu0 %v6200, 64
    %v9713 = vpop.permute.xlu0 %9712
    %9714 = vrot.lane.b32.xlu0 %v6203, 64
    %v9715 = vpop.permute.xlu0 %9714
    %9716 = vrot.lane.b32.xlu0 %v6208, 64
    %v9717 = vpop.permute.xlu0 %9716
    %9718 = vrot.lane.b32.xlu0 %v6211, 64
    %v9719 = vpop.permute.xlu0 %9718
    %9720 = vrot.lane.b32.xlu0 %v6216, 64
    %v9721 = vpop.permute.xlu0 %9720
    %9722 = vrot.lane.b32.xlu0 %v6219, 64
    %v9723 = vpop.permute.xlu0 %9722
    %9724 = vrot.lane.b32.xlu0 %v6224, 64
    %v9725 = vpop.permute.xlu0 %9724
    %9726 = vrot.lane.b32.xlu0 %v6227, 64
    %v9727 = vpop.permute.xlu0 %9726
    %v9740 = vsel %vm1713, %v9680, %v9705
    %v9741 = vsel %vm1713, %v9681, %v9707
    %v9742 = vsel %vm1713, %v9682, %v9709
    %v9743 = vsel %vm1713, %v9683, %v9711
    %v9744 = vsel %vm1713, %v9684, %v9713
    %v9745 = vsel %vm1713, %v9685, %v9715
    %v9746 = vsel %vm1713, %v9686, %v9717
    %v9747 = vsel %vm1713, %v9687, %v9719
    %v9748 = vsel %vm1713, %v9688, %v9721
    %v9749 = vsel %vm1713, %v9689, %v9723
    %v9750 = vsel %vm1713, %v9690, %v9725
    %v9751 = vsel %vm1713, %v9691, %v9727
    %v9752 = vld [vmem:[%s71] sm:$0xf]
    %v9753 = vld [vmem:[%s71 + $0x4] sm:$0xf]
    %v9754 = vld [vmem:[%s71 + $0x8] sm:$0xf]
    %v9755 = vld [vmem:[%s71 + $0xc] sm:$0xf]
    %v9756 = vld [vmem:[%s71 + $0x10] sm:$0xf]
    %v9757 = vld [vmem:[%s71 + $0x14] sm:$0xf]
    %v9758 = vld [vmem:[%s71 + $0x18] sm:$0xf]
    %v9759 = vld [vmem:[%s71 + $0x1c] sm:$0xf]
    %v9760 = vld [vmem:[%s71 + $0x20] sm:$0xf]
    %v9761 = vld [vmem:[%s71 + $0x24] sm:$0xf]
    %v9762 = vld [vmem:[%s71 + $0x28] sm:$0xf]
    %v9763 = vld [vmem:[%s71 + $0x2c] sm:$0xf]
    %v9764 = vld [vmem:[%s71 + $0x30] sm:$0xf]
    %v9765 = vld [vmem:[%s71 + $0x34] sm:$0xf]
    %v9766 = vld [vmem:[%s71 + $0x38] sm:$0xf]
    %v9767 = vld [vmem:[%s71 + $0x3c] sm:$0xf]
    %v9768 = vpack.c.bf16 %v9741, %v9740
    %v9769 = vpack.c.bf16 %v9743, %v9742
    %v9770 = vpack.c.bf16 %v9745, %v9744
    %v9771 = vpack.c.bf16 %v9747, %v9746
    %v9772 = vpack.c.bf16 %v9749, %v9748
    %v9773 = vpack.c.bf16 %v9751, %v9750
    %v9774 = vld [vmem:[#allocation4] sm:$0x1]
    %v9776 = vlaneseq
    %v9777 = vshrl.u32 %v9776, 7
    %v9778 = vsub.s32 0, %v9777
    %v9779 = vrot.slane %v9774, %v9778
    %v9797 = vunpack.c.l.b16 %v9752
    %v9798 = vunpack.c.l.b16 %v9753
    %v9799 = vunpack.c.l.b16 %v9754
    %v9800 = vunpack.c.l.b16 %v9755
    %v9801 = vunpack.c.l.b16 %v9756
    %v9802 = vunpack.c.l.b16 %v9757
    %v9803 = vunpack.c.l.b16 %v9758
    %v9804 = vunpack.c.l.b16 %v9759
    %v9805 = vunpack.c.l.b16 %v9760
    %v9806 = vunpack.c.l.b16 %v9761
    %v9807 = vunpack.c.l.b16 %v9762
    %v9808 = vunpack.c.l.b16 %v9763
    %v9809 = vunpack.c.l.b16 %v9764
    %v9810 = vunpack.c.l.b16 %v9765
    %v9811 = vunpack.c.l.b16 %v9766
    %v9812 = vunpack.c.l.b16 %v9767
    %v9813 = vpack.c.b16 %v9798, %v9797
    %v9814 = vpack.c.b16 %v9800, %v9799
    %v9815 = vpack.c.b16 %v9802, %v9801
    %v9816 = vpack.c.b16 %v9804, %v9803
    %v9817 = vpack.c.b16 %v9806, %v9805
    %v9818 = vpack.c.b16 %v9808, %v9807
    %v9819 = vpack.c.b16 %v9810, %v9809
    %v9820 = vpack.c.b16 %v9812, %v9811
    %9829 = vmatprep.subr.bf16.mxu0 0
    %9830 = vmatpush1.bf16.msra.mxu0 %v9813
    %9831 = vmatprep.subr.bf16.mxu0 0
    %9832 = vmatpush1.bf16.msra.mxu0 %v9814
    %9833 = vmatprep.subr.bf16.mxu0 0
    %9834 = vmatpush1.bf16.msra.mxu0 %v9815
    %9835 = vmatprep.subr.bf16.mxu0 0
    %9836 = vmatpush1.bf16.msra.mxu0 %v9816
    %9837 = vmatprep.subr.bf16.mxu0 0
    %9838 = vmatpush1.bf16.msra.mxu0 %v9817
    %9839 = vmatprep.subr.bf16.mxu0 0
    %9840 = vmatpush1.bf16.msra.mxu0 %v9818
    %9841 = vmatprep.subr.bf16.mxu0 0
    %9842 = vmatpush1.bf16.msra.mxu0 %v9819
    %9843 = vmatprep.subr.bf16.mxu0 0
    %9844 = vmatpush1.bf16.msra.mxu0 %v9820
    %9845 = vmatprep.subr.bf16.mxu0 0
    %9846 = vmatpush1.bf16.msra.mxu0 0
    %9847 = vmatprep.subr.bf16.mxu0 0
    %9848 = vmatpush1.bf16.msra.mxu0 0
    %9849 = vmatprep.subr.bf16.mxu0 0
    %9850 = vmatpush1.bf16.msra.mxu0 0
    %9851 = vmatprep.subr.bf16.mxu0 0
    %9852 = vmatpush1.bf16.msra.mxu0 0
    %9853 = vmatprep.subr.bf16.mxu0 0
    %9854 = vmatpush1.bf16.msra.mxu0 0
    %9855 = vmatprep.subr.bf16.mxu0 0
    %9856 = vmatpush1.bf16.msra.mxu0 0
    %9857 = vmatprep.subr.bf16.mxu0 0
    %9858 = vmatpush1.bf16.msra.mxu0 0
    %9859 = vmatprep.subr.bf16.mxu0 0
    %9860 = vmatpush1.bf16.msra.mxu0 0
    %9861 = vmatprep.mubr.bf16.mxu0 0
    %9862 = vmatmul.mubr.bf16.gmra.mrb[0].mxu0 %v9768
    %v9863 = vpop.f32.mrb[0].mxu0
    %v9864 = vadd.f32 %v9779, %v9863
    %v9865 = vpop.f32.mrb[0].mxu0
    %v9866 = vpop.f32.mrb[0].mxu0
    %v9867 = vadd.f32 %v9779, %v9866
    %v9868 = vpop.f32.mrb[0].mxu0
    %9869 = vmatprep.mubr.bf16.mxu0 0
    %9870 = vmatmul.mubr.bf16.gmra.mrb[0].mxu0 %v9769
    %v9871 = vpop.f32.mrb[0].mxu0
    %v9872 = vadd.f32 %v9779, %v9871
    %v9873 = vpop.f32.mrb[0].mxu0
    %v9874 = vpop.f32.mrb[0].mxu0
    %v9875 = vadd.f32 %v9779, %v9874
    %v9876 = vpop.f32.mrb[0].mxu0
    %9877 = vmatprep.mubr.bf16.mxu0 0
    %9878 = vmatmul.mubr.bf16.gmra.mrb[0].mxu0 %v9770
    %v9879 = vpop.f32.mrb[0].mxu0
    %v9880 = vadd.f32 %v9779, %v9879
    %v9881 = vpop.f32.mrb[0].mxu0
    %v9882 = vpop.f32.mrb[0].mxu0
    %v9883 = vadd.f32 %v9779, %v9882
    %v9884 = vpop.f32.mrb[0].mxu0
    %9885 = vmatprep.mubr.bf16.mxu0 0
    %9886 = vmatmul.mubr.bf16.gmra.mrb[0].mxu0 %v9771
    %v9887 = vpop.f32.mrb[0].mxu0
    %v9888 = vadd.f32 %v9779, %v9887
    %v9889 = vpop.f32.mrb[0].mxu0
    %v9890 = vpop.f32.mrb[0].mxu0
    %v9891 = vadd.f32 %v9779, %v9890
    %v9892 = vpop.f32.mrb[0].mxu0
    %9893 = vmatprep.mubr.bf16.mxu0 0
    %9894 = vmatmul.mubr.bf16.gmra.mrb[0].mxu0 %v9772
    %v9895 = vpop.f32.mrb[0].mxu0
    %v9896 = vadd.f32 %v9779, %v9895
    %v9897 = vpop.f32.mrb[0].mxu0
    %v9898 = vpop.f32.mrb[0].mxu0
    %v9899 = vadd.f32 %v9779, %v9898
    %v9900 = vpop.f32.mrb[0].mxu0
    %9901 = vmatprep.mubr.bf16.mxu0 0
    %9902 = vmatmul.mubr.bf16.gmra.mrb[0].mxu0 %v9773
    %v9903 = vpop.f32.mrb[0].mxu0
    %v9904 = vadd.f32 %v9779, %v9903
    %v9905 = vpop.f32.mrb[0].mxu0
    %v9906 = vpop.f32.mrb[0].mxu0
    %v9907 = vadd.f32 %v9779, %v9906
    %v9908 = vpop.f32.mrb[0].mxu0
    %9909 = vdwg.mxu0
    %v9910 = vmax.f32 %v9864, 0.0
    %v9911 = vmax.f32 %v9867, 0.0
    %v9912 = vmax.f32 %v9872, 0.0
    %v9913 = vmax.f32 %v9875, 0.0
    %v9914 = vmax.f32 %v9880, 0.0
    %v9915 = vmax.f32 %v9883, 0.0
    %v9916 = vmax.f32 %v9888, 0.0
    %v9917 = vmax.f32 %v9891, 0.0
    %v9918 = vmax.f32 %v9896, 0.0
    %v9919 = vmax.f32 %v9899, 0.0
    %v9920 = vmax.f32 %v9904, 0.0
    %v9921 = vmax.f32 %v9907, 0.0
    %v9922 = vld [vmem:[%s73] sm:$0xf]
    %v9923 = vld [vmem:[%s73 + $0x4] sm:$0xf]
    %v9924 = vld [vmem:[%s73 + $0x8] sm:$0xf]
    %v9925 = vld [vmem:[%s73 + $0xc] sm:$0xf]
    %v9926 = vld [vmem:[%s73 + $0x10] sm:$0xf]
    %v9927 = vld [vmem:[%s73 + $0x14] sm:$0xf]
    %v9928 = vld [vmem:[%s73 + $0x18] sm:$0xf]
    %v9929 = vld [vmem:[%s73 + $0x1c] sm:$0xf]
    %v9930 = vpack.c.bf16 %v9911, %v9910
    %v9931 = vpack.c.bf16 %v9913, %v9912
    %v9932 = vpack.c.bf16 %v9915, %v9914
    %v9933 = vpack.c.bf16 %v9917, %v9916
    %v9934 = vpack.c.bf16 %v9919, %v9918
    %v9935 = vpack.c.bf16 %v9921, %v9920
    %v9936 = vld [vmem:[#allocation6] sm:$0x1]
    %v9938 = vlaneseq
    %v9939 = vshrl.u32 %v9938, 7
    %v9940 = vsub.s32 0, %v9939
    %v9941 = vrot.slane %v9936, %v9940
    %v9951 = vunpack.c.l.b16 %v9922
    %v9952 = vunpack.c.l.b16 %v9923
    %v9953 = vunpack.c.l.b16 %v9924
    %v9954 = vunpack.c.l.b16 %v9925
    %v9955 = vunpack.c.l.b16 %v9926
    %v9956 = vunpack.c.l.b16 %v9927
    %v9957 = vunpack.c.l.b16 %v9928
    %v9958 = vunpack.c.l.b16 %v9929
    %v9959 = vpack.c.b16 %v9952, %v9951
    %v9960 = vpack.c.b16 %v9954, %v9953
    %v9961 = vpack.c.b16 %v9956, %v9955
    %v9962 = vpack.c.b16 %v9958, %v9957
    %v9968 = vsel %vm1713, %v9930, 0
    %v9971 = vsel %vm1713, %v9931, 0
    %v9974 = vsel %vm1713, %v9932, 0
    %v9977 = vsel %vm1713, %v9933, 0
    %v9980 = vsel %vm1713, %v9934, 0
    %v9983 = vsel %vm1713, %v9935, 0
    %9985 = vmatprep.subr.bf16.mxu0 0
    %9986 = vmatpush1.bf16.msra.mxu0 %v9959
    %9987 = vmatprep.subr.bf16.mxu0 0
    %9988 = vmatpush1.bf16.msra.mxu0 %v9960
    %9989 = vmatprep.subr.bf16.mxu0 0
    %9990 = vmatpush1.bf16.msra.mxu0 %v9961
    %9991 = vmatprep.subr.bf16.mxu0 0
    %9992 = vmatpush1.bf16.msra.mxu0 %v9962
    %9993 = vmatprep.subr.bf16.mxu0 0
    %9994 = vmatpush1.bf16.msra.mxu0 0
    %9995 = vmatprep.subr.bf16.mxu0 0
    %9996 = vmatpush1.bf16.msra.mxu0 0
    %9997 = vmatprep.subr.bf16.mxu0 0
    %9998 = vmatpush1.bf16.msra.mxu0 0
    %9999 = vmatprep.subr.bf16.mxu0 0
    %10000 = vmatpush1.bf16.msra.mxu0 0
    %10001 = vmatprep.subr.bf16.mxu0 0
    %10002 = vmatpush1.bf16.msra.mxu0 0
    %10003 = vmatprep.subr.bf16.mxu0 0
    %10004 = vmatpush1.bf16.msra.mxu0 0
    %10005 = vmatprep.subr.bf16.mxu0 0
    %10006 = vmatpush1.bf16.msra.mxu0 0
    %10007 = vmatprep.subr.bf16.mxu0 0
    %10008 = vmatpush1.bf16.msra.mxu0 0
    %10009 = vmatprep.subr.bf16.mxu0 0
    %10010 = vmatpush1.bf16.msra.mxu0 0
    %10011 = vmatprep.subr.bf16.mxu0 0
    %10012 = vmatpush1.bf16.msra.mxu0 0
    %10013 = vmatprep.subr.bf16.mxu0 0
    %10014 = vmatpush1.bf16.msra.mxu0 0
    %10015 = vmatprep.subr.bf16.mxu0 0
    %10016 = vmatpush1.bf16.msra.mxu0 0
    %10017 = vmatprep.mubr.bf16.mxu0 0
    %10018 = vmatmul.mubr.bf16.gmra.mrb[0].mxu0 %v9968
    %v10019 = vpop.f32.mrb[0].mxu0
    %v10020 = vadd.f32 %v9941, %v10019
    %v10021 = vpop.f32.mrb[0].mxu0
    %v10022 = vpop.f32.mrb[0].mxu0
    %v10023 = vadd.f32 %v9941, %v10022
    %v10024 = vpop.f32.mrb[0].mxu0
    %10025 = vmatprep.mubr.bf16.mxu0 0
    %10026 = vmatmul.mubr.bf16.gmra.mrb[0].mxu0 %v9971
    %v10027 = vpop.f32.mrb[0].mxu0
    %v10028 = vadd.f32 %v9941, %v10027
    %v10029 = vpop.f32.mrb[0].mxu0
    %v10030 = vpop.f32.mrb[0].mxu0
    %v10031 = vadd.f32 %v9941, %v10030
    %v10032 = vpop.f32.mrb[0].mxu0
    %10033 = vmatprep.mubr.bf16.mxu0 0
    %10034 = vmatmul.mubr.bf16.gmra.mrb[0].mxu0 %v9974
    %v10035 = vpop.f32.mrb[0].mxu0
    %v10036 = vadd.f32 %v9941, %v10035
    %v10037 = vpop.f32.mrb[0].mxu0
    %v10038 = vpop.f32.mrb[0].mxu0
    %v10039 = vadd.f32 %v9941, %v10038
    %v10040 = vpop.f32.mrb[0].mxu0
    %10041 = vmatprep.mubr.bf16.mxu0 0
    %10042 = vmatmul.mubr.bf16.gmra.mrb[0].mxu0 %v9977
    %v10043 = vpop.f32.mrb[0].mxu0
    %v10044 = vadd.f32 %v9941, %v10043
    %v10045 = vpop.f32.mrb[0].mxu0
    %v10046 = vpop.f32.mrb[0].mxu0
    %v10047 = vadd.f32 %v9941, %v10046
    %v10048 = vpop.f32.mrb[0].mxu0
    %10049 = vmatprep.mubr.bf16.mxu0 0
    %10050 = vmatmul.mubr.bf16.gmra.mrb[0].mxu0 %v9980
    %v10051 = vpop.f32.mrb[0].mxu0
    %v10052 = vadd.f32 %v9941, %v10051
    %v10053 = vpop.f32.mrb[0].mxu0
    %v10054 = vpop.f32.mrb[0].mxu0
    %v10055 = vadd.f32 %v9941, %v10054
    %v10056 = vpop.f32.mrb[0].mxu0
    %10057 = vmatprep.mubr.bf16.mxu0 0
    %10058 = vmatmul.mubr.bf16.gmra.mrb[0].mxu0 %v9983
    %v10059 = vpop.f32.mrb[0].mxu0
    %v10060 = vadd.f32 %v9941, %v10059
    %v10061 = vpop.f32.mrb[0].mxu0
    %v10062 = vpop.f32.mrb[0].mxu0
    %v10063 = vadd.f32 %v9941, %v10062
    %v10064 = vpop.f32.mrb[0].mxu0
    %10065 = vdwg.mxu0
    %10066 = vst.msk [vmem:[%s141] sm:$0xff] %vm1713, %v8045
    %10067 = vst.msk [vmem:[%s141 + $0x8] sm:$0xff] %vm1713, %v8048
    %10068 = vst.msk [vmem:[%s141 + $0x10] sm:$0xff] %vm1713, %v8053
    %10069 = vst.msk [vmem:[%s141 + $0x18] sm:$0xff] %vm1713, %v8056
    %10070 = vst.msk [vmem:[%s141 + $0x20] sm:$0xff] %vm1713, %v8061
    %10071 = vst.msk [vmem:[%s141 + $0x28] sm:$0xff] %vm1713, %v8064
    %10072 = vst.msk [vmem:[%s141 + $0x30] sm:$0xff] %vm1713, %v8069
    %10073 = vst.msk [vmem:[%s141 + $0x38] sm:$0xff] %vm1713, %v8072
    %10074 = vst.msk [vmem:[%s141 + $0x40] sm:$0xff] %vm1713, %v10020
    %10075 = vst.msk [vmem:[%s141 + $0x48] sm:$0xff] %vm1713, %v10023
    %10076 = vst.msk [vmem:[%s141 + $0x50] sm:$0xff] %vm1713, %v10028
    %10077 = vst.msk [vmem:[%s141 + $0x58] sm:$0xff] %vm1713, %v10031
    %10078 = vst.msk [vmem:[%s141 + $0x60] sm:$0xff] %vm1713, %v10036
    %10079 = vst.msk [vmem:[%s141 + $0x68] sm:$0xff] %vm1713, %v10039
    %10080 = vst.msk [vmem:[%s141 + $0x70] sm:$0xff] %vm1713, %v10044
    %10081 = vst.msk [vmem:[%s141 + $0x78] sm:$0xff] %vm1713, %v10047
    %10082 = vst.msk [vmem:[%s141 + $0x80] sm:$0xff] %vm1713, %v10052
    %10083 = vst.msk [vmem:[%s141 + $0x88] sm:$0xff] %vm1713, %v10055
    %10084 = vst.msk [vmem:[%s141 + $0x90] sm:$0xff] %vm1713, %v10060
    %10085 = vst.msk [vmem:[%s141 + $0x98] sm:$0xff] %vm1713, %v10063
    // Predicated region
    $region386: #{tpu_custom_call.1} parent=1 // pred_check
      _
    $region387: #{tpu_custom_call.1} parent=1 // pred_check_branch
      %10087 = sbr.rel (0) target = $region389
    $region388: #{tpu_custom_call.1} parent=1 // pred_region
      _
    $region389: #{tpu_custom_call.1} parent=1 // pred_fallthru
      _
    // Predicated region
    $region390: #{tpu_custom_call.1} parent=1 // pred_check
      _
    $region391: #{tpu_custom_call.1} parent=1 // pred_check_branch
      %10089 = sbr.rel (0) target = $region393
    $region392: #{tpu_custom_call.1} parent=1 // pred_region
      _
    $region393: #{tpu_custom_call.1} parent=1 // pred_fallthru
      _
    %10090 = vsyncpa [#allocation3], 1
    %10091 = vsyncpa [#allocation5], 1
    %10092 = vsyncpa [#allocation8], 1
    %10093 = vsyncpa [#allocation11], 1
    %10094 = vsyncpa [#allocation14], 1
    %10095 = vsyncpa [#allocation17], 1
    %10096 = vsyncpa [#allocation20], 1
    %10097 = vsyncpa [#allocation23], 1
    %10098 = vsyncpa [#allocation26], 1
    %10099 = vsyncpa [#allocation29], 1
    %10100 = vsyncpa [#allocation32], 1
    %10101 = vsyncpa [#allocation35], 1
    %10102 = vsyncpa [#allocation38], 1
    %10103 = vsyncpa [#allocation41], 1

</llo_original>
